<compile_context>
chip_gen: v7x
topology: tpu7x:2x2x1
jax: 0.10.0
libtpu: 0.0.40
codegen_flags: <defaults>
</compile_context>

<pallas_src>
import jax
import jax.numpy as jnp
from jax.experimental import pallas as pl
from jax.experimental.pallas import tpu as pltpu

NEG_SLOPE = 0.01   # nn.LeakyReLU default
BN_EPS = 1e-5      # nn.BatchNorm2d default


def _leaky(x):
    return jnp.where(x >= 0, x, NEG_SLOPE * x)


# ------------------------------ Pallas kernel ------------------------------

def _resblock_kernel(x_ref, w1_ref, s1_ref, w2_ref, s2_ref, o_ref,
                     xpad_ref, hpad_ref):
    """Fused ResBlock for one image of the batch.

    x_ref    : (1, H, W, C)   f32   input activation (also the residual)
    w1_ref   : (9, C, C)      bf16  conv1 weights, BN1 scale folded, tap-major
    s1_ref   : (1, C)         f32   conv1 bias + BN1 shift
    w2_ref   : (9, C, C)      bf16  conv2 weights, BN2 scale folded
    s2_ref   : (1, C)         f32   conv2 bias + BN2 shift
    o_ref    : (1, H, W, C)   f32   output
    xpad_ref : (H+2, W+2, C)  bf16  scratch: zero-padded input (im2col source)
    hpad_ref : (H+2, W+2, C)  bf16  scratch: zero-padded intermediate act.
    """
    H, W, C = o_ref.shape[1], o_ref.shape[2], o_ref.shape[3]
    HW = H * W

    # -------- in-kernel "same" padding (no HBM pad / im2col traffic) -------
    xpad_ref[...] = jnp.zeros(xpad_ref.shape, xpad_ref.dtype)
    xpad_ref[1:H + 1, 1:W + 1, :] = x_ref[0].astype(jnp.bfloat16)

    # -------- conv1 (+ folded BN1) : 9 tap-matmuls, f32 accumulate ---------
    acc = jnp.zeros((HW, C), jnp.float32)
    for t in range(9):
        ky, kx = divmod(t, 3)
        patch = xpad_ref[ky:ky + H, kx:kx + W, :].reshape(HW, C)
        acc = acc + jnp.dot(patch, w1_ref[t],
                            preferred_element_type=jnp.float32)
    h = _leaky(acc + s1_ref[...])                     # f32 epilogue (VPU)

    # -------- pad intermediate activation in VMEM for conv2 ----------------
    hpad_ref[...] = jnp.zeros(hpad_ref.shape, hpad_ref.dtype)
    hpad_ref[1:H + 1, 1:W + 1, :] = h.reshape(H, W, C).astype(jnp.bfloat16)

    # -------- conv2 (+ folded BN2) + residual + LeakyReLU -------------------
    acc2 = jnp.zeros((HW, C), jnp.float32)
    for t in range(9):
        ky, kx = divmod(t, 3)
        patch = hpad_ref[ky:ky + H, kx:kx + W, :].reshape(HW, C)
        acc2 = acc2 + jnp.dot(patch, w2_ref[t],
                              preferred_element_type=jnp.float32)
    identity = x_ref[0].reshape(HW, C)                # exact f32 residual
    out = _leaky(acc2 + s2_ref[...] + identity)
    o_ref[0] = out.reshape(H, W, C)


# ------------------------------- JAX wrapper -------------------------------

def _fold_bn(p):
    """Fold inference-mode BatchNorm into conv weights/bias.

    PyTorch conv weight layout (Cout, Cin, kH, kW) -> HWIO, scaled by
    gamma / sqrt(var + eps).  Returns (w_hwio_bf16, shift_f32 of shape (1,C)).
    """
    scale = p["gamma"] / jnp.sqrt(p["var"] + BN_EPS)             # (Cout,)
    shift = p["beta"] + scale * (p["b"] - p["mean"])             # (Cout,)
    w_hwio = jnp.transpose(p["w"], (2, 3, 1, 0)) * scale         # (kH,kW,Cin,Cout)
    return w_hwio.astype(jnp.bfloat16), shift.reshape(1, -1).astype(jnp.float32)


def resblock_forward(params, x_nchw):
    """ResBlock forward. Input/output NCHW float32 (PyTorch convention)."""
    x = jnp.transpose(x_nchw, (0, 2, 3, 1)).astype(jnp.float32)  # -> NHWC
    B, H, W, C = x.shape
    wq1, s1 = _fold_bn(params["conv1"])
    wq2, s2 = _fold_bn(params["conv2"])
    wq1 = wq1.reshape(9, C, C)   # tap-major (ky*3+kx, Cin, Cout)
    wq2 = wq2.reshape(9, C, C)

    out = pl.pallas_call(
        _resblock_kernel,
        out_shape=jax.ShapeDtypeStruct((B, H, W, C), jnp.float32),
        grid=(B,),
        in_specs=[
            pl.BlockSpec((1, H, W, C), lambda b: (b, 0, 0, 0)),
            pl.BlockSpec((9, C, C), lambda b: (0, 0, 0)),    # VMEM-resident
            pl.BlockSpec((1, C), lambda b: (0, 0)),
            pl.BlockSpec((9, C, C), lambda b: (0, 0, 0)),    # VMEM-resident
            pl.BlockSpec((1, C), lambda b: (0, 0)),
        ],
        out_specs=pl.BlockSpec((1, H, W, C), lambda b: (b, 0, 0, 0)),
        scratch_shapes=[
            pltpu.VMEM((H + 2, W + 2, C), jnp.bfloat16),     # padded input
            pltpu.VMEM((H + 2, W + 2, C), jnp.bfloat16),     # padded intermediate
        ],
        compiler_params=pltpu.CompilerParams(
            dimension_semantics=("parallel",),   # v7x: batch across 2 TCs
            vmem_limit_bytes=32 * 1024 * 1024,   # explicit budget (v5e/v7x safe)
        ),
    )(x, wq1, s1, wq2, s2)
    return jnp.transpose(out, (0, 3, 1, 2))                    # -> NCHW


# ------------------------- pure-JAX reference check -------------------------

def resblock_reference(params, x_nchw):
    """f32 reference with the same bf16 operand rounding as the kernel."""
    x = jnp.transpose(x_nchw, (0, 2, 3, 1)).astype(jnp.float32)
    wq1, s1 = _fold_bn(params["conv1"])
    wq2, s2 = _fold_bn(params["conv2"])
    dn = ("NHWC", "HWIO", "NHWC")

    def conv(a, wq):
        return jax.lax.conv_general_dilated(
            a, wq.astype(jnp.float32), (1, 1), "SAME",
            dimension_numbers=dn, precision=jax.lax.Precision.HIGHEST)

    xb = x.astype(jnp.bfloat16).astype(jnp.float32)
    h = _leaky(conv(xb, wq1) + s1)
    hb = h.astype(jnp.bfloat16).astype(jnp.float32)
    o = _leaky(conv(hb, wq2) + s2 + x)
    return jnp.transpose(o, (0, 3, 1, 2))


# --------------------------- deterministic params ---------------------------

def make_conv_bn_params(key, cin, cout, k=3):
    ks = jax.random.split(key, 6)
    return dict(
        w=jax.random.normal(ks[0], (cout, cin, k, k), jnp.float32) * 0.05,
        b=jax.random.normal(ks[1], (cout,), jnp.float32) * 0.05,
        gamma=1.0 + 0.1 * jax.random.normal(ks[2], (cout,), jnp.float32),
        beta=0.1 * jax.random.normal(ks[3], (cout,), jnp.float32),
        mean=0.1 * jax.random.normal(ks[4], (cout,), jnp.float32),
        var=0.5 + 0.1 * jnp.abs(jax.random.normal(ks[5], (cout,), jnp.float32)),
    )


# ----------------------------------- main -----------------------------------

if __name__ == "__main__":
    # Small shapes consistent with the module defaults (incoming=outgoing=64).
    B, C, H, W = 2, 64, 16, 16

    key = jax.random.PRNGKey(0)
    kx, k1, k2 = jax.random.split(key, 3)
    x = jax.random.normal(kx, (B, C, H, W), jnp.float32)
    params = dict(conv1=make_conv_bn_params(k1, C, C),
                  conv2=make_conv_bn_params(k2, C, C))

    fwd = jax.jit(resblock_forward)
    out = jax.block_until_ready(fwd(params, x))

    assert out.shape == (B, C, H, W)
    assert bool(jnp.all(jnp.isfinite(out)))

    ref = resblock_reference(params, x)
    max_err = float(jnp.max(jnp.abs(out - ref)))
    assert max_err < 5e-2, f"max abs error vs reference: {max_err}"

    print("KERNEL_OK")
</pallas_src>

<mosaic_0001>
module attributes {stable_mosaic.version = 11 : i64} {
  func.func @_resblock_kernel(%arg0: i32, %arg1: memref<1x16x16x64xf32, #tpu.memory_space<vmem>>, %arg2: memref<9x64x64xbf16, #tpu.memory_space<vmem>>, %arg3: memref<1x64xf32, #tpu.memory_space<vmem>>, %arg4: memref<9x64x64xbf16, #tpu.memory_space<vmem>>, %arg5: memref<1x64xf32, #tpu.memory_space<vmem>>, %arg6: memref<1x16x16x64xf32, #tpu.memory_space<vmem>>, %arg7: memref<18x18x64xbf16, #tpu.memory_space<vmem>>, %arg8: memref<18x18x64xbf16, #tpu.memory_space<vmem>>) attributes {dimension_semantics = [#tpu.dimension_semantics<parallel>], iteration_bounds = array<i64: 2>, scalar_prefetch = 0 : i64, scratch_operands = 2 : i64, tpu.core_type = #tpu.core_type<tc>, window_params = [{transform_indices = @transform_0, window_bounds = array<i64: 1, 16, 16, 64>}, {pipeline_mode = #tpu.pipeline_mode<synchronous>, transform_indices = @transform_1, window_bounds = array<i64: 9, 64, 64>}, {pipeline_mode = #tpu.pipeline_mode<synchronous>, transform_indices = @transform_2, window_bounds = array<i64: 1, 64>}, {pipeline_mode = #tpu.pipeline_mode<synchronous>, transform_indices = @transform_3, window_bounds = array<i64: 9, 64, 64>}, {pipeline_mode = #tpu.pipeline_mode<synchronous>, transform_indices = @transform_4, window_bounds = array<i64: 1, 64>}, {transform_indices = @transform_5, window_bounds = array<i64: 1, 16, 16, 64>}]} {
    %cst = arith.constant 0.000000e+00 : bf16
    %0 = vector.broadcast %cst : bf16 to vector<18x18x64xbf16>
    %c0 = arith.constant 0 : index
    %c0_0 = arith.constant 0 : index
    %c0_1 = arith.constant 0 : index
    %1 = vector.load %arg7[%c0, %c0_0, %c0_1] : memref<18x18x64xbf16, #tpu.memory_space<vmem>>, vector<18x18x64xbf16>
    tpu.vector_store %arg7[%c0, %c0_0, %c0_1], %0 {strides = array<i32>} : memref<18x18x64xbf16, #tpu.memory_space<vmem>>, vector<18x18x64xbf16>,
    %c0_2 = arith.constant 0 : index
    %c0_3 = arith.constant 0 : index
    %c0_4 = arith.constant 0 : index
    %c0_5 = arith.constant 0 : index
    %2 = vector.load %arg1[%c0_2, %c0_3, %c0_4, %c0_5] : memref<1x16x16x64xf32, #tpu.memory_space<vmem>>, vector<1x16x16x64xf32>
    %3 = vector.shape_cast %2 : vector<1x16x16x64xf32> to vector<16x16x64xf32>
    %4 = arith.truncf %3 : vector<16x16x64xf32> to vector<16x16x64xbf16>
    %c1 = arith.constant 1 : index
    %c1_6 = arith.constant 1 : index
    %c0_7 = arith.constant 0 : index
    %5 = vector.load %arg7[%c1, %c1_6, %c0_7] : memref<18x18x64xbf16, #tpu.memory_space<vmem>>, vector<16x16x64xbf16>
    tpu.vector_store %arg7[%c1, %c1_6, %c0_7], %4 {strides = array<i32>} : memref<18x18x64xbf16, #tpu.memory_space<vmem>>, vector<16x16x64xbf16>,
    %cst_8 = arith.constant 0.000000e+00 : f32
    %6 = vector.broadcast %cst_8 : f32 to vector<256x64xf32>
    %c0_9 = arith.constant 0 : index
    %c0_10 = arith.constant 0 : index
    %c0_11 = arith.constant 0 : index
    %7 = vector.load %arg7[%c0_9, %c0_10, %c0_11] : memref<18x18x64xbf16, #tpu.memory_space<vmem>>, vector<16x16x64xbf16>
    %8 = vector.shape_cast %7 : vector<16x16x64xbf16> to vector<256x64xbf16>
    %c0_12 = arith.constant 0 : index
    %c0_13 = arith.constant 0 : index
    %c0_14 = arith.constant 0 : index
    %9 = vector.load %arg2[%c0_12, %c0_13, %c0_14] : memref<9x64x64xbf16, #tpu.memory_space<vmem>>, vector<1x64x64xbf16>
    %10 = vector.shape_cast %9 : vector<1x64x64xbf16> to vector<64x64xbf16>
    %cst_15 = arith.constant dense<0.000000e+00> : vector<256x64xf32>
    %11 = tpu.matmul %8, %10, %cst_15 {dimension_numbers = #tpu.dot_dimension_numbers<[1], [0], [0], [1], [0, 0, 1, 1], [], []>} : vector<256x64xbf16>, vector<64x64xbf16>, vector<256x64xf32> -> vector<256x64xf32>
    %12 = arith.addf %6, %11 : vector<256x64xf32>
    %c0_16 = arith.constant 0 : index
    %c1_17 = arith.constant 1 : index
    %c0_18 = arith.constant 0 : index
    %13 = vector.load %arg7[%c0_16, %c1_17, %c0_18] : memref<18x18x64xbf16, #tpu.memory_space<vmem>>, vector<16x16x64xbf16>
    %14 = vector.shape_cast %13 : vector<16x16x64xbf16> to vector<256x64xbf16>
    %c1_19 = arith.constant 1 : index
    %c0_20 = arith.constant 0 : index
    %c0_21 = arith.constant 0 : index
    %15 = vector.load %arg2[%c1_19, %c0_20, %c0_21] : memref<9x64x64xbf16, #tpu.memory_space<vmem>>, vector<1x64x64xbf16>
    %16 = vector.shape_cast %15 : vector<1x64x64xbf16> to vector<64x64xbf16>
    %cst_22 = arith.constant dense<0.000000e+00> : vector<256x64xf32>
    %17 = tpu.matmul %14, %16, %cst_22 {dimension_numbers = #tpu.dot_dimension_numbers<[1], [0], [0], [1], [0, 0, 1, 1], [], []>} : vector<256x64xbf16>, vector<64x64xbf16>, vector<256x64xf32> -> vector<256x64xf32>
    %18 = arith.addf %12, %17 : vector<256x64xf32>
    %c0_23 = arith.constant 0 : index
    %c2 = arith.constant 2 : index
    %c0_24 = arith.constant 0 : index
    %19 = vector.load %arg7[%c0_23, %c2, %c0_24] : memref<18x18x64xbf16, #tpu.memory_space<vmem>>, vector<16x16x64xbf16>
    %20 = vector.shape_cast %19 : vector<16x16x64xbf16> to vector<256x64xbf16>
    %c2_25 = arith.constant 2 : index
    %c0_26 = arith.constant 0 : index
    %c0_27 = arith.constant 0 : index
    %21 = vector.load %arg2[%c2_25, %c0_26, %c0_27] : memref<9x64x64xbf16, #tpu.memory_space<vmem>>, vector<1x64x64xbf16>
    %22 = vector.shape_cast %21 : vector<1x64x64xbf16> to vector<64x64xbf16>
    %cst_28 = arith.constant dense<0.000000e+00> : vector<256x64xf32>
    %23 = tpu.matmul %20, %22, %cst_28 {dimension_numbers = #tpu.dot_dimension_numbers<[1], [0], [0], [1], [0, 0, 1, 1], [], []>} : vector<256x64xbf16>, vector<64x64xbf16>, vector<256x64xf32> -> vector<256x64xf32>
    %24 = arith.addf %18, %23 : vector<256x64xf32>
    %c1_29 = arith.constant 1 : index
    %c0_30 = arith.constant 0 : index
    %c0_31 = arith.constant 0 : index
    %25 = vector.load %arg7[%c1_29, %c0_30, %c0_31] : memref<18x18x64xbf16, #tpu.memory_space<vmem>>, vector<16x16x64xbf16>
    %26 = vector.shape_cast %25 : vector<16x16x64xbf16> to vector<256x64xbf16>
    %c3 = arith.constant 3 : index
    %c0_32 = arith.constant 0 : index
    %c0_33 = arith.constant 0 : index
    %27 = vector.load %arg2[%c3, %c0_32, %c0_33] : memref<9x64x64xbf16, #tpu.memory_space<vmem>>, vector<1x64x64xbf16>
    %28 = vector.shape_cast %27 : vector<1x64x64xbf16> to vector<64x64xbf16>
    %cst_34 = arith.constant dense<0.000000e+00> : vector<256x64xf32>
    %29 = tpu.matmul %26, %28, %cst_34 {dimension_numbers = #tpu.dot_dimension_numbers<[1], [0], [0], [1], [0, 0, 1, 1], [], []>} : vector<256x64xbf16>, vector<64x64xbf16>, vector<256x64xf32> -> vector<256x64xf32>
    %30 = arith.addf %24, %29 : vector<256x64xf32>
    %c1_35 = arith.constant 1 : index
    %c1_36 = arith.constant 1 : index
    %c0_37 = arith.constant 0 : index
    %31 = vector.load %arg7[%c1_35, %c1_36, %c0_37] : memref<18x18x64xbf16, #tpu.memory_space<vmem>>, vector<16x16x64xbf16>
    %32 = vector.shape_cast %31 : vector<16x16x64xbf16> to vector<256x64xbf16>
    %c4 = arith.constant 4 : index
    %c0_38 = arith.constant 0 : index
    %c0_39 = arith.constant 0 : index
    %33 = vector.load %arg2[%c4, %c0_38, %c0_39] : memref<9x64x64xbf16, #tpu.memory_space<vmem>>, vector<1x64x64xbf16>
    %34 = vector.shape_cast %33 : vector<1x64x64xbf16> to vector<64x64xbf16>
    %cst_40 = arith.constant dense<0.000000e+00> : vector<256x64xf32>
    %35 = tpu.matmul %32, %34, %cst_40 {dimension_numbers = #tpu.dot_dimension_numbers<[1], [0], [0], [1], [0, 0, 1, 1], [], []>} : vector<256x64xbf16>, vector<64x64xbf16>, vector<256x64xf32> -> vector<256x64xf32>
    %36 = arith.addf %30, %35 : vector<256x64xf32>
    %c1_41 = arith.constant 1 : index
    %c2_42 = arith.constant 2 : index
    %c0_43 = arith.constant 0 : index
    %37 = vector.load %arg7[%c1_41, %c2_42, %c0_43] : memref<18x18x64xbf16, #tpu.memory_space<vmem>>, vector<16x16x64xbf16>
    %38 = vector.shape_cast %37 : vector<16x16x64xbf16> to vector<256x64xbf16>
    %c5 = arith.constant 5 : index
    %c0_44 = arith.constant 0 : index
    %c0_45 = arith.constant 0 : index
    %39 = vector.load %arg2[%c5, %c0_44, %c0_45] : memref<9x64x64xbf16, #tpu.memory_space<vmem>>, vector<1x64x64xbf16>
    %40 = vector.shape_cast %39 : vector<1x64x64xbf16> to vector<64x64xbf16>
    %cst_46 = arith.constant dense<0.000000e+00> : vector<256x64xf32>
    %41 = tpu.matmul %38, %40, %cst_46 {dimension_numbers = #tpu.dot_dimension_numbers<[1], [0], [0], [1], [0, 0, 1, 1], [], []>} : vector<256x64xbf16>, vector<64x64xbf16>, vector<256x64xf32> -> vector<256x64xf32>
    %42 = arith.addf %36, %41 : vector<256x64xf32>
    %c2_47 = arith.constant 2 : index
    %c0_48 = arith.constant 0 : index
    %c0_49 = arith.constant 0 : index
    %43 = vector.load %arg7[%c2_47, %c0_48, %c0_49] : memref<18x18x64xbf16, #tpu.memory_space<vmem>>, vector<16x16x64xbf16>
    %44 = vector.shape_cast %43 : vector<16x16x64xbf16> to vector<256x64xbf16>
    %c6 = arith.constant 6 : index
    %c0_50 = arith.constant 0 : index
    %c0_51 = arith.constant 0 : index
    %45 = vector.load %arg2[%c6, %c0_50, %c0_51] : memref<9x64x64xbf16, #tpu.memory_space<vmem>>, vector<1x64x64xbf16>
    %46 = vector.shape_cast %45 : vector<1x64x64xbf16> to vector<64x64xbf16>
    %cst_52 = arith.constant dense<0.000000e+00> : vector<256x64xf32>
    %47 = tpu.matmul %44, %46, %cst_52 {dimension_numbers = #tpu.dot_dimension_numbers<[1], [0], [0], [1], [0, 0, 1, 1], [], []>} : vector<256x64xbf16>, vector<64x64xbf16>, vector<256x64xf32> -> vector<256x64xf32>
    %48 = arith.addf %42, %47 : vector<256x64xf32>
    %c2_53 = arith.constant 2 : index
    %c1_54 = arith.constant 1 : index
    %c0_55 = arith.constant 0 : index
    %49 = vector.load %arg7[%c2_53, %c1_54, %c0_55] : memref<18x18x64xbf16, #tpu.memory_space<vmem>>, vector<16x16x64xbf16>
    %50 = vector.shape_cast %49 : vector<16x16x64xbf16> to vector<256x64xbf16>
    %c7 = arith.constant 7 : index
    %c0_56 = arith.constant 0 : index
    %c0_57 = arith.constant 0 : index
    %51 = vector.load %arg2[%c7, %c0_56, %c0_57] : memref<9x64x64xbf16, #tpu.memory_space<vmem>>, vector<1x64x64xbf16>
    %52 = vector.shape_cast %51 : vector<1x64x64xbf16> to vector<64x64xbf16>
    %cst_58 = arith.constant dense<0.000000e+00> : vector<256x64xf32>
    %53 = tpu.matmul %50, %52, %cst_58 {dimension_numbers = #tpu.dot_dimension_numbers<[1], [0], [0], [1], [0, 0, 1, 1], [], []>} : vector<256x64xbf16>, vector<64x64xbf16>, vector<256x64xf32> -> vector<256x64xf32>
    %54 = arith.addf %48, %53 : vector<256x64xf32>
    %c2_59 = arith.constant 2 : index
    %c2_60 = arith.constant 2 : index
    %c0_61 = arith.constant 0 : index
    %55 = vector.load %arg7[%c2_59, %c2_60, %c0_61] : memref<18x18x64xbf16, #tpu.memory_space<vmem>>, vector<16x16x64xbf16>
    %56 = vector.shape_cast %55 : vector<16x16x64xbf16> to vector<256x64xbf16>
    %c8 = arith.constant 8 : index
    %c0_62 = arith.constant 0 : index
    %c0_63 = arith.constant 0 : index
    %57 = vector.load %arg2[%c8, %c0_62, %c0_63] : memref<9x64x64xbf16, #tpu.memory_space<vmem>>, vector<1x64x64xbf16>
    %58 = vector.shape_cast %57 : vector<1x64x64xbf16> to vector<64x64xbf16>
    %cst_64 = arith.constant dense<0.000000e+00> : vector<256x64xf32>
    %59 = tpu.matmul %56, %58, %cst_64 {dimension_numbers = #tpu.dot_dimension_numbers<[1], [0], [0], [1], [0, 0, 1, 1], [], []>} : vector<256x64xbf16>, vector<64x64xbf16>, vector<256x64xf32> -> vector<256x64xf32>
    %60 = arith.addf %54, %59 : vector<256x64xf32>
    %c0_65 = arith.constant 0 : index
    %c0_66 = arith.constant 0 : index
    %61 = vector.load %arg3[%c0_65, %c0_66] : memref<1x64xf32, #tpu.memory_space<vmem>>, vector<1x64xf32>
    %62 = vector.broadcast %61 : vector<1x64xf32> to vector<256x64xf32>
    %63 = arith.addf %60, %62 : vector<256x64xf32>
    %cst_67 = arith.constant 0.000000e+00 : f32
    %64 = vector.broadcast %cst_67 : f32 to vector<256x64xf32>
    %65 = arith.cmpf oge, %63, %64 : vector<256x64xf32>
    %cst_68 = arith.constant 0.00999999977 : f32
    %66 = vector.broadcast %cst_68 : f32 to vector<256x64xf32>
    %67 = arith.mulf %66, %63 : vector<256x64xf32>
    %68 = arith.select %65, %63, %67 : vector<256x64xi1>, vector<256x64xf32>
    %cst_69 = arith.constant 0.000000e+00 : bf16
    %69 = vector.broadcast %cst_69 : bf16 to vector<18x18x64xbf16>
    %c0_70 = arith.constant 0 : index
    %c0_71 = arith.constant 0 : index
    %c0_72 = arith.constant 0 : index
    %70 = vector.load %arg8[%c0_70, %c0_71, %c0_72] : memref<18x18x64xbf16, #tpu.memory_space<vmem>>, vector<18x18x64xbf16>
    tpu.vector_store %arg8[%c0_70, %c0_71, %c0_72], %69 {strides = array<i32>} : memref<18x18x64xbf16, #tpu.memory_space<vmem>>, vector<18x18x64xbf16>,
    %71 = vector.shape_cast %68 : vector<256x64xf32> to vector<16x16x64xf32>
    %72 = arith.truncf %71 : vector<16x16x64xf32> to vector<16x16x64xbf16>
    %c1_73 = arith.constant 1 : index
    %c1_74 = arith.constant 1 : index
    %c0_75 = arith.constant 0 : index
    %73 = vector.load %arg8[%c1_73, %c1_74, %c0_75] : memref<18x18x64xbf16, #tpu.memory_space<vmem>>, vector<16x16x64xbf16>
    tpu.vector_store %arg8[%c1_73, %c1_74, %c0_75], %72 {strides = array<i32>} : memref<18x18x64xbf16, #tpu.memory_space<vmem>>, vector<16x16x64xbf16>,
    %cst_76 = arith.constant 0.000000e+00 : f32
    %74 = vector.broadcast %cst_76 : f32 to vector<256x64xf32>
    %c0_77 = arith.constant 0 : index
    %c0_78 = arith.constant 0 : index
    %c0_79 = arith.constant 0 : index
    %75 = vector.load %arg8[%c0_77, %c0_78, %c0_79] : memref<18x18x64xbf16, #tpu.memory_space<vmem>>, vector<16x16x64xbf16>
    %76 = vector.shape_cast %75 : vector<16x16x64xbf16> to vector<256x64xbf16>
    %c0_80 = arith.constant 0 : index
    %c0_81 = arith.constant 0 : index
    %c0_82 = arith.constant 0 : index
    %77 = vector.load %arg4[%c0_80, %c0_81, %c0_82] : memref<9x64x64xbf16, #tpu.memory_space<vmem>>, vector<1x64x64xbf16>
    %78 = vector.shape_cast %77 : vector<1x64x64xbf16> to vector<64x64xbf16>
    %cst_83 = arith.constant dense<0.000000e+00> : vector<256x64xf32>
    %79 = tpu.matmul %76, %78, %cst_83 {dimension_numbers = #tpu.dot_dimension_numbers<[1], [0], [0], [1], [0, 0, 1, 1], [], []>} : vector<256x64xbf16>, vector<64x64xbf16>, vector<256x64xf32> -> vector<256x64xf32>
    %80 = arith.addf %74, %79 : vector<256x64xf32>
    %c0_84 = arith.constant 0 : index
    %c1_85 = arith.constant 1 : index
    %c0_86 = arith.constant 0 : index
    %81 = vector.load %arg8[%c0_84, %c1_85, %c0_86] : memref<18x18x64xbf16, #tpu.memory_space<vmem>>, vector<16x16x64xbf16>
    %82 = vector.shape_cast %81 : vector<16x16x64xbf16> to vector<256x64xbf16>
    %c1_87 = arith.constant 1 : index
    %c0_88 = arith.constant 0 : index
    %c0_89 = arith.constant 0 : index
    %83 = vector.load %arg4[%c1_87, %c0_88, %c0_89] : memref<9x64x64xbf16, #tpu.memory_space<vmem>>, vector<1x64x64xbf16>
    %84 = vector.shape_cast %83 : vector<1x64x64xbf16> to vector<64x64xbf16>
    %cst_90 = arith.constant dense<0.000000e+00> : vector<256x64xf32>
    %85 = tpu.matmul %82, %84, %cst_90 {dimension_numbers = #tpu.dot_dimension_numbers<[1], [0], [0], [1], [0, 0, 1, 1], [], []>} : vector<256x64xbf16>, vector<64x64xbf16>, vector<256x64xf32> -> vector<256x64xf32>
    %86 = arith.addf %80, %85 : vector<256x64xf32>
    %c0_91 = arith.constant 0 : index
    %c2_92 = arith.constant 2 : index
    %c0_93 = arith.constant 0 : index
    %87 = vector.load %arg8[%c0_91, %c2_92, %c0_93] : memref<18x18x64xbf16, #tpu.memory_space<vmem>>, vector<16x16x64xbf16>
    %88 = vector.shape_cast %87 : vector<16x16x64xbf16> to vector<256x64xbf16>
    %c2_94 = arith.constant 2 : index
    %c0_95 = arith.constant 0 : index
    %c0_96 = arith.constant 0 : index
    %89 = vector.load %arg4[%c2_94, %c0_95, %c0_96] : memref<9x64x64xbf16, #tpu.memory_space<vmem>>, vector<1x64x64xbf16>
    %90 = vector.shape_cast %89 : vector<1x64x64xbf16> to vector<64x64xbf16>
    %cst_97 = arith.constant dense<0.000000e+00> : vector<256x64xf32>
    %91 = tpu.matmul %88, %90, %cst_97 {dimension_numbers = #tpu.dot_dimension_numbers<[1], [0], [0], [1], [0, 0, 1, 1], [], []>} : vector<256x64xbf16>, vector<64x64xbf16>, vector<256x64xf32> -> vector<256x64xf32>
    %92 = arith.addf %86, %91 : vector<256x64xf32>
    %c1_98 = arith.constant 1 : index
    %c0_99 = arith.constant 0 : index
    %c0_100 = arith.constant 0 : index
    %93 = vector.load %arg8[%c1_98, %c0_99, %c0_100] : memref<18x18x64xbf16, #tpu.memory_space<vmem>>, vector<16x16x64xbf16>
    %94 = vector.shape_cast %93 : vector<16x16x64xbf16> to vector<256x64xbf16>
    %c3_101 = arith.constant 3 : index
    %c0_102 = arith.constant 0 : index
    %c0_103 = arith.constant 0 : index
    %95 = vector.load %arg4[%c3_101, %c0_102, %c0_103] : memref<9x64x64xbf16, #tpu.memory_space<vmem>>, vector<1x64x64xbf16>
    %96 = vector.shape_cast %95 : vector<1x64x64xbf16> to vector<64x64xbf16>
    %cst_104 = arith.constant dense<0.000000e+00> : vector<256x64xf32>
    %97 = tpu.matmul %94, %96, %cst_104 {dimension_numbers = #tpu.dot_dimension_numbers<[1], [0], [0], [1], [0, 0, 1, 1], [], []>} : vector<256x64xbf16>, vector<64x64xbf16>, vector<256x64xf32> -> vector<256x64xf32>
    %98 = arith.addf %92, %97 : vector<256x64xf32>
    %c1_105 = arith.constant 1 : index
    %c1_106 = arith.constant 1 : index
    %c0_107 = arith.constant 0 : index
    %99 = vector.load %arg8[%c1_105, %c1_106, %c0_107] : memref<18x18x64xbf16, #tpu.memory_space<vmem>>, vector<16x16x64xbf16>
    %100 = vector.shape_cast %99 : vector<16x16x64xbf16> to vector<256x64xbf16>
    %c4_108 = arith.constant 4 : index
    %c0_109 = arith.constant 0 : index
    %c0_110 = arith.constant 0 : index
    %101 = vector.load %arg4[%c4_108, %c0_109, %c0_110] : memref<9x64x64xbf16, #tpu.memory_space<vmem>>, vector<1x64x64xbf16>
    %102 = vector.shape_cast %101 : vector<1x64x64xbf16> to vector<64x64xbf16>
    %cst_111 = arith.constant dense<0.000000e+00> : vector<256x64xf32>
    %103 = tpu.matmul %100, %102, %cst_111 {dimension_numbers = #tpu.dot_dimension_numbers<[1], [0], [0], [1], [0, 0, 1, 1], [], []>} : vector<256x64xbf16>, vector<64x64xbf16>, vector<256x64xf32> -> vector<256x64xf32>
    %104 = arith.addf %98, %103 : vector<256x64xf32>
    %c1_112 = arith.constant 1 : index
    %c2_113 = arith.constant 2 : index
    %c0_114 = arith.constant 0 : index
    %105 = vector.load %arg8[%c1_112, %c2_113, %c0_114] : memref<18x18x64xbf16, #tpu.memory_space<vmem>>, vector<16x16x64xbf16>
    %106 = vector.shape_cast %105 : vector<16x16x64xbf16> to vector<256x64xbf16>
    %c5_115 = arith.constant 5 : index
    %c0_116 = arith.constant 0 : index
    %c0_117 = arith.constant 0 : index
    %107 = vector.load %arg4[%c5_115, %c0_116, %c0_117] : memref<9x64x64xbf16, #tpu.memory_space<vmem>>, vector<1x64x64xbf16>
    %108 = vector.shape_cast %107 : vector<1x64x64xbf16> to vector<64x64xbf16>
    %cst_118 = arith.constant dense<0.000000e+00> : vector<256x64xf32>
    %109 = tpu.matmul %106, %108, %cst_118 {dimension_numbers = #tpu.dot_dimension_numbers<[1], [0], [0], [1], [0, 0, 1, 1], [], []>} : vector<256x64xbf16>, vector<64x64xbf16>, vector<256x64xf32> -> vector<256x64xf32>
    %110 = arith.addf %104, %109 : vector<256x64xf32>
    %c2_119 = arith.constant 2 : index
    %c0_120 = arith.constant 0 : index
    %c0_121 = arith.constant 0 : index
    %111 = vector.load %arg8[%c2_119, %c0_120, %c0_121] : memref<18x18x64xbf16, #tpu.memory_space<vmem>>, vector<16x16x64xbf16>
    %112 = vector.shape_cast %111 : vector<16x16x64xbf16> to vector<256x64xbf16>
    %c6_122 = arith.constant 6 : index
    %c0_123 = arith.constant 0 : index
    %c0_124 = arith.constant 0 : index
    %113 = vector.load %arg4[%c6_122, %c0_123, %c0_124] : memref<9x64x64xbf16, #tpu.memory_space<vmem>>, vector<1x64x64xbf16>
    %114 = vector.shape_cast %113 : vector<1x64x64xbf16> to vector<64x64xbf16>
    %cst_125 = arith.constant dense<0.000000e+00> : vector<256x64xf32>
    %115 = tpu.matmul %112, %114, %cst_125 {dimension_numbers = #tpu.dot_dimension_numbers<[1], [0], [0], [1], [0, 0, 1, 1], [], []>} : vector<256x64xbf16>, vector<64x64xbf16>, vector<256x64xf32> -> vector<256x64xf32>
    %116 = arith.addf %110, %115 : vector<256x64xf32>
    %c2_126 = arith.constant 2 : index
    %c1_127 = arith.constant 1 : index
    %c0_128 = arith.constant 0 : index
    %117 = vector.load %arg8[%c2_126, %c1_127, %c0_128] : memref<18x18x64xbf16, #tpu.memory_space<vmem>>, vector<16x16x64xbf16>
    %118 = vector.shape_cast %117 : vector<16x16x64xbf16> to vector<256x64xbf16>
    %c7_129 = arith.constant 7 : index
    %c0_130 = arith.constant 0 : index
    %c0_131 = arith.constant 0 : index
    %119 = vector.load %arg4[%c7_129, %c0_130, %c0_131] : memref<9x64x64xbf16, #tpu.memory_space<vmem>>, vector<1x64x64xbf16>
    %120 = vector.shape_cast %119 : vector<1x64x64xbf16> to vector<64x64xbf16>
    %cst_132 = arith.constant dense<0.000000e+00> : vector<256x64xf32>
    %121 = tpu.matmul %118, %120, %cst_132 {dimension_numbers = #tpu.dot_dimension_numbers<[1], [0], [0], [1], [0, 0, 1, 1], [], []>} : vector<256x64xbf16>, vector<64x64xbf16>, vector<256x64xf32> -> vector<256x64xf32>
    %122 = arith.addf %116, %121 : vector<256x64xf32>
    %c2_133 = arith.constant 2 : index
    %c2_134 = arith.constant 2 : index
    %c0_135 = arith.constant 0 : index
    %123 = vector.load %arg8[%c2_133, %c2_134, %c0_135] : memref<18x18x64xbf16, #tpu.memory_space<vmem>>, vector<16x16x64xbf16>
    %124 = vector.shape_cast %123 : vector<16x16x64xbf16> to vector<256x64xbf16>
    %c8_136 = arith.constant 8 : index
    %c0_137 = arith.constant 0 : index
    %c0_138 = arith.constant 0 : index
    %125 = vector.load %arg4[%c8_136, %c0_137, %c0_138] : memref<9x64x64xbf16, #tpu.memory_space<vmem>>, vector<1x64x64xbf16>
    %126 = vector.shape_cast %125 : vector<1x64x64xbf16> to vector<64x64xbf16>
    %cst_139 = arith.constant dense<0.000000e+00> : vector<256x64xf32>
    %127 = tpu.matmul %124, %126, %cst_139 {dimension_numbers = #tpu.dot_dimension_numbers<[1], [0], [0], [1], [0, 0, 1, 1], [], []>} : vector<256x64xbf16>, vector<64x64xbf16>, vector<256x64xf32> -> vector<256x64xf32>
    %128 = arith.addf %122, %127 : vector<256x64xf32>
    %c0_140 = arith.constant 0 : index
    %c0_141 = arith.constant 0 : index
    %c0_142 = arith.constant 0 : index
    %c0_143 = arith.constant 0 : index
    %129 = vector.load %arg1[%c0_140, %c0_141, %c0_142, %c0_143] : memref<1x16x16x64xf32, #tpu.memory_space<vmem>>, vector<1x16x16x64xf32>
    %130 = vector.shape_cast %129 : vector<1x16x16x64xf32> to vector<16x16x64xf32>
    %131 = vector.shape_cast %130 : vector<16x16x64xf32> to vector<256x64xf32>
    %c0_144 = arith.constant 0 : index
    %c0_145 = arith.constant 0 : index
    %132 = vector.load %arg5[%c0_144, %c0_145] : memref<1x64xf32, #tpu.memory_space<vmem>>, vector<1x64xf32>
    %133 = vector.broadcast %132 : vector<1x64xf32> to vector<256x64xf32>
    %134 = arith.addf %128, %133 : vector<256x64xf32>
    %135 = arith.addf %134, %131 : vector<256x64xf32>
    %cst_146 = arith.constant 0.000000e+00 : f32
    %136 = vector.broadcast %cst_146 : f32 to vector<256x64xf32>
    %137 = arith.cmpf oge, %135, %136 : vector<256x64xf32>
    %cst_147 = arith.constant 0.00999999977 : f32
    %138 = vector.broadcast %cst_147 : f32 to vector<256x64xf32>
    %139 = arith.mulf %138, %135 : vector<256x64xf32>
    %140 = arith.select %137, %135, %139 : vector<256x64xi1>, vector<256x64xf32>
    %141 = vector.shape_cast %140 : vector<256x64xf32> to vector<16x16x64xf32>
    %c0_148 = arith.constant 0 : index
    %c0_149 = arith.constant 0 : index
    %c0_150 = arith.constant 0 : index
    %c0_151 = arith.constant 0 : index
    %142 = vector.load %arg6[%c0_148, %c0_149, %c0_150, %c0_151] : memref<1x16x16x64xf32, #tpu.memory_space<vmem>>, vector<1x16x16x64xf32>
    %143 = vector.shape_cast %142 : vector<1x16x16x64xf32> to vector<16x16x64xf32>
    %144 = vector.shape_cast %141 : vector<16x16x64xf32> to vector<1x16x16x64xf32>
    tpu.vector_store %arg6[%c0_148, %c0_149, %c0_150, %c0_151], %144 {strides = array<i32>} : memref<1x16x16x64xf32, #tpu.memory_space<vmem>>, vector<1x16x16x64xf32>,
    return
  }
  func.func @transform_0(%arg0: i32) -> (i32, i32, i32, i32) {
    %c0_i32 = arith.constant 0 : i32
    %c0_i32_0 = arith.constant 0 : i32
    %c0_i32_1 = arith.constant 0 : i32
    %c0_i32_2 = arith.constant 0 : i32
    return %arg0, %c0_i32, %c0_i32_0, %c0_i32_1 : i32, i32, i32, i32
  }
  func.func @transform_1(%arg0: i32) -> (i32, i32, i32) {
    %c0_i32 = arith.constant 0 : i32
    %c0_i32_0 = arith.constant 0 : i32
    %c0_i32_1 = arith.constant 0 : i32
    %c0_i32_2 = arith.constant 0 : i32
    return %c0_i32, %c0_i32_0, %c0_i32_1 : i32, i32, i32
  }
  func.func @transform_2(%arg0: i32) -> (i32, i32) {
    %c0_i32 = arith.constant 0 : i32
    %c0_i32_0 = arith.constant 0 : i32
    %c0_i32_1 = arith.constant 0 : i32
    return %c0_i32, %c0_i32_0 : i32, i32
  }
  func.func @transform_3(%arg0: i32) -> (i32, i32, i32) {
    %c0_i32 = arith.constant 0 : i32
    %c0_i32_0 = arith.constant 0 : i32
    %c0_i32_1 = arith.constant 0 : i32
    %c0_i32_2 = arith.constant 0 : i32
    return %c0_i32, %c0_i32_0, %c0_i32_1 : i32, i32, i32
  }
  func.func @transform_4(%arg0: i32) -> (i32, i32) {
    %c0_i32 = arith.constant 0 : i32
    %c0_i32_0 = arith.constant 0 : i32
    %c0_i32_1 = arith.constant 0 : i32
    return %c0_i32, %c0_i32_0 : i32, i32
  }
  func.func @transform_5(%arg0: i32) -> (i32, i32, i32, i32) {
    %c0_i32 = arith.constant 0 : i32
    %c0_i32_0 = arith.constant 0 : i32
    %c0_i32_1 = arith.constant 0 : i32
    %c0_i32_2 = arith.constant 0 : i32
    return %arg0, %c0_i32, %c0_i32_0, %c0_i32_1 : i32, i32, i32, i32
  }
}

</mosaic_0001>

<llo_original>
// kernel: resblock_forward.1
$region0: #{resblock_forward.1}
  #allocation0 [shape = 'u32[]', space=smem, size = 0x4, offset = 0x4, fixed_abs, tag = 'smem constant byte address 0x4 - core index']
  #allocation1 [shape = 'u32[144,128]{1,0:T(1,128)}', space=vmem, size = 0x12000, scoped, tag = 'internal scratch']
  #allocation2 [shape = 'bf16[18,18,64]{2,1,0:T(8,128)(2,1)}', space=vmem, size = 0x1b000, scoped, tag = 'scratch operand']
  #allocation3 [shape = 'bf16[18,18,64]{2,1,0:T(8,128)(2,1)}', space=vmem, size = 0x1b000, scoped, tag = 'scratch operand']
  %s0 = inlined_call_operand.vmem [shape: f32[2,16,16,64], index: 0, kind: input, shape index: {}]
  %s1 = inlined_call_operand.vmem [shape: bf16[9,64,64], index: 1, kind: input, shape index: {}]
  %s2 = inlined_call_operand.vmem [shape: f32[1,64], index: 2, kind: input, shape index: {}]
  %s3 = inlined_call_operand.vmem [shape: bf16[9,64,64], index: 3, kind: input, shape index: {}]
  %s4 = inlined_call_operand.vmem [shape: f32[1,64], index: 4, kind: input, shape index: {}]
  %s5 = inlined_call_operand.hbm [shape: f32[2,16,16,64], index: 5, kind: output, shape index: {}]
  %s6 = sld [smem:[#allocation0]]
  $region53: #{resblock_forward.1} parent=0
    _
  %s8 = ssub.s32 1, %s6
  %s9 = scalar_select 0, %s8, %s6
  $region1: #{resblock_forward.1} parent=0
    #allocation4 [shape = 'u8[262144]{0}', space=vmem, size = 0x40000, scoped, tag = 'output window, operand 0']
    #allocation5 [shape = 's32[2]{0}', space=sflag, size = 0x8, scoped, tag = 'scoped memory for resblock_forward.1']
    %10 = vsyncpa [#allocation5], 0
    %s11 = scalar_lea.sflag [#allocation5], 1
    %12 = vsyncpa %s11, 0
    loop: start=0, step=1, limit=4
    $region2: #{resblock_forward.1} parent=1 // loop_pre_header
      _
    $region3: #{resblock_forward.1} parent=1 // loop_header
      %s14 = sphi 0, %s18
      %p15 = scmp.ge.s32.totalorder %s14, 4
      %s24 = sphi 0, %s26
      %s27 = sphi 0, %s24
      %s28 = sphi 0, %s27
      %s44 = sphi 0, %s28
      %s48 = sphi 0, %s48
      %s50 = sphi 0, %s48
      %s51 = sphi 0, %s50
      %s65 = sphi 0, %s51
      %s69 = sphi 0, %s69
      %s71 = sphi 0, %s69
      %s72 = sphi 0, %s71
      %s86 = sphi 0, %s72
      %s90 = sphi 0, %s90
      %s92 = sphi 0, %s90
      %s93 = sphi 0, %s92
      %s107 = sphi 0, %s93
      %s111 = sphi 0, %s111
      %s113 = sphi 0, %s111
      %s114 = sphi 0, %s113
      %s128 = sphi 0, %s114
      %s134 = sphi 0, %s136
      %s137 = sphi 0, %s134
      %s138 = sphi 0, %s137
      %s154 = sphi 0, %s138
    $region4: #{resblock_forward.1} parent=1 // loop_header_branch
      %17 = sbr.rel (%p15) target = $region8
    $region5: #{resblock_forward.1} parent=1 // loop_body
      %s19 = ssub.s32 %s14, 1
      %s20 = ssub.s32 %s14, 2
      %s21 = sadd.s32 %s14, 1
      %s22 = ssub.s32 %s14, %s21
      %p23 = scmp.eq.s32.totalorder %s22, 0
      %s25 = sadd.s32 %s24, 1
      %s26 = scalar_select %p23, %s24, %s25
      %p29 = pneg %p23
      %p30 = scmp.eq.s32.totalorder %s14, 1
      %p31 = por %p29, %p30
      %p32 = scmp.ne.s32.totalorder %s24, %s27
      %p33 = scmp.eq.s32.totalorder %s14, 0
      %p34 = por %p32, %p33
      %p35 = scmp.ne.s32.totalorder %s24, %s27
      %p36 = scmp.eq.s32.totalorder %s19, 1
      %p37 = por %p35, %p36
      %p38 = scmp.ne.s32.totalorder %s27, %s28
      %p39 = scmp.eq.s32.totalorder %s19, 0
      %p40 = por %p38, %p39
      %p41 = scmp.ne.s32.totalorder %s27, %s28
      %p42 = scmp.eq.s32.totalorder %s20, 1
      %p43 = por %p41, %p42
      %p45 = scmp.ne.s32.totalorder %s28, %s44
      %p46 = scmp.eq.s32.totalorder %s20, 0
      %p47 = por %p45, %p46
      %s49 = sadd.s32 %s48, 1
      %p52 = scmp.eq.s32.totalorder %s14, 1
      %p53 = scmp.ne.s32.totalorder %s48, %s50
      %p54 = scmp.eq.s32.totalorder %s14, 0
      %p55 = por %p53, %p54
      %p56 = scmp.ne.s32.totalorder %s48, %s50
      %p57 = scmp.eq.s32.totalorder %s19, 1
      %p58 = por %p56, %p57
      %p59 = scmp.ne.s32.totalorder %s50, %s51
      %p60 = scmp.eq.s32.totalorder %s19, 0
      %p61 = por %p59, %p60
      %p62 = scmp.ne.s32.totalorder %s50, %s51
      %p63 = scmp.eq.s32.totalorder %s20, 1
      %p64 = por %p62, %p63
      %p66 = scmp.ne.s32.totalorder %s51, %s65
      %p67 = scmp.eq.s32.totalorder %s20, 0
      %p68 = por %p66, %p67
      %s70 = sadd.s32 %s69, 1
      %p73 = scmp.eq.s32.totalorder %s14, 1
      %p74 = scmp.ne.s32.totalorder %s69, %s71
      %p75 = scmp.eq.s32.totalorder %s14, 0
      %p76 = por %p74, %p75
      %p77 = scmp.ne.s32.totalorder %s69, %s71
      %p78 = scmp.eq.s32.totalorder %s19, 1
      %p79 = por %p77, %p78
      %p80 = scmp.ne.s32.totalorder %s71, %s72
      %p81 = scmp.eq.s32.totalorder %s19, 0
      %p82 = por %p80, %p81
      %p83 = scmp.ne.s32.totalorder %s71, %s72
      %p84 = scmp.eq.s32.totalorder %s20, 1
      %p85 = por %p83, %p84
      %p87 = scmp.ne.s32.totalorder %s72, %s86
      %p88 = scmp.eq.s32.totalorder %s20, 0
      %p89 = por %p87, %p88
      %s91 = sadd.s32 %s90, 1
      %p94 = scmp.eq.s32.totalorder %s14, 1
      %p95 = scmp.ne.s32.totalorder %s90, %s92
      %p96 = scmp.eq.s32.totalorder %s14, 0
      %p97 = por %p95, %p96
      %p98 = scmp.ne.s32.totalorder %s90, %s92
      %p99 = scmp.eq.s32.totalorder %s19, 1
      %p100 = por %p98, %p99
      %p101 = scmp.ne.s32.totalorder %s92, %s93
      %p102 = scmp.eq.s32.totalorder %s19, 0
      %p103 = por %p101, %p102
      %p104 = scmp.ne.s32.totalorder %s92, %s93
      %p105 = scmp.eq.s32.totalorder %s20, 1
      %p106 = por %p104, %p105
      %p108 = scmp.ne.s32.totalorder %s93, %s107
      %p109 = scmp.eq.s32.totalorder %s20, 0
      %p110 = por %p108, %p109
      %s112 = sadd.s32 %s111, 1
      %p115 = scmp.eq.s32.totalorder %s14, 1
      %p116 = scmp.ne.s32.totalorder %s111, %s113
      %p117 = scmp.eq.s32.totalorder %s14, 0
      %p118 = por %p116, %p117
      %p119 = scmp.ne.s32.totalorder %s111, %s113
      %p120 = scmp.eq.s32.totalorder %s19, 1
      %p121 = por %p119, %p120
      %p122 = scmp.ne.s32.totalorder %s113, %s114
      %p123 = scmp.eq.s32.totalorder %s19, 0
      %p124 = por %p122, %p123
      %p125 = scmp.ne.s32.totalorder %s113, %s114
      %p126 = scmp.eq.s32.totalorder %s20, 1
      %p127 = por %p125, %p126
      %p129 = scmp.ne.s32.totalorder %s114, %s128
      %p130 = scmp.eq.s32.totalorder %s20, 0
      %p131 = por %p129, %p130
      %s132 = ssub.s32 %s14, %s21
      %p133 = scmp.eq.s32.totalorder %s132, 0
      %s135 = sadd.s32 %s134, 1
      %s136 = scalar_select %p133, %s134, %s135
      %p139 = pneg %p133
      %p140 = scmp.eq.s32.totalorder %s14, 1
      %p141 = por %p139, %p140
      %p142 = scmp.ne.s32.totalorder %s134, %s137
      %p143 = scmp.eq.s32.totalorder %s14, 0
      %p144 = por %p142, %p143
      %p145 = scmp.ne.s32.totalorder %s134, %s137
      %p146 = scmp.eq.s32.totalorder %s19, 1
      %p147 = por %p145, %p146
      %p148 = scmp.ne.s32.totalorder %s137, %s138
      %p149 = scmp.eq.s32.totalorder %s19, 0
      %p150 = por %p148, %p149
      %p151 = scmp.ne.s32.totalorder %s137, %s138
      %p152 = scmp.eq.s32.totalorder %s20, 1
      %p153 = por %p151, %p152
      %p155 = scmp.ne.s32.totalorder %s138, %s154
      %p156 = scmp.eq.s32.totalorder %s20, 0
      %p157 = por %p155, %p156
      %p158 = scmp.le.s32.totalorder 1, %s14
      %p159 = scmp.lt.s32.totalorder %s14, 3
      %p160 = pnand %p158, %p159
      %p161 = pneg %p160
      // Predicated region
      $region9: #{resblock_forward.1} parent=5 // pred_check
        _
      $region10: #{resblock_forward.1} parent=5 // pred_check_branch
        %163 = sbr.rel (%p160) target = $region12
      $region11: #{resblock_forward.1} parent=5 // pred_region
        %s164 = ssub.s32 %s14, 1
        // Predicated region
        $region13: #{resblock_forward.1} parent=11 // pred_check
          %p165 = pneg %p61
        $region14: #{resblock_forward.1} parent=11 // pred_check_branch
          %167 = sbr.rel (%p165) target = $region16
        $region15: #{resblock_forward.1} parent=11 // pred_region
          _
        $region16: #{resblock_forward.1} parent=11 // pred_fallthru
          _
        // Predicated region
        $region17: #{resblock_forward.1} parent=11 // pred_check
          %p168 = pneg %p82
        $region18: #{resblock_forward.1} parent=11 // pred_check_branch
          %170 = sbr.rel (%p168) target = $region20
        $region19: #{resblock_forward.1} parent=11 // pred_region
          _
        $region20: #{resblock_forward.1} parent=11 // pred_fallthru
          _
        // Predicated region
        $region21: #{resblock_forward.1} parent=11 // pred_check
          %p171 = pneg %p103
        $region22: #{resblock_forward.1} parent=11 // pred_check_branch
          %173 = sbr.rel (%p171) target = $region24
        $region23: #{resblock_forward.1} parent=11 // pred_region
          _
        $region24: #{resblock_forward.1} parent=11 // pred_fallthru
          _
        // Predicated region
        $region25: #{resblock_forward.1} parent=11 // pred_check
          %p174 = pneg %p124
        $region26: #{resblock_forward.1} parent=11 // pred_check_branch
          %176 = sbr.rel (%p174) target = $region28
        $region27: #{resblock_forward.1} parent=11 // pred_region
          _
        $region28: #{resblock_forward.1} parent=11 // pred_fallthru
          _
      $region12: #{resblock_forward.1} parent=5 // pred_fallthru
        _
      %p177 = scmp.lt.s32.totalorder %s14, 2
      // Predicated region
      $region29: #{resblock_forward.1} parent=5 // pred_check
        %p178 = pneg %p177
      $region30: #{resblock_forward.1} parent=5 // pred_check_branch
        %180 = sbr.rel (%p178) target = $region32
      $region31: #{resblock_forward.1} parent=5 // pred_region
        // Predicated region
        $region33: #{resblock_forward.1} parent=31 // pred_check
          %p181 = pneg %p34
        $region34: #{resblock_forward.1} parent=31 // pred_check_branch
          %183 = sbr.rel (%p181) target = $region36
        $region35: #{resblock_forward.1} parent=31 // pred_region
          %p184 = scmp.lt.s32.totalorder %s14, 1
          %s185 = scalar_select %p184, %s14, 1
          %s186 = smul.addr %s185, 32
          %s187 = smul.addr %s186, 8
          %s188 = scalar_lea.vmem %s0, %s187
        $region36: #{resblock_forward.1} parent=31 // pred_fallthru
          _
      $region32: #{resblock_forward.1} parent=5 // pred_fallthru
        _
      %p189 = scmp.le.s32.totalorder 1, %s14
      %p190 = scmp.lt.s32.totalorder %s14, 3
      %p191 = pnand %p189, %p190
      %p192 = pneg %p191
      // Predicated region
      $region37: #{resblock_forward.1} parent=5 // pred_check
        _
      $region38: #{resblock_forward.1} parent=5 // pred_check_branch
        %194 = sbr.rel (%p191) target = $region40
      $region39: #{resblock_forward.1} parent=5 // pred_region
        %s195 = ssub.s32 %s14, 1
        %p196 = scmp.lt.s32.totalorder %s19, 1
        %s197 = scalar_select %p196, %s19, 1
        %s198 = smul.addr %s197, 32
        %s199 = smul.addr %s198, 8
        %s200 = scalar_lea.vmem %s0, %s199
        %p201 = pneg %p40
        %p202 = pneg %p37
        %p203 = pneg %p61
        %p204 = pneg %p58
        %p205 = pneg %p82
        %p206 = pneg %p79
        %p207 = pneg %p103
        %p208 = pneg %p100
        %p209 = pneg %p124
        %p210 = pneg %p121
        %p211 = pneg %p150
        %p212 = pneg %p147
        %s213 = sand.u32 %s137, 1
        %s214 = scalar_lea.sflag [#allocation5], %s213
        %s215 = sand.u32 %s137, 1
        %s216 = smul.addr %s215, 256
        %s217 = scalar_lea.vmem [#allocation4], %s216
        %p218 = scmp.lt.s32.totalorder %s19, 1
        %s219 = scalar_select %p218, %s19, 1
        %s220 = smul.addr %s219, 32
        %s221 = smul.addr %s220, 8
        %s222 = scalar_lea.vmem %s0, %s221
        %vm224 = vcmask 519168
        %225 = vst.msk [vmem:[#allocation2] sm:$0xf] %vm224, 0
        %226 = vst.msk [vmem:[#allocation2 + $0x4] sm:$0xf] %vm224, 0
        %vm227 = vcmask 516096
        %228 = vst.msk [vmem:[#allocation2 + $0x8] sm:$0x1] %vm227, 0
        %229 = vst.msk [vmem:[#allocation2 + $0xc] sm:$0xf] %vm224, 0
        %230 = vst.msk [vmem:[#allocation2 + $0x10] sm:$0xf] %vm224, 0
        %231 = vst.msk [vmem:[#allocation2 + $0x14] sm:$0x1] %vm227, 0
        %232 = vst.msk [vmem:[#allocation2 + $0x18] sm:$0xf] %vm224, 0
        %233 = vst.msk [vmem:[#allocation2 + $0x1c] sm:$0xf] %vm224, 0
        %234 = vst.msk [vmem:[#allocation2 + $0x20] sm:$0x1] %vm227, 0
        %235 = vst.msk [vmem:[#allocation2 + $0x24] sm:$0xf] %vm224, 0
        %236 = vst.msk [vmem:[#allocation2 + $0x28] sm:$0xf] %vm224, 0
        %237 = vst.msk [vmem:[#allocation2 + $0x2c] sm:$0x1] %vm227, 0
        %238 = vst.msk [vmem:[#allocation2 + $0x30] sm:$0xf] %vm224, 0
        %239 = vst.msk [vmem:[#allocation2 + $0x34] sm:$0xf] %vm224, 0
        %240 = vst.msk [vmem:[#allocation2 + $0x38] sm:$0x1] %vm227, 0
        %241 = vst.msk [vmem:[#allocation2 + $0x3c] sm:$0xf] %vm224, 0
        %242 = vst.msk [vmem:[#allocation2 + $0x40] sm:$0xf] %vm224, 0
        %243 = vst.msk [vmem:[#allocation2 + $0x44] sm:$0x1] %vm227, 0
        %244 = vst.msk [vmem:[#allocation2 + $0x48] sm:$0xf] %vm224, 0
        %245 = vst.msk [vmem:[#allocation2 + $0x4c] sm:$0xf] %vm224, 0
        %246 = vst.msk [vmem:[#allocation2 + $0x50] sm:$0x1] %vm227, 0
        %247 = vst.msk [vmem:[#allocation2 + $0x54] sm:$0xf] %vm224, 0
        %248 = vst.msk [vmem:[#allocation2 + $0x58] sm:$0xf] %vm224, 0
        %249 = vst.msk [vmem:[#allocation2 + $0x5c] sm:$0x1] %vm227, 0
        %250 = vst.msk [vmem:[#allocation2 + $0x60] sm:$0xf] %vm224, 0
        %251 = vst.msk [vmem:[#allocation2 + $0x64] sm:$0xf] %vm224, 0
        %252 = vst.msk [vmem:[#allocation2 + $0x68] sm:$0x1] %vm227, 0
        %253 = vst.msk [vmem:[#allocation2 + $0x6c] sm:$0xf] %vm224, 0
        %254 = vst.msk [vmem:[#allocation2 + $0x70] sm:$0xf] %vm224, 0
        %255 = vst.msk [vmem:[#allocation2 + $0x74] sm:$0x1] %vm227, 0
        %256 = vst.msk [vmem:[#allocation2 + $0x78] sm:$0xf] %vm224, 0
        %257 = vst.msk [vmem:[#allocation2 + $0x7c] sm:$0xf] %vm224, 0
        %258 = vst.msk [vmem:[#allocation2 + $0x80] sm:$0x1] %vm227, 0
        %259 = vst.msk [vmem:[#allocation2 + $0x84] sm:$0xf] %vm224, 0
        %260 = vst.msk [vmem:[#allocation2 + $0x88] sm:$0xf] %vm224, 0
        %261 = vst.msk [vmem:[#allocation2 + $0x8c] sm:$0x1] %vm227, 0
        %262 = vst.msk [vmem:[#allocation2 + $0x90] sm:$0xf] %vm224, 0
        %263 = vst.msk [vmem:[#allocation2 + $0x94] sm:$0xf] %vm224, 0
        %264 = vst.msk [vmem:[#allocation2 + $0x98] sm:$0x1] %vm227, 0
        %265 = vst.msk [vmem:[#allocation2 + $0x9c] sm:$0xf] %vm224, 0
        %266 = vst.msk [vmem:[#allocation2 + $0xa0] sm:$0xf] %vm224, 0
        %267 = vst.msk [vmem:[#allocation2 + $0xa4] sm:$0x1] %vm227, 0
        %268 = vst.msk [vmem:[#allocation2 + $0xa8] sm:$0xf] %vm224, 0
        %269 = vst.msk [vmem:[#allocation2 + $0xac] sm:$0xf] %vm224, 0
        %270 = vst.msk [vmem:[#allocation2 + $0xb0] sm:$0x1] %vm227, 0
        %271 = vst.msk [vmem:[#allocation2 + $0xb4] sm:$0xf] %vm224, 0
        %272 = vst.msk [vmem:[#allocation2 + $0xb8] sm:$0xf] %vm224, 0
        %273 = vst.msk [vmem:[#allocation2 + $0xbc] sm:$0x1] %vm227, 0
        %274 = vst.msk [vmem:[#allocation2 + $0xc0] sm:$0xf] %vm224, 0
        %275 = vst.msk [vmem:[#allocation2 + $0xc4] sm:$0xf] %vm224, 0
        %276 = vst.msk [vmem:[#allocation2 + $0xc8] sm:$0x1] %vm227, 0
        %277 = vst.msk [vmem:[#allocation2 + $0xcc] sm:$0xf] %vm224, 0
        %278 = vst.msk [vmem:[#allocation2 + $0xd0] sm:$0xf] %vm224, 0
        %279 = vst.msk [vmem:[#allocation2 + $0xd4] sm:$0x1] %vm227, 0
        %v280 = vld [vmem:[%s222] sm:$0xff]
        %v281 = vld [vmem:[%s222 + $0x8] sm:$0xff]
        %v282 = vld [vmem:[%s222 + $0x10] sm:$0xff]
        %v283 = vld [vmem:[%s222 + $0x18] sm:$0xff]
        %v284 = vld [vmem:[%s222 + $0x20] sm:$0xff]
        %v285 = vld [vmem:[%s222 + $0x28] sm:$0xff]
        %v286 = vld [vmem:[%s222 + $0x30] sm:$0xff]
        %v287 = vld [vmem:[%s222 + $0x38] sm:$0xff]
        %v288 = vld [vmem:[%s222 + $0x40] sm:$0xff]
        %v289 = vld [vmem:[%s222 + $0x48] sm:$0xff]
        %v290 = vld [vmem:[%s222 + $0x50] sm:$0xff]
        %v291 = vld [vmem:[%s222 + $0x58] sm:$0xff]
        %v292 = vld [vmem:[%s222 + $0x60] sm:$0xff]
        %v293 = vld [vmem:[%s222 + $0x68] sm:$0xff]
        %v294 = vld [vmem:[%s222 + $0x70] sm:$0xff]
        %v295 = vld [vmem:[%s222 + $0x78] sm:$0xff]
        %v296 = vld [vmem:[%s222 + $0x80] sm:$0xff]
        %v297 = vld [vmem:[%s222 + $0x88] sm:$0xff]
        %v298 = vld [vmem:[%s222 + $0x90] sm:$0xff]
        %v299 = vld [vmem:[%s222 + $0x98] sm:$0xff]
        %v300 = vld [vmem:[%s222 + $0xa0] sm:$0xff]
        %v301 = vld [vmem:[%s222 + $0xa8] sm:$0xff]
        %v302 = vld [vmem:[%s222 + $0xb0] sm:$0xff]
        %v303 = vld [vmem:[%s222 + $0xb8] sm:$0xff]
        %v304 = vld [vmem:[%s222 + $0xc0] sm:$0xff]
        %v305 = vld [vmem:[%s222 + $0xc8] sm:$0xff]
        %v306 = vld [vmem:[%s222 + $0xd0] sm:$0xff]
        %v307 = vld [vmem:[%s222 + $0xd8] sm:$0xff]
        %v308 = vld [vmem:[%s222 + $0xe0] sm:$0xff]
        %v309 = vld [vmem:[%s222 + $0xe8] sm:$0xff]
        %v310 = vld [vmem:[%s222 + $0xf0] sm:$0xff]
        %v311 = vld [vmem:[%s222 + $0xf8] sm:$0xff]
        %v312 = vpack.c.bf16 %v281, %v280
        %v313 = vpack.c.bf16 %v283, %v282
        %v314 = vpack.c.bf16 %v285, %v284
        %v315 = vpack.c.bf16 %v287, %v286
        %v316 = vpack.c.bf16 %v289, %v288
        %v317 = vpack.c.bf16 %v291, %v290
        %v318 = vpack.c.bf16 %v293, %v292
        %v319 = vpack.c.bf16 %v295, %v294
        %v320 = vpack.c.bf16 %v297, %v296
        %v321 = vpack.c.bf16 %v299, %v298
        %v322 = vpack.c.bf16 %v301, %v300
        %v323 = vpack.c.bf16 %v303, %v302
        %v324 = vpack.c.bf16 %v305, %v304
        %v325 = vpack.c.bf16 %v307, %v306
        %v326 = vpack.c.bf16 %v309, %v308
        %v327 = vpack.c.bf16 %v311, %v310
        %v344 = vunpack.c.l.b16 %v312
        %v345 = vunpack.c.h.b16 %v312
        %v346 = vunpack.c.l.b16 %v313
        %v347 = vunpack.c.h.b16 %v313
        %v348 = vunpack.c.l.b16 %v314
        %v349 = vunpack.c.h.b16 %v314
        %v350 = vunpack.c.l.b16 %v315
        %v351 = vunpack.c.h.b16 %v315
        %v352 = vunpack.c.l.b16 %v316
        %v353 = vunpack.c.h.b16 %v316
        %v354 = vunpack.c.l.b16 %v317
        %v355 = vunpack.c.h.b16 %v317
        %v356 = vunpack.c.l.b16 %v318
        %v357 = vunpack.c.h.b16 %v318
        %v358 = vunpack.c.l.b16 %v319
        %v359 = vunpack.c.h.b16 %v319
        %v360 = vunpack.c.l.b16 %v320
        %v361 = vunpack.c.h.b16 %v320
        %v362 = vunpack.c.l.b16 %v321
        %v363 = vunpack.c.h.b16 %v321
        %v364 = vunpack.c.l.b16 %v322
        %v365 = vunpack.c.h.b16 %v322
        %v366 = vunpack.c.l.b16 %v323
        %v367 = vunpack.c.h.b16 %v323
        %v368 = vunpack.c.l.b16 %v324
        %v369 = vunpack.c.h.b16 %v324
        %v370 = vunpack.c.l.b16 %v325
        %v371 = vunpack.c.h.b16 %v325
        %v372 = vunpack.c.l.b16 %v326
        %v373 = vunpack.c.h.b16 %v326
        %v374 = vunpack.c.l.b16 %v327
        %v375 = vunpack.c.h.b16 %v327
        %v376 = vpack.c.b16 %v344, %v344
        %v377 = vpack.c.b16 %v345, %v345
        %v378 = vpack.c.b16 %v346, %v346
        %v379 = vpack.c.b16 %v347, %v347
        %v380 = vpack.c.b16 %v348, %v348
        %v381 = vpack.c.b16 %v349, %v349
        %v382 = vpack.c.b16 %v350, %v350
        %v383 = vpack.c.b16 %v351, %v351
        %v384 = vpack.c.b16 %v352, %v352
        %v385 = vpack.c.b16 %v353, %v353
        %v386 = vpack.c.b16 %v354, %v354
        %v387 = vpack.c.b16 %v355, %v355
        %v388 = vpack.c.b16 %v356, %v356
        %v389 = vpack.c.b16 %v357, %v357
        %v390 = vpack.c.b16 %v358, %v358
        %v391 = vpack.c.b16 %v359, %v359
        %v392 = vpack.c.b16 %v360, %v360
        %v393 = vpack.c.b16 %v361, %v361
        %v394 = vpack.c.b16 %v362, %v362
        %v395 = vpack.c.b16 %v363, %v363
        %v396 = vpack.c.b16 %v364, %v364
        %v397 = vpack.c.b16 %v365, %v365
        %v398 = vpack.c.b16 %v366, %v366
        %v399 = vpack.c.b16 %v367, %v367
        %v400 = vpack.c.b16 %v368, %v368
        %v401 = vpack.c.b16 %v369, %v369
        %v402 = vpack.c.b16 %v370, %v370
        %v403 = vpack.c.b16 %v371, %v371
        %v404 = vpack.c.b16 %v372, %v372
        %v405 = vpack.c.b16 %v373, %v373
        %v406 = vpack.c.b16 %v374, %v374
        %v407 = vpack.c.b16 %v375, %v375
        %vm408 = vsmask.f32 256
        %vm409 = vsmask.f32 4368
        %vm410 = vmor %vm408, %vm409
        %v412 = vshrl.u32 %v376, 16
        %v414 = vrot.slane %v412, 7
        %v415 = vshll.u32 %v376, 16
        %v417 = vor.u32 %v414, %v415
        %v418 = vrot.slane %v414, 4
        %v420 = vshrl.u32 %v377, 16
        %v422 = vrot.slane %v420, 7
        %v423 = vshll.u32 %v377, 16
        %v425 = vor.u32 %v422, %v423
        %v426 = vsel %vm410, %v418, %v425
        %v427 = vrot.slane %v422, 4
        %v429 = vshrl.u32 %v378, 16
        %v431 = vrot.slane %v429, 7
        %v432 = vshll.u32 %v378, 16
        %v434 = vor.u32 %v431, %v432
        %v435 = vrot.slane %v431, 4
        %v437 = vshrl.u32 %v379, 16
        %v439 = vrot.slane %v437, 7
        %v440 = vshll.u32 %v379, 16
        %v442 = vor.u32 %v439, %v440
        %v443 = vsel %vm410, %v435, %v442
        %v444 = vrot.slane %v439, 4
        %v446 = vshrl.u32 %v380, 16
        %v448 = vrot.slane %v446, 7
        %v449 = vshll.u32 %v380, 16
        %v451 = vor.u32 %v448, %v449
        %v452 = vrot.slane %v448, 4
        %v454 = vshrl.u32 %v381, 16
        %v456 = vrot.slane %v454, 7
        %v457 = vshll.u32 %v381, 16
        %v459 = vor.u32 %v456, %v457
        %v460 = vsel %vm410, %v452, %v459
        %v461 = vrot.slane %v456, 4
        %v463 = vshrl.u32 %v382, 16
        %v465 = vrot.slane %v463, 7
        %v466 = vshll.u32 %v382, 16
        %v468 = vor.u32 %v465, %v466
        %v469 = vrot.slane %v465, 4
        %v471 = vshrl.u32 %v383, 16
        %v473 = vrot.slane %v471, 7
        %v474 = vshll.u32 %v383, 16
        %v476 = vor.u32 %v473, %v474
        %v477 = vsel %vm410, %v469, %v476
        %v478 = vrot.slane %v473, 4
        %v480 = vshrl.u32 %v384, 16
        %v482 = vrot.slane %v480, 7
        %v483 = vshll.u32 %v384, 16
        %v485 = vor.u32 %v482, %v483
        %v486 = vrot.slane %v482, 4
        %v488 = vshrl.u32 %v385, 16
        %v490 = vrot.slane %v488, 7
        %v491 = vshll.u32 %v385, 16
        %v493 = vor.u32 %v490, %v491
        %v494 = vsel %vm410, %v486, %v493
        %v495 = vrot.slane %v490, 4
        %v497 = vshrl.u32 %v386, 16
        %v499 = vrot.slane %v497, 7
        %v500 = vshll.u32 %v386, 16
        %v502 = vor.u32 %v499, %v500
        %v503 = vrot.slane %v499, 4
        %v505 = vshrl.u32 %v387, 16
        %v507 = vrot.slane %v505, 7
        %v508 = vshll.u32 %v387, 16
        %v510 = vor.u32 %v507, %v508
        %v511 = vsel %vm410, %v503, %v510
        %v512 = vrot.slane %v507, 4
        %v514 = vshrl.u32 %v388, 16
        %v516 = vrot.slane %v514, 7
        %v517 = vshll.u32 %v388, 16
        %v519 = vor.u32 %v516, %v517
        %v520 = vrot.slane %v516, 4
        %v522 = vshrl.u32 %v389, 16
        %v524 = vrot.slane %v522, 7
        %v525 = vshll.u32 %v389, 16
        %v527 = vor.u32 %v524, %v525
        %v528 = vsel %vm410, %v520, %v527
        %v529 = vrot.slane %v524, 4
        %v531 = vshrl.u32 %v390, 16
        %v533 = vrot.slane %v531, 7
        %v534 = vshll.u32 %v390, 16
        %v536 = vor.u32 %v533, %v534
        %v537 = vrot.slane %v533, 4
        %v539 = vshrl.u32 %v391, 16
        %v541 = vrot.slane %v539, 7
        %v542 = vshll.u32 %v391, 16
        %v544 = vor.u32 %v541, %v542
        %v545 = vsel %vm410, %v537, %v544
        %v546 = vrot.slane %v541, 4
        %v548 = vshrl.u32 %v392, 16
        %v550 = vrot.slane %v548, 7
        %v551 = vshll.u32 %v392, 16
        %v553 = vor.u32 %v550, %v551
        %v554 = vrot.slane %v550, 4
        %v556 = vshrl.u32 %v393, 16
        %v558 = vrot.slane %v556, 7
        %v559 = vshll.u32 %v393, 16
        %v561 = vor.u32 %v558, %v559
        %v562 = vsel %vm410, %v554, %v561
        %v563 = vrot.slane %v558, 4
        %v565 = vshrl.u32 %v394, 16
        %v567 = vrot.slane %v565, 7
        %v568 = vshll.u32 %v394, 16
        %v570 = vor.u32 %v567, %v568
        %v571 = vrot.slane %v567, 4
        %v573 = vshrl.u32 %v395, 16
        %v575 = vrot.slane %v573, 7
        %v576 = vshll.u32 %v395, 16
        %v578 = vor.u32 %v575, %v576
        %v579 = vsel %vm410, %v571, %v578
        %v580 = vrot.slane %v575, 4
        %v582 = vshrl.u32 %v396, 16
        %v584 = vrot.slane %v582, 7
        %v585 = vshll.u32 %v396, 16
        %v587 = vor.u32 %v584, %v585
        %v588 = vrot.slane %v584, 4
        %v590 = vshrl.u32 %v397, 16
        %v592 = vrot.slane %v590, 7
        %v593 = vshll.u32 %v397, 16
        %v595 = vor.u32 %v592, %v593
        %v596 = vsel %vm410, %v588, %v595
        %v597 = vrot.slane %v592, 4
        %v599 = vshrl.u32 %v398, 16
        %v601 = vrot.slane %v599, 7
        %v602 = vshll.u32 %v398, 16
        %v604 = vor.u32 %v601, %v602
        %v605 = vrot.slane %v601, 4
        %v607 = vshrl.u32 %v399, 16
        %v609 = vrot.slane %v607, 7
        %v610 = vshll.u32 %v399, 16
        %v612 = vor.u32 %v609, %v610
        %v613 = vsel %vm410, %v605, %v612
        %v614 = vrot.slane %v609, 4
        %v616 = vshrl.u32 %v400, 16
        %v618 = vrot.slane %v616, 7
        %v619 = vshll.u32 %v400, 16
        %v621 = vor.u32 %v618, %v619
        %v622 = vrot.slane %v618, 4
        %v624 = vshrl.u32 %v401, 16
        %v626 = vrot.slane %v624, 7
        %v627 = vshll.u32 %v401, 16
        %v629 = vor.u32 %v626, %v627
        %v630 = vsel %vm410, %v622, %v629
        %v631 = vrot.slane %v626, 4
        %v633 = vshrl.u32 %v402, 16
        %v635 = vrot.slane %v633, 7
        %v636 = vshll.u32 %v402, 16
        %v638 = vor.u32 %v635, %v636
        %v639 = vrot.slane %v635, 4
        %v641 = vshrl.u32 %v403, 16
        %v643 = vrot.slane %v641, 7
        %v644 = vshll.u32 %v403, 16
        %v646 = vor.u32 %v643, %v644
        %v647 = vsel %vm410, %v639, %v646
        %v648 = vrot.slane %v643, 4
        %v650 = vshrl.u32 %v404, 16
        %v652 = vrot.slane %v650, 7
        %v653 = vshll.u32 %v404, 16
        %v655 = vor.u32 %v652, %v653
        %v656 = vrot.slane %v652, 4
        %v658 = vshrl.u32 %v405, 16
        %v660 = vrot.slane %v658, 7
        %v661 = vshll.u32 %v405, 16
        %v663 = vor.u32 %v660, %v661
        %v664 = vsel %vm410, %v656, %v663
        %v665 = vrot.slane %v660, 4
        %v667 = vshrl.u32 %v406, 16
        %v669 = vrot.slane %v667, 7
        %v670 = vshll.u32 %v406, 16
        %v672 = vor.u32 %v669, %v670
        %v673 = vrot.slane %v669, 4
        %v675 = vshrl.u32 %v407, 16
        %v677 = vrot.slane %v675, 7
        %v678 = vshll.u32 %v407, 16
        %v680 = vor.u32 %v677, %v678
        %v681 = vsel %vm410, %v673, %v680
        %v682 = vrot.slane %v677, 4
        %s731 = scalar_lea.vmem [#allocation2], 12
        %vm732 = vcmask 519168
        %vm733 = vsmask.f32 7938
        %vm734 = vmand %vm732, %vm733
        %v735 = vld [vmem:[%s731] sm:$0xf]
        %v736 = vsel %vm734, %v417, %v735
        %737 = vst [vmem:[%s731] sm:$0xf] %v736
        %738 = vst.msk [vmem:[%s731 + $0x4] sm:$0xf] %vm224, %v426
        %vm739 = vcmask 516096
        %vm740 = vmand %vm739, %vm408
        %v741 = vld [vmem:[%s731 + $0x8] sm:$0x1]
        %v742 = vsel %vm740, %v427, %v741
        %743 = vst [vmem:[%s731 + $0x8] sm:$0x1] %v742
        %v744 = vld [vmem:[%s731 + $0xc] sm:$0xf]
        %v745 = vsel %vm734, %v434, %v744
        %746 = vst [vmem:[%s731 + $0xc] sm:$0xf] %v745
        %747 = vst.msk [vmem:[%s731 + $0x10] sm:$0xf] %vm224, %v443
        %v748 = vld [vmem:[%s731 + $0x14] sm:$0x1]
        %v749 = vsel %vm740, %v444, %v748
        %750 = vst [vmem:[%s731 + $0x14] sm:$0x1] %v749
        %v751 = vld [vmem:[%s731 + $0x18] sm:$0xf]
        %v752 = vsel %vm734, %v451, %v751
        %753 = vst [vmem:[%s731 + $0x18] sm:$0xf] %v752
        %754 = vst.msk [vmem:[%s731 + $0x1c] sm:$0xf] %vm224, %v460
        %v755 = vld [vmem:[%s731 + $0x20] sm:$0x1]
        %v756 = vsel %vm740, %v461, %v755
        %757 = vst [vmem:[%s731 + $0x20] sm:$0x1] %v756
        %v758 = vld [vmem:[%s731 + $0x24] sm:$0xf]
        %v759 = vsel %vm734, %v468, %v758
        %760 = vst [vmem:[%s731 + $0x24] sm:$0xf] %v759
        %761 = vst.msk [vmem:[%s731 + $0x28] sm:$0xf] %vm224, %v477
        %v762 = vld [vmem:[%s731 + $0x2c] sm:$0x1]
        %v763 = vsel %vm740, %v478, %v762
        %764 = vst [vmem:[%s731 + $0x2c] sm:$0x1] %v763
        %v765 = vld [vmem:[%s731 + $0x30] sm:$0xf]
        %v766 = vsel %vm734, %v485, %v765
        %767 = vst [vmem:[%s731 + $0x30] sm:$0xf] %v766
        %768 = vst.msk [vmem:[%s731 + $0x34] sm:$0xf] %vm224, %v494
        %v769 = vld [vmem:[%s731 + $0x38] sm:$0x1]
        %v770 = vsel %vm740, %v495, %v769
        %771 = vst [vmem:[%s731 + $0x38] sm:$0x1] %v770
        %v772 = vld [vmem:[%s731 + $0x3c] sm:$0xf]
        %v773 = vsel %vm734, %v502, %v772
        %774 = vst [vmem:[%s731 + $0x3c] sm:$0xf] %v773
        %775 = vst.msk [vmem:[%s731 + $0x40] sm:$0xf] %vm224, %v511
        %v776 = vld [vmem:[%s731 + $0x44] sm:$0x1]
        %v777 = vsel %vm740, %v512, %v776
        %778 = vst [vmem:[%s731 + $0x44] sm:$0x1] %v777
        %v779 = vld [vmem:[%s731 + $0x48] sm:$0xf]
        %v780 = vsel %vm734, %v519, %v779
        %781 = vst [vmem:[%s731 + $0x48] sm:$0xf] %v780
        %782 = vst.msk [vmem:[%s731 + $0x4c] sm:$0xf] %vm224, %v528
        %v783 = vld [vmem:[%s731 + $0x50] sm:$0x1]
        %v784 = vsel %vm740, %v529, %v783
        %785 = vst [vmem:[%s731 + $0x50] sm:$0x1] %v784
        %v786 = vld [vmem:[%s731 + $0x54] sm:$0xf]
        %v787 = vsel %vm734, %v536, %v786
        %788 = vst [vmem:[%s731 + $0x54] sm:$0xf] %v787
        %789 = vst.msk [vmem:[%s731 + $0x58] sm:$0xf] %vm224, %v545
        %v790 = vld [vmem:[%s731 + $0x5c] sm:$0x1]
        %v791 = vsel %vm740, %v546, %v790
        %792 = vst [vmem:[%s731 + $0x5c] sm:$0x1] %v791
        %v793 = vld [vmem:[%s731 + $0x60] sm:$0xf]
        %v794 = vsel %vm734, %v553, %v793
        %795 = vst [vmem:[%s731 + $0x60] sm:$0xf] %v794
        %796 = vst.msk [vmem:[%s731 + $0x64] sm:$0xf] %vm224, %v562
        %v797 = vld [vmem:[%s731 + $0x68] sm:$0x1]
        %v798 = vsel %vm740, %v563, %v797
        %799 = vst [vmem:[%s731 + $0x68] sm:$0x1] %v798
        %v800 = vld [vmem:[%s731 + $0x6c] sm:$0xf]
        %v801 = vsel %vm734, %v570, %v800
        %802 = vst [vmem:[%s731 + $0x6c] sm:$0xf] %v801
        %803 = vst.msk [vmem:[%s731 + $0x70] sm:$0xf] %vm224, %v579
        %v804 = vld [vmem:[%s731 + $0x74] sm:$0x1]
        %v805 = vsel %vm740, %v580, %v804
        %806 = vst [vmem:[%s731 + $0x74] sm:$0x1] %v805
        %v807 = vld [vmem:[%s731 + $0x78] sm:$0xf]
        %v808 = vsel %vm734, %v587, %v807
        %809 = vst [vmem:[%s731 + $0x78] sm:$0xf] %v808
        %810 = vst.msk [vmem:[%s731 + $0x7c] sm:$0xf] %vm224, %v596
        %v811 = vld [vmem:[%s731 + $0x80] sm:$0x1]
        %v812 = vsel %vm740, %v597, %v811
        %813 = vst [vmem:[%s731 + $0x80] sm:$0x1] %v812
        %v814 = vld [vmem:[%s731 + $0x84] sm:$0xf]
        %v815 = vsel %vm734, %v604, %v814
        %816 = vst [vmem:[%s731 + $0x84] sm:$0xf] %v815
        %817 = vst.msk [vmem:[%s731 + $0x88] sm:$0xf] %vm224, %v613
        %v818 = vld [vmem:[%s731 + $0x8c] sm:$0x1]
        %v819 = vsel %vm740, %v614, %v818
        %820 = vst [vmem:[%s731 + $0x8c] sm:$0x1] %v819
        %v821 = vld [vmem:[%s731 + $0x90] sm:$0xf]
        %v822 = vsel %vm734, %v621, %v821
        %823 = vst [vmem:[%s731 + $0x90] sm:$0xf] %v822
        %824 = vst.msk [vmem:[%s731 + $0x94] sm:$0xf] %vm224, %v630
        %v825 = vld [vmem:[%s731 + $0x98] sm:$0x1]
        %v826 = vsel %vm740, %v631, %v825
        %827 = vst [vmem:[%s731 + $0x98] sm:$0x1] %v826
        %v828 = vld [vmem:[%s731 + $0x9c] sm:$0xf]
        %v829 = vsel %vm734, %v638, %v828
        %830 = vst [vmem:[%s731 + $0x9c] sm:$0xf] %v829
        %831 = vst.msk [vmem:[%s731 + $0xa0] sm:$0xf] %vm224, %v647
        %v832 = vld [vmem:[%s731 + $0xa4] sm:$0x1]
        %v833 = vsel %vm740, %v648, %v832
        %834 = vst [vmem:[%s731 + $0xa4] sm:$0x1] %v833
        %v835 = vld [vmem:[%s731 + $0xa8] sm:$0xf]
        %v836 = vsel %vm734, %v655, %v835
        %837 = vst [vmem:[%s731 + $0xa8] sm:$0xf] %v836
        %838 = vst.msk [vmem:[%s731 + $0xac] sm:$0xf] %vm224, %v664
        %v839 = vld [vmem:[%s731 + $0xb0] sm:$0x1]
        %v840 = vsel %vm740, %v665, %v839
        %841 = vst [vmem:[%s731 + $0xb0] sm:$0x1] %v840
        %v842 = vld [vmem:[%s731 + $0xb4] sm:$0xf]
        %v843 = vsel %vm734, %v672, %v842
        %844 = vst [vmem:[%s731 + $0xb4] sm:$0xf] %v843
        %845 = vst.msk [vmem:[%s731 + $0xb8] sm:$0xf] %vm224, %v681
        %v846 = vld [vmem:[%s731 + $0xbc] sm:$0x1]
        %v847 = vsel %vm740, %v682, %v846
        %848 = vst [vmem:[%s731 + $0xbc] sm:$0x1] %v847
        %v849 = vld [vmem:[#allocation2] sm:$0xf]
        %v850 = vld [vmem:[#allocation2 + $0x4] sm:$0xf]
        %v851 = vld [vmem:[#allocation2 + $0xc] sm:$0xf]
        %v852 = vld [vmem:[#allocation2 + $0x10] sm:$0xf]
        %v853 = vld [vmem:[#allocation2 + $0x18] sm:$0xf]
        %v854 = vld [vmem:[#allocation2 + $0x1c] sm:$0xf]
        %v855 = vld [vmem:[#allocation2 + $0x24] sm:$0xf]
        %v856 = vld [vmem:[#allocation2 + $0x28] sm:$0xf]
        %v857 = vld [vmem:[#allocation2 + $0x30] sm:$0xf]
        %v858 = vld [vmem:[#allocation2 + $0x34] sm:$0xf]
        %v859 = vld [vmem:[#allocation2 + $0x3c] sm:$0xf]
        %v860 = vld [vmem:[#allocation2 + $0x40] sm:$0xf]
        %v861 = vld [vmem:[#allocation2 + $0x48] sm:$0xf]
        %v862 = vld [vmem:[#allocation2 + $0x4c] sm:$0xf]
        %v863 = vld [vmem:[#allocation2 + $0x54] sm:$0xf]
        %v864 = vld [vmem:[#allocation2 + $0x58] sm:$0xf]
        %v865 = vld [vmem:[#allocation2 + $0x60] sm:$0xf]
        %v866 = vld [vmem:[#allocation2 + $0x64] sm:$0xf]
        %v867 = vld [vmem:[#allocation2 + $0x6c] sm:$0xf]
        %v868 = vld [vmem:[#allocation2 + $0x70] sm:$0xf]
        %v869 = vld [vmem:[#allocation2 + $0x78] sm:$0xf]
        %v870 = vld [vmem:[#allocation2 + $0x7c] sm:$0xf]
        %v871 = vld [vmem:[#allocation2 + $0x84] sm:$0xf]
        %v872 = vld [vmem:[#allocation2 + $0x88] sm:$0xf]
        %v873 = vld [vmem:[#allocation2 + $0x90] sm:$0xf]
        %v874 = vld [vmem:[#allocation2 + $0x94] sm:$0xf]
        %v875 = vld [vmem:[#allocation2 + $0x9c] sm:$0xf]
        %v876 = vld [vmem:[#allocation2 + $0xa0] sm:$0xf]
        %v877 = vld [vmem:[#allocation2 + $0xa8] sm:$0xf]
        %v878 = vld [vmem:[#allocation2 + $0xac] sm:$0xf]
        %v879 = vld [vmem:[#allocation2 + $0xb4] sm:$0xf]
        %v880 = vld [vmem:[#allocation2 + $0xb8] sm:$0xf]
        %v881 = vld [vmem:[%s1] sm:$0xf]
        %v882 = vld [vmem:[%s1 + $0x4] sm:$0xf]
        %v883 = vld [vmem:[%s1 + $0x8] sm:$0xf]
        %v884 = vld [vmem:[%s1 + $0xc] sm:$0xf]
        %v885 = vld [vmem:[%s1 + $0x10] sm:$0xf]
        %v886 = vld [vmem:[%s1 + $0x14] sm:$0xf]
        %v887 = vld [vmem:[%s1 + $0x18] sm:$0xf]
        %v888 = vld [vmem:[%s1 + $0x1c] sm:$0xf]
        %v889 = vld [vmem:[#allocation2 + $0x8] sm:$0x1]
        %v890 = vld [vmem:[#allocation2 + $0x14] sm:$0x1]
        %v891 = vld [vmem:[#allocation2 + $0x20] sm:$0x1]
        %v892 = vld [vmem:[#allocation2 + $0x2c] sm:$0x1]
        %v893 = vld [vmem:[#allocation2 + $0x38] sm:$0x1]
        %v894 = vld [vmem:[#allocation2 + $0x44] sm:$0x1]
        %v895 = vld [vmem:[#allocation2 + $0x50] sm:$0x1]
        %v896 = vld [vmem:[#allocation2 + $0x5c] sm:$0x1]
        %v897 = vld [vmem:[#allocation2 + $0x68] sm:$0x1]
        %v898 = vld [vmem:[#allocation2 + $0x74] sm:$0x1]
        %v899 = vld [vmem:[#allocation2 + $0x80] sm:$0x1]
        %v900 = vld [vmem:[#allocation2 + $0x8c] sm:$0x1]
        %v901 = vld [vmem:[#allocation2 + $0x98] sm:$0x1]
        %v902 = vld [vmem:[#allocation2 + $0xa4] sm:$0x1]
        %v903 = vld [vmem:[#allocation2 + $0xb0] sm:$0x1]
        %v904 = vld [vmem:[#allocation2 + $0xbc] sm:$0x1]
        %vm905 = vsmask.f32 3328
        %vm906 = vsmask.f32 7440
        %vm907 = vmor %vm905, %vm906
        %v909 = vshrl.u32 %v849, 16
        %v911 = vrot.slane %v909, 4
        %v912 = vshll.u32 %v849, 16
        %v914 = vrot.slane %v912, 5
        %v915 = vor.u32 %v911, %v914
        %v916 = vrot.slane %v915, 4
        %v918 = vshll.u32 %v850, 16
        %v920 = vrot.slane %v918, 5
        %v921 = vsel %vm907, %v916, %v920
        %v922 = vshrl.u32 %v850, 16
        %v924 = vrot.slane %v922, 4
        %v925 = vor.u32 %v924, %v920
        %v926 = vrot.slane %v925, 4
        %v928 = vshll.u32 %v889, 16
        %v930 = vrot.slane %v928, 5
        %v931 = vsel %vm907, %v926, %v930
        %v933 = vshrl.u32 %v851, 16
        %v935 = vrot.slane %v933, 4
        %v936 = vshll.u32 %v851, 16
        %v938 = vrot.slane %v936, 5
        %v939 = vor.u32 %v935, %v938
        %v940 = vrot.slane %v939, 4
        %v942 = vshll.u32 %v852, 16
        %v944 = vrot.slane %v942, 5
        %v945 = vsel %vm907, %v940, %v944
        %v946 = vshrl.u32 %v852, 16
        %v948 = vrot.slane %v946, 4
        %v949 = vor.u32 %v948, %v944
        %v950 = vrot.slane %v949, 4
        %v952 = vshll.u32 %v890, 16
        %v954 = vrot.slane %v952, 5
        %v955 = vsel %vm907, %v950, %v954
        %v957 = vshrl.u32 %v853, 16
        %v959 = vrot.slane %v957, 4
        %v960 = vshll.u32 %v853, 16
        %v962 = vrot.slane %v960, 5
        %v963 = vor.u32 %v959, %v962
        %v964 = vrot.slane %v963, 4
        %v966 = vshll.u32 %v854, 16
        %v968 = vrot.slane %v966, 5
        %v969 = vsel %vm907, %v964, %v968
        %v970 = vshrl.u32 %v854, 16
        %v972 = vrot.slane %v970, 4
        %v973 = vor.u32 %v972, %v968
        %v974 = vrot.slane %v973, 4
        %v976 = vshll.u32 %v891, 16
        %v978 = vrot.slane %v976, 5
        %v979 = vsel %vm907, %v974, %v978
        %v981 = vshrl.u32 %v855, 16
        %v983 = vrot.slane %v981, 4
        %v984 = vshll.u32 %v855, 16
        %v986 = vrot.slane %v984, 5
        %v987 = vor.u32 %v983, %v986
        %v988 = vrot.slane %v987, 4
        %v990 = vshll.u32 %v856, 16
        %v992 = vrot.slane %v990, 5
        %v993 = vsel %vm907, %v988, %v992
        %v994 = vshrl.u32 %v856, 16
        %v996 = vrot.slane %v994, 4
        %v997 = vor.u32 %v996, %v992
        %v998 = vrot.slane %v997, 4
        %v1000 = vshll.u32 %v892, 16
        %v1002 = vrot.slane %v1000, 5
        %v1003 = vsel %vm907, %v998, %v1002
        %v1005 = vshrl.u32 %v857, 16
        %v1007 = vrot.slane %v1005, 4
        %v1008 = vshll.u32 %v857, 16
        %v1010 = vrot.slane %v1008, 5
        %v1011 = vor.u32 %v1007, %v1010
        %v1012 = vrot.slane %v1011, 4
        %v1014 = vshll.u32 %v858, 16
        %v1016 = vrot.slane %v1014, 5
        %v1017 = vsel %vm907, %v1012, %v1016
        %v1018 = vshrl.u32 %v858, 16
        %v1020 = vrot.slane %v1018, 4
        %v1021 = vor.u32 %v1020, %v1016
        %v1022 = vrot.slane %v1021, 4
        %v1024 = vshll.u32 %v893, 16
        %v1026 = vrot.slane %v1024, 5
        %v1027 = vsel %vm907, %v1022, %v1026
        %v1029 = vshrl.u32 %v859, 16
        %v1031 = vrot.slane %v1029, 4
        %v1032 = vshll.u32 %v859, 16
        %v1034 = vrot.slane %v1032, 5
        %v1035 = vor.u32 %v1031, %v1034
        %v1036 = vrot.slane %v1035, 4
        %v1038 = vshll.u32 %v860, 16
        %v1040 = vrot.slane %v1038, 5
        %v1041 = vsel %vm907, %v1036, %v1040
        %v1042 = vshrl.u32 %v860, 16
        %v1044 = vrot.slane %v1042, 4
        %v1045 = vor.u32 %v1044, %v1040
        %v1046 = vrot.slane %v1045, 4
        %v1048 = vshll.u32 %v894, 16
        %v1050 = vrot.slane %v1048, 5
        %v1051 = vsel %vm907, %v1046, %v1050
        %v1053 = vshrl.u32 %v861, 16
        %v1055 = vrot.slane %v1053, 4
        %v1056 = vshll.u32 %v861, 16
        %v1058 = vrot.slane %v1056, 5
        %v1059 = vor.u32 %v1055, %v1058
        %v1060 = vrot.slane %v1059, 4
        %v1062 = vshll.u32 %v862, 16
        %v1064 = vrot.slane %v1062, 5
        %v1065 = vsel %vm907, %v1060, %v1064
        %v1066 = vshrl.u32 %v862, 16
        %v1068 = vrot.slane %v1066, 4
        %v1069 = vor.u32 %v1068, %v1064
        %v1070 = vrot.slane %v1069, 4
        %v1072 = vshll.u32 %v895, 16
        %v1074 = vrot.slane %v1072, 5
        %v1075 = vsel %vm907, %v1070, %v1074
        %v1077 = vshrl.u32 %v863, 16
        %v1079 = vrot.slane %v1077, 4
        %v1080 = vshll.u32 %v863, 16
        %v1082 = vrot.slane %v1080, 5
        %v1083 = vor.u32 %v1079, %v1082
        %v1084 = vrot.slane %v1083, 4
        %v1086 = vshll.u32 %v864, 16
        %v1088 = vrot.slane %v1086, 5
        %v1089 = vsel %vm907, %v1084, %v1088
        %v1090 = vshrl.u32 %v864, 16
        %v1092 = vrot.slane %v1090, 4
        %v1093 = vor.u32 %v1092, %v1088
        %v1094 = vrot.slane %v1093, 4
        %v1096 = vshll.u32 %v896, 16
        %v1098 = vrot.slane %v1096, 5
        %v1099 = vsel %vm907, %v1094, %v1098
        %v1101 = vshrl.u32 %v865, 16
        %v1103 = vrot.slane %v1101, 4
        %v1104 = vshll.u32 %v865, 16
        %v1106 = vrot.slane %v1104, 5
        %v1107 = vor.u32 %v1103, %v1106
        %v1108 = vrot.slane %v1107, 4
        %v1110 = vshll.u32 %v866, 16
        %v1112 = vrot.slane %v1110, 5
        %v1113 = vsel %vm907, %v1108, %v1112
        %v1114 = vshrl.u32 %v866, 16
        %v1116 = vrot.slane %v1114, 4
        %v1117 = vor.u32 %v1116, %v1112
        %v1118 = vrot.slane %v1117, 4
        %v1120 = vshll.u32 %v897, 16
        %v1122 = vrot.slane %v1120, 5
        %v1123 = vsel %vm907, %v1118, %v1122
        %v1125 = vshrl.u32 %v867, 16
        %v1127 = vrot.slane %v1125, 4
        %v1128 = vshll.u32 %v867, 16
        %v1130 = vrot.slane %v1128, 5
        %v1131 = vor.u32 %v1127, %v1130
        %v1132 = vrot.slane %v1131, 4
        %v1134 = vshll.u32 %v868, 16
        %v1136 = vrot.slane %v1134, 5
        %v1137 = vsel %vm907, %v1132, %v1136
        %v1138 = vshrl.u32 %v868, 16
        %v1140 = vrot.slane %v1138, 4
        %v1141 = vor.u32 %v1140, %v1136
        %v1142 = vrot.slane %v1141, 4
        %v1144 = vshll.u32 %v898, 16
        %v1146 = vrot.slane %v1144, 5
        %v1147 = vsel %vm907, %v1142, %v1146
        %v1149 = vshrl.u32 %v869, 16
        %v1151 = vrot.slane %v1149, 4
        %v1152 = vshll.u32 %v869, 16
        %v1154 = vrot.slane %v1152, 5
        %v1155 = vor.u32 %v1151, %v1154
        %v1156 = vrot.slane %v1155, 4
        %v1158 = vshll.u32 %v870, 16
        %v1160 = vrot.slane %v1158, 5
        %v1161 = vsel %vm907, %v1156, %v1160
        %v1162 = vshrl.u32 %v870, 16
        %v1164 = vrot.slane %v1162, 4
        %v1165 = vor.u32 %v1164, %v1160
        %v1166 = vrot.slane %v1165, 4
        %v1168 = vshll.u32 %v899, 16
        %v1170 = vrot.slane %v1168, 5
        %v1171 = vsel %vm907, %v1166, %v1170
        %v1173 = vshrl.u32 %v871, 16
        %v1175 = vrot.slane %v1173, 4
        %v1176 = vshll.u32 %v871, 16
        %v1178 = vrot.slane %v1176, 5
        %v1179 = vor.u32 %v1175, %v1178
        %v1180 = vrot.slane %v1179, 4
        %v1182 = vshll.u32 %v872, 16
        %v1184 = vrot.slane %v1182, 5
        %v1185 = vsel %vm907, %v1180, %v1184
        %v1186 = vshrl.u32 %v872, 16
        %v1188 = vrot.slane %v1186, 4
        %v1189 = vor.u32 %v1188, %v1184
        %v1190 = vrot.slane %v1189, 4
        %v1192 = vshll.u32 %v900, 16
        %v1194 = vrot.slane %v1192, 5
        %v1195 = vsel %vm907, %v1190, %v1194
        %v1197 = vshrl.u32 %v873, 16
        %v1199 = vrot.slane %v1197, 4
        %v1200 = vshll.u32 %v873, 16
        %v1202 = vrot.slane %v1200, 5
        %v1203 = vor.u32 %v1199, %v1202
        %v1204 = vrot.slane %v1203, 4
        %v1206 = vshll.u32 %v874, 16
        %v1208 = vrot.slane %v1206, 5
        %v1209 = vsel %vm907, %v1204, %v1208
        %v1210 = vshrl.u32 %v874, 16
        %v1212 = vrot.slane %v1210, 4
        %v1213 = vor.u32 %v1212, %v1208
        %v1214 = vrot.slane %v1213, 4
        %v1216 = vshll.u32 %v901, 16
        %v1218 = vrot.slane %v1216, 5
        %v1219 = vsel %vm907, %v1214, %v1218
        %v1221 = vshrl.u32 %v875, 16
        %v1223 = vrot.slane %v1221, 4
        %v1224 = vshll.u32 %v875, 16
        %v1226 = vrot.slane %v1224, 5
        %v1227 = vor.u32 %v1223, %v1226
        %v1228 = vrot.slane %v1227, 4
        %v1230 = vshll.u32 %v876, 16
        %v1232 = vrot.slane %v1230, 5
        %v1233 = vsel %vm907, %v1228, %v1232
        %v1234 = vshrl.u32 %v876, 16
        %v1236 = vrot.slane %v1234, 4
        %v1237 = vor.u32 %v1236, %v1232
        %v1238 = vrot.slane %v1237, 4
        %v1240 = vshll.u32 %v902, 16
        %v1242 = vrot.slane %v1240, 5
        %v1243 = vsel %vm907, %v1238, %v1242
        %v1245 = vshrl.u32 %v877, 16
        %v1247 = vrot.slane %v1245, 4
        %v1248 = vshll.u32 %v877, 16
        %v1250 = vrot.slane %v1248, 5
        %v1251 = vor.u32 %v1247, %v1250
        %v1252 = vrot.slane %v1251, 4
        %v1254 = vshll.u32 %v878, 16
        %v1256 = vrot.slane %v1254, 5
        %v1257 = vsel %vm907, %v1252, %v1256
        %v1258 = vshrl.u32 %v878, 16
        %v1260 = vrot.slane %v1258, 4
        %v1261 = vor.u32 %v1260, %v1256
        %v1262 = vrot.slane %v1261, 4
        %v1264 = vshll.u32 %v903, 16
        %v1266 = vrot.slane %v1264, 5
        %v1267 = vsel %vm907, %v1262, %v1266
        %v1269 = vshrl.u32 %v879, 16
        %v1271 = vrot.slane %v1269, 4
        %v1272 = vshll.u32 %v879, 16
        %v1274 = vrot.slane %v1272, 5
        %v1275 = vor.u32 %v1271, %v1274
        %v1276 = vrot.slane %v1275, 4
        %v1278 = vshll.u32 %v880, 16
        %v1280 = vrot.slane %v1278, 5
        %v1281 = vsel %vm907, %v1276, %v1280
        %v1282 = vshrl.u32 %v880, 16
        %v1284 = vrot.slane %v1282, 4
        %v1285 = vor.u32 %v1284, %v1280
        %v1286 = vrot.slane %v1285, 4
        %v1288 = vshll.u32 %v904, 16
        %v1290 = vrot.slane %v1288, 5
        %v1291 = vsel %vm907, %v1286, %v1290
        %s1292 = scalar_lea.vmem %s1, 32
        %v1293 = vld [vmem:[%s1292] sm:$0xf]
        %v1294 = vld [vmem:[%s1292 + $0x4] sm:$0xf]
        %v1295 = vld [vmem:[%s1292 + $0x8] sm:$0xf]
        %v1296 = vld [vmem:[%s1292 + $0xc] sm:$0xf]
        %v1297 = vld [vmem:[%s1292 + $0x10] sm:$0xf]
        %v1298 = vld [vmem:[%s1292 + $0x14] sm:$0xf]
        %v1299 = vld [vmem:[%s1292 + $0x18] sm:$0xf]
        %v1300 = vld [vmem:[%s1292 + $0x1c] sm:$0xf]
        %v1301 = vunpack.c.l.b16 %v921
        %v1302 = vunpack.c.l.b16 %v931
        %v1303 = vunpack.c.l.b16 %v945
        %v1304 = vunpack.c.l.b16 %v955
        %v1305 = vunpack.c.l.b16 %v969
        %v1306 = vunpack.c.l.b16 %v979
        %v1307 = vunpack.c.l.b16 %v993
        %v1308 = vunpack.c.l.b16 %v1003
        %v1309 = vunpack.c.l.b16 %v1017
        %v1310 = vunpack.c.l.b16 %v1027
        %v1311 = vunpack.c.l.b16 %v1041
        %v1312 = vunpack.c.l.b16 %v1051
        %v1313 = vunpack.c.l.b16 %v1065
        %v1314 = vunpack.c.l.b16 %v1075
        %v1315 = vunpack.c.l.b16 %v1089
        %v1316 = vunpack.c.l.b16 %v1099
        %v1317 = vunpack.c.l.b16 %v1113
        %v1318 = vunpack.c.l.b16 %v1123
        %v1319 = vunpack.c.l.b16 %v1137
        %v1320 = vunpack.c.l.b16 %v1147
        %v1321 = vunpack.c.l.b16 %v1161
        %v1322 = vunpack.c.l.b16 %v1171
        %v1323 = vunpack.c.l.b16 %v1185
        %v1324 = vunpack.c.l.b16 %v1195
        %v1325 = vunpack.c.l.b16 %v1209
        %v1326 = vunpack.c.l.b16 %v1219
        %v1327 = vunpack.c.l.b16 %v1233
        %v1328 = vunpack.c.l.b16 %v1243
        %v1329 = vunpack.c.l.b16 %v1257
        %v1330 = vunpack.c.l.b16 %v1267
        %v1331 = vunpack.c.l.b16 %v1281
        %v1332 = vunpack.c.l.b16 %v1291
        %v1333 = vpack.c.b16 %v1302, %v1301
        %v1334 = vpack.c.b16 %v1304, %v1303
        %v1335 = vpack.c.b16 %v1306, %v1305
        %v1336 = vpack.c.b16 %v1308, %v1307
        %v1337 = vpack.c.b16 %v1310, %v1309
        %v1338 = vpack.c.b16 %v1312, %v1311
        %v1339 = vpack.c.b16 %v1314, %v1313
        %v1340 = vpack.c.b16 %v1316, %v1315
        %v1341 = vpack.c.b16 %v1318, %v1317
        %v1342 = vpack.c.b16 %v1320, %v1319
        %v1343 = vpack.c.b16 %v1322, %v1321
        %v1344 = vpack.c.b16 %v1324, %v1323
        %v1345 = vpack.c.b16 %v1326, %v1325
        %v1346 = vpack.c.b16 %v1328, %v1327
        %v1347 = vpack.c.b16 %v1330, %v1329
        %v1348 = vpack.c.b16 %v1332, %v1331
        %v1357 = vunpack.c.l.b16 %v1293
        %v1358 = vunpack.c.l.b16 %v1294
        %v1359 = vunpack.c.l.b16 %v1295
        %v1360 = vunpack.c.l.b16 %v1296
        %v1361 = vunpack.c.l.b16 %v1297
        %v1362 = vunpack.c.l.b16 %v1298
        %v1363 = vunpack.c.l.b16 %v1299
        %v1364 = vunpack.c.l.b16 %v1300
        %v1365 = vpack.c.b16 %v1358, %v1357
        %v1366 = vpack.c.b16 %v1360, %v1359
        %v1367 = vpack.c.b16 %v1362, %v1361
        %v1368 = vpack.c.b16 %v1364, %v1363
        %vm1373 = vcmask 523264
        %v1375 = vsel %vm1373, %v1333, 0
        %v1378 = vsel %vm1373, %v1334, 0
        %v1381 = vsel %vm1373, %v1335, 0
        %v1384 = vsel %vm1373, %v1336, 0
        %v1387 = vsel %vm1373, %v1337, 0
        %v1390 = vsel %vm1373, %v1338, 0
        %v1393 = vsel %vm1373, %v1339, 0
        %v1396 = vsel %vm1373, %v1340, 0
        %v1399 = vsel %vm1373, %v1341, 0
        %v1402 = vsel %vm1373, %v1342, 0
        %v1405 = vsel %vm1373, %v1343, 0
        %v1408 = vsel %vm1373, %v1344, 0
        %v1411 = vsel %vm1373, %v1345, 0
        %v1414 = vsel %vm1373, %v1346, 0
        %v1417 = vsel %vm1373, %v1347, 0
        %v1420 = vsel %vm1373, %v1348, 0
        %1422 = vmatprep.subr.bf16.mxu0 0
        %1423 = vmatpush1.bf16.msra.mxu0 %v1365
        %1424 = vmatprep.subr.bf16.mxu0 0
        %1425 = vmatpush1.bf16.msra.mxu0 %v1366
        %1426 = vmatprep.subr.bf16.mxu0 0
        %1427 = vmatpush1.bf16.msra.mxu0 %v1367
        %1428 = vmatprep.subr.bf16.mxu0 0
        %1429 = vmatpush1.bf16.msra.mxu0 %v1368
        %1430 = vmatprep.subr.bf16.mxu0 0
        %1431 = vmatpush1.bf16.msra.mxu0 0
        %1432 = vmatprep.subr.bf16.mxu0 0
        %1433 = vmatpush1.bf16.msra.mxu0 0
        %1434 = vmatprep.subr.bf16.mxu0 0
        %1435 = vmatpush1.bf16.msra.mxu0 0
        %1436 = vmatprep.subr.bf16.mxu0 0
        %1437 = vmatpush1.bf16.msra.mxu0 0
        %1438 = vmatprep.subr.bf16.mxu0 0
        %1439 = vmatpush1.bf16.msra.mxu0 0
        %1440 = vmatprep.subr.bf16.mxu0 0
        %1441 = vmatpush1.bf16.msra.mxu0 0
        %1442 = vmatprep.subr.bf16.mxu0 0
        %1443 = vmatpush1.bf16.msra.mxu0 0
        %1444 = vmatprep.subr.bf16.mxu0 0
        %1445 = vmatpush1.bf16.msra.mxu0 0
        %1446 = vmatprep.subr.bf16.mxu0 0
        %1447 = vmatpush1.bf16.msra.mxu0 0
        %1448 = vmatprep.subr.bf16.mxu0 0
        %1449 = vmatpush1.bf16.msra.mxu0 0
        %1450 = vmatprep.subr.bf16.mxu0 0
        %1451 = vmatpush1.bf16.msra.mxu0 0
        %1452 = vmatprep.subr.bf16.mxu0 0
        %1453 = vmatpush1.bf16.msra.mxu0 0
        %1454 = vmatprep.mubr.bf16.mxu0 0
        %1455 = vmatmul.mubr.bf16.gmra.mrb[0].mxu0 %v1375
        %v1456 = vpop.f32.mrb[0].mxu0
        %v1457 = vadd.f32 0.0, %v1456
        %v1458 = vpop.f32.mrb[0].mxu0
        %v1459 = vpop.f32.mrb[0].mxu0
        %v1460 = vadd.f32 0.0, %v1459
        %v1461 = vpop.f32.mrb[0].mxu0
        %1462 = vmatprep.mubr.bf16.mxu0 0
        %1463 = vmatmul.mubr.bf16.gmra.mrb[0].mxu0 %v1378
        %v1464 = vpop.f32.mrb[0].mxu0
        %v1465 = vadd.f32 0.0, %v1464
        %v1466 = vpop.f32.mrb[0].mxu0
        %v1467 = vpop.f32.mrb[0].mxu0
        %v1468 = vadd.f32 0.0, %v1467
        %v1469 = vpop.f32.mrb[0].mxu0
        %1470 = vmatprep.mubr.bf16.mxu0 0
        %1471 = vmatmul.mubr.bf16.gmra.mrb[0].mxu0 %v1381
        %v1472 = vpop.f32.mrb[0].mxu0
        %v1473 = vadd.f32 0.0, %v1472
        %v1474 = vpop.f32.mrb[0].mxu0
        %v1475 = vpop.f32.mrb[0].mxu0
        %v1476 = vadd.f32 0.0, %v1475
        %v1477 = vpop.f32.mrb[0].mxu0
        %1478 = vmatprep.mubr.bf16.mxu0 0
        %1479 = vmatmul.mubr.bf16.gmra.mrb[0].mxu0 %v1384
        %v1480 = vpop.f32.mrb[0].mxu0
        %v1481 = vadd.f32 0.0, %v1480
        %v1482 = vpop.f32.mrb[0].mxu0
        %v1483 = vpop.f32.mrb[0].mxu0
        %v1484 = vadd.f32 0.0, %v1483
        %v1485 = vpop.f32.mrb[0].mxu0
        %1486 = vmatprep.mubr.bf16.mxu0 0
        %1487 = vmatmul.mubr.bf16.gmra.mrb[0].mxu0 %v1387
        %v1488 = vpop.f32.mrb[0].mxu0
        %v1489 = vadd.f32 0.0, %v1488
        %v1490 = vpop.f32.mrb[0].mxu0
        %v1491 = vpop.f32.mrb[0].mxu0
        %v1492 = vadd.f32 0.0, %v1491
        %v1493 = vpop.f32.mrb[0].mxu0
        %1494 = vmatprep.mubr.bf16.mxu0 0
        %1495 = vmatmul.mubr.bf16.gmra.mrb[0].mxu0 %v1390
        %v1496 = vpop.f32.mrb[0].mxu0
        %v1497 = vadd.f32 0.0, %v1496
        %v1498 = vpop.f32.mrb[0].mxu0
        %v1499 = vpop.f32.mrb[0].mxu0
        %v1500 = vadd.f32 0.0, %v1499
        %v1501 = vpop.f32.mrb[0].mxu0
        %1502 = vmatprep.mubr.bf16.mxu0 0
        %1503 = vmatmul.mubr.bf16.gmra.mrb[0].mxu0 %v1393
        %v1504 = vpop.f32.mrb[0].mxu0
        %v1505 = vadd.f32 0.0, %v1504
        %v1506 = vpop.f32.mrb[0].mxu0
        %v1507 = vpop.f32.mrb[0].mxu0
        %v1508 = vadd.f32 0.0, %v1507
        %v1509 = vpop.f32.mrb[0].mxu0
        %1510 = vmatprep.mubr.bf16.mxu0 0
        %1511 = vmatmul.mubr.bf16.gmra.mrb[0].mxu0 %v1396
        %v1512 = vpop.f32.mrb[0].mxu0
        %v1513 = vadd.f32 0.0, %v1512
        %v1514 = vpop.f32.mrb[0].mxu0
        %v1515 = vpop.f32.mrb[0].mxu0
        %v1516 = vadd.f32 0.0, %v1515
        %v1517 = vpop.f32.mrb[0].mxu0
        %1518 = vmatprep.mubr.bf16.mxu0 0
        %1519 = vmatmul.mubr.bf16.gmra.mrb[0].mxu0 %v1399
        %v1520 = vpop.f32.mrb[0].mxu0
        %v1521 = vadd.f32 0.0, %v1520
        %v1522 = vpop.f32.mrb[0].mxu0
        %v1523 = vpop.f32.mrb[0].mxu0
        %v1524 = vadd.f32 0.0, %v1523
        %v1525 = vpop.f32.mrb[0].mxu0
        %1526 = vmatprep.mubr.bf16.mxu0 0
        %1527 = vmatmul.mubr.bf16.gmra.mrb[0].mxu0 %v1402
        %v1528 = vpop.f32.mrb[0].mxu0
        %v1529 = vadd.f32 0.0, %v1528
        %v1530 = vpop.f32.mrb[0].mxu0
        %v1531 = vpop.f32.mrb[0].mxu0
        %v1532 = vadd.f32 0.0, %v1531
        %v1533 = vpop.f32.mrb[0].mxu0
        %1534 = vmatprep.mubr.bf16.mxu0 0
        %1535 = vmatmul.mubr.bf16.gmra.mrb[0].mxu0 %v1405
        %v1536 = vpop.f32.mrb[0].mxu0
        %v1537 = vadd.f32 0.0, %v1536
        %v1538 = vpop.f32.mrb[0].mxu0
        %v1539 = vpop.f32.mrb[0].mxu0
        %v1540 = vadd.f32 0.0, %v1539
        %v1541 = vpop.f32.mrb[0].mxu0
        %1542 = vmatprep.mubr.bf16.mxu0 0
        %1543 = vmatmul.mubr.bf16.gmra.mrb[0].mxu0 %v1408
        %v1544 = vpop.f32.mrb[0].mxu0
        %v1545 = vadd.f32 0.0, %v1544
        %v1546 = vpop.f32.mrb[0].mxu0
        %v1547 = vpop.f32.mrb[0].mxu0
        %v1548 = vadd.f32 0.0, %v1547
        %v1549 = vpop.f32.mrb[0].mxu0
        %1550 = vmatprep.mubr.bf16.mxu0 0
        %1551 = vmatmul.mubr.bf16.gmra.mrb[0].mxu0 %v1411
        %v1552 = vpop.f32.mrb[0].mxu0
        %v1553 = vadd.f32 0.0, %v1552
        %v1554 = vpop.f32.mrb[0].mxu0
        %v1555 = vpop.f32.mrb[0].mxu0
        %v1556 = vadd.f32 0.0, %v1555
        %v1557 = vpop.f32.mrb[0].mxu0
        %1558 = vmatprep.mubr.bf16.mxu0 0
        %1559 = vmatmul.mubr.bf16.gmra.mrb[0].mxu0 %v1414
        %v1560 = vpop.f32.mrb[0].mxu0
        %v1561 = vadd.f32 0.0, %v1560
        %v1562 = vpop.f32.mrb[0].mxu0
        %v1563 = vpop.f32.mrb[0].mxu0
        %v1564 = vadd.f32 0.0, %v1563
        %v1565 = vpop.f32.mrb[0].mxu0
        %1566 = vmatprep.mubr.bf16.mxu0 0
        %1567 = vmatmul.mubr.bf16.gmra.mrb[0].mxu0 %v1417
        %v1568 = vpop.f32.mrb[0].mxu0
        %v1569 = vadd.f32 0.0, %v1568
        %v1570 = vpop.f32.mrb[0].mxu0
        %v1571 = vpop.f32.mrb[0].mxu0
        %v1572 = vadd.f32 0.0, %v1571
        %v1573 = vpop.f32.mrb[0].mxu0
        %1574 = vmatprep.mubr.bf16.mxu0 0
        %1575 = vmatmul.mubr.bf16.gmra.mrb[0].mxu0 %v1420
        %v1576 = vpop.f32.mrb[0].mxu0
        %v1577 = vadd.f32 0.0, %v1576
        %v1578 = vpop.f32.mrb[0].mxu0
        %v1579 = vpop.f32.mrb[0].mxu0
        %v1580 = vadd.f32 0.0, %v1579
        %v1581 = vpop.f32.mrb[0].mxu0
        %1582 = vdwg.mxu0
        %v1615 = vunpack.c.l.b16 %v849
        %v1616 = vunpack.c.l.b16 %v850
        %v1617 = vunpack.c.l.b16 %v851
        %v1618 = vunpack.c.l.b16 %v852
        %v1619 = vunpack.c.l.b16 %v853
        %v1620 = vunpack.c.l.b16 %v854
        %v1621 = vunpack.c.l.b16 %v855
        %v1622 = vunpack.c.l.b16 %v856
        %v1623 = vunpack.c.l.b16 %v857
        %v1624 = vunpack.c.l.b16 %v858
        %v1625 = vunpack.c.l.b16 %v859
        %v1626 = vunpack.c.l.b16 %v860
        %v1627 = vunpack.c.l.b16 %v861
        %v1628 = vunpack.c.l.b16 %v862
        %v1629 = vunpack.c.l.b16 %v863
        %v1630 = vunpack.c.l.b16 %v864
        %v1631 = vunpack.c.l.b16 %v865
        %v1632 = vunpack.c.l.b16 %v866
        %v1633 = vunpack.c.l.b16 %v867
        %v1634 = vunpack.c.l.b16 %v868
        %v1635 = vunpack.c.l.b16 %v869
        %v1636 = vunpack.c.l.b16 %v870
        %v1637 = vunpack.c.l.b16 %v871
        %v1638 = vunpack.c.l.b16 %v872
        %v1639 = vunpack.c.l.b16 %v873
        %v1640 = vunpack.c.l.b16 %v874
        %v1641 = vunpack.c.l.b16 %v875
        %v1642 = vunpack.c.l.b16 %v876
        %v1643 = vunpack.c.l.b16 %v877
        %v1644 = vunpack.c.l.b16 %v878
        %v1645 = vunpack.c.l.b16 %v879
        %v1646 = vunpack.c.l.b16 %v880
        %v1647 = vpack.c.b16 %v1616, %v1615
        %v1648 = vpack.c.b16 %v1618, %v1617
        %v1649 = vpack.c.b16 %v1620, %v1619
        %v1650 = vpack.c.b16 %v1622, %v1621
        %v1651 = vpack.c.b16 %v1624, %v1623
        %v1652 = vpack.c.b16 %v1626, %v1625
        %v1653 = vpack.c.b16 %v1628, %v1627
        %v1654 = vpack.c.b16 %v1630, %v1629
        %v1655 = vpack.c.b16 %v1632, %v1631
        %v1656 = vpack.c.b16 %v1634, %v1633
        %v1657 = vpack.c.b16 %v1636, %v1635
        %v1658 = vpack.c.b16 %v1638, %v1637
        %v1659 = vpack.c.b16 %v1640, %v1639
        %v1660 = vpack.c.b16 %v1642, %v1641
        %v1661 = vpack.c.b16 %v1644, %v1643
        %v1662 = vpack.c.b16 %v1646, %v1645
        %v1671 = vunpack.c.l.b16 %v881
        %v1672 = vunpack.c.l.b16 %v882
        %v1673 = vunpack.c.l.b16 %v883
        %v1674 = vunpack.c.l.b16 %v884
        %v1675 = vunpack.c.l.b16 %v885
        %v1676 = vunpack.c.l.b16 %v886
        %v1677 = vunpack.c.l.b16 %v887
        %v1678 = vunpack.c.l.b16 %v888
        %v1679 = vpack.c.b16 %v1672, %v1671
        %v1680 = vpack.c.b16 %v1674, %v1673
        %v1681 = vpack.c.b16 %v1676, %v1675
        %v1682 = vpack.c.b16 %v1678, %v1677
        %v1688 = vsel %vm1373, %v1647, 0
        %v1691 = vsel %vm1373, %v1648, 0
        %v1694 = vsel %vm1373, %v1649, 0
        %v1697 = vsel %vm1373, %v1650, 0
        %v1700 = vsel %vm1373, %v1651, 0
        %v1703 = vsel %vm1373, %v1652, 0
        %v1706 = vsel %vm1373, %v1653, 0
        %v1709 = vsel %vm1373, %v1654, 0
        %v1712 = vsel %vm1373, %v1655, 0
        %v1715 = vsel %vm1373, %v1656, 0
        %v1718 = vsel %vm1373, %v1657, 0
        %v1721 = vsel %vm1373, %v1658, 0
        %v1724 = vsel %vm1373, %v1659, 0
        %v1727 = vsel %vm1373, %v1660, 0
        %v1730 = vsel %vm1373, %v1661, 0
        %v1733 = vsel %vm1373, %v1662, 0
        %1735 = vmatprep.subr.bf16.mxu0 0
        %1736 = vmatpush1.bf16.msra.mxu0 %v1679
        %1737 = vmatprep.subr.bf16.mxu0 0
        %1738 = vmatpush1.bf16.msra.mxu0 %v1680
        %1739 = vmatprep.subr.bf16.mxu0 0
        %1740 = vmatpush1.bf16.msra.mxu0 %v1681
        %1741 = vmatprep.subr.bf16.mxu0 0
        %1742 = vmatpush1.bf16.msra.mxu0 %v1682
        %1743 = vmatprep.subr.bf16.mxu0 0
        %1744 = vmatpush1.bf16.msra.mxu0 0
        %1745 = vmatprep.subr.bf16.mxu0 0
        %1746 = vmatpush1.bf16.msra.mxu0 0
        %1747 = vmatprep.subr.bf16.mxu0 0
        %1748 = vmatpush1.bf16.msra.mxu0 0
        %1749 = vmatprep.subr.bf16.mxu0 0
        %1750 = vmatpush1.bf16.msra.mxu0 0
        %1751 = vmatprep.subr.bf16.mxu0 0
        %1752 = vmatpush1.bf16.msra.mxu0 0
        %1753 = vmatprep.subr.bf16.mxu0 0
        %1754 = vmatpush1.bf16.msra.mxu0 0
        %1755 = vmatprep.subr.bf16.mxu0 0
        %1756 = vmatpush1.bf16.msra.mxu0 0
        %1757 = vmatprep.subr.bf16.mxu0 0
        %1758 = vmatpush1.bf16.msra.mxu0 0
        %1759 = vmatprep.subr.bf16.mxu0 0
        %1760 = vmatpush1.bf16.msra.mxu0 0
        %1761 = vmatprep.subr.bf16.mxu0 0
        %1762 = vmatpush1.bf16.msra.mxu0 0
        %1763 = vmatprep.subr.bf16.mxu0 0
        %1764 = vmatpush1.bf16.msra.mxu0 0
        %1765 = vmatprep.subr.bf16.mxu0 0
        %1766 = vmatpush1.bf16.msra.mxu0 0
        %1767 = vmatprep.mubr.bf16.mxu0 0
        %1768 = vmatmul.mubr.bf16.gmra.mrb[0].mxu0 %v1688
        %v1769 = vpop.f32.mrb[0].mxu0
        %v1770 = vadd.f32 %v1457, %v1769
        %v1771 = vpop.f32.mrb[0].mxu0
        %v1772 = vpop.f32.mrb[0].mxu0
        %v1773 = vadd.f32 %v1460, %v1772
        %v1774 = vpop.f32.mrb[0].mxu0
        %1775 = vmatprep.mubr.bf16.mxu0 0
        %1776 = vmatmul.mubr.bf16.gmra.mrb[0].mxu0 %v1691
        %v1777 = vpop.f32.mrb[0].mxu0
        %v1778 = vadd.f32 %v1465, %v1777
        %v1779 = vpop.f32.mrb[0].mxu0
        %v1780 = vpop.f32.mrb[0].mxu0
        %v1781 = vadd.f32 %v1468, %v1780
        %v1782 = vpop.f32.mrb[0].mxu0
        %1783 = vmatprep.mubr.bf16.mxu0 0
        %1784 = vmatmul.mubr.bf16.gmra.mrb[0].mxu0 %v1694
        %v1785 = vpop.f32.mrb[0].mxu0
        %v1786 = vadd.f32 %v1473, %v1785
        %v1787 = vpop.f32.mrb[0].mxu0
        %v1788 = vpop.f32.mrb[0].mxu0
        %v1789 = vadd.f32 %v1476, %v1788
        %v1790 = vpop.f32.mrb[0].mxu0
        %1791 = vmatprep.mubr.bf16.mxu0 0
        %1792 = vmatmul.mubr.bf16.gmra.mrb[0].mxu0 %v1697
        %v1793 = vpop.f32.mrb[0].mxu0
        %v1794 = vadd.f32 %v1481, %v1793
        %v1795 = vpop.f32.mrb[0].mxu0
        %v1796 = vpop.f32.mrb[0].mxu0
        %v1797 = vadd.f32 %v1484, %v1796
        %v1798 = vpop.f32.mrb[0].mxu0
        %1799 = vmatprep.mubr.bf16.mxu0 0
        %1800 = vmatmul.mubr.bf16.gmra.mrb[0].mxu0 %v1700
        %v1801 = vpop.f32.mrb[0].mxu0
        %v1802 = vadd.f32 %v1489, %v1801
        %v1803 = vpop.f32.mrb[0].mxu0
        %v1804 = vpop.f32.mrb[0].mxu0
        %v1805 = vadd.f32 %v1492, %v1804
        %v1806 = vpop.f32.mrb[0].mxu0
        %1807 = vmatprep.mubr.bf16.mxu0 0
        %1808 = vmatmul.mubr.bf16.gmra.mrb[0].mxu0 %v1703
        %v1809 = vpop.f32.mrb[0].mxu0
        %v1810 = vadd.f32 %v1497, %v1809
        %v1811 = vpop.f32.mrb[0].mxu0
        %v1812 = vpop.f32.mrb[0].mxu0
        %v1813 = vadd.f32 %v1500, %v1812
        %v1814 = vpop.f32.mrb[0].mxu0
        %1815 = vmatprep.mubr.bf16.mxu0 0
        %1816 = vmatmul.mubr.bf16.gmra.mrb[0].mxu0 %v1706
        %v1817 = vpop.f32.mrb[0].mxu0
        %v1818 = vadd.f32 %v1505, %v1817
        %v1819 = vpop.f32.mrb[0].mxu0
        %v1820 = vpop.f32.mrb[0].mxu0
        %v1821 = vadd.f32 %v1508, %v1820
        %v1822 = vpop.f32.mrb[0].mxu0
        %1823 = vmatprep.mubr.bf16.mxu0 0
        %1824 = vmatmul.mubr.bf16.gmra.mrb[0].mxu0 %v1709
        %v1825 = vpop.f32.mrb[0].mxu0
        %v1826 = vadd.f32 %v1513, %v1825
        %v1827 = vpop.f32.mrb[0].mxu0
        %v1828 = vpop.f32.mrb[0].mxu0
        %v1829 = vadd.f32 %v1516, %v1828
        %v1830 = vpop.f32.mrb[0].mxu0
        %1831 = vmatprep.mubr.bf16.mxu0 0
        %1832 = vmatmul.mubr.bf16.gmra.mrb[0].mxu0 %v1712
        %v1833 = vpop.f32.mrb[0].mxu0
        %v1834 = vadd.f32 %v1521, %v1833
        %v1835 = vpop.f32.mrb[0].mxu0
        %v1836 = vpop.f32.mrb[0].mxu0
        %v1837 = vadd.f32 %v1524, %v1836
        %v1838 = vpop.f32.mrb[0].mxu0
        %1839 = vmatprep.mubr.bf16.mxu0 0
        %1840 = vmatmul.mubr.bf16.gmra.mrb[0].mxu0 %v1715
        %v1841 = vpop.f32.mrb[0].mxu0
        %v1842 = vadd.f32 %v1529, %v1841
        %v1843 = vpop.f32.mrb[0].mxu0
        %v1844 = vpop.f32.mrb[0].mxu0
        %v1845 = vadd.f32 %v1532, %v1844
        %v1846 = vpop.f32.mrb[0].mxu0
        %1847 = vmatprep.mubr.bf16.mxu0 0
        %1848 = vmatmul.mubr.bf16.gmra.mrb[0].mxu0 %v1718
        %v1849 = vpop.f32.mrb[0].mxu0
        %v1850 = vadd.f32 %v1537, %v1849
        %v1851 = vpop.f32.mrb[0].mxu0
        %v1852 = vpop.f32.mrb[0].mxu0
        %v1853 = vadd.f32 %v1540, %v1852
        %v1854 = vpop.f32.mrb[0].mxu0
        %1855 = vmatprep.mubr.bf16.mxu0 0
        %1856 = vmatmul.mubr.bf16.gmra.mrb[0].mxu0 %v1721
        %v1857 = vpop.f32.mrb[0].mxu0
        %v1858 = vadd.f32 %v1545, %v1857
        %v1859 = vpop.f32.mrb[0].mxu0
        %v1860 = vpop.f32.mrb[0].mxu0
        %v1861 = vadd.f32 %v1548, %v1860
        %v1862 = vpop.f32.mrb[0].mxu0
        %1863 = vmatprep.mubr.bf16.mxu0 0
        %1864 = vmatmul.mubr.bf16.gmra.mrb[0].mxu0 %v1724
        %v1865 = vpop.f32.mrb[0].mxu0
        %v1866 = vadd.f32 %v1553, %v1865
        %v1867 = vpop.f32.mrb[0].mxu0
        %v1868 = vpop.f32.mrb[0].mxu0
        %v1869 = vadd.f32 %v1556, %v1868
        %v1870 = vpop.f32.mrb[0].mxu0
        %1871 = vmatprep.mubr.bf16.mxu0 0
        %1872 = vmatmul.mubr.bf16.gmra.mrb[0].mxu0 %v1727
        %v1873 = vpop.f32.mrb[0].mxu0
        %v1874 = vadd.f32 %v1561, %v1873
        %v1875 = vpop.f32.mrb[0].mxu0
        %v1876 = vpop.f32.mrb[0].mxu0
        %v1877 = vadd.f32 %v1564, %v1876
        %v1878 = vpop.f32.mrb[0].mxu0
        %1879 = vmatprep.mubr.bf16.mxu0 0
        %1880 = vmatmul.mubr.bf16.gmra.mrb[0].mxu0 %v1730
        %v1881 = vpop.f32.mrb[0].mxu0
        %v1882 = vadd.f32 %v1569, %v1881
        %v1883 = vpop.f32.mrb[0].mxu0
        %v1884 = vpop.f32.mrb[0].mxu0
        %v1885 = vadd.f32 %v1572, %v1884
        %v1886 = vpop.f32.mrb[0].mxu0
        %1887 = vmatprep.mubr.bf16.mxu0 0
        %1888 = vmatmul.mubr.bf16.gmra.mrb[0].mxu0 %v1733
        %v1889 = vpop.f32.mrb[0].mxu0
        %v1890 = vadd.f32 %v1577, %v1889
        %v1891 = vpop.f32.mrb[0].mxu0
        %v1892 = vpop.f32.mrb[0].mxu0
        %v1893 = vadd.f32 %v1580, %v1892
        %v1894 = vpop.f32.mrb[0].mxu0
        %1895 = vdwg.mxu0
        %v1896 = vld [vmem:[#allocation2] sm:$0xe]
        %v1897 = vld [vmem:[#allocation2 + $0xc] sm:$0xe]
        %v1898 = vld [vmem:[#allocation2 + $0x18] sm:$0xe]
        %v1899 = vld [vmem:[#allocation2 + $0x24] sm:$0xe]
        %v1900 = vld [vmem:[#allocation2 + $0x30] sm:$0xe]
        %v1901 = vld [vmem:[#allocation2 + $0x3c] sm:$0xe]
        %v1902 = vld [vmem:[#allocation2 + $0x48] sm:$0xe]
        %v1903 = vld [vmem:[#allocation2 + $0x54] sm:$0xe]
        %v1904 = vld [vmem:[#allocation2 + $0x60] sm:$0xe]
        %v1905 = vld [vmem:[#allocation2 + $0x6c] sm:$0xe]
        %v1906 = vld [vmem:[#allocation2 + $0x78] sm:$0xe]
        %v1907 = vld [vmem:[#allocation2 + $0x84] sm:$0xe]
        %v1908 = vld [vmem:[#allocation2 + $0x90] sm:$0xe]
        %v1909 = vld [vmem:[#allocation2 + $0x9c] sm:$0xe]
        %v1910 = vld [vmem:[#allocation2 + $0xa8] sm:$0xe]
        %v1911 = vld [vmem:[#allocation2 + $0xb4] sm:$0xe]
        %vm1944 = vcmask 1042432
        %vm1945 = vcmask 1046532
        %vm1946 = vmor %vm1944, %vm1945
        %v1947 = vrot.slane %v1896, 5
        %v1948 = vrot.slane %v1947, 4
        %v1949 = vrot.slane %v850, 5
        %v1950 = vsel %vm1946, %v1948, %v1949
        %v1951 = vrot.slane %v1949, 4
        %v1952 = vrot.slane %v889, 5
        %v1953 = vsel %vm1946, %v1951, %v1952
        %v1954 = vrot.slane %v1897, 5
        %v1955 = vrot.slane %v1954, 4
        %v1956 = vrot.slane %v852, 5
        %v1957 = vsel %vm1946, %v1955, %v1956
        %v1958 = vrot.slane %v1956, 4
        %v1959 = vrot.slane %v890, 5
        %v1960 = vsel %vm1946, %v1958, %v1959
        %v1961 = vrot.slane %v1898, 5
        %v1962 = vrot.slane %v1961, 4
        %v1963 = vrot.slane %v854, 5
        %v1964 = vsel %vm1946, %v1962, %v1963
        %v1965 = vrot.slane %v1963, 4
        %v1966 = vrot.slane %v891, 5
        %v1967 = vsel %vm1946, %v1965, %v1966
        %v1968 = vrot.slane %v1899, 5
        %v1969 = vrot.slane %v1968, 4
        %v1970 = vrot.slane %v856, 5
        %v1971 = vsel %vm1946, %v1969, %v1970
        %v1972 = vrot.slane %v1970, 4
        %v1973 = vrot.slane %v892, 5
        %v1974 = vsel %vm1946, %v1972, %v1973
        %v1975 = vrot.slane %v1900, 5
        %v1976 = vrot.slane %v1975, 4
        %v1977 = vrot.slane %v858, 5
        %v1978 = vsel %vm1946, %v1976, %v1977
        %v1979 = vrot.slane %v1977, 4
        %v1980 = vrot.slane %v893, 5
        %v1981 = vsel %vm1946, %v1979, %v1980
        %v1982 = vrot.slane %v1901, 5
        %v1983 = vrot.slane %v1982, 4
        %v1984 = vrot.slane %v860, 5
        %v1985 = vsel %vm1946, %v1983, %v1984
        %v1986 = vrot.slane %v1984, 4
        %v1987 = vrot.slane %v894, 5
        %v1988 = vsel %vm1946, %v1986, %v1987
        %v1989 = vrot.slane %v1902, 5
        %v1990 = vrot.slane %v1989, 4
        %v1991 = vrot.slane %v862, 5
        %v1992 = vsel %vm1946, %v1990, %v1991
        %v1993 = vrot.slane %v1991, 4
        %v1994 = vrot.slane %v895, 5
        %v1995 = vsel %vm1946, %v1993, %v1994
        %v1996 = vrot.slane %v1903, 5
        %v1997 = vrot.slane %v1996, 4
        %v1998 = vrot.slane %v864, 5
        %v1999 = vsel %vm1946, %v1997, %v1998
        %v2000 = vrot.slane %v1998, 4
        %v2001 = vrot.slane %v896, 5
        %v2002 = vsel %vm1946, %v2000, %v2001
        %v2003 = vrot.slane %v1904, 5
        %v2004 = vrot.slane %v2003, 4
        %v2005 = vrot.slane %v866, 5
        %v2006 = vsel %vm1946, %v2004, %v2005
        %v2007 = vrot.slane %v2005, 4
        %v2008 = vrot.slane %v897, 5
        %v2009 = vsel %vm1946, %v2007, %v2008
        %v2010 = vrot.slane %v1905, 5
        %v2011 = vrot.slane %v2010, 4
        %v2012 = vrot.slane %v868, 5
        %v2013 = vsel %vm1946, %v2011, %v2012
        %v2014 = vrot.slane %v2012, 4
        %v2015 = vrot.slane %v898, 5
        %v2016 = vsel %vm1946, %v2014, %v2015
        %v2017 = vrot.slane %v1906, 5
        %v2018 = vrot.slane %v2017, 4
        %v2019 = vrot.slane %v870, 5
        %v2020 = vsel %vm1946, %v2018, %v2019
        %v2021 = vrot.slane %v2019, 4
        %v2022 = vrot.slane %v899, 5
        %v2023 = vsel %vm1946, %v2021, %v2022
        %v2024 = vrot.slane %v1907, 5
        %v2025 = vrot.slane %v2024, 4
        %v2026 = vrot.slane %v872, 5
        %v2027 = vsel %vm1946, %v2025, %v2026
        %v2028 = vrot.slane %v2026, 4
        %v2029 = vrot.slane %v900, 5
        %v2030 = vsel %vm1946, %v2028, %v2029
        %v2031 = vrot.slane %v1908, 5
        %v2032 = vrot.slane %v2031, 4
        %v2033 = vrot.slane %v874, 5
        %v2034 = vsel %vm1946, %v2032, %v2033
        %v2035 = vrot.slane %v2033, 4
        %v2036 = vrot.slane %v901, 5
        %v2037 = vsel %vm1946, %v2035, %v2036
        %v2038 = vrot.slane %v1909, 5
        %v2039 = vrot.slane %v2038, 4
        %v2040 = vrot.slane %v876, 5
        %v2041 = vsel %vm1946, %v2039, %v2040
        %v2042 = vrot.slane %v2040, 4
        %v2043 = vrot.slane %v902, 5
        %v2044 = vsel %vm1946, %v2042, %v2043
        %v2045 = vrot.slane %v1910, 5
        %v2046 = vrot.slane %v2045, 4
        %v2047 = vrot.slane %v878, 5
        %v2048 = vsel %vm1946, %v2046, %v2047
        %v2049 = vrot.slane %v2047, 4
        %v2050 = vrot.slane %v903, 5
        %v2051 = vsel %vm1946, %v2049, %v2050
        %v2052 = vrot.slane %v1911, 5
        %v2053 = vrot.slane %v2052, 4
        %v2054 = vrot.slane %v880, 5
        %v2055 = vsel %vm1946, %v2053, %v2054
        %v2056 = vrot.slane %v2054, 4
        %v2057 = vrot.slane %v904, 5
        %v2058 = vsel %vm1946, %v2056, %v2057
        %s2059 = scalar_lea.vmem %s1, 64
        %v2060 = vld [vmem:[%s2059] sm:$0xf]
        %v2061 = vld [vmem:[%s2059 + $0x4] sm:$0xf]
        %v2062 = vld [vmem:[%s2059 + $0x8] sm:$0xf]
        %v2063 = vld [vmem:[%s2059 + $0xc] sm:$0xf]
        %v2064 = vld [vmem:[%s2059 + $0x10] sm:$0xf]
        %v2065 = vld [vmem:[%s2059 + $0x14] sm:$0xf]
        %v2066 = vld [vmem:[%s2059 + $0x18] sm:$0xf]
        %v2067 = vld [vmem:[%s2059 + $0x1c] sm:$0xf]
        %v2068 = vunpack.c.l.b16 %v1950
        %v2069 = vunpack.c.l.b16 %v1953
        %v2070 = vunpack.c.l.b16 %v1957
        %v2071 = vunpack.c.l.b16 %v1960
        %v2072 = vunpack.c.l.b16 %v1964
        %v2073 = vunpack.c.l.b16 %v1967
        %v2074 = vunpack.c.l.b16 %v1971
        %v2075 = vunpack.c.l.b16 %v1974
        %v2076 = vunpack.c.l.b16 %v1978
        %v2077 = vunpack.c.l.b16 %v1981
        %v2078 = vunpack.c.l.b16 %v1985
        %v2079 = vunpack.c.l.b16 %v1988
        %v2080 = vunpack.c.l.b16 %v1992
        %v2081 = vunpack.c.l.b16 %v1995
        %v2082 = vunpack.c.l.b16 %v1999
        %v2083 = vunpack.c.l.b16 %v2002
        %v2084 = vunpack.c.l.b16 %v2006
        %v2085 = vunpack.c.l.b16 %v2009
        %v2086 = vunpack.c.l.b16 %v2013
        %v2087 = vunpack.c.l.b16 %v2016
        %v2088 = vunpack.c.l.b16 %v2020
        %v2089 = vunpack.c.l.b16 %v2023
        %v2090 = vunpack.c.l.b16 %v2027
        %v2091 = vunpack.c.l.b16 %v2030
        %v2092 = vunpack.c.l.b16 %v2034
        %v2093 = vunpack.c.l.b16 %v2037
        %v2094 = vunpack.c.l.b16 %v2041
        %v2095 = vunpack.c.l.b16 %v2044
        %v2096 = vunpack.c.l.b16 %v2048
        %v2097 = vunpack.c.l.b16 %v2051
        %v2098 = vunpack.c.l.b16 %v2055
        %v2099 = vunpack.c.l.b16 %v2058
        %v2100 = vpack.c.b16 %v2069, %v2068
        %v2101 = vpack.c.b16 %v2071, %v2070
        %v2102 = vpack.c.b16 %v2073, %v2072
        %v2103 = vpack.c.b16 %v2075, %v2074
        %v2104 = vpack.c.b16 %v2077, %v2076
        %v2105 = vpack.c.b16 %v2079, %v2078
        %v2106 = vpack.c.b16 %v2081, %v2080
        %v2107 = vpack.c.b16 %v2083, %v2082
        %v2108 = vpack.c.b16 %v2085, %v2084
        %v2109 = vpack.c.b16 %v2087, %v2086
        %v2110 = vpack.c.b16 %v2089, %v2088
        %v2111 = vpack.c.b16 %v2091, %v2090
        %v2112 = vpack.c.b16 %v2093, %v2092
        %v2113 = vpack.c.b16 %v2095, %v2094
        %v2114 = vpack.c.b16 %v2097, %v2096
        %v2115 = vpack.c.b16 %v2099, %v2098
        %v2124 = vunpack.c.l.b16 %v2060
        %v2125 = vunpack.c.l.b16 %v2061
        %v2126 = vunpack.c.l.b16 %v2062
        %v2127 = vunpack.c.l.b16 %v2063
        %v2128 = vunpack.c.l.b16 %v2064
        %v2129 = vunpack.c.l.b16 %v2065
        %v2130 = vunpack.c.l.b16 %v2066
        %v2131 = vunpack.c.l.b16 %v2067
        %v2132 = vpack.c.b16 %v2125, %v2124
        %v2133 = vpack.c.b16 %v2127, %v2126
        %v2134 = vpack.c.b16 %v2129, %v2128
        %v2135 = vpack.c.b16 %v2131, %v2130
        %v2141 = vsel %vm1373, %v2100, 0
        %v2144 = vsel %vm1373, %v2101, 0
        %v2147 = vsel %vm1373, %v2102, 0
        %v2150 = vsel %vm1373, %v2103, 0
        %v2153 = vsel %vm1373, %v2104, 0
        %v2156 = vsel %vm1373, %v2105, 0
        %v2159 = vsel %vm1373, %v2106, 0
        %v2162 = vsel %vm1373, %v2107, 0
        %v2165 = vsel %vm1373, %v2108, 0
        %v2168 = vsel %vm1373, %v2109, 0
        %v2171 = vsel %vm1373, %v2110, 0
        %v2174 = vsel %vm1373, %v2111, 0
        %v2177 = vsel %vm1373, %v2112, 0
        %v2180 = vsel %vm1373, %v2113, 0
        %v2183 = vsel %vm1373, %v2114, 0
        %v2186 = vsel %vm1373, %v2115, 0
        %2188 = vmatprep.subr.bf16.mxu0 0
        %2189 = vmatpush1.bf16.msra.mxu0 %v2132
        %2190 = vmatprep.subr.bf16.mxu0 0
        %2191 = vmatpush1.bf16.msra.mxu0 %v2133
        %2192 = vmatprep.subr.bf16.mxu0 0
        %2193 = vmatpush1.bf16.msra.mxu0 %v2134
        %2194 = vmatprep.subr.bf16.mxu0 0
        %2195 = vmatpush1.bf16.msra.mxu0 %v2135
        %2196 = vmatprep.subr.bf16.mxu0 0
        %2197 = vmatpush1.bf16.msra.mxu0 0
        %2198 = vmatprep.subr.bf16.mxu0 0
        %2199 = vmatpush1.bf16.msra.mxu0 0
        %2200 = vmatprep.subr.bf16.mxu0 0
        %2201 = vmatpush1.bf16.msra.mxu0 0
        %2202 = vmatprep.subr.bf16.mxu0 0
        %2203 = vmatpush1.bf16.msra.mxu0 0
        %2204 = vmatprep.subr.bf16.mxu0 0
        %2205 = vmatpush1.bf16.msra.mxu0 0
        %2206 = vmatprep.subr.bf16.mxu0 0
        %2207 = vmatpush1.bf16.msra.mxu0 0
        %2208 = vmatprep.subr.bf16.mxu0 0
        %2209 = vmatpush1.bf16.msra.mxu0 0
        %2210 = vmatprep.subr.bf16.mxu0 0
        %2211 = vmatpush1.bf16.msra.mxu0 0
        %2212 = vmatprep.subr.bf16.mxu0 0
        %2213 = vmatpush1.bf16.msra.mxu0 0
        %2214 = vmatprep.subr.bf16.mxu0 0
        %2215 = vmatpush1.bf16.msra.mxu0 0
        %2216 = vmatprep.subr.bf16.mxu0 0
        %2217 = vmatpush1.bf16.msra.mxu0 0
        %2218 = vmatprep.subr.bf16.mxu0 0
        %2219 = vmatpush1.bf16.msra.mxu0 0
        %2220 = vmatprep.mubr.bf16.mxu0 0
        %2221 = vmatmul.mubr.bf16.gmra.mrb[0].mxu0 %v2141
        %v2222 = vpop.f32.mrb[0].mxu0
        %v2223 = vadd.f32 0.0, %v2222
        %v2224 = vpop.f32.mrb[0].mxu0
        %v2225 = vpop.f32.mrb[0].mxu0
        %v2226 = vadd.f32 0.0, %v2225
        %v2227 = vpop.f32.mrb[0].mxu0
        %2228 = vmatprep.mubr.bf16.mxu0 0
        %2229 = vmatmul.mubr.bf16.gmra.mrb[0].mxu0 %v2144
        %v2230 = vpop.f32.mrb[0].mxu0
        %v2231 = vadd.f32 0.0, %v2230
        %v2232 = vpop.f32.mrb[0].mxu0
        %v2233 = vpop.f32.mrb[0].mxu0
        %v2234 = vadd.f32 0.0, %v2233
        %v2235 = vpop.f32.mrb[0].mxu0
        %2236 = vmatprep.mubr.bf16.mxu0 0
        %2237 = vmatmul.mubr.bf16.gmra.mrb[0].mxu0 %v2147
        %v2238 = vpop.f32.mrb[0].mxu0
        %v2239 = vadd.f32 0.0, %v2238
        %v2240 = vpop.f32.mrb[0].mxu0
        %v2241 = vpop.f32.mrb[0].mxu0
        %v2242 = vadd.f32 0.0, %v2241
        %v2243 = vpop.f32.mrb[0].mxu0
        %2244 = vmatprep.mubr.bf16.mxu0 0
        %2245 = vmatmul.mubr.bf16.gmra.mrb[0].mxu0 %v2150
        %v2246 = vpop.f32.mrb[0].mxu0
        %v2247 = vadd.f32 0.0, %v2246
        %v2248 = vpop.f32.mrb[0].mxu0
        %v2249 = vpop.f32.mrb[0].mxu0
        %v2250 = vadd.f32 0.0, %v2249
        %v2251 = vpop.f32.mrb[0].mxu0
        %2252 = vmatprep.mubr.bf16.mxu0 0
        %2253 = vmatmul.mubr.bf16.gmra.mrb[0].mxu0 %v2153
        %v2254 = vpop.f32.mrb[0].mxu0
        %v2255 = vadd.f32 0.0, %v2254
        %v2256 = vpop.f32.mrb[0].mxu0
        %v2257 = vpop.f32.mrb[0].mxu0
        %v2258 = vadd.f32 0.0, %v2257
        %v2259 = vpop.f32.mrb[0].mxu0
        %2260 = vmatprep.mubr.bf16.mxu0 0
        %2261 = vmatmul.mubr.bf16.gmra.mrb[0].mxu0 %v2156
        %v2262 = vpop.f32.mrb[0].mxu0
        %v2263 = vadd.f32 0.0, %v2262
        %v2264 = vpop.f32.mrb[0].mxu0
        %v2265 = vpop.f32.mrb[0].mxu0
        %v2266 = vadd.f32 0.0, %v2265
        %v2267 = vpop.f32.mrb[0].mxu0
        %2268 = vmatprep.mubr.bf16.mxu0 0
        %2269 = vmatmul.mubr.bf16.gmra.mrb[0].mxu0 %v2159
        %v2270 = vpop.f32.mrb[0].mxu0
        %v2271 = vadd.f32 0.0, %v2270
        %v2272 = vpop.f32.mrb[0].mxu0
        %v2273 = vpop.f32.mrb[0].mxu0
        %v2274 = vadd.f32 0.0, %v2273
        %v2275 = vpop.f32.mrb[0].mxu0
        %2276 = vmatprep.mubr.bf16.mxu0 0
        %2277 = vmatmul.mubr.bf16.gmra.mrb[0].mxu0 %v2162
        %v2278 = vpop.f32.mrb[0].mxu0
        %v2279 = vadd.f32 0.0, %v2278
        %v2280 = vpop.f32.mrb[0].mxu0
        %v2281 = vpop.f32.mrb[0].mxu0
        %v2282 = vadd.f32 0.0, %v2281
        %v2283 = vpop.f32.mrb[0].mxu0
        %2284 = vmatprep.mubr.bf16.mxu0 0
        %2285 = vmatmul.mubr.bf16.gmra.mrb[0].mxu0 %v2165
        %v2286 = vpop.f32.mrb[0].mxu0
        %v2287 = vadd.f32 0.0, %v2286
        %v2288 = vpop.f32.mrb[0].mxu0
        %v2289 = vpop.f32.mrb[0].mxu0
        %v2290 = vadd.f32 0.0, %v2289
        %v2291 = vpop.f32.mrb[0].mxu0
        %2292 = vmatprep.mubr.bf16.mxu0 0
        %2293 = vmatmul.mubr.bf16.gmra.mrb[0].mxu0 %v2168
        %v2294 = vpop.f32.mrb[0].mxu0
        %v2295 = vadd.f32 0.0, %v2294
        %v2296 = vpop.f32.mrb[0].mxu0
        %v2297 = vpop.f32.mrb[0].mxu0
        %v2298 = vadd.f32 0.0, %v2297
        %v2299 = vpop.f32.mrb[0].mxu0
        %2300 = vmatprep.mubr.bf16.mxu0 0
        %2301 = vmatmul.mubr.bf16.gmra.mrb[0].mxu0 %v2171
        %v2302 = vpop.f32.mrb[0].mxu0
        %v2303 = vadd.f32 0.0, %v2302
        %v2304 = vpop.f32.mrb[0].mxu0
        %v2305 = vpop.f32.mrb[0].mxu0
        %v2306 = vadd.f32 0.0, %v2305
        %v2307 = vpop.f32.mrb[0].mxu0
        %2308 = vmatprep.mubr.bf16.mxu0 0
        %2309 = vmatmul.mubr.bf16.gmra.mrb[0].mxu0 %v2174
        %v2310 = vpop.f32.mrb[0].mxu0
        %v2311 = vadd.f32 0.0, %v2310
        %v2312 = vpop.f32.mrb[0].mxu0
        %v2313 = vpop.f32.mrb[0].mxu0
        %v2314 = vadd.f32 0.0, %v2313
        %v2315 = vpop.f32.mrb[0].mxu0
        %2316 = vmatprep.mubr.bf16.mxu0 0
        %2317 = vmatmul.mubr.bf16.gmra.mrb[0].mxu0 %v2177
        %v2318 = vpop.f32.mrb[0].mxu0
        %v2319 = vadd.f32 0.0, %v2318
        %v2320 = vpop.f32.mrb[0].mxu0
        %v2321 = vpop.f32.mrb[0].mxu0
        %v2322 = vadd.f32 0.0, %v2321
        %v2323 = vpop.f32.mrb[0].mxu0
        %2324 = vmatprep.mubr.bf16.mxu0 0
        %2325 = vmatmul.mubr.bf16.gmra.mrb[0].mxu0 %v2180
        %v2326 = vpop.f32.mrb[0].mxu0
        %v2327 = vadd.f32 0.0, %v2326
        %v2328 = vpop.f32.mrb[0].mxu0
        %v2329 = vpop.f32.mrb[0].mxu0
        %v2330 = vadd.f32 0.0, %v2329
        %v2331 = vpop.f32.mrb[0].mxu0
        %2332 = vmatprep.mubr.bf16.mxu0 0
        %2333 = vmatmul.mubr.bf16.gmra.mrb[0].mxu0 %v2183
        %v2334 = vpop.f32.mrb[0].mxu0
        %v2335 = vadd.f32 0.0, %v2334
        %v2336 = vpop.f32.mrb[0].mxu0
        %v2337 = vpop.f32.mrb[0].mxu0
        %v2338 = vadd.f32 0.0, %v2337
        %v2339 = vpop.f32.mrb[0].mxu0
        %2340 = vmatprep.mubr.bf16.mxu0 0
        %2341 = vmatmul.mubr.bf16.gmra.mrb[0].mxu0 %v2186
        %v2342 = vpop.f32.mrb[0].mxu0
        %v2343 = vadd.f32 0.0, %v2342
        %v2344 = vpop.f32.mrb[0].mxu0
        %v2345 = vpop.f32.mrb[0].mxu0
        %v2346 = vadd.f32 0.0, %v2345
        %v2347 = vpop.f32.mrb[0].mxu0
        %2348 = vdwg.mxu0
        %v2349 = vadd.f32 %v1770, %v2223
        %v2350 = vadd.f32 %v1773, %v2226
        %v2351 = vadd.f32 %v1778, %v2231
        %v2352 = vadd.f32 %v1781, %v2234
        %v2353 = vadd.f32 %v1786, %v2239
        %v2354 = vadd.f32 %v1789, %v2242
        %v2355 = vadd.f32 %v1794, %v2247
        %v2356 = vadd.f32 %v1797, %v2250
        %v2357 = vadd.f32 %v1802, %v2255
        %v2358 = vadd.f32 %v1805, %v2258
        %v2359 = vadd.f32 %v1810, %v2263
        %v2360 = vadd.f32 %v1813, %v2266
        %v2361 = vadd.f32 %v1818, %v2271
        %v2362 = vadd.f32 %v1821, %v2274
        %v2363 = vadd.f32 %v1826, %v2279
        %v2364 = vadd.f32 %v1829, %v2282
        %v2365 = vadd.f32 %v1834, %v2287
        %v2366 = vadd.f32 %v1837, %v2290
        %v2367 = vadd.f32 %v1842, %v2295
        %v2368 = vadd.f32 %v1845, %v2298
        %v2369 = vadd.f32 %v1850, %v2303
        %v2370 = vadd.f32 %v1853, %v2306
        %v2371 = vadd.f32 %v1858, %v2311
        %v2372 = vadd.f32 %v1861, %v2314
        %v2373 = vadd.f32 %v1866, %v2319
        %v2374 = vadd.f32 %v1869, %v2322
        %v2375 = vadd.f32 %v1874, %v2327
        %v2376 = vadd.f32 %v1877, %v2330
        %v2377 = vadd.f32 %v1882, %v2335
        %v2378 = vadd.f32 %v1885, %v2338
        %v2379 = vadd.f32 %v1890, %v2343
        %v2380 = vadd.f32 %v1893, %v2346
        %v2381 = vld [vmem:[%s731] sm:$0xf]
        %v2382 = vld [vmem:[%s731 + $0x4] sm:$0xf]
        %v2383 = vld [vmem:[%s731 + $0xc] sm:$0xf]
        %v2384 = vld [vmem:[%s731 + $0x10] sm:$0xf]
        %v2385 = vld [vmem:[%s731 + $0x18] sm:$0xf]
        %v2386 = vld [vmem:[%s731 + $0x1c] sm:$0xf]
        %v2387 = vld [vmem:[%s731 + $0x24] sm:$0xf]
        %v2388 = vld [vmem:[%s731 + $0x28] sm:$0xf]
        %v2389 = vld [vmem:[%s731 + $0x30] sm:$0xf]
        %v2390 = vld [vmem:[%s731 + $0x34] sm:$0xf]
        %v2391 = vld [vmem:[%s731 + $0x3c] sm:$0xf]
        %v2392 = vld [vmem:[%s731 + $0x40] sm:$0xf]
        %v2393 = vld [vmem:[%s731 + $0x48] sm:$0xf]
        %v2394 = vld [vmem:[%s731 + $0x4c] sm:$0xf]
        %v2395 = vld [vmem:[%s731 + $0x54] sm:$0xf]
        %v2396 = vld [vmem:[%s731 + $0x58] sm:$0xf]
        %v2397 = vld [vmem:[%s731 + $0x60] sm:$0xf]
        %v2398 = vld [vmem:[%s731 + $0x64] sm:$0xf]
        %v2399 = vld [vmem:[%s731 + $0x6c] sm:$0xf]
        %v2400 = vld [vmem:[%s731 + $0x70] sm:$0xf]
        %v2401 = vld [vmem:[%s731 + $0x78] sm:$0xf]
        %v2402 = vld [vmem:[%s731 + $0x7c] sm:$0xf]
        %v2403 = vld [vmem:[%s731 + $0x84] sm:$0xf]
        %v2404 = vld [vmem:[%s731 + $0x88] sm:$0xf]
        %v2405 = vld [vmem:[%s731 + $0x90] sm:$0xf]
        %v2406 = vld [vmem:[%s731 + $0x94] sm:$0xf]
        %v2407 = vld [vmem:[%s731 + $0x9c] sm:$0xf]
        %v2408 = vld [vmem:[%s731 + $0xa0] sm:$0xf]
        %v2409 = vld [vmem:[%s731 + $0xa8] sm:$0xf]
        %v2410 = vld [vmem:[%s731 + $0xac] sm:$0xf]
        %v2411 = vld [vmem:[%s731 + $0xb4] sm:$0xf]
        %v2412 = vld [vmem:[%s731 + $0xb8] sm:$0xf]
        %s2413 = scalar_lea.vmem %s1, 96
        %v2414 = vld [vmem:[%s2413] sm:$0xf]
        %v2415 = vld [vmem:[%s2413 + $0x4] sm:$0xf]
        %v2416 = vld [vmem:[%s2413 + $0x8] sm:$0xf]
        %v2417 = vld [vmem:[%s2413 + $0xc] sm:$0xf]
        %v2418 = vld [vmem:[%s2413 + $0x10] sm:$0xf]
        %v2419 = vld [vmem:[%s2413 + $0x14] sm:$0xf]
        %v2420 = vld [vmem:[%s2413 + $0x18] sm:$0xf]
        %v2421 = vld [vmem:[%s2413 + $0x1c] sm:$0xf]
        %v2454 = vunpack.c.l.b16 %v2381
        %v2455 = vunpack.c.l.b16 %v2382
        %v2456 = vunpack.c.l.b16 %v2383
        %v2457 = vunpack.c.l.b16 %v2384
        %v2458 = vunpack.c.l.b16 %v2385
        %v2459 = vunpack.c.l.b16 %v2386
        %v2460 = vunpack.c.l.b16 %v2387
        %v2461 = vunpack.c.l.b16 %v2388
        %v2462 = vunpack.c.l.b16 %v2389
        %v2463 = vunpack.c.l.b16 %v2390
        %v2464 = vunpack.c.l.b16 %v2391
        %v2465 = vunpack.c.l.b16 %v2392
        %v2466 = vunpack.c.l.b16 %v2393
        %v2467 = vunpack.c.l.b16 %v2394
        %v2468 = vunpack.c.l.b16 %v2395
        %v2469 = vunpack.c.l.b16 %v2396
        %v2470 = vunpack.c.l.b16 %v2397
        %v2471 = vunpack.c.l.b16 %v2398
        %v2472 = vunpack.c.l.b16 %v2399
        %v2473 = vunpack.c.l.b16 %v2400
        %v2474 = vunpack.c.l.b16 %v2401
        %v2475 = vunpack.c.l.b16 %v2402
        %v2476 = vunpack.c.l.b16 %v2403
        %v2477 = vunpack.c.l.b16 %v2404
        %v2478 = vunpack.c.l.b16 %v2405
        %v2479 = vunpack.c.l.b16 %v2406
        %v2480 = vunpack.c.l.b16 %v2407
        %v2481 = vunpack.c.l.b16 %v2408
        %v2482 = vunpack.c.l.b16 %v2409
        %v2483 = vunpack.c.l.b16 %v2410
        %v2484 = vunpack.c.l.b16 %v2411
        %v2485 = vunpack.c.l.b16 %v2412
        %v2486 = vpack.c.b16 %v2455, %v2454
        %v2487 = vpack.c.b16 %v2457, %v2456
        %v2488 = vpack.c.b16 %v2459, %v2458
        %v2489 = vpack.c.b16 %v2461, %v2460
        %v2490 = vpack.c.b16 %v2463, %v2462
        %v2491 = vpack.c.b16 %v2465, %v2464
        %v2492 = vpack.c.b16 %v2467, %v2466
        %v2493 = vpack.c.b16 %v2469, %v2468
        %v2494 = vpack.c.b16 %v2471, %v2470
        %v2495 = vpack.c.b16 %v2473, %v2472
        %v2496 = vpack.c.b16 %v2475, %v2474
        %v2497 = vpack.c.b16 %v2477, %v2476
        %v2498 = vpack.c.b16 %v2479, %v2478
        %v2499 = vpack.c.b16 %v2481, %v2480
        %v2500 = vpack.c.b16 %v2483, %v2482
        %v2501 = vpack.c.b16 %v2485, %v2484
        %v2510 = vunpack.c.l.b16 %v2414
        %v2511 = vunpack.c.l.b16 %v2415
        %v2512 = vunpack.c.l.b16 %v2416
        %v2513 = vunpack.c.l.b16 %v2417
        %v2514 = vunpack.c.l.b16 %v2418
        %v2515 = vunpack.c.l.b16 %v2419
        %v2516 = vunpack.c.l.b16 %v2420
        %v2517 = vunpack.c.l.b16 %v2421
        %v2518 = vpack.c.b16 %v2511, %v2510
        %v2519 = vpack.c.b16 %v2513, %v2512
        %v2520 = vpack.c.b16 %v2515, %v2514
        %v2521 = vpack.c.b16 %v2517, %v2516
        %v2527 = vsel %vm1373, %v2486, 0
        %v2530 = vsel %vm1373, %v2487, 0
        %v2533 = vsel %vm1373, %v2488, 0
        %v2536 = vsel %vm1373, %v2489, 0
        %v2539 = vsel %vm1373, %v2490, 0
        %v2542 = vsel %vm1373, %v2491, 0
        %v2545 = vsel %vm1373, %v2492, 0
        %v2548 = vsel %vm1373, %v2493, 0
        %v2551 = vsel %vm1373, %v2494, 0
        %v2554 = vsel %vm1373, %v2495, 0
        %v2557 = vsel %vm1373, %v2496, 0
        %v2560 = vsel %vm1373, %v2497, 0
        %v2563 = vsel %vm1373, %v2498, 0
        %v2566 = vsel %vm1373, %v2499, 0
        %v2569 = vsel %vm1373, %v2500, 0
        %v2572 = vsel %vm1373, %v2501, 0
        %2574 = vmatprep.subr.bf16.mxu0 0
        %2575 = vmatpush1.bf16.msra.mxu0 %v2518
        %2576 = vmatprep.subr.bf16.mxu0 0
        %2577 = vmatpush1.bf16.msra.mxu0 %v2519
        %2578 = vmatprep.subr.bf16.mxu0 0
        %2579 = vmatpush1.bf16.msra.mxu0 %v2520
        %2580 = vmatprep.subr.bf16.mxu0 0
        %2581 = vmatpush1.bf16.msra.mxu0 %v2521
        %2582 = vmatprep.subr.bf16.mxu0 0
        %2583 = vmatpush1.bf16.msra.mxu0 0
        %2584 = vmatprep.subr.bf16.mxu0 0
        %2585 = vmatpush1.bf16.msra.mxu0 0
        %2586 = vmatprep.subr.bf16.mxu0 0
        %2587 = vmatpush1.bf16.msra.mxu0 0
        %2588 = vmatprep.subr.bf16.mxu0 0
        %2589 = vmatpush1.bf16.msra.mxu0 0
        %2590 = vmatprep.subr.bf16.mxu0 0
        %2591 = vmatpush1.bf16.msra.mxu0 0
        %2592 = vmatprep.subr.bf16.mxu0 0
        %2593 = vmatpush1.bf16.msra.mxu0 0
        %2594 = vmatprep.subr.bf16.mxu0 0
        %2595 = vmatpush1.bf16.msra.mxu0 0
        %2596 = vmatprep.subr.bf16.mxu0 0
        %2597 = vmatpush1.bf16.msra.mxu0 0
        %2598 = vmatprep.subr.bf16.mxu0 0
        %2599 = vmatpush1.bf16.msra.mxu0 0
        %2600 = vmatprep.subr.bf16.mxu0 0
        %2601 = vmatpush1.bf16.msra.mxu0 0
        %2602 = vmatprep.subr.bf16.mxu0 0
        %2603 = vmatpush1.bf16.msra.mxu0 0
        %2604 = vmatprep.subr.bf16.mxu0 0
        %2605 = vmatpush1.bf16.msra.mxu0 0
        %2606 = vmatprep.mubr.bf16.mxu0 0
        %2607 = vmatmul.mubr.bf16.gmra.mrb[0].mxu0 %v2527
        %v2608 = vpop.f32.mrb[0].mxu0
        %v2609 = vadd.f32 0.0, %v2608
        %v2610 = vpop.f32.mrb[0].mxu0
        %v2611 = vpop.f32.mrb[0].mxu0
        %v2612 = vadd.f32 0.0, %v2611
        %v2613 = vpop.f32.mrb[0].mxu0
        %2614 = vmatprep.mubr.bf16.mxu0 0
        %2615 = vmatmul.mubr.bf16.gmra.mrb[0].mxu0 %v2530
        %v2616 = vpop.f32.mrb[0].mxu0
        %v2617 = vadd.f32 0.0, %v2616
        %v2618 = vpop.f32.mrb[0].mxu0
        %v2619 = vpop.f32.mrb[0].mxu0
        %v2620 = vadd.f32 0.0, %v2619
        %v2621 = vpop.f32.mrb[0].mxu0
        %2622 = vmatprep.mubr.bf16.mxu0 0
        %2623 = vmatmul.mubr.bf16.gmra.mrb[0].mxu0 %v2533
        %v2624 = vpop.f32.mrb[0].mxu0
        %v2625 = vadd.f32 0.0, %v2624
        %v2626 = vpop.f32.mrb[0].mxu0
        %v2627 = vpop.f32.mrb[0].mxu0
        %v2628 = vadd.f32 0.0, %v2627
        %v2629 = vpop.f32.mrb[0].mxu0
        %2630 = vmatprep.mubr.bf16.mxu0 0
        %2631 = vmatmul.mubr.bf16.gmra.mrb[0].mxu0 %v2536
        %v2632 = vpop.f32.mrb[0].mxu0
        %v2633 = vadd.f32 0.0, %v2632
        %v2634 = vpop.f32.mrb[0].mxu0
        %v2635 = vpop.f32.mrb[0].mxu0
        %v2636 = vadd.f32 0.0, %v2635
        %v2637 = vpop.f32.mrb[0].mxu0
        %2638 = vmatprep.mubr.bf16.mxu0 0
        %2639 = vmatmul.mubr.bf16.gmra.mrb[0].mxu0 %v2539
        %v2640 = vpop.f32.mrb[0].mxu0
        %v2641 = vadd.f32 0.0, %v2640
        %v2642 = vpop.f32.mrb[0].mxu0
        %v2643 = vpop.f32.mrb[0].mxu0
        %v2644 = vadd.f32 0.0, %v2643
        %v2645 = vpop.f32.mrb[0].mxu0
        %2646 = vmatprep.mubr.bf16.mxu0 0
        %2647 = vmatmul.mubr.bf16.gmra.mrb[0].mxu0 %v2542
        %v2648 = vpop.f32.mrb[0].mxu0
        %v2649 = vadd.f32 0.0, %v2648
        %v2650 = vpop.f32.mrb[0].mxu0
        %v2651 = vpop.f32.mrb[0].mxu0
        %v2652 = vadd.f32 0.0, %v2651
        %v2653 = vpop.f32.mrb[0].mxu0
        %2654 = vmatprep.mubr.bf16.mxu0 0
        %2655 = vmatmul.mubr.bf16.gmra.mrb[0].mxu0 %v2545
        %v2656 = vpop.f32.mrb[0].mxu0
        %v2657 = vadd.f32 0.0, %v2656
        %v2658 = vpop.f32.mrb[0].mxu0
        %v2659 = vpop.f32.mrb[0].mxu0
        %v2660 = vadd.f32 0.0, %v2659
        %v2661 = vpop.f32.mrb[0].mxu0
        %2662 = vmatprep.mubr.bf16.mxu0 0
        %2663 = vmatmul.mubr.bf16.gmra.mrb[0].mxu0 %v2548
        %v2664 = vpop.f32.mrb[0].mxu0
        %v2665 = vadd.f32 0.0, %v2664
        %v2666 = vpop.f32.mrb[0].mxu0
        %v2667 = vpop.f32.mrb[0].mxu0
        %v2668 = vadd.f32 0.0, %v2667
        %v2669 = vpop.f32.mrb[0].mxu0
        %2670 = vmatprep.mubr.bf16.mxu0 0
        %2671 = vmatmul.mubr.bf16.gmra.mrb[0].mxu0 %v2551
        %v2672 = vpop.f32.mrb[0].mxu0
        %v2673 = vadd.f32 0.0, %v2672
        %v2674 = vpop.f32.mrb[0].mxu0
        %v2675 = vpop.f32.mrb[0].mxu0
        %v2676 = vadd.f32 0.0, %v2675
        %v2677 = vpop.f32.mrb[0].mxu0
        %2678 = vmatprep.mubr.bf16.mxu0 0
        %2679 = vmatmul.mubr.bf16.gmra.mrb[0].mxu0 %v2554
        %v2680 = vpop.f32.mrb[0].mxu0
        %v2681 = vadd.f32 0.0, %v2680
        %v2682 = vpop.f32.mrb[0].mxu0
        %v2683 = vpop.f32.mrb[0].mxu0
        %v2684 = vadd.f32 0.0, %v2683
        %v2685 = vpop.f32.mrb[0].mxu0
        %2686 = vmatprep.mubr.bf16.mxu0 0
        %2687 = vmatmul.mubr.bf16.gmra.mrb[0].mxu0 %v2557
        %v2688 = vpop.f32.mrb[0].mxu0
        %v2689 = vadd.f32 0.0, %v2688
        %v2690 = vpop.f32.mrb[0].mxu0
        %v2691 = vpop.f32.mrb[0].mxu0
        %v2692 = vadd.f32 0.0, %v2691
        %v2693 = vpop.f32.mrb[0].mxu0
        %2694 = vmatprep.mubr.bf16.mxu0 0
        %2695 = vmatmul.mubr.bf16.gmra.mrb[0].mxu0 %v2560
        %v2696 = vpop.f32.mrb[0].mxu0
        %v2697 = vadd.f32 0.0, %v2696
        %v2698 = vpop.f32.mrb[0].mxu0
        %v2699 = vpop.f32.mrb[0].mxu0
        %v2700 = vadd.f32 0.0, %v2699
        %v2701 = vpop.f32.mrb[0].mxu0
        %2702 = vmatprep.mubr.bf16.mxu0 0
        %2703 = vmatmul.mubr.bf16.gmra.mrb[0].mxu0 %v2563
        %v2704 = vpop.f32.mrb[0].mxu0
        %v2705 = vadd.f32 0.0, %v2704
        %v2706 = vpop.f32.mrb[0].mxu0
        %v2707 = vpop.f32.mrb[0].mxu0
        %v2708 = vadd.f32 0.0, %v2707
        %v2709 = vpop.f32.mrb[0].mxu0
        %2710 = vmatprep.mubr.bf16.mxu0 0
        %2711 = vmatmul.mubr.bf16.gmra.mrb[0].mxu0 %v2566
        %v2712 = vpop.f32.mrb[0].mxu0
        %v2713 = vadd.f32 0.0, %v2712
        %v2714 = vpop.f32.mrb[0].mxu0
        %v2715 = vpop.f32.mrb[0].mxu0
        %v2716 = vadd.f32 0.0, %v2715
        %v2717 = vpop.f32.mrb[0].mxu0
        %2718 = vmatprep.mubr.bf16.mxu0 0
        %2719 = vmatmul.mubr.bf16.gmra.mrb[0].mxu0 %v2569
        %v2720 = vpop.f32.mrb[0].mxu0
        %v2721 = vadd.f32 0.0, %v2720
        %v2722 = vpop.f32.mrb[0].mxu0
        %v2723 = vpop.f32.mrb[0].mxu0
        %v2724 = vadd.f32 0.0, %v2723
        %v2725 = vpop.f32.mrb[0].mxu0
        %2726 = vmatprep.mubr.bf16.mxu0 0
        %2727 = vmatmul.mubr.bf16.gmra.mrb[0].mxu0 %v2572
        %v2728 = vpop.f32.mrb[0].mxu0
        %v2729 = vadd.f32 0.0, %v2728
        %v2730 = vpop.f32.mrb[0].mxu0
        %v2731 = vpop.f32.mrb[0].mxu0
        %v2732 = vadd.f32 0.0, %v2731
        %v2733 = vpop.f32.mrb[0].mxu0
        %2734 = vdwg.mxu0
        %v2735 = vadd.f32 %v2349, %v2609
        %v2736 = vadd.f32 %v2350, %v2612
        %v2737 = vadd.f32 %v2351, %v2617
        %v2738 = vadd.f32 %v2352, %v2620
        %v2739 = vadd.f32 %v2353, %v2625
        %v2740 = vadd.f32 %v2354, %v2628
        %v2741 = vadd.f32 %v2355, %v2633
        %v2742 = vadd.f32 %v2356, %v2636
        %v2743 = vadd.f32 %v2357, %v2641
        %v2744 = vadd.f32 %v2358, %v2644
        %v2745 = vadd.f32 %v2359, %v2649
        %v2746 = vadd.f32 %v2360, %v2652
        %v2747 = vadd.f32 %v2361, %v2657
        %v2748 = vadd.f32 %v2362, %v2660
        %v2749 = vadd.f32 %v2363, %v2665
        %v2750 = vadd.f32 %v2364, %v2668
        %v2751 = vadd.f32 %v2365, %v2673
        %v2752 = vadd.f32 %v2366, %v2676
        %v2753 = vadd.f32 %v2367, %v2681
        %v2754 = vadd.f32 %v2368, %v2684
        %v2755 = vadd.f32 %v2369, %v2689
        %v2756 = vadd.f32 %v2370, %v2692
        %v2757 = vadd.f32 %v2371, %v2697
        %v2758 = vadd.f32 %v2372, %v2700
        %v2759 = vadd.f32 %v2373, %v2705
        %v2760 = vadd.f32 %v2374, %v2708
        %v2761 = vadd.f32 %v2375, %v2713
        %v2762 = vadd.f32 %v2376, %v2716
        %v2763 = vadd.f32 %v2377, %v2721
        %v2764 = vadd.f32 %v2378, %v2724
        %v2765 = vadd.f32 %v2379, %v2729
        %v2766 = vadd.f32 %v2380, %v2732
        %v2767 = vld [vmem:[%s731] sm:$0xf]
        %v2768 = vld [vmem:[%s731 + $0x4] sm:$0xf]
        %v2769 = vld [vmem:[%s731 + $0x8] sm:$0x1]
        %v2770 = vld [vmem:[%s731 + $0xc] sm:$0xf]
        %v2771 = vld [vmem:[%s731 + $0x10] sm:$0xf]
        %v2772 = vld [vmem:[%s731 + $0x14] sm:$0x1]
        %v2773 = vld [vmem:[%s731 + $0x18] sm:$0xf]
        %v2774 = vld [vmem:[%s731 + $0x1c] sm:$0xf]
        %v2775 = vld [vmem:[%s731 + $0x20] sm:$0x1]
        %v2776 = vld [vmem:[%s731 + $0x24] sm:$0xf]
        %v2777 = vld [vmem:[%s731 + $0x28] sm:$0xf]
        %v2778 = vld [vmem:[%s731 + $0x2c] sm:$0x1]
        %v2779 = vld [vmem:[%s731 + $0x30] sm:$0xf]
        %v2780 = vld [vmem:[%s731 + $0x34] sm:$0xf]
        %v2781 = vld [vmem:[%s731 + $0x38] sm:$0x1]
        %v2782 = vld [vmem:[%s731 + $0x3c] sm:$0xf]
        %v2783 = vld [vmem:[%s731 + $0x40] sm:$0xf]
        %v2784 = vld [vmem:[%s731 + $0x44] sm:$0x1]
        %v2785 = vld [vmem:[%s731 + $0x48] sm:$0xf]
        %v2786 = vld [vmem:[%s731 + $0x4c] sm:$0xf]
        %v2787 = vld [vmem:[%s731 + $0x50] sm:$0x1]
        %v2788 = vld [vmem:[%s731 + $0x54] sm:$0xf]
        %v2789 = vld [vmem:[%s731 + $0x58] sm:$0xf]
        %v2790 = vld [vmem:[%s731 + $0x5c] sm:$0x1]
        %v2791 = vld [vmem:[%s731 + $0x60] sm:$0xf]
        %v2792 = vld [vmem:[%s731 + $0x64] sm:$0xf]
        %v2793 = vld [vmem:[%s731 + $0x68] sm:$0x1]
        %v2794 = vld [vmem:[%s731 + $0x6c] sm:$0xf]
        %v2795 = vld [vmem:[%s731 + $0x70] sm:$0xf]
        %v2796 = vld [vmem:[%s731 + $0x74] sm:$0x1]
        %v2797 = vld [vmem:[%s731 + $0x78] sm:$0xf]
        %v2798 = vld [vmem:[%s731 + $0x7c] sm:$0xf]
        %v2799 = vld [vmem:[%s731 + $0x80] sm:$0x1]
        %v2800 = vld [vmem:[%s731 + $0x84] sm:$0xf]
        %v2801 = vld [vmem:[%s731 + $0x88] sm:$0xf]
        %v2802 = vld [vmem:[%s731 + $0x8c] sm:$0x1]
        %v2803 = vld [vmem:[%s731 + $0x90] sm:$0xf]
        %v2804 = vld [vmem:[%s731 + $0x94] sm:$0xf]
        %v2805 = vld [vmem:[%s731 + $0x98] sm:$0x1]
        %v2806 = vld [vmem:[%s731 + $0x9c] sm:$0xf]
        %v2807 = vld [vmem:[%s731 + $0xa0] sm:$0xf]
        %v2808 = vld [vmem:[%s731 + $0xa4] sm:$0x1]
        %v2809 = vld [vmem:[%s731 + $0xa8] sm:$0xf]
        %v2810 = vld [vmem:[%s731 + $0xac] sm:$0xf]
        %v2811 = vld [vmem:[%s731 + $0xb0] sm:$0x1]
        %v2812 = vld [vmem:[%s731 + $0xb4] sm:$0xf]
        %v2813 = vld [vmem:[%s731 + $0xb8] sm:$0xf]
        %v2814 = vld [vmem:[%s731 + $0xbc] sm:$0x1]
        %v2816 = vshrl.u32 %v2767, 16
        %v2818 = vrot.slane %v2816, 4
        %v2819 = vshll.u32 %v2767, 16
        %v2821 = vrot.slane %v2819, 5
        %v2822 = vor.u32 %v2818, %v2821
        %v2823 = vrot.slane %v2822, 4
        %v2825 = vshll.u32 %v2768, 16
        %v2827 = vrot.slane %v2825, 5
        %v2828 = vsel %vm907, %v2823, %v2827
        %v2829 = vshrl.u32 %v2768, 16
        %v2831 = vrot.slane %v2829, 4
        %v2832 = vor.u32 %v2831, %v2827
        %v2833 = vrot.slane %v2832, 4
        %v2835 = vshll.u32 %v2769, 16
        %v2837 = vrot.slane %v2835, 5
        %v2838 = vsel %vm907, %v2833, %v2837
        %v2840 = vshrl.u32 %v2770, 16
        %v2842 = vrot.slane %v2840, 4
        %v2843 = vshll.u32 %v2770, 16
        %v2845 = vrot.slane %v2843, 5
        %v2846 = vor.u32 %v2842, %v2845
        %v2847 = vrot.slane %v2846, 4
        %v2849 = vshll.u32 %v2771, 16
        %v2851 = vrot.slane %v2849, 5
        %v2852 = vsel %vm907, %v2847, %v2851
        %v2853 = vshrl.u32 %v2771, 16
        %v2855 = vrot.slane %v2853, 4
        %v2856 = vor.u32 %v2855, %v2851
        %v2857 = vrot.slane %v2856, 4
        %v2859 = vshll.u32 %v2772, 16
        %v2861 = vrot.slane %v2859, 5
        %v2862 = vsel %vm907, %v2857, %v2861
        %v2864 = vshrl.u32 %v2773, 16
        %v2866 = vrot.slane %v2864, 4
        %v2867 = vshll.u32 %v2773, 16
        %v2869 = vrot.slane %v2867, 5
        %v2870 = vor.u32 %v2866, %v2869
        %v2871 = vrot.slane %v2870, 4
        %v2873 = vshll.u32 %v2774, 16
        %v2875 = vrot.slane %v2873, 5
        %v2876 = vsel %vm907, %v2871, %v2875
        %v2877 = vshrl.u32 %v2774, 16
        %v2879 = vrot.slane %v2877, 4
        %v2880 = vor.u32 %v2879, %v2875
        %v2881 = vrot.slane %v2880, 4
        %v2883 = vshll.u32 %v2775, 16
        %v2885 = vrot.slane %v2883, 5
        %v2886 = vsel %vm907, %v2881, %v2885
        %v2888 = vshrl.u32 %v2776, 16
        %v2890 = vrot.slane %v2888, 4
        %v2891 = vshll.u32 %v2776, 16
        %v2893 = vrot.slane %v2891, 5
        %v2894 = vor.u32 %v2890, %v2893
        %v2895 = vrot.slane %v2894, 4
        %v2897 = vshll.u32 %v2777, 16
        %v2899 = vrot.slane %v2897, 5
        %v2900 = vsel %vm907, %v2895, %v2899
        %v2901 = vshrl.u32 %v2777, 16
        %v2903 = vrot.slane %v2901, 4
        %v2904 = vor.u32 %v2903, %v2899
        %v2905 = vrot.slane %v2904, 4
        %v2907 = vshll.u32 %v2778, 16
        %v2909 = vrot.slane %v2907, 5
        %v2910 = vsel %vm907, %v2905, %v2909
        %v2912 = vshrl.u32 %v2779, 16
        %v2914 = vrot.slane %v2912, 4
        %v2915 = vshll.u32 %v2779, 16
        %v2917 = vrot.slane %v2915, 5
        %v2918 = vor.u32 %v2914, %v2917
        %v2919 = vrot.slane %v2918, 4
        %v2921 = vshll.u32 %v2780, 16
        %v2923 = vrot.slane %v2921, 5
        %v2924 = vsel %vm907, %v2919, %v2923
        %v2925 = vshrl.u32 %v2780, 16
        %v2927 = vrot.slane %v2925, 4
        %v2928 = vor.u32 %v2927, %v2923
        %v2929 = vrot.slane %v2928, 4
        %v2931 = vshll.u32 %v2781, 16
        %v2933 = vrot.slane %v2931, 5
        %v2934 = vsel %vm907, %v2929, %v2933
        %v2936 = vshrl.u32 %v2782, 16
        %v2938 = vrot.slane %v2936, 4
        %v2939 = vshll.u32 %v2782, 16
        %v2941 = vrot.slane %v2939, 5
        %v2942 = vor.u32 %v2938, %v2941
        %v2943 = vrot.slane %v2942, 4
        %v2945 = vshll.u32 %v2783, 16
        %v2947 = vrot.slane %v2945, 5
        %v2948 = vsel %vm907, %v2943, %v2947
        %v2949 = vshrl.u32 %v2783, 16
        %v2951 = vrot.slane %v2949, 4
        %v2952 = vor.u32 %v2951, %v2947
        %v2953 = vrot.slane %v2952, 4
        %v2955 = vshll.u32 %v2784, 16
        %v2957 = vrot.slane %v2955, 5
        %v2958 = vsel %vm907, %v2953, %v2957
        %v2960 = vshrl.u32 %v2785, 16
        %v2962 = vrot.slane %v2960, 4
        %v2963 = vshll.u32 %v2785, 16
        %v2965 = vrot.slane %v2963, 5
        %v2966 = vor.u32 %v2962, %v2965
        %v2967 = vrot.slane %v2966, 4
        %v2969 = vshll.u32 %v2786, 16
        %v2971 = vrot.slane %v2969, 5
        %v2972 = vsel %vm907, %v2967, %v2971
        %v2973 = vshrl.u32 %v2786, 16
        %v2975 = vrot.slane %v2973, 4
        %v2976 = vor.u32 %v2975, %v2971
        %v2977 = vrot.slane %v2976, 4
        %v2979 = vshll.u32 %v2787, 16
        %v2981 = vrot.slane %v2979, 5
        %v2982 = vsel %vm907, %v2977, %v2981
        %v2984 = vshrl.u32 %v2788, 16
        %v2986 = vrot.slane %v2984, 4
        %v2987 = vshll.u32 %v2788, 16
        %v2989 = vrot.slane %v2987, 5
        %v2990 = vor.u32 %v2986, %v2989
        %v2991 = vrot.slane %v2990, 4
        %v2993 = vshll.u32 %v2789, 16
        %v2995 = vrot.slane %v2993, 5
        %v2996 = vsel %vm907, %v2991, %v2995
        %v2997 = vshrl.u32 %v2789, 16
        %v2999 = vrot.slane %v2997, 4
        %v3000 = vor.u32 %v2999, %v2995
        %v3001 = vrot.slane %v3000, 4
        %v3003 = vshll.u32 %v2790, 16
        %v3005 = vrot.slane %v3003, 5
        %v3006 = vsel %vm907, %v3001, %v3005
        %v3008 = vshrl.u32 %v2791, 16
        %v3010 = vrot.slane %v3008, 4
        %v3011 = vshll.u32 %v2791, 16
        %v3013 = vrot.slane %v3011, 5
        %v3014 = vor.u32 %v3010, %v3013
        %v3015 = vrot.slane %v3014, 4
        %v3017 = vshll.u32 %v2792, 16
        %v3019 = vrot.slane %v3017, 5
        %v3020 = vsel %vm907, %v3015, %v3019
        %v3021 = vshrl.u32 %v2792, 16
        %v3023 = vrot.slane %v3021, 4
        %v3024 = vor.u32 %v3023, %v3019
        %v3025 = vrot.slane %v3024, 4
        %v3027 = vshll.u32 %v2793, 16
        %v3029 = vrot.slane %v3027, 5
        %v3030 = vsel %vm907, %v3025, %v3029
        %v3032 = vshrl.u32 %v2794, 16
        %v3034 = vrot.slane %v3032, 4
        %v3035 = vshll.u32 %v2794, 16
        %v3037 = vrot.slane %v3035, 5
        %v3038 = vor.u32 %v3034, %v3037
        %v3039 = vrot.slane %v3038, 4
        %v3041 = vshll.u32 %v2795, 16
        %v3043 = vrot.slane %v3041, 5
        %v3044 = vsel %vm907, %v3039, %v3043
        %v3045 = vshrl.u32 %v2795, 16
        %v3047 = vrot.slane %v3045, 4
        %v3048 = vor.u32 %v3047, %v3043
        %v3049 = vrot.slane %v3048, 4
        %v3051 = vshll.u32 %v2796, 16
        %v3053 = vrot.slane %v3051, 5
        %v3054 = vsel %vm907, %v3049, %v3053
        %v3056 = vshrl.u32 %v2797, 16
        %v3058 = vrot.slane %v3056, 4
        %v3059 = vshll.u32 %v2797, 16
        %v3061 = vrot.slane %v3059, 5
        %v3062 = vor.u32 %v3058, %v3061
        %v3063 = vrot.slane %v3062, 4
        %v3065 = vshll.u32 %v2798, 16
        %v3067 = vrot.slane %v3065, 5
        %v3068 = vsel %vm907, %v3063, %v3067
        %v3069 = vshrl.u32 %v2798, 16
        %v3071 = vrot.slane %v3069, 4
        %v3072 = vor.u32 %v3071, %v3067
        %v3073 = vrot.slane %v3072, 4
        %v3075 = vshll.u32 %v2799, 16
        %v3077 = vrot.slane %v3075, 5
        %v3078 = vsel %vm907, %v3073, %v3077
        %v3080 = vshrl.u32 %v2800, 16
        %v3082 = vrot.slane %v3080, 4
        %v3083 = vshll.u32 %v2800, 16
        %v3085 = vrot.slane %v3083, 5
        %v3086 = vor.u32 %v3082, %v3085
        %v3087 = vrot.slane %v3086, 4
        %v3089 = vshll.u32 %v2801, 16
        %v3091 = vrot.slane %v3089, 5
        %v3092 = vsel %vm907, %v3087, %v3091
        %v3093 = vshrl.u32 %v2801, 16
        %v3095 = vrot.slane %v3093, 4
        %v3096 = vor.u32 %v3095, %v3091
        %v3097 = vrot.slane %v3096, 4
        %v3099 = vshll.u32 %v2802, 16
        %v3101 = vrot.slane %v3099, 5
        %v3102 = vsel %vm907, %v3097, %v3101
        %v3104 = vshrl.u32 %v2803, 16
        %v3106 = vrot.slane %v3104, 4
        %v3107 = vshll.u32 %v2803, 16
        %v3109 = vrot.slane %v3107, 5
        %v3110 = vor.u32 %v3106, %v3109
        %v3111 = vrot.slane %v3110, 4
        %v3113 = vshll.u32 %v2804, 16
        %v3115 = vrot.slane %v3113, 5
        %v3116 = vsel %vm907, %v3111, %v3115
        %v3117 = vshrl.u32 %v2804, 16
        %v3119 = vrot.slane %v3117, 4
        %v3120 = vor.u32 %v3119, %v3115
        %v3121 = vrot.slane %v3120, 4
        %v3123 = vshll.u32 %v2805, 16
        %v3125 = vrot.slane %v3123, 5
        %v3126 = vsel %vm907, %v3121, %v3125
        %v3128 = vshrl.u32 %v2806, 16
        %v3130 = vrot.slane %v3128, 4
        %v3131 = vshll.u32 %v2806, 16
        %v3133 = vrot.slane %v3131, 5
        %v3134 = vor.u32 %v3130, %v3133
        %v3135 = vrot.slane %v3134, 4
        %v3137 = vshll.u32 %v2807, 16
        %v3139 = vrot.slane %v3137, 5
        %v3140 = vsel %vm907, %v3135, %v3139
        %v3141 = vshrl.u32 %v2807, 16
        %v3143 = vrot.slane %v3141, 4
        %v3144 = vor.u32 %v3143, %v3139
        %v3145 = vrot.slane %v3144, 4
        %v3147 = vshll.u32 %v2808, 16
        %v3149 = vrot.slane %v3147, 5
        %v3150 = vsel %vm907, %v3145, %v3149
        %v3152 = vshrl.u32 %v2809, 16
        %v3154 = vrot.slane %v3152, 4
        %v3155 = vshll.u32 %v2809, 16
        %v3157 = vrot.slane %v3155, 5
        %v3158 = vor.u32 %v3154, %v3157
        %v3159 = vrot.slane %v3158, 4
        %v3161 = vshll.u32 %v2810, 16
        %v3163 = vrot.slane %v3161, 5
        %v3164 = vsel %vm907, %v3159, %v3163
        %v3165 = vshrl.u32 %v2810, 16
        %v3167 = vrot.slane %v3165, 4
        %v3168 = vor.u32 %v3167, %v3163
        %v3169 = vrot.slane %v3168, 4
        %v3171 = vshll.u32 %v2811, 16
        %v3173 = vrot.slane %v3171, 5
        %v3174 = vsel %vm907, %v3169, %v3173
        %v3176 = vshrl.u32 %v2812, 16
        %v3178 = vrot.slane %v3176, 4
        %v3179 = vshll.u32 %v2812, 16
        %v3181 = vrot.slane %v3179, 5
        %v3182 = vor.u32 %v3178, %v3181
        %v3183 = vrot.slane %v3182, 4
        %v3185 = vshll.u32 %v2813, 16
        %v3187 = vrot.slane %v3185, 5
        %v3188 = vsel %vm907, %v3183, %v3187
        %v3189 = vshrl.u32 %v2813, 16
        %v3191 = vrot.slane %v3189, 4
        %v3192 = vor.u32 %v3191, %v3187
        %v3193 = vrot.slane %v3192, 4
        %v3195 = vshll.u32 %v2814, 16
        %v3197 = vrot.slane %v3195, 5
        %v3198 = vsel %vm907, %v3193, %v3197
        %s3199 = scalar_lea.vmem %s1, 128
        %v3200 = vld [vmem:[%s3199] sm:$0xf]
        %v3201 = vld [vmem:[%s3199 + $0x4] sm:$0xf]
        %v3202 = vld [vmem:[%s3199 + $0x8] sm:$0xf]
        %v3203 = vld [vmem:[%s3199 + $0xc] sm:$0xf]
        %v3204 = vld [vmem:[%s3199 + $0x10] sm:$0xf]
        %v3205 = vld [vmem:[%s3199 + $0x14] sm:$0xf]
        %v3206 = vld [vmem:[%s3199 + $0x18] sm:$0xf]
        %v3207 = vld [vmem:[%s3199 + $0x1c] sm:$0xf]
        %v3208 = vunpack.c.l.b16 %v2828
        %v3209 = vunpack.c.l.b16 %v2838
        %v3210 = vunpack.c.l.b16 %v2852
        %v3211 = vunpack.c.l.b16 %v2862
        %v3212 = vunpack.c.l.b16 %v2876
        %v3213 = vunpack.c.l.b16 %v2886
        %v3214 = vunpack.c.l.b16 %v2900
        %v3215 = vunpack.c.l.b16 %v2910
        %v3216 = vunpack.c.l.b16 %v2924
        %v3217 = vunpack.c.l.b16 %v2934
        %v3218 = vunpack.c.l.b16 %v2948
        %v3219 = vunpack.c.l.b16 %v2958
        %v3220 = vunpack.c.l.b16 %v2972
        %v3221 = vunpack.c.l.b16 %v2982
        %v3222 = vunpack.c.l.b16 %v2996
        %v3223 = vunpack.c.l.b16 %v3006
        %v3224 = vunpack.c.l.b16 %v3020
        %v3225 = vunpack.c.l.b16 %v3030
        %v3226 = vunpack.c.l.b16 %v3044
        %v3227 = vunpack.c.l.b16 %v3054
        %v3228 = vunpack.c.l.b16 %v3068
        %v3229 = vunpack.c.l.b16 %v3078
        %v3230 = vunpack.c.l.b16 %v3092
        %v3231 = vunpack.c.l.b16 %v3102
        %v3232 = vunpack.c.l.b16 %v3116
        %v3233 = vunpack.c.l.b16 %v3126
        %v3234 = vunpack.c.l.b16 %v3140
        %v3235 = vunpack.c.l.b16 %v3150
        %v3236 = vunpack.c.l.b16 %v3164
        %v3237 = vunpack.c.l.b16 %v3174
        %v3238 = vunpack.c.l.b16 %v3188
        %v3239 = vunpack.c.l.b16 %v3198
        %v3240 = vpack.c.b16 %v3209, %v3208
        %v3241 = vpack.c.b16 %v3211, %v3210
        %v3242 = vpack.c.b16 %v3213, %v3212
        %v3243 = vpack.c.b16 %v3215, %v3214
        %v3244 = vpack.c.b16 %v3217, %v3216
        %v3245 = vpack.c.b16 %v3219, %v3218
        %v3246 = vpack.c.b16 %v3221, %v3220
        %v3247 = vpack.c.b16 %v3223, %v3222
        %v3248 = vpack.c.b16 %v3225, %v3224
        %v3249 = vpack.c.b16 %v3227, %v3226
        %v3250 = vpack.c.b16 %v3229, %v3228
        %v3251 = vpack.c.b16 %v3231, %v3230
        %v3252 = vpack.c.b16 %v3233, %v3232
        %v3253 = vpack.c.b16 %v3235, %v3234
        %v3254 = vpack.c.b16 %v3237, %v3236
        %v3255 = vpack.c.b16 %v3239, %v3238
        %v3264 = vunpack.c.l.b16 %v3200
        %v3265 = vunpack.c.l.b16 %v3201
        %v3266 = vunpack.c.l.b16 %v3202
        %v3267 = vunpack.c.l.b16 %v3203
        %v3268 = vunpack.c.l.b16 %v3204
        %v3269 = vunpack.c.l.b16 %v3205
        %v3270 = vunpack.c.l.b16 %v3206
        %v3271 = vunpack.c.l.b16 %v3207
        %v3272 = vpack.c.b16 %v3265, %v3264
        %v3273 = vpack.c.b16 %v3267, %v3266
        %v3274 = vpack.c.b16 %v3269, %v3268
        %v3275 = vpack.c.b16 %v3271, %v3270
        %v3281 = vsel %vm1373, %v3240, 0
        %v3284 = vsel %vm1373, %v3241, 0
        %v3287 = vsel %vm1373, %v3242, 0
        %v3290 = vsel %vm1373, %v3243, 0
        %v3293 = vsel %vm1373, %v3244, 0
        %v3296 = vsel %vm1373, %v3245, 0
        %v3299 = vsel %vm1373, %v3246, 0
        %v3302 = vsel %vm1373, %v3247, 0
        %v3305 = vsel %vm1373, %v3248, 0
        %v3308 = vsel %vm1373, %v3249, 0
        %v3311 = vsel %vm1373, %v3250, 0
        %v3314 = vsel %vm1373, %v3251, 0
        %v3317 = vsel %vm1373, %v3252, 0
        %v3320 = vsel %vm1373, %v3253, 0
        %v3323 = vsel %vm1373, %v3254, 0
        %v3326 = vsel %vm1373, %v3255, 0
        %3328 = vmatprep.subr.bf16.mxu0 0
        %3329 = vmatpush1.bf16.msra.mxu0 %v3272
        %3330 = vmatprep.subr.bf16.mxu0 0
        %3331 = vmatpush1.bf16.msra.mxu0 %v3273
        %3332 = vmatprep.subr.bf16.mxu0 0
        %3333 = vmatpush1.bf16.msra.mxu0 %v3274
        %3334 = vmatprep.subr.bf16.mxu0 0
        %3335 = vmatpush1.bf16.msra.mxu0 %v3275
        %3336 = vmatprep.subr.bf16.mxu0 0
        %3337 = vmatpush1.bf16.msra.mxu0 0
        %3338 = vmatprep.subr.bf16.mxu0 0
        %3339 = vmatpush1.bf16.msra.mxu0 0
        %3340 = vmatprep.subr.bf16.mxu0 0
        %3341 = vmatpush1.bf16.msra.mxu0 0
        %3342 = vmatprep.subr.bf16.mxu0 0
        %3343 = vmatpush1.bf16.msra.mxu0 0
        %3344 = vmatprep.subr.bf16.mxu0 0
        %3345 = vmatpush1.bf16.msra.mxu0 0
        %3346 = vmatprep.subr.bf16.mxu0 0
        %3347 = vmatpush1.bf16.msra.mxu0 0
        %3348 = vmatprep.subr.bf16.mxu0 0
        %3349 = vmatpush1.bf16.msra.mxu0 0
        %3350 = vmatprep.subr.bf16.mxu0 0
        %3351 = vmatpush1.bf16.msra.mxu0 0
        %3352 = vmatprep.subr.bf16.mxu0 0
        %3353 = vmatpush1.bf16.msra.mxu0 0
        %3354 = vmatprep.subr.bf16.mxu0 0
        %3355 = vmatpush1.bf16.msra.mxu0 0
        %3356 = vmatprep.subr.bf16.mxu0 0
        %3357 = vmatpush1.bf16.msra.mxu0 0
        %3358 = vmatprep.subr.bf16.mxu0 0
        %3359 = vmatpush1.bf16.msra.mxu0 0
        %3360 = vmatprep.mubr.bf16.mxu0 0
        %3361 = vmatmul.mubr.bf16.gmra.mrb[0].mxu0 %v3281
        %v3362 = vpop.f32.mrb[0].mxu0
        %v3363 = vadd.f32 0.0, %v3362
        %v3364 = vpop.f32.mrb[0].mxu0
        %v3365 = vpop.f32.mrb[0].mxu0
        %v3366 = vadd.f32 0.0, %v3365
        %v3367 = vpop.f32.mrb[0].mxu0
        %3368 = vmatprep.mubr.bf16.mxu0 0
        %3369 = vmatmul.mubr.bf16.gmra.mrb[0].mxu0 %v3284
        %v3370 = vpop.f32.mrb[0].mxu0
        %v3371 = vadd.f32 0.0, %v3370
        %v3372 = vpop.f32.mrb[0].mxu0
        %v3373 = vpop.f32.mrb[0].mxu0
        %v3374 = vadd.f32 0.0, %v3373
        %v3375 = vpop.f32.mrb[0].mxu0
        %3376 = vmatprep.mubr.bf16.mxu0 0
        %3377 = vmatmul.mubr.bf16.gmra.mrb[0].mxu0 %v3287
        %v3378 = vpop.f32.mrb[0].mxu0
        %v3379 = vadd.f32 0.0, %v3378
        %v3380 = vpop.f32.mrb[0].mxu0
        %v3381 = vpop.f32.mrb[0].mxu0
        %v3382 = vadd.f32 0.0, %v3381
        %v3383 = vpop.f32.mrb[0].mxu0
        %3384 = vmatprep.mubr.bf16.mxu0 0
        %3385 = vmatmul.mubr.bf16.gmra.mrb[0].mxu0 %v3290
        %v3386 = vpop.f32.mrb[0].mxu0
        %v3387 = vadd.f32 0.0, %v3386
        %v3388 = vpop.f32.mrb[0].mxu0
        %v3389 = vpop.f32.mrb[0].mxu0
        %v3390 = vadd.f32 0.0, %v3389
        %v3391 = vpop.f32.mrb[0].mxu0
        %3392 = vmatprep.mubr.bf16.mxu0 0
        %3393 = vmatmul.mubr.bf16.gmra.mrb[0].mxu0 %v3293
        %v3394 = vpop.f32.mrb[0].mxu0
        %v3395 = vadd.f32 0.0, %v3394
        %v3396 = vpop.f32.mrb[0].mxu0
        %v3397 = vpop.f32.mrb[0].mxu0
        %v3398 = vadd.f32 0.0, %v3397
        %v3399 = vpop.f32.mrb[0].mxu0
        %3400 = vmatprep.mubr.bf16.mxu0 0
        %3401 = vmatmul.mubr.bf16.gmra.mrb[0].mxu0 %v3296
        %v3402 = vpop.f32.mrb[0].mxu0
        %v3403 = vadd.f32 0.0, %v3402
        %v3404 = vpop.f32.mrb[0].mxu0
        %v3405 = vpop.f32.mrb[0].mxu0
        %v3406 = vadd.f32 0.0, %v3405
        %v3407 = vpop.f32.mrb[0].mxu0
        %3408 = vmatprep.mubr.bf16.mxu0 0
        %3409 = vmatmul.mubr.bf16.gmra.mrb[0].mxu0 %v3299
        %v3410 = vpop.f32.mrb[0].mxu0
        %v3411 = vadd.f32 0.0, %v3410
        %v3412 = vpop.f32.mrb[0].mxu0
        %v3413 = vpop.f32.mrb[0].mxu0
        %v3414 = vadd.f32 0.0, %v3413
        %v3415 = vpop.f32.mrb[0].mxu0
        %3416 = vmatprep.mubr.bf16.mxu0 0
        %3417 = vmatmul.mubr.bf16.gmra.mrb[0].mxu0 %v3302
        %v3418 = vpop.f32.mrb[0].mxu0
        %v3419 = vadd.f32 0.0, %v3418
        %v3420 = vpop.f32.mrb[0].mxu0
        %v3421 = vpop.f32.mrb[0].mxu0
        %v3422 = vadd.f32 0.0, %v3421
        %v3423 = vpop.f32.mrb[0].mxu0
        %3424 = vmatprep.mubr.bf16.mxu0 0
        %3425 = vmatmul.mubr.bf16.gmra.mrb[0].mxu0 %v3305
        %v3426 = vpop.f32.mrb[0].mxu0
        %v3427 = vadd.f32 0.0, %v3426
        %v3428 = vpop.f32.mrb[0].mxu0
        %v3429 = vpop.f32.mrb[0].mxu0
        %v3430 = vadd.f32 0.0, %v3429
        %v3431 = vpop.f32.mrb[0].mxu0
        %3432 = vmatprep.mubr.bf16.mxu0 0
        %3433 = vmatmul.mubr.bf16.gmra.mrb[0].mxu0 %v3308
        %v3434 = vpop.f32.mrb[0].mxu0
        %v3435 = vadd.f32 0.0, %v3434
        %v3436 = vpop.f32.mrb[0].mxu0
        %v3437 = vpop.f32.mrb[0].mxu0
        %v3438 = vadd.f32 0.0, %v3437
        %v3439 = vpop.f32.mrb[0].mxu0
        %3440 = vmatprep.mubr.bf16.mxu0 0
        %3441 = vmatmul.mubr.bf16.gmra.mrb[0].mxu0 %v3311
        %v3442 = vpop.f32.mrb[0].mxu0
        %v3443 = vadd.f32 0.0, %v3442
        %v3444 = vpop.f32.mrb[0].mxu0
        %v3445 = vpop.f32.mrb[0].mxu0
        %v3446 = vadd.f32 0.0, %v3445
        %v3447 = vpop.f32.mrb[0].mxu0
        %3448 = vmatprep.mubr.bf16.mxu0 0
        %3449 = vmatmul.mubr.bf16.gmra.mrb[0].mxu0 %v3314
        %v3450 = vpop.f32.mrb[0].mxu0
        %v3451 = vadd.f32 0.0, %v3450
        %v3452 = vpop.f32.mrb[0].mxu0
        %v3453 = vpop.f32.mrb[0].mxu0
        %v3454 = vadd.f32 0.0, %v3453
        %v3455 = vpop.f32.mrb[0].mxu0
        %3456 = vmatprep.mubr.bf16.mxu0 0
        %3457 = vmatmul.mubr.bf16.gmra.mrb[0].mxu0 %v3317
        %v3458 = vpop.f32.mrb[0].mxu0
        %v3459 = vadd.f32 0.0, %v3458
        %v3460 = vpop.f32.mrb[0].mxu0
        %v3461 = vpop.f32.mrb[0].mxu0
        %v3462 = vadd.f32 0.0, %v3461
        %v3463 = vpop.f32.mrb[0].mxu0
        %3464 = vmatprep.mubr.bf16.mxu0 0
        %3465 = vmatmul.mubr.bf16.gmra.mrb[0].mxu0 %v3320
        %v3466 = vpop.f32.mrb[0].mxu0
        %v3467 = vadd.f32 0.0, %v3466
        %v3468 = vpop.f32.mrb[0].mxu0
        %v3469 = vpop.f32.mrb[0].mxu0
        %v3470 = vadd.f32 0.0, %v3469
        %v3471 = vpop.f32.mrb[0].mxu0
        %3472 = vmatprep.mubr.bf16.mxu0 0
        %3473 = vmatmul.mubr.bf16.gmra.mrb[0].mxu0 %v3323
        %v3474 = vpop.f32.mrb[0].mxu0
        %v3475 = vadd.f32 0.0, %v3474
        %v3476 = vpop.f32.mrb[0].mxu0
        %v3477 = vpop.f32.mrb[0].mxu0
        %v3478 = vadd.f32 0.0, %v3477
        %v3479 = vpop.f32.mrb[0].mxu0
        %3480 = vmatprep.mubr.bf16.mxu0 0
        %3481 = vmatmul.mubr.bf16.gmra.mrb[0].mxu0 %v3326
        %v3482 = vpop.f32.mrb[0].mxu0
        %v3483 = vadd.f32 0.0, %v3482
        %v3484 = vpop.f32.mrb[0].mxu0
        %v3485 = vpop.f32.mrb[0].mxu0
        %v3486 = vadd.f32 0.0, %v3485
        %v3487 = vpop.f32.mrb[0].mxu0
        %3488 = vdwg.mxu0
        %v3489 = vadd.f32 %v2735, %v3363
        %v3490 = vadd.f32 %v2736, %v3366
        %v3491 = vadd.f32 %v2737, %v3371
        %v3492 = vadd.f32 %v2738, %v3374
        %v3493 = vadd.f32 %v2739, %v3379
        %v3494 = vadd.f32 %v2740, %v3382
        %v3495 = vadd.f32 %v2741, %v3387
        %v3496 = vadd.f32 %v2742, %v3390
        %v3497 = vadd.f32 %v2743, %v3395
        %v3498 = vadd.f32 %v2744, %v3398
        %v3499 = vadd.f32 %v2745, %v3403
        %v3500 = vadd.f32 %v2746, %v3406
        %v3501 = vadd.f32 %v2747, %v3411
        %v3502 = vadd.f32 %v2748, %v3414
        %v3503 = vadd.f32 %v2749, %v3419
        %v3504 = vadd.f32 %v2750, %v3422
        %v3505 = vadd.f32 %v2751, %v3427
        %v3506 = vadd.f32 %v2752, %v3430
        %v3507 = vadd.f32 %v2753, %v3435
        %v3508 = vadd.f32 %v2754, %v3438
        %v3509 = vadd.f32 %v2755, %v3443
        %v3510 = vadd.f32 %v2756, %v3446
        %v3511 = vadd.f32 %v2757, %v3451
        %v3512 = vadd.f32 %v2758, %v3454
        %v3513 = vadd.f32 %v2759, %v3459
        %v3514 = vadd.f32 %v2760, %v3462
        %v3515 = vadd.f32 %v2761, %v3467
        %v3516 = vadd.f32 %v2762, %v3470
        %v3517 = vadd.f32 %v2763, %v3475
        %v3518 = vadd.f32 %v2764, %v3478
        %v3519 = vadd.f32 %v2765, %v3483
        %v3520 = vadd.f32 %v2766, %v3486
        %v3521 = vld [vmem:[%s731] sm:$0xe]
        %v3522 = vld [vmem:[%s731 + $0xc] sm:$0xe]
        %v3523 = vld [vmem:[%s731 + $0x18] sm:$0xe]
        %v3524 = vld [vmem:[%s731 + $0x24] sm:$0xe]
        %v3525 = vld [vmem:[%s731 + $0x30] sm:$0xe]
        %v3526 = vld [vmem:[%s731 + $0x3c] sm:$0xe]
        %v3527 = vld [vmem:[%s731 + $0x48] sm:$0xe]
        %v3528 = vld [vmem:[%s731 + $0x54] sm:$0xe]
        %v3529 = vld [vmem:[%s731 + $0x60] sm:$0xe]
        %v3530 = vld [vmem:[%s731 + $0x6c] sm:$0xe]
        %v3531 = vld [vmem:[%s731 + $0x78] sm:$0xe]
        %v3532 = vld [vmem:[%s731 + $0x84] sm:$0xe]
        %v3533 = vld [vmem:[%s731 + $0x90] sm:$0xe]
        %v3534 = vld [vmem:[%s731 + $0x9c] sm:$0xe]
        %v3535 = vld [vmem:[%s731 + $0xa8] sm:$0xe]
        %v3536 = vld [vmem:[%s731 + $0xb4] sm:$0xe]
        %v3585 = vrot.slane %v3521, 5
        %v3586 = vrot.slane %v3585, 4
        %v3587 = vrot.slane %v2768, 5
        %v3588 = vsel %vm1946, %v3586, %v3587
        %v3589 = vrot.slane %v3587, 4
        %v3590 = vrot.slane %v2769, 5
        %v3591 = vsel %vm1946, %v3589, %v3590
        %v3592 = vrot.slane %v3522, 5
        %v3593 = vrot.slane %v3592, 4
        %v3594 = vrot.slane %v2771, 5
        %v3595 = vsel %vm1946, %v3593, %v3594
        %v3596 = vrot.slane %v3594, 4
        %v3597 = vrot.slane %v2772, 5
        %v3598 = vsel %vm1946, %v3596, %v3597
        %v3599 = vrot.slane %v3523, 5
        %v3600 = vrot.slane %v3599, 4
        %v3601 = vrot.slane %v2774, 5
        %v3602 = vsel %vm1946, %v3600, %v3601
        %v3603 = vrot.slane %v3601, 4
        %v3604 = vrot.slane %v2775, 5
        %v3605 = vsel %vm1946, %v3603, %v3604
        %v3606 = vrot.slane %v3524, 5
        %v3607 = vrot.slane %v3606, 4
        %v3608 = vrot.slane %v2777, 5
        %v3609 = vsel %vm1946, %v3607, %v3608
        %v3610 = vrot.slane %v3608, 4
        %v3611 = vrot.slane %v2778, 5
        %v3612 = vsel %vm1946, %v3610, %v3611
        %v3613 = vrot.slane %v3525, 5
        %v3614 = vrot.slane %v3613, 4
        %v3615 = vrot.slane %v2780, 5
        %v3616 = vsel %vm1946, %v3614, %v3615
        %v3617 = vrot.slane %v3615, 4
        %v3618 = vrot.slane %v2781, 5
        %v3619 = vsel %vm1946, %v3617, %v3618
        %v3620 = vrot.slane %v3526, 5
        %v3621 = vrot.slane %v3620, 4
        %v3622 = vrot.slane %v2783, 5
        %v3623 = vsel %vm1946, %v3621, %v3622
        %v3624 = vrot.slane %v3622, 4
        %v3625 = vrot.slane %v2784, 5
        %v3626 = vsel %vm1946, %v3624, %v3625
        %v3627 = vrot.slane %v3527, 5
        %v3628 = vrot.slane %v3627, 4
        %v3629 = vrot.slane %v2786, 5
        %v3630 = vsel %vm1946, %v3628, %v3629
        %v3631 = vrot.slane %v3629, 4
        %v3632 = vrot.slane %v2787, 5
        %v3633 = vsel %vm1946, %v3631, %v3632
        %v3634 = vrot.slane %v3528, 5
        %v3635 = vrot.slane %v3634, 4
        %v3636 = vrot.slane %v2789, 5
        %v3637 = vsel %vm1946, %v3635, %v3636
        %v3638 = vrot.slane %v3636, 4
        %v3639 = vrot.slane %v2790, 5
        %v3640 = vsel %vm1946, %v3638, %v3639
        %v3641 = vrot.slane %v3529, 5
        %v3642 = vrot.slane %v3641, 4
        %v3643 = vrot.slane %v2792, 5
        %v3644 = vsel %vm1946, %v3642, %v3643
        %v3645 = vrot.slane %v3643, 4
        %v3646 = vrot.slane %v2793, 5
        %v3647 = vsel %vm1946, %v3645, %v3646
        %v3648 = vrot.slane %v3530, 5
        %v3649 = vrot.slane %v3648, 4
        %v3650 = vrot.slane %v2795, 5
        %v3651 = vsel %vm1946, %v3649, %v3650
        %v3652 = vrot.slane %v3650, 4
        %v3653 = vrot.slane %v2796, 5
        %v3654 = vsel %vm1946, %v3652, %v3653
        %v3655 = vrot.slane %v3531, 5
        %v3656 = vrot.slane %v3655, 4
        %v3657 = vrot.slane %v2798, 5
        %v3658 = vsel %vm1946, %v3656, %v3657
        %v3659 = vrot.slane %v3657, 4
        %v3660 = vrot.slane %v2799, 5
        %v3661 = vsel %vm1946, %v3659, %v3660
        %v3662 = vrot.slane %v3532, 5
        %v3663 = vrot.slane %v3662, 4
        %v3664 = vrot.slane %v2801, 5
        %v3665 = vsel %vm1946, %v3663, %v3664
        %v3666 = vrot.slane %v3664, 4
        %v3667 = vrot.slane %v2802, 5
        %v3668 = vsel %vm1946, %v3666, %v3667
        %v3669 = vrot.slane %v3533, 5
        %v3670 = vrot.slane %v3669, 4
        %v3671 = vrot.slane %v2804, 5
        %v3672 = vsel %vm1946, %v3670, %v3671
        %v3673 = vrot.slane %v3671, 4
        %v3674 = vrot.slane %v2805, 5
        %v3675 = vsel %vm1946, %v3673, %v3674
        %v3676 = vrot.slane %v3534, 5
        %v3677 = vrot.slane %v3676, 4
        %v3678 = vrot.slane %v2807, 5
        %v3679 = vsel %vm1946, %v3677, %v3678
        %v3680 = vrot.slane %v3678, 4
        %v3681 = vrot.slane %v2808, 5
        %v3682 = vsel %vm1946, %v3680, %v3681
        %v3683 = vrot.slane %v3535, 5
        %v3684 = vrot.slane %v3683, 4
        %v3685 = vrot.slane %v2810, 5
        %v3686 = vsel %vm1946, %v3684, %v3685
        %v3687 = vrot.slane %v3685, 4
        %v3688 = vrot.slane %v2811, 5
        %v3689 = vsel %vm1946, %v3687, %v3688
        %v3690 = vrot.slane %v3536, 5
        %v3691 = vrot.slane %v3690, 4
        %v3692 = vrot.slane %v2813, 5
        %v3693 = vsel %vm1946, %v3691, %v3692
        %v3694 = vrot.slane %v3692, 4
        %v3695 = vrot.slane %v2814, 5
        %v3696 = vsel %vm1946, %v3694, %v3695
        %s3697 = scalar_lea.vmem %s1, 160
        %v3698 = vld [vmem:[%s3697] sm:$0xf]
        %v3699 = vld [vmem:[%s3697 + $0x4] sm:$0xf]
        %v3700 = vld [vmem:[%s3697 + $0x8] sm:$0xf]
        %v3701 = vld [vmem:[%s3697 + $0xc] sm:$0xf]
        %v3702 = vld [vmem:[%s3697 + $0x10] sm:$0xf]
        %v3703 = vld [vmem:[%s3697 + $0x14] sm:$0xf]
        %v3704 = vld [vmem:[%s3697 + $0x18] sm:$0xf]
        %v3705 = vld [vmem:[%s3697 + $0x1c] sm:$0xf]
        %v3706 = vunpack.c.l.b16 %v3588
        %v3707 = vunpack.c.l.b16 %v3591
        %v3708 = vunpack.c.l.b16 %v3595
        %v3709 = vunpack.c.l.b16 %v3598
        %v3710 = vunpack.c.l.b16 %v3602
        %v3711 = vunpack.c.l.b16 %v3605
        %v3712 = vunpack.c.l.b16 %v3609
        %v3713 = vunpack.c.l.b16 %v3612
        %v3714 = vunpack.c.l.b16 %v3616
        %v3715 = vunpack.c.l.b16 %v3619
        %v3716 = vunpack.c.l.b16 %v3623
        %v3717 = vunpack.c.l.b16 %v3626
        %v3718 = vunpack.c.l.b16 %v3630
        %v3719 = vunpack.c.l.b16 %v3633
        %v3720 = vunpack.c.l.b16 %v3637
        %v3721 = vunpack.c.l.b16 %v3640
        %v3722 = vunpack.c.l.b16 %v3644
        %v3723 = vunpack.c.l.b16 %v3647
        %v3724 = vunpack.c.l.b16 %v3651
        %v3725 = vunpack.c.l.b16 %v3654
        %v3726 = vunpack.c.l.b16 %v3658
        %v3727 = vunpack.c.l.b16 %v3661
        %v3728 = vunpack.c.l.b16 %v3665
        %v3729 = vunpack.c.l.b16 %v3668
        %v3730 = vunpack.c.l.b16 %v3672
        %v3731 = vunpack.c.l.b16 %v3675
        %v3732 = vunpack.c.l.b16 %v3679
        %v3733 = vunpack.c.l.b16 %v3682
        %v3734 = vunpack.c.l.b16 %v3686
        %v3735 = vunpack.c.l.b16 %v3689
        %v3736 = vunpack.c.l.b16 %v3693
        %v3737 = vunpack.c.l.b16 %v3696
        %v3738 = vpack.c.b16 %v3707, %v3706
        %v3739 = vpack.c.b16 %v3709, %v3708
        %v3740 = vpack.c.b16 %v3711, %v3710
        %v3741 = vpack.c.b16 %v3713, %v3712
        %v3742 = vpack.c.b16 %v3715, %v3714
        %v3743 = vpack.c.b16 %v3717, %v3716
        %v3744 = vpack.c.b16 %v3719, %v3718
        %v3745 = vpack.c.b16 %v3721, %v3720
        %v3746 = vpack.c.b16 %v3723, %v3722
        %v3747 = vpack.c.b16 %v3725, %v3724
        %v3748 = vpack.c.b16 %v3727, %v3726
        %v3749 = vpack.c.b16 %v3729, %v3728
        %v3750 = vpack.c.b16 %v3731, %v3730
        %v3751 = vpack.c.b16 %v3733, %v3732
        %v3752 = vpack.c.b16 %v3735, %v3734
        %v3753 = vpack.c.b16 %v3737, %v3736
        %v3762 = vunpack.c.l.b16 %v3698
        %v3763 = vunpack.c.l.b16 %v3699
        %v3764 = vunpack.c.l.b16 %v3700
        %v3765 = vunpack.c.l.b16 %v3701
        %v3766 = vunpack.c.l.b16 %v3702
        %v3767 = vunpack.c.l.b16 %v3703
        %v3768 = vunpack.c.l.b16 %v3704
        %v3769 = vunpack.c.l.b16 %v3705
        %v3770 = vpack.c.b16 %v3763, %v3762
        %v3771 = vpack.c.b16 %v3765, %v3764
        %v3772 = vpack.c.b16 %v3767, %v3766
        %v3773 = vpack.c.b16 %v3769, %v3768
        %v3779 = vsel %vm1373, %v3738, 0
        %v3782 = vsel %vm1373, %v3739, 0
        %v3785 = vsel %vm1373, %v3740, 0
        %v3788 = vsel %vm1373, %v3741, 0
        %v3791 = vsel %vm1373, %v3742, 0
        %v3794 = vsel %vm1373, %v3743, 0
        %v3797 = vsel %vm1373, %v3744, 0
        %v3800 = vsel %vm1373, %v3745, 0
        %v3803 = vsel %vm1373, %v3746, 0
        %v3806 = vsel %vm1373, %v3747, 0
        %v3809 = vsel %vm1373, %v3748, 0
        %v3812 = vsel %vm1373, %v3749, 0
        %v3815 = vsel %vm1373, %v3750, 0
        %v3818 = vsel %vm1373, %v3751, 0
        %v3821 = vsel %vm1373, %v3752, 0
        %v3824 = vsel %vm1373, %v3753, 0
        %3826 = vmatprep.subr.bf16.mxu0 0
        %3827 = vmatpush1.bf16.msra.mxu0 %v3770
        %3828 = vmatprep.subr.bf16.mxu0 0
        %3829 = vmatpush1.bf16.msra.mxu0 %v3771
        %3830 = vmatprep.subr.bf16.mxu0 0
        %3831 = vmatpush1.bf16.msra.mxu0 %v3772
        %3832 = vmatprep.subr.bf16.mxu0 0
        %3833 = vmatpush1.bf16.msra.mxu0 %v3773
        %3834 = vmatprep.subr.bf16.mxu0 0
        %3835 = vmatpush1.bf16.msra.mxu0 0
        %3836 = vmatprep.subr.bf16.mxu0 0
        %3837 = vmatpush1.bf16.msra.mxu0 0
        %3838 = vmatprep.subr.bf16.mxu0 0
        %3839 = vmatpush1.bf16.msra.mxu0 0
        %3840 = vmatprep.subr.bf16.mxu0 0
        %3841 = vmatpush1.bf16.msra.mxu0 0
        %3842 = vmatprep.subr.bf16.mxu0 0
        %3843 = vmatpush1.bf16.msra.mxu0 0
        %3844 = vmatprep.subr.bf16.mxu0 0
        %3845 = vmatpush1.bf16.msra.mxu0 0
        %3846 = vmatprep.subr.bf16.mxu0 0
        %3847 = vmatpush1.bf16.msra.mxu0 0
        %3848 = vmatprep.subr.bf16.mxu0 0
        %3849 = vmatpush1.bf16.msra.mxu0 0
        %3850 = vmatprep.subr.bf16.mxu0 0
        %3851 = vmatpush1.bf16.msra.mxu0 0
        %3852 = vmatprep.subr.bf16.mxu0 0
        %3853 = vmatpush1.bf16.msra.mxu0 0
        %3854 = vmatprep.subr.bf16.mxu0 0
        %3855 = vmatpush1.bf16.msra.mxu0 0
        %3856 = vmatprep.subr.bf16.mxu0 0
        %3857 = vmatpush1.bf16.msra.mxu0 0
        %3858 = vmatprep.mubr.bf16.mxu0 0
        %3859 = vmatmul.mubr.bf16.gmra.mrb[0].mxu0 %v3779
        %v3860 = vpop.f32.mrb[0].mxu0
        %v3861 = vadd.f32 0.0, %v3860
        %v3862 = vpop.f32.mrb[0].mxu0
        %v3863 = vpop.f32.mrb[0].mxu0
        %v3864 = vadd.f32 0.0, %v3863
        %v3865 = vpop.f32.mrb[0].mxu0
        %3866 = vmatprep.mubr.bf16.mxu0 0
        %3867 = vmatmul.mubr.bf16.gmra.mrb[0].mxu0 %v3782
        %v3868 = vpop.f32.mrb[0].mxu0
        %v3869 = vadd.f32 0.0, %v3868
        %v3870 = vpop.f32.mrb[0].mxu0
        %v3871 = vpop.f32.mrb[0].mxu0
        %v3872 = vadd.f32 0.0, %v3871
        %v3873 = vpop.f32.mrb[0].mxu0
        %3874 = vmatprep.mubr.bf16.mxu0 0
        %3875 = vmatmul.mubr.bf16.gmra.mrb[0].mxu0 %v3785
        %v3876 = vpop.f32.mrb[0].mxu0
        %v3877 = vadd.f32 0.0, %v3876
        %v3878 = vpop.f32.mrb[0].mxu0
        %v3879 = vpop.f32.mrb[0].mxu0
        %v3880 = vadd.f32 0.0, %v3879
        %v3881 = vpop.f32.mrb[0].mxu0
        %3882 = vmatprep.mubr.bf16.mxu0 0
        %3883 = vmatmul.mubr.bf16.gmra.mrb[0].mxu0 %v3788
        %v3884 = vpop.f32.mrb[0].mxu0
        %v3885 = vadd.f32 0.0, %v3884
        %v3886 = vpop.f32.mrb[0].mxu0
        %v3887 = vpop.f32.mrb[0].mxu0
        %v3888 = vadd.f32 0.0, %v3887
        %v3889 = vpop.f32.mrb[0].mxu0
        %3890 = vmatprep.mubr.bf16.mxu0 0
        %3891 = vmatmul.mubr.bf16.gmra.mrb[0].mxu0 %v3791
        %v3892 = vpop.f32.mrb[0].mxu0
        %v3893 = vadd.f32 0.0, %v3892
        %v3894 = vpop.f32.mrb[0].mxu0
        %v3895 = vpop.f32.mrb[0].mxu0
        %v3896 = vadd.f32 0.0, %v3895
        %v3897 = vpop.f32.mrb[0].mxu0
        %3898 = vmatprep.mubr.bf16.mxu0 0
        %3899 = vmatmul.mubr.bf16.gmra.mrb[0].mxu0 %v3794
        %v3900 = vpop.f32.mrb[0].mxu0
        %v3901 = vadd.f32 0.0, %v3900
        %v3902 = vpop.f32.mrb[0].mxu0
        %v3903 = vpop.f32.mrb[0].mxu0
        %v3904 = vadd.f32 0.0, %v3903
        %v3905 = vpop.f32.mrb[0].mxu0
        %3906 = vmatprep.mubr.bf16.mxu0 0
        %3907 = vmatmul.mubr.bf16.gmra.mrb[0].mxu0 %v3797
        %v3908 = vpop.f32.mrb[0].mxu0
        %v3909 = vadd.f32 0.0, %v3908
        %v3910 = vpop.f32.mrb[0].mxu0
        %v3911 = vpop.f32.mrb[0].mxu0
        %v3912 = vadd.f32 0.0, %v3911
        %v3913 = vpop.f32.mrb[0].mxu0
        %3914 = vmatprep.mubr.bf16.mxu0 0
        %3915 = vmatmul.mubr.bf16.gmra.mrb[0].mxu0 %v3800
        %v3916 = vpop.f32.mrb[0].mxu0
        %v3917 = vadd.f32 0.0, %v3916
        %v3918 = vpop.f32.mrb[0].mxu0
        %v3919 = vpop.f32.mrb[0].mxu0
        %v3920 = vadd.f32 0.0, %v3919
        %v3921 = vpop.f32.mrb[0].mxu0
        %3922 = vmatprep.mubr.bf16.mxu0 0
        %3923 = vmatmul.mubr.bf16.gmra.mrb[0].mxu0 %v3803
        %v3924 = vpop.f32.mrb[0].mxu0
        %v3925 = vadd.f32 0.0, %v3924
        %v3926 = vpop.f32.mrb[0].mxu0
        %v3927 = vpop.f32.mrb[0].mxu0
        %v3928 = vadd.f32 0.0, %v3927
        %v3929 = vpop.f32.mrb[0].mxu0
        %3930 = vmatprep.mubr.bf16.mxu0 0
        %3931 = vmatmul.mubr.bf16.gmra.mrb[0].mxu0 %v3806
        %v3932 = vpop.f32.mrb[0].mxu0
        %v3933 = vadd.f32 0.0, %v3932
        %v3934 = vpop.f32.mrb[0].mxu0
        %v3935 = vpop.f32.mrb[0].mxu0
        %v3936 = vadd.f32 0.0, %v3935
        %v3937 = vpop.f32.mrb[0].mxu0
        %3938 = vmatprep.mubr.bf16.mxu0 0
        %3939 = vmatmul.mubr.bf16.gmra.mrb[0].mxu0 %v3809
        %v3940 = vpop.f32.mrb[0].mxu0
        %v3941 = vadd.f32 0.0, %v3940
        %v3942 = vpop.f32.mrb[0].mxu0
        %v3943 = vpop.f32.mrb[0].mxu0
        %v3944 = vadd.f32 0.0, %v3943
        %v3945 = vpop.f32.mrb[0].mxu0
        %3946 = vmatprep.mubr.bf16.mxu0 0
        %3947 = vmatmul.mubr.bf16.gmra.mrb[0].mxu0 %v3812
        %v3948 = vpop.f32.mrb[0].mxu0
        %v3949 = vadd.f32 0.0, %v3948
        %v3950 = vpop.f32.mrb[0].mxu0
        %v3951 = vpop.f32.mrb[0].mxu0
        %v3952 = vadd.f32 0.0, %v3951
        %v3953 = vpop.f32.mrb[0].mxu0
        %3954 = vmatprep.mubr.bf16.mxu0 0
        %3955 = vmatmul.mubr.bf16.gmra.mrb[0].mxu0 %v3815
        %v3956 = vpop.f32.mrb[0].mxu0
        %v3957 = vadd.f32 0.0, %v3956
        %v3958 = vpop.f32.mrb[0].mxu0
        %v3959 = vpop.f32.mrb[0].mxu0
        %v3960 = vadd.f32 0.0, %v3959
        %v3961 = vpop.f32.mrb[0].mxu0
        %3962 = vmatprep.mubr.bf16.mxu0 0
        %3963 = vmatmul.mubr.bf16.gmra.mrb[0].mxu0 %v3818
        %v3964 = vpop.f32.mrb[0].mxu0
        %v3965 = vadd.f32 0.0, %v3964
        %v3966 = vpop.f32.mrb[0].mxu0
        %v3967 = vpop.f32.mrb[0].mxu0
        %v3968 = vadd.f32 0.0, %v3967
        %v3969 = vpop.f32.mrb[0].mxu0
        %3970 = vmatprep.mubr.bf16.mxu0 0
        %3971 = vmatmul.mubr.bf16.gmra.mrb[0].mxu0 %v3821
        %v3972 = vpop.f32.mrb[0].mxu0
        %v3973 = vadd.f32 0.0, %v3972
        %v3974 = vpop.f32.mrb[0].mxu0
        %v3975 = vpop.f32.mrb[0].mxu0
        %v3976 = vadd.f32 0.0, %v3975
        %v3977 = vpop.f32.mrb[0].mxu0
        %3978 = vmatprep.mubr.bf16.mxu0 0
        %3979 = vmatmul.mubr.bf16.gmra.mrb[0].mxu0 %v3824
        %v3980 = vpop.f32.mrb[0].mxu0
        %v3981 = vadd.f32 0.0, %v3980
        %v3982 = vpop.f32.mrb[0].mxu0
        %v3983 = vpop.f32.mrb[0].mxu0
        %v3984 = vadd.f32 0.0, %v3983
        %v3985 = vpop.f32.mrb[0].mxu0
        %3986 = vdwg.mxu0
        %v3987 = vadd.f32 %v3489, %v3861
        %v3988 = vadd.f32 %v3490, %v3864
        %v3989 = vadd.f32 %v3491, %v3869
        %v3990 = vadd.f32 %v3492, %v3872
        %v3991 = vadd.f32 %v3493, %v3877
        %v3992 = vadd.f32 %v3494, %v3880
        %v3993 = vadd.f32 %v3495, %v3885
        %v3994 = vadd.f32 %v3496, %v3888
        %v3995 = vadd.f32 %v3497, %v3893
        %v3996 = vadd.f32 %v3498, %v3896
        %v3997 = vadd.f32 %v3499, %v3901
        %v3998 = vadd.f32 %v3500, %v3904
        %v3999 = vadd.f32 %v3501, %v3909
        %v4000 = vadd.f32 %v3502, %v3912
        %v4001 = vadd.f32 %v3503, %v3917
        %v4002 = vadd.f32 %v3504, %v3920
        %v4003 = vadd.f32 %v3505, %v3925
        %v4004 = vadd.f32 %v3506, %v3928
        %v4005 = vadd.f32 %v3507, %v3933
        %v4006 = vadd.f32 %v3508, %v3936
        %v4007 = vadd.f32 %v3509, %v3941
        %v4008 = vadd.f32 %v3510, %v3944
        %v4009 = vadd.f32 %v3511, %v3949
        %v4010 = vadd.f32 %v3512, %v3952
        %v4011 = vadd.f32 %v3513, %v3957
        %v4012 = vadd.f32 %v3514, %v3960
        %v4013 = vadd.f32 %v3515, %v3965
        %v4014 = vadd.f32 %v3516, %v3968
        %v4015 = vadd.f32 %v3517, %v3973
        %v4016 = vadd.f32 %v3518, %v3976
        %v4017 = vadd.f32 %v3519, %v3981
        %v4018 = vadd.f32 %v3520, %v3984
        %s4019 = scalar_lea.vmem [#allocation2], 24
        %v4020 = vld [vmem:[%s4019] sm:$0xf]
        %v4021 = vld [vmem:[%s4019 + $0x4] sm:$0xf]
        %v4022 = vld [vmem:[%s4019 + $0xc] sm:$0xf]
        %v4023 = vld [vmem:[%s4019 + $0x10] sm:$0xf]
        %v4024 = vld [vmem:[%s4019 + $0x18] sm:$0xf]
        %v4025 = vld [vmem:[%s4019 + $0x1c] sm:$0xf]
        %v4026 = vld [vmem:[%s4019 + $0x24] sm:$0xf]
        %v4027 = vld [vmem:[%s4019 + $0x28] sm:$0xf]
        %v4028 = vld [vmem:[%s4019 + $0x30] sm:$0xf]
        %v4029 = vld [vmem:[%s4019 + $0x34] sm:$0xf]
        %v4030 = vld [vmem:[%s4019 + $0x3c] sm:$0xf]
        %v4031 = vld [vmem:[%s4019 + $0x40] sm:$0xf]
        %v4032 = vld [vmem:[%s4019 + $0x48] sm:$0xf]
        %v4033 = vld [vmem:[%s4019 + $0x4c] sm:$0xf]
        %v4034 = vld [vmem:[%s4019 + $0x54] sm:$0xf]
        %v4035 = vld [vmem:[%s4019 + $0x58] sm:$0xf]
        %v4036 = vld [vmem:[%s4019 + $0x60] sm:$0xf]
        %v4037 = vld [vmem:[%s4019 + $0x64] sm:$0xf]
        %v4038 = vld [vmem:[%s4019 + $0x6c] sm:$0xf]
        %v4039 = vld [vmem:[%s4019 + $0x70] sm:$0xf]
        %v4040 = vld [vmem:[%s4019 + $0x78] sm:$0xf]
        %v4041 = vld [vmem:[%s4019 + $0x7c] sm:$0xf]
        %v4042 = vld [vmem:[%s4019 + $0x84] sm:$0xf]
        %v4043 = vld [vmem:[%s4019 + $0x88] sm:$0xf]
        %v4044 = vld [vmem:[%s4019 + $0x90] sm:$0xf]
        %v4045 = vld [vmem:[%s4019 + $0x94] sm:$0xf]
        %v4046 = vld [vmem:[%s4019 + $0x9c] sm:$0xf]
        %v4047 = vld [vmem:[%s4019 + $0xa0] sm:$0xf]
        %v4048 = vld [vmem:[%s4019 + $0xa8] sm:$0xf]
        %v4049 = vld [vmem:[%s4019 + $0xac] sm:$0xf]
        %v4050 = vld [vmem:[%s4019 + $0xb4] sm:$0xf]
        %v4051 = vld [vmem:[%s4019 + $0xb8] sm:$0xf]
        %s4052 = scalar_lea.vmem %s1, 192
        %v4053 = vld [vmem:[%s4052] sm:$0xf]
        %v4054 = vld [vmem:[%s4052 + $0x4] sm:$0xf]
        %v4055 = vld [vmem:[%s4052 + $0x8] sm:$0xf]
        %v4056 = vld [vmem:[%s4052 + $0xc] sm:$0xf]
        %v4057 = vld [vmem:[%s4052 + $0x10] sm:$0xf]
        %v4058 = vld [vmem:[%s4052 + $0x14] sm:$0xf]
        %v4059 = vld [vmem:[%s4052 + $0x18] sm:$0xf]
        %v4060 = vld [vmem:[%s4052 + $0x1c] sm:$0xf]
        %v4093 = vunpack.c.l.b16 %v4020
        %v4094 = vunpack.c.l.b16 %v4021
        %v4095 = vunpack.c.l.b16 %v4022
        %v4096 = vunpack.c.l.b16 %v4023
        %v4097 = vunpack.c.l.b16 %v4024
        %v4098 = vunpack.c.l.b16 %v4025
        %v4099 = vunpack.c.l.b16 %v4026
        %v4100 = vunpack.c.l.b16 %v4027
        %v4101 = vunpack.c.l.b16 %v4028
        %v4102 = vunpack.c.l.b16 %v4029
        %v4103 = vunpack.c.l.b16 %v4030
        %v4104 = vunpack.c.l.b16 %v4031
        %v4105 = vunpack.c.l.b16 %v4032
        %v4106 = vunpack.c.l.b16 %v4033
        %v4107 = vunpack.c.l.b16 %v4034
        %v4108 = vunpack.c.l.b16 %v4035
        %v4109 = vunpack.c.l.b16 %v4036
        %v4110 = vunpack.c.l.b16 %v4037
        %v4111 = vunpack.c.l.b16 %v4038
        %v4112 = vunpack.c.l.b16 %v4039
        %v4113 = vunpack.c.l.b16 %v4040
        %v4114 = vunpack.c.l.b16 %v4041
        %v4115 = vunpack.c.l.b16 %v4042
        %v4116 = vunpack.c.l.b16 %v4043
        %v4117 = vunpack.c.l.b16 %v4044
        %v4118 = vunpack.c.l.b16 %v4045
        %v4119 = vunpack.c.l.b16 %v4046
        %v4120 = vunpack.c.l.b16 %v4047
        %v4121 = vunpack.c.l.b16 %v4048
        %v4122 = vunpack.c.l.b16 %v4049
        %v4123 = vunpack.c.l.b16 %v4050
        %v4124 = vunpack.c.l.b16 %v4051
        %v4125 = vpack.c.b16 %v4094, %v4093
        %v4126 = vpack.c.b16 %v4096, %v4095
        %v4127 = vpack.c.b16 %v4098, %v4097
        %v4128 = vpack.c.b16 %v4100, %v4099
        %v4129 = vpack.c.b16 %v4102, %v4101
        %v4130 = vpack.c.b16 %v4104, %v4103
        %v4131 = vpack.c.b16 %v4106, %v4105
        %v4132 = vpack.c.b16 %v4108, %v4107
        %v4133 = vpack.c.b16 %v4110, %v4109
        %v4134 = vpack.c.b16 %v4112, %v4111
        %v4135 = vpack.c.b16 %v4114, %v4113
        %v4136 = vpack.c.b16 %v4116, %v4115
        %v4137 = vpack.c.b16 %v4118, %v4117
        %v4138 = vpack.c.b16 %v4120, %v4119
        %v4139 = vpack.c.b16 %v4122, %v4121
        %v4140 = vpack.c.b16 %v4124, %v4123
        %v4149 = vunpack.c.l.b16 %v4053
        %v4150 = vunpack.c.l.b16 %v4054
        %v4151 = vunpack.c.l.b16 %v4055
        %v4152 = vunpack.c.l.b16 %v4056
        %v4153 = vunpack.c.l.b16 %v4057
        %v4154 = vunpack.c.l.b16 %v4058
        %v4155 = vunpack.c.l.b16 %v4059
        %v4156 = vunpack.c.l.b16 %v4060
        %v4157 = vpack.c.b16 %v4150, %v4149
        %v4158 = vpack.c.b16 %v4152, %v4151
        %v4159 = vpack.c.b16 %v4154, %v4153
        %v4160 = vpack.c.b16 %v4156, %v4155
        %v4166 = vsel %vm1373, %v4125, 0
        %v4169 = vsel %vm1373, %v4126, 0
        %v4172 = vsel %vm1373, %v4127, 0
        %v4175 = vsel %vm1373, %v4128, 0
        %v4178 = vsel %vm1373, %v4129, 0
        %v4181 = vsel %vm1373, %v4130, 0
        %v4184 = vsel %vm1373, %v4131, 0
        %v4187 = vsel %vm1373, %v4132, 0
        %v4190 = vsel %vm1373, %v4133, 0
        %v4193 = vsel %vm1373, %v4134, 0
        %v4196 = vsel %vm1373, %v4135, 0
        %v4199 = vsel %vm1373, %v4136, 0
        %v4202 = vsel %vm1373, %v4137, 0
        %v4205 = vsel %vm1373, %v4138, 0
        %v4208 = vsel %vm1373, %v4139, 0
        %v4211 = vsel %vm1373, %v4140, 0
        %4213 = vmatprep.subr.bf16.mxu0 0
        %4214 = vmatpush1.bf16.msra.mxu0 %v4157
        %4215 = vmatprep.subr.bf16.mxu0 0
        %4216 = vmatpush1.bf16.msra.mxu0 %v4158
        %4217 = vmatprep.subr.bf16.mxu0 0
        %4218 = vmatpush1.bf16.msra.mxu0 %v4159
        %4219 = vmatprep.subr.bf16.mxu0 0
        %4220 = vmatpush1.bf16.msra.mxu0 %v4160
        %4221 = vmatprep.subr.bf16.mxu0 0
        %4222 = vmatpush1.bf16.msra.mxu0 0
        %4223 = vmatprep.subr.bf16.mxu0 0
        %4224 = vmatpush1.bf16.msra.mxu0 0
        %4225 = vmatprep.subr.bf16.mxu0 0
        %4226 = vmatpush1.bf16.msra.mxu0 0
        %4227 = vmatprep.subr.bf16.mxu0 0
        %4228 = vmatpush1.bf16.msra.mxu0 0
        %4229 = vmatprep.subr.bf16.mxu0 0
        %4230 = vmatpush1.bf16.msra.mxu0 0
        %4231 = vmatprep.subr.bf16.mxu0 0
        %4232 = vmatpush1.bf16.msra.mxu0 0
        %4233 = vmatprep.subr.bf16.mxu0 0
        %4234 = vmatpush1.bf16.msra.mxu0 0
        %4235 = vmatprep.subr.bf16.mxu0 0
        %4236 = vmatpush1.bf16.msra.mxu0 0
        %4237 = vmatprep.subr.bf16.mxu0 0
        %4238 = vmatpush1.bf16.msra.mxu0 0
        %4239 = vmatprep.subr.bf16.mxu0 0
        %4240 = vmatpush1.bf16.msra.mxu0 0
        %4241 = vmatprep.subr.bf16.mxu0 0
        %4242 = vmatpush1.bf16.msra.mxu0 0
        %4243 = vmatprep.subr.bf16.mxu0 0
        %4244 = vmatpush1.bf16.msra.mxu0 0
        %4245 = vmatprep.mubr.bf16.mxu0 0
        %4246 = vmatmul.mubr.bf16.gmra.mrb[0].mxu0 %v4166
        %v4247 = vpop.f32.mrb[0].mxu0
        %v4248 = vadd.f32 0.0, %v4247
        %v4249 = vpop.f32.mrb[0].mxu0
        %v4250 = vpop.f32.mrb[0].mxu0
        %v4251 = vadd.f32 0.0, %v4250
        %v4252 = vpop.f32.mrb[0].mxu0
        %4253 = vmatprep.mubr.bf16.mxu0 0
        %4254 = vmatmul.mubr.bf16.gmra.mrb[0].mxu0 %v4169
        %v4255 = vpop.f32.mrb[0].mxu0
        %v4256 = vadd.f32 0.0, %v4255
        %v4257 = vpop.f32.mrb[0].mxu0
        %v4258 = vpop.f32.mrb[0].mxu0
        %v4259 = vadd.f32 0.0, %v4258
        %v4260 = vpop.f32.mrb[0].mxu0
        %4261 = vmatprep.mubr.bf16.mxu0 0
        %4262 = vmatmul.mubr.bf16.gmra.mrb[0].mxu0 %v4172
        %v4263 = vpop.f32.mrb[0].mxu0
        %v4264 = vadd.f32 0.0, %v4263
        %v4265 = vpop.f32.mrb[0].mxu0
        %v4266 = vpop.f32.mrb[0].mxu0
        %v4267 = vadd.f32 0.0, %v4266
        %v4268 = vpop.f32.mrb[0].mxu0
        %4269 = vmatprep.mubr.bf16.mxu0 0
        %4270 = vmatmul.mubr.bf16.gmra.mrb[0].mxu0 %v4175
        %v4271 = vpop.f32.mrb[0].mxu0
        %v4272 = vadd.f32 0.0, %v4271
        %v4273 = vpop.f32.mrb[0].mxu0
        %v4274 = vpop.f32.mrb[0].mxu0
        %v4275 = vadd.f32 0.0, %v4274
        %v4276 = vpop.f32.mrb[0].mxu0
        %4277 = vmatprep.mubr.bf16.mxu0 0
        %4278 = vmatmul.mubr.bf16.gmra.mrb[0].mxu0 %v4178
        %v4279 = vpop.f32.mrb[0].mxu0
        %v4280 = vadd.f32 0.0, %v4279
        %v4281 = vpop.f32.mrb[0].mxu0
        %v4282 = vpop.f32.mrb[0].mxu0
        %v4283 = vadd.f32 0.0, %v4282
        %v4284 = vpop.f32.mrb[0].mxu0
        %4285 = vmatprep.mubr.bf16.mxu0 0
        %4286 = vmatmul.mubr.bf16.gmra.mrb[0].mxu0 %v4181
        %v4287 = vpop.f32.mrb[0].mxu0
        %v4288 = vadd.f32 0.0, %v4287
        %v4289 = vpop.f32.mrb[0].mxu0
        %v4290 = vpop.f32.mrb[0].mxu0
        %v4291 = vadd.f32 0.0, %v4290
        %v4292 = vpop.f32.mrb[0].mxu0
        %4293 = vmatprep.mubr.bf16.mxu0 0
        %4294 = vmatmul.mubr.bf16.gmra.mrb[0].mxu0 %v4184
        %v4295 = vpop.f32.mrb[0].mxu0
        %v4296 = vadd.f32 0.0, %v4295
        %v4297 = vpop.f32.mrb[0].mxu0
        %v4298 = vpop.f32.mrb[0].mxu0
        %v4299 = vadd.f32 0.0, %v4298
        %v4300 = vpop.f32.mrb[0].mxu0
        %4301 = vmatprep.mubr.bf16.mxu0 0
        %4302 = vmatmul.mubr.bf16.gmra.mrb[0].mxu0 %v4187
        %v4303 = vpop.f32.mrb[0].mxu0
        %v4304 = vadd.f32 0.0, %v4303
        %v4305 = vpop.f32.mrb[0].mxu0
        %v4306 = vpop.f32.mrb[0].mxu0
        %v4307 = vadd.f32 0.0, %v4306
        %v4308 = vpop.f32.mrb[0].mxu0
        %4309 = vmatprep.mubr.bf16.mxu0 0
        %4310 = vmatmul.mubr.bf16.gmra.mrb[0].mxu0 %v4190
        %v4311 = vpop.f32.mrb[0].mxu0
        %v4312 = vadd.f32 0.0, %v4311
        %v4313 = vpop.f32.mrb[0].mxu0
        %v4314 = vpop.f32.mrb[0].mxu0
        %v4315 = vadd.f32 0.0, %v4314
        %v4316 = vpop.f32.mrb[0].mxu0
        %4317 = vmatprep.mubr.bf16.mxu0 0
        %4318 = vmatmul.mubr.bf16.gmra.mrb[0].mxu0 %v4193
        %v4319 = vpop.f32.mrb[0].mxu0
        %v4320 = vadd.f32 0.0, %v4319
        %v4321 = vpop.f32.mrb[0].mxu0
        %v4322 = vpop.f32.mrb[0].mxu0
        %v4323 = vadd.f32 0.0, %v4322
        %v4324 = vpop.f32.mrb[0].mxu0
        %4325 = vmatprep.mubr.bf16.mxu0 0
        %4326 = vmatmul.mubr.bf16.gmra.mrb[0].mxu0 %v4196
        %v4327 = vpop.f32.mrb[0].mxu0
        %v4328 = vadd.f32 0.0, %v4327
        %v4329 = vpop.f32.mrb[0].mxu0
        %v4330 = vpop.f32.mrb[0].mxu0
        %v4331 = vadd.f32 0.0, %v4330
        %v4332 = vpop.f32.mrb[0].mxu0
        %4333 = vmatprep.mubr.bf16.mxu0 0
        %4334 = vmatmul.mubr.bf16.gmra.mrb[0].mxu0 %v4199
        %v4335 = vpop.f32.mrb[0].mxu0
        %v4336 = vadd.f32 0.0, %v4335
        %v4337 = vpop.f32.mrb[0].mxu0
        %v4338 = vpop.f32.mrb[0].mxu0
        %v4339 = vadd.f32 0.0, %v4338
        %v4340 = vpop.f32.mrb[0].mxu0
        %4341 = vmatprep.mubr.bf16.mxu0 0
        %4342 = vmatmul.mubr.bf16.gmra.mrb[0].mxu0 %v4202
        %v4343 = vpop.f32.mrb[0].mxu0
        %v4344 = vadd.f32 0.0, %v4343
        %v4345 = vpop.f32.mrb[0].mxu0
        %v4346 = vpop.f32.mrb[0].mxu0
        %v4347 = vadd.f32 0.0, %v4346
        %v4348 = vpop.f32.mrb[0].mxu0
        %4349 = vmatprep.mubr.bf16.mxu0 0
        %4350 = vmatmul.mubr.bf16.gmra.mrb[0].mxu0 %v4205
        %v4351 = vpop.f32.mrb[0].mxu0
        %v4352 = vadd.f32 0.0, %v4351
        %v4353 = vpop.f32.mrb[0].mxu0
        %v4354 = vpop.f32.mrb[0].mxu0
        %v4355 = vadd.f32 0.0, %v4354
        %v4356 = vpop.f32.mrb[0].mxu0
        %4357 = vmatprep.mubr.bf16.mxu0 0
        %4358 = vmatmul.mubr.bf16.gmra.mrb[0].mxu0 %v4208
        %v4359 = vpop.f32.mrb[0].mxu0
        %v4360 = vadd.f32 0.0, %v4359
        %v4361 = vpop.f32.mrb[0].mxu0
        %v4362 = vpop.f32.mrb[0].mxu0
        %v4363 = vadd.f32 0.0, %v4362
        %v4364 = vpop.f32.mrb[0].mxu0
        %4365 = vmatprep.mubr.bf16.mxu0 0
        %4366 = vmatmul.mubr.bf16.gmra.mrb[0].mxu0 %v4211
        %v4367 = vpop.f32.mrb[0].mxu0
        %v4368 = vadd.f32 0.0, %v4367
        %v4369 = vpop.f32.mrb[0].mxu0
        %v4370 = vpop.f32.mrb[0].mxu0
        %v4371 = vadd.f32 0.0, %v4370
        %v4372 = vpop.f32.mrb[0].mxu0
        %4373 = vdwg.mxu0
        %v4374 = vadd.f32 %v3987, %v4248
        %v4375 = vadd.f32 %v3988, %v4251
        %v4376 = vadd.f32 %v3989, %v4256
        %v4377 = vadd.f32 %v3990, %v4259
        %v4378 = vadd.f32 %v3991, %v4264
        %v4379 = vadd.f32 %v3992, %v4267
        %v4380 = vadd.f32 %v3993, %v4272
        %v4381 = vadd.f32 %v3994, %v4275
        %v4382 = vadd.f32 %v3995, %v4280
        %v4383 = vadd.f32 %v3996, %v4283
        %v4384 = vadd.f32 %v3997, %v4288
        %v4385 = vadd.f32 %v3998, %v4291
        %v4386 = vadd.f32 %v3999, %v4296
        %v4387 = vadd.f32 %v4000, %v4299
        %v4388 = vadd.f32 %v4001, %v4304
        %v4389 = vadd.f32 %v4002, %v4307
        %v4390 = vadd.f32 %v4003, %v4312
        %v4391 = vadd.f32 %v4004, %v4315
        %v4392 = vadd.f32 %v4005, %v4320
        %v4393 = vadd.f32 %v4006, %v4323
        %v4394 = vadd.f32 %v4007, %v4328
        %v4395 = vadd.f32 %v4008, %v4331
        %v4396 = vadd.f32 %v4009, %v4336
        %v4397 = vadd.f32 %v4010, %v4339
        %v4398 = vadd.f32 %v4011, %v4344
        %v4399 = vadd.f32 %v4012, %v4347
        %v4400 = vadd.f32 %v4013, %v4352
        %v4401 = vadd.f32 %v4014, %v4355
        %v4402 = vadd.f32 %v4015, %v4360
        %v4403 = vadd.f32 %v4016, %v4363
        %v4404 = vadd.f32 %v4017, %v4368
        %v4405 = vadd.f32 %v4018, %v4371
        %v4406 = vld [vmem:[%s4019] sm:$0xf]
        %v4407 = vld [vmem:[%s4019 + $0x4] sm:$0xf]
        %v4408 = vld [vmem:[%s4019 + $0x8] sm:$0x1]
        %v4409 = vld [vmem:[%s4019 + $0xc] sm:$0xf]
        %v4410 = vld [vmem:[%s4019 + $0x10] sm:$0xf]
        %v4411 = vld [vmem:[%s4019 + $0x14] sm:$0x1]
        %v4412 = vld [vmem:[%s4019 + $0x18] sm:$0xf]
        %v4413 = vld [vmem:[%s4019 + $0x1c] sm:$0xf]
        %v4414 = vld [vmem:[%s4019 + $0x20] sm:$0x1]
        %v4415 = vld [vmem:[%s4019 + $0x24] sm:$0xf]
        %v4416 = vld [vmem:[%s4019 + $0x28] sm:$0xf]
        %v4417 = vld [vmem:[%s4019 + $0x2c] sm:$0x1]
        %v4418 = vld [vmem:[%s4019 + $0x30] sm:$0xf]
        %v4419 = vld [vmem:[%s4019 + $0x34] sm:$0xf]
        %v4420 = vld [vmem:[%s4019 + $0x38] sm:$0x1]
        %v4421 = vld [vmem:[%s4019 + $0x3c] sm:$0xf]
        %v4422 = vld [vmem:[%s4019 + $0x40] sm:$0xf]
        %v4423 = vld [vmem:[%s4019 + $0x44] sm:$0x1]
        %v4424 = vld [vmem:[%s4019 + $0x48] sm:$0xf]
        %v4425 = vld [vmem:[%s4019 + $0x4c] sm:$0xf]
        %v4426 = vld [vmem:[%s4019 + $0x50] sm:$0x1]
        %v4427 = vld [vmem:[%s4019 + $0x54] sm:$0xf]
        %v4428 = vld [vmem:[%s4019 + $0x58] sm:$0xf]
        %v4429 = vld [vmem:[%s4019 + $0x5c] sm:$0x1]
        %v4430 = vld [vmem:[%s4019 + $0x60] sm:$0xf]
        %v4431 = vld [vmem:[%s4019 + $0x64] sm:$0xf]
        %v4432 = vld [vmem:[%s4019 + $0x68] sm:$0x1]
        %v4433 = vld [vmem:[%s4019 + $0x6c] sm:$0xf]
        %v4434 = vld [vmem:[%s4019 + $0x70] sm:$0xf]
        %v4435 = vld [vmem:[%s4019 + $0x74] sm:$0x1]
        %v4436 = vld [vmem:[%s4019 + $0x78] sm:$0xf]
        %v4437 = vld [vmem:[%s4019 + $0x7c] sm:$0xf]
        %v4438 = vld [vmem:[%s4019 + $0x80] sm:$0x1]
        %v4439 = vld [vmem:[%s4019 + $0x84] sm:$0xf]
        %v4440 = vld [vmem:[%s4019 + $0x88] sm:$0xf]
        %v4441 = vld [vmem:[%s4019 + $0x8c] sm:$0x1]
        %v4442 = vld [vmem:[%s4019 + $0x90] sm:$0xf]
        %v4443 = vld [vmem:[%s4019 + $0x94] sm:$0xf]
        %v4444 = vld [vmem:[%s4019 + $0x98] sm:$0x1]
        %v4445 = vld [vmem:[%s4019 + $0x9c] sm:$0xf]
        %v4446 = vld [vmem:[%s4019 + $0xa0] sm:$0xf]
        %v4447 = vld [vmem:[%s4019 + $0xa4] sm:$0x1]
        %v4448 = vld [vmem:[%s4019 + $0xa8] sm:$0xf]
        %v4449 = vld [vmem:[%s4019 + $0xac] sm:$0xf]
        %v4450 = vld [vmem:[%s4019 + $0xb0] sm:$0x1]
        %v4451 = vld [vmem:[%s4019 + $0xb4] sm:$0xf]
        %v4452 = vld [vmem:[%s4019 + $0xb8] sm:$0xf]
        %v4453 = vld [vmem:[%s4019 + $0xbc] sm:$0x1]
        %v4455 = vshrl.u32 %v4406, 16
        %v4457 = vrot.slane %v4455, 4
        %v4458 = vshll.u32 %v4406, 16
        %v4460 = vrot.slane %v4458, 5
        %v4461 = vor.u32 %v4457, %v4460
        %v4462 = vrot.slane %v4461, 4
        %v4464 = vshll.u32 %v4407, 16
        %v4466 = vrot.slane %v4464, 5
        %v4467 = vsel %vm907, %v4462, %v4466
        %v4468 = vshrl.u32 %v4407, 16
        %v4470 = vrot.slane %v4468, 4
        %v4471 = vor.u32 %v4470, %v4466
        %v4472 = vrot.slane %v4471, 4
        %v4474 = vshll.u32 %v4408, 16
        %v4476 = vrot.slane %v4474, 5
        %v4477 = vsel %vm907, %v4472, %v4476
        %v4479 = vshrl.u32 %v4409, 16
        %v4481 = vrot.slane %v4479, 4
        %v4482 = vshll.u32 %v4409, 16
        %v4484 = vrot.slane %v4482, 5
        %v4485 = vor.u32 %v4481, %v4484
        %v4486 = vrot.slane %v4485, 4
        %v4488 = vshll.u32 %v4410, 16
        %v4490 = vrot.slane %v4488, 5
        %v4491 = vsel %vm907, %v4486, %v4490
        %v4492 = vshrl.u32 %v4410, 16
        %v4494 = vrot.slane %v4492, 4
        %v4495 = vor.u32 %v4494, %v4490
        %v4496 = vrot.slane %v4495, 4
        %v4498 = vshll.u32 %v4411, 16
        %v4500 = vrot.slane %v4498, 5
        %v4501 = vsel %vm907, %v4496, %v4500
        %v4503 = vshrl.u32 %v4412, 16
        %v4505 = vrot.slane %v4503, 4
        %v4506 = vshll.u32 %v4412, 16
        %v4508 = vrot.slane %v4506, 5
        %v4509 = vor.u32 %v4505, %v4508
        %v4510 = vrot.slane %v4509, 4
        %v4512 = vshll.u32 %v4413, 16
        %v4514 = vrot.slane %v4512, 5
        %v4515 = vsel %vm907, %v4510, %v4514
        %v4516 = vshrl.u32 %v4413, 16
        %v4518 = vrot.slane %v4516, 4
        %v4519 = vor.u32 %v4518, %v4514
        %v4520 = vrot.slane %v4519, 4
        %v4522 = vshll.u32 %v4414, 16
        %v4524 = vrot.slane %v4522, 5
        %v4525 = vsel %vm907, %v4520, %v4524
        %v4527 = vshrl.u32 %v4415, 16
        %v4529 = vrot.slane %v4527, 4
        %v4530 = vshll.u32 %v4415, 16
        %v4532 = vrot.slane %v4530, 5
        %v4533 = vor.u32 %v4529, %v4532
        %v4534 = vrot.slane %v4533, 4
        %v4536 = vshll.u32 %v4416, 16
        %v4538 = vrot.slane %v4536, 5
        %v4539 = vsel %vm907, %v4534, %v4538
        %v4540 = vshrl.u32 %v4416, 16
        %v4542 = vrot.slane %v4540, 4
        %v4543 = vor.u32 %v4542, %v4538
        %v4544 = vrot.slane %v4543, 4
        %v4546 = vshll.u32 %v4417, 16
        %v4548 = vrot.slane %v4546, 5
        %v4549 = vsel %vm907, %v4544, %v4548
        %v4551 = vshrl.u32 %v4418, 16
        %v4553 = vrot.slane %v4551, 4
        %v4554 = vshll.u32 %v4418, 16
        %v4556 = vrot.slane %v4554, 5
        %v4557 = vor.u32 %v4553, %v4556
        %v4558 = vrot.slane %v4557, 4
        %v4560 = vshll.u32 %v4419, 16
        %v4562 = vrot.slane %v4560, 5
        %v4563 = vsel %vm907, %v4558, %v4562
        %v4564 = vshrl.u32 %v4419, 16
        %v4566 = vrot.slane %v4564, 4
        %v4567 = vor.u32 %v4566, %v4562
        %v4568 = vrot.slane %v4567, 4
        %v4570 = vshll.u32 %v4420, 16
        %v4572 = vrot.slane %v4570, 5
        %v4573 = vsel %vm907, %v4568, %v4572
        %v4575 = vshrl.u32 %v4421, 16
        %v4577 = vrot.slane %v4575, 4
        %v4578 = vshll.u32 %v4421, 16
        %v4580 = vrot.slane %v4578, 5
        %v4581 = vor.u32 %v4577, %v4580
        %v4582 = vrot.slane %v4581, 4
        %v4584 = vshll.u32 %v4422, 16
        %v4586 = vrot.slane %v4584, 5
        %v4587 = vsel %vm907, %v4582, %v4586
        %v4588 = vshrl.u32 %v4422, 16
        %v4590 = vrot.slane %v4588, 4
        %v4591 = vor.u32 %v4590, %v4586
        %v4592 = vrot.slane %v4591, 4
        %v4594 = vshll.u32 %v4423, 16
        %v4596 = vrot.slane %v4594, 5
        %v4597 = vsel %vm907, %v4592, %v4596
        %v4599 = vshrl.u32 %v4424, 16
        %v4601 = vrot.slane %v4599, 4
        %v4602 = vshll.u32 %v4424, 16
        %v4604 = vrot.slane %v4602, 5
        %v4605 = vor.u32 %v4601, %v4604
        %v4606 = vrot.slane %v4605, 4
        %v4608 = vshll.u32 %v4425, 16
        %v4610 = vrot.slane %v4608, 5
        %v4611 = vsel %vm907, %v4606, %v4610
        %v4612 = vshrl.u32 %v4425, 16
        %v4614 = vrot.slane %v4612, 4
        %v4615 = vor.u32 %v4614, %v4610
        %v4616 = vrot.slane %v4615, 4
        %v4618 = vshll.u32 %v4426, 16
        %v4620 = vrot.slane %v4618, 5
        %v4621 = vsel %vm907, %v4616, %v4620
        %v4623 = vshrl.u32 %v4427, 16
        %v4625 = vrot.slane %v4623, 4
        %v4626 = vshll.u32 %v4427, 16
        %v4628 = vrot.slane %v4626, 5
        %v4629 = vor.u32 %v4625, %v4628
        %v4630 = vrot.slane %v4629, 4
        %v4632 = vshll.u32 %v4428, 16
        %v4634 = vrot.slane %v4632, 5
        %v4635 = vsel %vm907, %v4630, %v4634
        %v4636 = vshrl.u32 %v4428, 16
        %v4638 = vrot.slane %v4636, 4
        %v4639 = vor.u32 %v4638, %v4634
        %v4640 = vrot.slane %v4639, 4
        %v4642 = vshll.u32 %v4429, 16
        %v4644 = vrot.slane %v4642, 5
        %v4645 = vsel %vm907, %v4640, %v4644
        %v4647 = vshrl.u32 %v4430, 16
        %v4649 = vrot.slane %v4647, 4
        %v4650 = vshll.u32 %v4430, 16
        %v4652 = vrot.slane %v4650, 5
        %v4653 = vor.u32 %v4649, %v4652
        %v4654 = vrot.slane %v4653, 4
        %v4656 = vshll.u32 %v4431, 16
        %v4658 = vrot.slane %v4656, 5
        %v4659 = vsel %vm907, %v4654, %v4658
        %v4660 = vshrl.u32 %v4431, 16
        %v4662 = vrot.slane %v4660, 4
        %v4663 = vor.u32 %v4662, %v4658
        %v4664 = vrot.slane %v4663, 4
        %v4666 = vshll.u32 %v4432, 16
        %v4668 = vrot.slane %v4666, 5
        %v4669 = vsel %vm907, %v4664, %v4668
        %v4671 = vshrl.u32 %v4433, 16
        %v4673 = vrot.slane %v4671, 4
        %v4674 = vshll.u32 %v4433, 16
        %v4676 = vrot.slane %v4674, 5
        %v4677 = vor.u32 %v4673, %v4676
        %v4678 = vrot.slane %v4677, 4
        %v4680 = vshll.u32 %v4434, 16
        %v4682 = vrot.slane %v4680, 5
        %v4683 = vsel %vm907, %v4678, %v4682
        %v4684 = vshrl.u32 %v4434, 16
        %v4686 = vrot.slane %v4684, 4
        %v4687 = vor.u32 %v4686, %v4682
        %v4688 = vrot.slane %v4687, 4
        %v4690 = vshll.u32 %v4435, 16
        %v4692 = vrot.slane %v4690, 5
        %v4693 = vsel %vm907, %v4688, %v4692
        %v4695 = vshrl.u32 %v4436, 16
        %v4697 = vrot.slane %v4695, 4
        %v4698 = vshll.u32 %v4436, 16
        %v4700 = vrot.slane %v4698, 5
        %v4701 = vor.u32 %v4697, %v4700
        %v4702 = vrot.slane %v4701, 4
        %v4704 = vshll.u32 %v4437, 16
        %v4706 = vrot.slane %v4704, 5
        %v4707 = vsel %vm907, %v4702, %v4706
        %v4708 = vshrl.u32 %v4437, 16
        %v4710 = vrot.slane %v4708, 4
        %v4711 = vor.u32 %v4710, %v4706
        %v4712 = vrot.slane %v4711, 4
        %v4714 = vshll.u32 %v4438, 16
        %v4716 = vrot.slane %v4714, 5
        %v4717 = vsel %vm907, %v4712, %v4716
        %v4719 = vshrl.u32 %v4439, 16
        %v4721 = vrot.slane %v4719, 4
        %v4722 = vshll.u32 %v4439, 16
        %v4724 = vrot.slane %v4722, 5
        %v4725 = vor.u32 %v4721, %v4724
        %v4726 = vrot.slane %v4725, 4
        %v4728 = vshll.u32 %v4440, 16
        %v4730 = vrot.slane %v4728, 5
        %v4731 = vsel %vm907, %v4726, %v4730
        %v4732 = vshrl.u32 %v4440, 16
        %v4734 = vrot.slane %v4732, 4
        %v4735 = vor.u32 %v4734, %v4730
        %v4736 = vrot.slane %v4735, 4
        %v4738 = vshll.u32 %v4441, 16
        %v4740 = vrot.slane %v4738, 5
        %v4741 = vsel %vm907, %v4736, %v4740
        %v4743 = vshrl.u32 %v4442, 16
        %v4745 = vrot.slane %v4743, 4
        %v4746 = vshll.u32 %v4442, 16
        %v4748 = vrot.slane %v4746, 5
        %v4749 = vor.u32 %v4745, %v4748
        %v4750 = vrot.slane %v4749, 4
        %v4752 = vshll.u32 %v4443, 16
        %v4754 = vrot.slane %v4752, 5
        %v4755 = vsel %vm907, %v4750, %v4754
        %v4756 = vshrl.u32 %v4443, 16
        %v4758 = vrot.slane %v4756, 4
        %v4759 = vor.u32 %v4758, %v4754
        %v4760 = vrot.slane %v4759, 4
        %v4762 = vshll.u32 %v4444, 16
        %v4764 = vrot.slane %v4762, 5
        %v4765 = vsel %vm907, %v4760, %v4764
        %v4767 = vshrl.u32 %v4445, 16
        %v4769 = vrot.slane %v4767, 4
        %v4770 = vshll.u32 %v4445, 16
        %v4772 = vrot.slane %v4770, 5
        %v4773 = vor.u32 %v4769, %v4772
        %v4774 = vrot.slane %v4773, 4
        %v4776 = vshll.u32 %v4446, 16
        %v4778 = vrot.slane %v4776, 5
        %v4779 = vsel %vm907, %v4774, %v4778
        %v4780 = vshrl.u32 %v4446, 16
        %v4782 = vrot.slane %v4780, 4
        %v4783 = vor.u32 %v4782, %v4778
        %v4784 = vrot.slane %v4783, 4
        %v4786 = vshll.u32 %v4447, 16
        %v4788 = vrot.slane %v4786, 5
        %v4789 = vsel %vm907, %v4784, %v4788
        %v4791 = vshrl.u32 %v4448, 16
        %v4793 = vrot.slane %v4791, 4
        %v4794 = vshll.u32 %v4448, 16
        %v4796 = vrot.slane %v4794, 5
        %v4797 = vor.u32 %v4793, %v4796
        %v4798 = vrot.slane %v4797, 4
        %v4800 = vshll.u32 %v4449, 16
        %v4802 = vrot.slane %v4800, 5
        %v4803 = vsel %vm907, %v4798, %v4802
        %v4804 = vshrl.u32 %v4449, 16
        %v4806 = vrot.slane %v4804, 4
        %v4807 = vor.u32 %v4806, %v4802
        %v4808 = vrot.slane %v4807, 4
        %v4810 = vshll.u32 %v4450, 16
        %v4812 = vrot.slane %v4810, 5
        %v4813 = vsel %vm907, %v4808, %v4812
        %v4815 = vshrl.u32 %v4451, 16
        %v4817 = vrot.slane %v4815, 4
        %v4818 = vshll.u32 %v4451, 16
        %v4820 = vrot.slane %v4818, 5
        %v4821 = vor.u32 %v4817, %v4820
        %v4822 = vrot.slane %v4821, 4
        %v4824 = vshll.u32 %v4452, 16
        %v4826 = vrot.slane %v4824, 5
        %v4827 = vsel %vm907, %v4822, %v4826
        %v4828 = vshrl.u32 %v4452, 16
        %v4830 = vrot.slane %v4828, 4
        %v4831 = vor.u32 %v4830, %v4826
        %v4832 = vrot.slane %v4831, 4
        %v4834 = vshll.u32 %v4453, 16
        %v4836 = vrot.slane %v4834, 5
        %v4837 = vsel %vm907, %v4832, %v4836
        %s4838 = scalar_lea.vmem %s1, 224
        %v4839 = vld [vmem:[%s4838] sm:$0xf]
        %v4840 = vld [vmem:[%s4838 + $0x4] sm:$0xf]
        %v4841 = vld [vmem:[%s4838 + $0x8] sm:$0xf]
        %v4842 = vld [vmem:[%s4838 + $0xc] sm:$0xf]
        %v4843 = vld [vmem:[%s4838 + $0x10] sm:$0xf]
        %v4844 = vld [vmem:[%s4838 + $0x14] sm:$0xf]
        %v4845 = vld [vmem:[%s4838 + $0x18] sm:$0xf]
        %v4846 = vld [vmem:[%s4838 + $0x1c] sm:$0xf]
        %v4847 = vunpack.c.l.b16 %v4467
        %v4848 = vunpack.c.l.b16 %v4477
        %v4849 = vunpack.c.l.b16 %v4491
        %v4850 = vunpack.c.l.b16 %v4501
        %v4851 = vunpack.c.l.b16 %v4515
        %v4852 = vunpack.c.l.b16 %v4525
        %v4853 = vunpack.c.l.b16 %v4539
        %v4854 = vunpack.c.l.b16 %v4549
        %v4855 = vunpack.c.l.b16 %v4563
        %v4856 = vunpack.c.l.b16 %v4573
        %v4857 = vunpack.c.l.b16 %v4587
        %v4858 = vunpack.c.l.b16 %v4597
        %v4859 = vunpack.c.l.b16 %v4611
        %v4860 = vunpack.c.l.b16 %v4621
        %v4861 = vunpack.c.l.b16 %v4635
        %v4862 = vunpack.c.l.b16 %v4645
        %v4863 = vunpack.c.l.b16 %v4659
        %v4864 = vunpack.c.l.b16 %v4669
        %v4865 = vunpack.c.l.b16 %v4683
        %v4866 = vunpack.c.l.b16 %v4693
        %v4867 = vunpack.c.l.b16 %v4707
        %v4868 = vunpack.c.l.b16 %v4717
        %v4869 = vunpack.c.l.b16 %v4731
        %v4870 = vunpack.c.l.b16 %v4741
        %v4871 = vunpack.c.l.b16 %v4755
        %v4872 = vunpack.c.l.b16 %v4765
        %v4873 = vunpack.c.l.b16 %v4779
        %v4874 = vunpack.c.l.b16 %v4789
        %v4875 = vunpack.c.l.b16 %v4803
        %v4876 = vunpack.c.l.b16 %v4813
        %v4877 = vunpack.c.l.b16 %v4827
        %v4878 = vunpack.c.l.b16 %v4837
        %v4879 = vpack.c.b16 %v4848, %v4847
        %v4880 = vpack.c.b16 %v4850, %v4849
        %v4881 = vpack.c.b16 %v4852, %v4851
        %v4882 = vpack.c.b16 %v4854, %v4853
        %v4883 = vpack.c.b16 %v4856, %v4855
        %v4884 = vpack.c.b16 %v4858, %v4857
        %v4885 = vpack.c.b16 %v4860, %v4859
        %v4886 = vpack.c.b16 %v4862, %v4861
        %v4887 = vpack.c.b16 %v4864, %v4863
        %v4888 = vpack.c.b16 %v4866, %v4865
        %v4889 = vpack.c.b16 %v4868, %v4867
        %v4890 = vpack.c.b16 %v4870, %v4869
        %v4891 = vpack.c.b16 %v4872, %v4871
        %v4892 = vpack.c.b16 %v4874, %v4873
        %v4893 = vpack.c.b16 %v4876, %v4875
        %v4894 = vpack.c.b16 %v4878, %v4877
        %v4903 = vunpack.c.l.b16 %v4839
        %v4904 = vunpack.c.l.b16 %v4840
        %v4905 = vunpack.c.l.b16 %v4841
        %v4906 = vunpack.c.l.b16 %v4842
        %v4907 = vunpack.c.l.b16 %v4843
        %v4908 = vunpack.c.l.b16 %v4844
        %v4909 = vunpack.c.l.b16 %v4845
        %v4910 = vunpack.c.l.b16 %v4846
        %v4911 = vpack.c.b16 %v4904, %v4903
        %v4912 = vpack.c.b16 %v4906, %v4905
        %v4913 = vpack.c.b16 %v4908, %v4907
        %v4914 = vpack.c.b16 %v4910, %v4909
        %v4920 = vsel %vm1373, %v4879, 0
        %v4923 = vsel %vm1373, %v4880, 0
        %v4926 = vsel %vm1373, %v4881, 0
        %v4929 = vsel %vm1373, %v4882, 0
        %v4932 = vsel %vm1373, %v4883, 0
        %v4935 = vsel %vm1373, %v4884, 0
        %v4938 = vsel %vm1373, %v4885, 0
        %v4941 = vsel %vm1373, %v4886, 0
        %v4944 = vsel %vm1373, %v4887, 0
        %v4947 = vsel %vm1373, %v4888, 0
        %v4950 = vsel %vm1373, %v4889, 0
        %v4953 = vsel %vm1373, %v4890, 0
        %v4956 = vsel %vm1373, %v4891, 0
        %v4959 = vsel %vm1373, %v4892, 0
        %v4962 = vsel %vm1373, %v4893, 0
        %v4965 = vsel %vm1373, %v4894, 0
        %4967 = vmatprep.subr.bf16.mxu0 0
        %4968 = vmatpush1.bf16.msra.mxu0 %v4911
        %4969 = vmatprep.subr.bf16.mxu0 0
        %4970 = vmatpush1.bf16.msra.mxu0 %v4912
        %4971 = vmatprep.subr.bf16.mxu0 0
        %4972 = vmatpush1.bf16.msra.mxu0 %v4913
        %4973 = vmatprep.subr.bf16.mxu0 0
        %4974 = vmatpush1.bf16.msra.mxu0 %v4914
        %4975 = vmatprep.subr.bf16.mxu0 0
        %4976 = vmatpush1.bf16.msra.mxu0 0
        %4977 = vmatprep.subr.bf16.mxu0 0
        %4978 = vmatpush1.bf16.msra.mxu0 0
        %4979 = vmatprep.subr.bf16.mxu0 0
        %4980 = vmatpush1.bf16.msra.mxu0 0
        %4981 = vmatprep.subr.bf16.mxu0 0
        %4982 = vmatpush1.bf16.msra.mxu0 0
        %4983 = vmatprep.subr.bf16.mxu0 0
        %4984 = vmatpush1.bf16.msra.mxu0 0
        %4985 = vmatprep.subr.bf16.mxu0 0
        %4986 = vmatpush1.bf16.msra.mxu0 0
        %4987 = vmatprep.subr.bf16.mxu0 0
        %4988 = vmatpush1.bf16.msra.mxu0 0
        %4989 = vmatprep.subr.bf16.mxu0 0
        %4990 = vmatpush1.bf16.msra.mxu0 0
        %4991 = vmatprep.subr.bf16.mxu0 0
        %4992 = vmatpush1.bf16.msra.mxu0 0
        %4993 = vmatprep.subr.bf16.mxu0 0
        %4994 = vmatpush1.bf16.msra.mxu0 0
        %4995 = vmatprep.subr.bf16.mxu0 0
        %4996 = vmatpush1.bf16.msra.mxu0 0
        %4997 = vmatprep.subr.bf16.mxu0 0
        %4998 = vmatpush1.bf16.msra.mxu0 0
        %4999 = vmatprep.mubr.bf16.mxu0 0
        %5000 = vmatmul.mubr.bf16.gmra.mrb[0].mxu0 %v4920
        %v5001 = vpop.f32.mrb[0].mxu0
        %v5002 = vadd.f32 0.0, %v5001
        %v5003 = vpop.f32.mrb[0].mxu0
        %v5004 = vpop.f32.mrb[0].mxu0
        %v5005 = vadd.f32 0.0, %v5004
        %v5006 = vpop.f32.mrb[0].mxu0
        %5007 = vmatprep.mubr.bf16.mxu0 0
        %5008 = vmatmul.mubr.bf16.gmra.mrb[0].mxu0 %v4923
        %v5009 = vpop.f32.mrb[0].mxu0
        %v5010 = vadd.f32 0.0, %v5009
        %v5011 = vpop.f32.mrb[0].mxu0
        %v5012 = vpop.f32.mrb[0].mxu0
        %v5013 = vadd.f32 0.0, %v5012
        %v5014 = vpop.f32.mrb[0].mxu0
        %5015 = vmatprep.mubr.bf16.mxu0 0
        %5016 = vmatmul.mubr.bf16.gmra.mrb[0].mxu0 %v4926
        %v5017 = vpop.f32.mrb[0].mxu0
        %v5018 = vadd.f32 0.0, %v5017
        %v5019 = vpop.f32.mrb[0].mxu0
        %v5020 = vpop.f32.mrb[0].mxu0
        %v5021 = vadd.f32 0.0, %v5020
        %v5022 = vpop.f32.mrb[0].mxu0
        %5023 = vmatprep.mubr.bf16.mxu0 0
        %5024 = vmatmul.mubr.bf16.gmra.mrb[0].mxu0 %v4929
        %v5025 = vpop.f32.mrb[0].mxu0
        %v5026 = vadd.f32 0.0, %v5025
        %v5027 = vpop.f32.mrb[0].mxu0
        %v5028 = vpop.f32.mrb[0].mxu0
        %v5029 = vadd.f32 0.0, %v5028
        %v5030 = vpop.f32.mrb[0].mxu0
        %5031 = vmatprep.mubr.bf16.mxu0 0
        %5032 = vmatmul.mubr.bf16.gmra.mrb[0].mxu0 %v4932
        %v5033 = vpop.f32.mrb[0].mxu0
        %v5034 = vadd.f32 0.0, %v5033
        %v5035 = vpop.f32.mrb[0].mxu0
        %v5036 = vpop.f32.mrb[0].mxu0
        %v5037 = vadd.f32 0.0, %v5036
        %v5038 = vpop.f32.mrb[0].mxu0
        %5039 = vmatprep.mubr.bf16.mxu0 0
        %5040 = vmatmul.mubr.bf16.gmra.mrb[0].mxu0 %v4935
        %v5041 = vpop.f32.mrb[0].mxu0
        %v5042 = vadd.f32 0.0, %v5041
        %v5043 = vpop.f32.mrb[0].mxu0
        %v5044 = vpop.f32.mrb[0].mxu0
        %v5045 = vadd.f32 0.0, %v5044
        %v5046 = vpop.f32.mrb[0].mxu0
        %5047 = vmatprep.mubr.bf16.mxu0 0
        %5048 = vmatmul.mubr.bf16.gmra.mrb[0].mxu0 %v4938
        %v5049 = vpop.f32.mrb[0].mxu0
        %v5050 = vadd.f32 0.0, %v5049
        %v5051 = vpop.f32.mrb[0].mxu0
        %v5052 = vpop.f32.mrb[0].mxu0
        %v5053 = vadd.f32 0.0, %v5052
        %v5054 = vpop.f32.mrb[0].mxu0
        %5055 = vmatprep.mubr.bf16.mxu0 0
        %5056 = vmatmul.mubr.bf16.gmra.mrb[0].mxu0 %v4941
        %v5057 = vpop.f32.mrb[0].mxu0
        %v5058 = vadd.f32 0.0, %v5057
        %v5059 = vpop.f32.mrb[0].mxu0
        %v5060 = vpop.f32.mrb[0].mxu0
        %v5061 = vadd.f32 0.0, %v5060
        %v5062 = vpop.f32.mrb[0].mxu0
        %5063 = vmatprep.mubr.bf16.mxu0 0
        %5064 = vmatmul.mubr.bf16.gmra.mrb[0].mxu0 %v4944
        %v5065 = vpop.f32.mrb[0].mxu0
        %v5066 = vadd.f32 0.0, %v5065
        %v5067 = vpop.f32.mrb[0].mxu0
        %v5068 = vpop.f32.mrb[0].mxu0
        %v5069 = vadd.f32 0.0, %v5068
        %v5070 = vpop.f32.mrb[0].mxu0
        %5071 = vmatprep.mubr.bf16.mxu0 0
        %5072 = vmatmul.mubr.bf16.gmra.mrb[0].mxu0 %v4947
        %v5073 = vpop.f32.mrb[0].mxu0
        %v5074 = vadd.f32 0.0, %v5073
        %v5075 = vpop.f32.mrb[0].mxu0
        %v5076 = vpop.f32.mrb[0].mxu0
        %v5077 = vadd.f32 0.0, %v5076
        %v5078 = vpop.f32.mrb[0].mxu0
        %5079 = vmatprep.mubr.bf16.mxu0 0
        %5080 = vmatmul.mubr.bf16.gmra.mrb[0].mxu0 %v4950
        %v5081 = vpop.f32.mrb[0].mxu0
        %v5082 = vadd.f32 0.0, %v5081
        %v5083 = vpop.f32.mrb[0].mxu0
        %v5084 = vpop.f32.mrb[0].mxu0
        %v5085 = vadd.f32 0.0, %v5084
        %v5086 = vpop.f32.mrb[0].mxu0
        %5087 = vmatprep.mubr.bf16.mxu0 0
        %5088 = vmatmul.mubr.bf16.gmra.mrb[0].mxu0 %v4953
        %v5089 = vpop.f32.mrb[0].mxu0
        %v5090 = vadd.f32 0.0, %v5089
        %v5091 = vpop.f32.mrb[0].mxu0
        %v5092 = vpop.f32.mrb[0].mxu0
        %v5093 = vadd.f32 0.0, %v5092
        %v5094 = vpop.f32.mrb[0].mxu0
        %5095 = vmatprep.mubr.bf16.mxu0 0
        %5096 = vmatmul.mubr.bf16.gmra.mrb[0].mxu0 %v4956
        %v5097 = vpop.f32.mrb[0].mxu0
        %v5098 = vadd.f32 0.0, %v5097
        %v5099 = vpop.f32.mrb[0].mxu0
        %v5100 = vpop.f32.mrb[0].mxu0
        %v5101 = vadd.f32 0.0, %v5100
        %v5102 = vpop.f32.mrb[0].mxu0
        %5103 = vmatprep.mubr.bf16.mxu0 0
        %5104 = vmatmul.mubr.bf16.gmra.mrb[0].mxu0 %v4959
        %v5105 = vpop.f32.mrb[0].mxu0
        %v5106 = vadd.f32 0.0, %v5105
        %v5107 = vpop.f32.mrb[0].mxu0
        %v5108 = vpop.f32.mrb[0].mxu0
        %v5109 = vadd.f32 0.0, %v5108
        %v5110 = vpop.f32.mrb[0].mxu0
        %5111 = vmatprep.mubr.bf16.mxu0 0
        %5112 = vmatmul.mubr.bf16.gmra.mrb[0].mxu0 %v4962
        %v5113 = vpop.f32.mrb[0].mxu0
        %v5114 = vadd.f32 0.0, %v5113
        %v5115 = vpop.f32.mrb[0].mxu0
        %v5116 = vpop.f32.mrb[0].mxu0
        %v5117 = vadd.f32 0.0, %v5116
        %v5118 = vpop.f32.mrb[0].mxu0
        %5119 = vmatprep.mubr.bf16.mxu0 0
        %5120 = vmatmul.mubr.bf16.gmra.mrb[0].mxu0 %v4965
        %v5121 = vpop.f32.mrb[0].mxu0
        %v5122 = vadd.f32 0.0, %v5121
        %v5123 = vpop.f32.mrb[0].mxu0
        %v5124 = vpop.f32.mrb[0].mxu0
        %v5125 = vadd.f32 0.0, %v5124
        %v5126 = vpop.f32.mrb[0].mxu0
        %5127 = vdwg.mxu0
        %v5128 = vadd.f32 %v4374, %v5002
        %v5129 = vadd.f32 %v4375, %v5005
        %v5130 = vadd.f32 %v4376, %v5010
        %v5131 = vadd.f32 %v4377, %v5013
        %v5132 = vadd.f32 %v4378, %v5018
        %v5133 = vadd.f32 %v4379, %v5021
        %v5134 = vadd.f32 %v4380, %v5026
        %v5135 = vadd.f32 %v4381, %v5029
        %v5136 = vadd.f32 %v4382, %v5034
        %v5137 = vadd.f32 %v4383, %v5037
        %v5138 = vadd.f32 %v4384, %v5042
        %v5139 = vadd.f32 %v4385, %v5045
        %v5140 = vadd.f32 %v4386, %v5050
        %v5141 = vadd.f32 %v4387, %v5053
        %v5142 = vadd.f32 %v4388, %v5058
        %v5143 = vadd.f32 %v4389, %v5061
        %v5144 = vadd.f32 %v4390, %v5066
        %v5145 = vadd.f32 %v4391, %v5069
        %v5146 = vadd.f32 %v4392, %v5074
        %v5147 = vadd.f32 %v4393, %v5077
        %v5148 = vadd.f32 %v4394, %v5082
        %v5149 = vadd.f32 %v4395, %v5085
        %v5150 = vadd.f32 %v4396, %v5090
        %v5151 = vadd.f32 %v4397, %v5093
        %v5152 = vadd.f32 %v4398, %v5098
        %v5153 = vadd.f32 %v4399, %v5101
        %v5154 = vadd.f32 %v4400, %v5106
        %v5155 = vadd.f32 %v4401, %v5109
        %v5156 = vadd.f32 %v4402, %v5114
        %v5157 = vadd.f32 %v4403, %v5117
        %v5158 = vadd.f32 %v4404, %v5122
        %v5159 = vadd.f32 %v4405, %v5125
        %v5160 = vld [vmem:[%s4019] sm:$0xe]
        %v5161 = vld [vmem:[%s4019 + $0xc] sm:$0xe]
        %v5162 = vld [vmem:[%s4019 + $0x18] sm:$0xe]
        %v5163 = vld [vmem:[%s4019 + $0x24] sm:$0xe]
        %v5164 = vld [vmem:[%s4019 + $0x30] sm:$0xe]
        %v5165 = vld [vmem:[%s4019 + $0x3c] sm:$0xe]
        %v5166 = vld [vmem:[%s4019 + $0x48] sm:$0xe]
        %v5167 = vld [vmem:[%s4019 + $0x54] sm:$0xe]
        %v5168 = vld [vmem:[%s4019 + $0x60] sm:$0xe]
        %v5169 = vld [vmem:[%s4019 + $0x6c] sm:$0xe]
        %v5170 = vld [vmem:[%s4019 + $0x78] sm:$0xe]
        %v5171 = vld [vmem:[%s4019 + $0x84] sm:$0xe]
        %v5172 = vld [vmem:[%s4019 + $0x90] sm:$0xe]
        %v5173 = vld [vmem:[%s4019 + $0x9c] sm:$0xe]
        %v5174 = vld [vmem:[%s4019 + $0xa8] sm:$0xe]
        %v5175 = vld [vmem:[%s4019 + $0xb4] sm:$0xe]
        %v5224 = vrot.slane %v5160, 5
        %v5225 = vrot.slane %v5224, 4
        %v5226 = vrot.slane %v4407, 5
        %v5227 = vsel %vm1946, %v5225, %v5226
        %v5228 = vrot.slane %v5226, 4
        %v5229 = vrot.slane %v4408, 5
        %v5230 = vsel %vm1946, %v5228, %v5229
        %v5231 = vrot.slane %v5161, 5
        %v5232 = vrot.slane %v5231, 4
        %v5233 = vrot.slane %v4410, 5
        %v5234 = vsel %vm1946, %v5232, %v5233
        %v5235 = vrot.slane %v5233, 4
        %v5236 = vrot.slane %v4411, 5
        %v5237 = vsel %vm1946, %v5235, %v5236
        %v5238 = vrot.slane %v5162, 5
        %v5239 = vrot.slane %v5238, 4
        %v5240 = vrot.slane %v4413, 5
        %v5241 = vsel %vm1946, %v5239, %v5240
        %v5242 = vrot.slane %v5240, 4
        %v5243 = vrot.slane %v4414, 5
        %v5244 = vsel %vm1946, %v5242, %v5243
        %v5245 = vrot.slane %v5163, 5
        %v5246 = vrot.slane %v5245, 4
        %v5247 = vrot.slane %v4416, 5
        %v5248 = vsel %vm1946, %v5246, %v5247
        %v5249 = vrot.slane %v5247, 4
        %v5250 = vrot.slane %v4417, 5
        %v5251 = vsel %vm1946, %v5249, %v5250
        %v5252 = vrot.slane %v5164, 5
        %v5253 = vrot.slane %v5252, 4
        %v5254 = vrot.slane %v4419, 5
        %v5255 = vsel %vm1946, %v5253, %v5254
        %v5256 = vrot.slane %v5254, 4
        %v5257 = vrot.slane %v4420, 5
        %v5258 = vsel %vm1946, %v5256, %v5257
        %v5259 = vrot.slane %v5165, 5
        %v5260 = vrot.slane %v5259, 4
        %v5261 = vrot.slane %v4422, 5
        %v5262 = vsel %vm1946, %v5260, %v5261
        %v5263 = vrot.slane %v5261, 4
        %v5264 = vrot.slane %v4423, 5
        %v5265 = vsel %vm1946, %v5263, %v5264
        %v5266 = vrot.slane %v5166, 5
        %v5267 = vrot.slane %v5266, 4
        %v5268 = vrot.slane %v4425, 5
        %v5269 = vsel %vm1946, %v5267, %v5268
        %v5270 = vrot.slane %v5268, 4
        %v5271 = vrot.slane %v4426, 5
        %v5272 = vsel %vm1946, %v5270, %v5271
        %v5273 = vrot.slane %v5167, 5
        %v5274 = vrot.slane %v5273, 4
        %v5275 = vrot.slane %v4428, 5
        %v5276 = vsel %vm1946, %v5274, %v5275
        %v5277 = vrot.slane %v5275, 4
        %v5278 = vrot.slane %v4429, 5
        %v5279 = vsel %vm1946, %v5277, %v5278
        %v5280 = vrot.slane %v5168, 5
        %v5281 = vrot.slane %v5280, 4
        %v5282 = vrot.slane %v4431, 5
        %v5283 = vsel %vm1946, %v5281, %v5282
        %v5284 = vrot.slane %v5282, 4
        %v5285 = vrot.slane %v4432, 5
        %v5286 = vsel %vm1946, %v5284, %v5285
        %v5287 = vrot.slane %v5169, 5
        %v5288 = vrot.slane %v5287, 4
        %v5289 = vrot.slane %v4434, 5
        %v5290 = vsel %vm1946, %v5288, %v5289
        %v5291 = vrot.slane %v5289, 4
        %v5292 = vrot.slane %v4435, 5
        %v5293 = vsel %vm1946, %v5291, %v5292
        %v5294 = vrot.slane %v5170, 5
        %v5295 = vrot.slane %v5294, 4
        %v5296 = vrot.slane %v4437, 5
        %v5297 = vsel %vm1946, %v5295, %v5296
        %v5298 = vrot.slane %v5296, 4
        %v5299 = vrot.slane %v4438, 5
        %v5300 = vsel %vm1946, %v5298, %v5299
        %v5301 = vrot.slane %v5171, 5
        %v5302 = vrot.slane %v5301, 4
        %v5303 = vrot.slane %v4440, 5
        %v5304 = vsel %vm1946, %v5302, %v5303
        %v5305 = vrot.slane %v5303, 4
        %v5306 = vrot.slane %v4441, 5
        %v5307 = vsel %vm1946, %v5305, %v5306
        %v5308 = vrot.slane %v5172, 5
        %v5309 = vrot.slane %v5308, 4
        %v5310 = vrot.slane %v4443, 5
        %v5311 = vsel %vm1946, %v5309, %v5310
        %v5312 = vrot.slane %v5310, 4
        %v5313 = vrot.slane %v4444, 5
        %v5314 = vsel %vm1946, %v5312, %v5313
        %v5315 = vrot.slane %v5173, 5
        %v5316 = vrot.slane %v5315, 4
        %v5317 = vrot.slane %v4446, 5
        %v5318 = vsel %vm1946, %v5316, %v5317
        %v5319 = vrot.slane %v5317, 4
        %v5320 = vrot.slane %v4447, 5
        %v5321 = vsel %vm1946, %v5319, %v5320
        %v5322 = vrot.slane %v5174, 5
        %v5323 = vrot.slane %v5322, 4
        %v5324 = vrot.slane %v4449, 5
        %v5325 = vsel %vm1946, %v5323, %v5324
        %v5326 = vrot.slane %v5324, 4
        %v5327 = vrot.slane %v4450, 5
        %v5328 = vsel %vm1946, %v5326, %v5327
        %v5329 = vrot.slane %v5175, 5
        %v5330 = vrot.slane %v5329, 4
        %v5331 = vrot.slane %v4452, 5
        %v5332 = vsel %vm1946, %v5330, %v5331
        %v5333 = vrot.slane %v5331, 4
        %v5334 = vrot.slane %v4453, 5
        %v5335 = vsel %vm1946, %v5333, %v5334
        %s5336 = scalar_lea.vmem %s1, 256
        %v5337 = vld [vmem:[%s5336] sm:$0xf]
        %v5338 = vld [vmem:[%s5336 + $0x4] sm:$0xf]
        %v5339 = vld [vmem:[%s5336 + $0x8] sm:$0xf]
        %v5340 = vld [vmem:[%s5336 + $0xc] sm:$0xf]
        %v5341 = vld [vmem:[%s5336 + $0x10] sm:$0xf]
        %v5342 = vld [vmem:[%s5336 + $0x14] sm:$0xf]
        %v5343 = vld [vmem:[%s5336 + $0x18] sm:$0xf]
        %v5344 = vld [vmem:[%s5336 + $0x1c] sm:$0xf]
        %v5345 = vunpack.c.l.b16 %v5227
        %v5346 = vunpack.c.l.b16 %v5230
        %v5347 = vunpack.c.l.b16 %v5234
        %v5348 = vunpack.c.l.b16 %v5237
        %v5349 = vunpack.c.l.b16 %v5241
        %v5350 = vunpack.c.l.b16 %v5244
        %v5351 = vunpack.c.l.b16 %v5248
        %v5352 = vunpack.c.l.b16 %v5251
        %v5353 = vunpack.c.l.b16 %v5255
        %v5354 = vunpack.c.l.b16 %v5258
        %v5355 = vunpack.c.l.b16 %v5262
        %v5356 = vunpack.c.l.b16 %v5265
        %v5357 = vunpack.c.l.b16 %v5269
        %v5358 = vunpack.c.l.b16 %v5272
        %v5359 = vunpack.c.l.b16 %v5276
        %v5360 = vunpack.c.l.b16 %v5279
        %v5361 = vunpack.c.l.b16 %v5283
        %v5362 = vunpack.c.l.b16 %v5286
        %v5363 = vunpack.c.l.b16 %v5290
        %v5364 = vunpack.c.l.b16 %v5293
        %v5365 = vunpack.c.l.b16 %v5297
        %v5366 = vunpack.c.l.b16 %v5300
        %v5367 = vunpack.c.l.b16 %v5304
        %v5368 = vunpack.c.l.b16 %v5307
        %v5369 = vunpack.c.l.b16 %v5311
        %v5370 = vunpack.c.l.b16 %v5314
        %v5371 = vunpack.c.l.b16 %v5318
        %v5372 = vunpack.c.l.b16 %v5321
        %v5373 = vunpack.c.l.b16 %v5325
        %v5374 = vunpack.c.l.b16 %v5328
        %v5375 = vunpack.c.l.b16 %v5332
        %v5376 = vunpack.c.l.b16 %v5335
        %v5377 = vpack.c.b16 %v5346, %v5345
        %v5378 = vpack.c.b16 %v5348, %v5347
        %v5379 = vpack.c.b16 %v5350, %v5349
        %v5380 = vpack.c.b16 %v5352, %v5351
        %v5381 = vpack.c.b16 %v5354, %v5353
        %v5382 = vpack.c.b16 %v5356, %v5355
        %v5383 = vpack.c.b16 %v5358, %v5357
        %v5384 = vpack.c.b16 %v5360, %v5359
        %v5385 = vpack.c.b16 %v5362, %v5361
        %v5386 = vpack.c.b16 %v5364, %v5363
        %v5387 = vpack.c.b16 %v5366, %v5365
        %v5388 = vpack.c.b16 %v5368, %v5367
        %v5389 = vpack.c.b16 %v5370, %v5369
        %v5390 = vpack.c.b16 %v5372, %v5371
        %v5391 = vpack.c.b16 %v5374, %v5373
        %v5392 = vpack.c.b16 %v5376, %v5375
        %v5401 = vunpack.c.l.b16 %v5337
        %v5402 = vunpack.c.l.b16 %v5338
        %v5403 = vunpack.c.l.b16 %v5339
        %v5404 = vunpack.c.l.b16 %v5340
        %v5405 = vunpack.c.l.b16 %v5341
        %v5406 = vunpack.c.l.b16 %v5342
        %v5407 = vunpack.c.l.b16 %v5343
        %v5408 = vunpack.c.l.b16 %v5344
        %v5409 = vpack.c.b16 %v5402, %v5401
        %v5410 = vpack.c.b16 %v5404, %v5403
        %v5411 = vpack.c.b16 %v5406, %v5405
        %v5412 = vpack.c.b16 %v5408, %v5407
        %v5418 = vsel %vm1373, %v5377, 0
        %v5421 = vsel %vm1373, %v5378, 0
        %v5424 = vsel %vm1373, %v5379, 0
        %v5427 = vsel %vm1373, %v5380, 0
        %v5430 = vsel %vm1373, %v5381, 0
        %v5433 = vsel %vm1373, %v5382, 0
        %v5436 = vsel %vm1373, %v5383, 0
        %v5439 = vsel %vm1373, %v5384, 0
        %v5442 = vsel %vm1373, %v5385, 0
        %v5445 = vsel %vm1373, %v5386, 0
        %v5448 = vsel %vm1373, %v5387, 0
        %v5451 = vsel %vm1373, %v5388, 0
        %v5454 = vsel %vm1373, %v5389, 0
        %v5457 = vsel %vm1373, %v5390, 0
        %v5460 = vsel %vm1373, %v5391, 0
        %v5463 = vsel %vm1373, %v5392, 0
        %5465 = vmatprep.subr.bf16.mxu0 0
        %5466 = vmatpush1.bf16.msra.mxu0 %v5409
        %5467 = vmatprep.subr.bf16.mxu0 0
        %5468 = vmatpush1.bf16.msra.mxu0 %v5410
        %5469 = vmatprep.subr.bf16.mxu0 0
        %5470 = vmatpush1.bf16.msra.mxu0 %v5411
        %5471 = vmatprep.subr.bf16.mxu0 0
        %5472 = vmatpush1.bf16.msra.mxu0 %v5412
        %5473 = vmatprep.subr.bf16.mxu0 0
        %5474 = vmatpush1.bf16.msra.mxu0 0
        %5475 = vmatprep.subr.bf16.mxu0 0
        %5476 = vmatpush1.bf16.msra.mxu0 0
        %5477 = vmatprep.subr.bf16.mxu0 0
        %5478 = vmatpush1.bf16.msra.mxu0 0
        %5479 = vmatprep.subr.bf16.mxu0 0
        %5480 = vmatpush1.bf16.msra.mxu0 0
        %5481 = vmatprep.subr.bf16.mxu0 0
        %5482 = vmatpush1.bf16.msra.mxu0 0
        %5483 = vmatprep.subr.bf16.mxu0 0
        %5484 = vmatpush1.bf16.msra.mxu0 0
        %5485 = vmatprep.subr.bf16.mxu0 0
        %5486 = vmatpush1.bf16.msra.mxu0 0
        %5487 = vmatprep.subr.bf16.mxu0 0
        %5488 = vmatpush1.bf16.msra.mxu0 0
        %5489 = vmatprep.subr.bf16.mxu0 0
        %5490 = vmatpush1.bf16.msra.mxu0 0
        %5491 = vmatprep.subr.bf16.mxu0 0
        %5492 = vmatpush1.bf16.msra.mxu0 0
        %5493 = vmatprep.subr.bf16.mxu0 0
        %5494 = vmatpush1.bf16.msra.mxu0 0
        %5495 = vmatprep.subr.bf16.mxu0 0
        %5496 = vmatpush1.bf16.msra.mxu0 0
        %5497 = vmatprep.mubr.bf16.mxu0 0
        %5498 = vmatmul.mubr.bf16.gmra.mrb[0].mxu0 %v5418
        %v5499 = vpop.f32.mrb[0].mxu0
        %v5500 = vadd.f32 0.0, %v5499
        %v5501 = vpop.f32.mrb[0].mxu0
        %v5502 = vpop.f32.mrb[0].mxu0
        %v5503 = vadd.f32 0.0, %v5502
        %v5504 = vpop.f32.mrb[0].mxu0
        %5505 = vmatprep.mubr.bf16.mxu0 0
        %5506 = vmatmul.mubr.bf16.gmra.mrb[0].mxu0 %v5421
        %v5507 = vpop.f32.mrb[0].mxu0
        %v5508 = vadd.f32 0.0, %v5507
        %v5509 = vpop.f32.mrb[0].mxu0
        %v5510 = vpop.f32.mrb[0].mxu0
        %v5511 = vadd.f32 0.0, %v5510
        %v5512 = vpop.f32.mrb[0].mxu0
        %5513 = vmatprep.mubr.bf16.mxu0 0
        %5514 = vmatmul.mubr.bf16.gmra.mrb[0].mxu0 %v5424
        %v5515 = vpop.f32.mrb[0].mxu0
        %v5516 = vadd.f32 0.0, %v5515
        %v5517 = vpop.f32.mrb[0].mxu0
        %v5518 = vpop.f32.mrb[0].mxu0
        %v5519 = vadd.f32 0.0, %v5518
        %v5520 = vpop.f32.mrb[0].mxu0
        %5521 = vmatprep.mubr.bf16.mxu0 0
        %5522 = vmatmul.mubr.bf16.gmra.mrb[0].mxu0 %v5427
        %v5523 = vpop.f32.mrb[0].mxu0
        %v5524 = vadd.f32 0.0, %v5523
        %v5525 = vpop.f32.mrb[0].mxu0
        %v5526 = vpop.f32.mrb[0].mxu0
        %v5527 = vadd.f32 0.0, %v5526
        %v5528 = vpop.f32.mrb[0].mxu0
        %5529 = vmatprep.mubr.bf16.mxu0 0
        %5530 = vmatmul.mubr.bf16.gmra.mrb[0].mxu0 %v5430
        %v5531 = vpop.f32.mrb[0].mxu0
        %v5532 = vadd.f32 0.0, %v5531
        %v5533 = vpop.f32.mrb[0].mxu0
        %v5534 = vpop.f32.mrb[0].mxu0
        %v5535 = vadd.f32 0.0, %v5534
        %v5536 = vpop.f32.mrb[0].mxu0
        %5537 = vmatprep.mubr.bf16.mxu0 0
        %5538 = vmatmul.mubr.bf16.gmra.mrb[0].mxu0 %v5433
        %v5539 = vpop.f32.mrb[0].mxu0
        %v5540 = vadd.f32 0.0, %v5539
        %v5541 = vpop.f32.mrb[0].mxu0
        %v5542 = vpop.f32.mrb[0].mxu0
        %v5543 = vadd.f32 0.0, %v5542
        %v5544 = vpop.f32.mrb[0].mxu0
        %5545 = vmatprep.mubr.bf16.mxu0 0
        %5546 = vmatmul.mubr.bf16.gmra.mrb[0].mxu0 %v5436
        %v5547 = vpop.f32.mrb[0].mxu0
        %v5548 = vadd.f32 0.0, %v5547
        %v5549 = vpop.f32.mrb[0].mxu0
        %v5550 = vpop.f32.mrb[0].mxu0
        %v5551 = vadd.f32 0.0, %v5550
        %v5552 = vpop.f32.mrb[0].mxu0
        %5553 = vmatprep.mubr.bf16.mxu0 0
        %5554 = vmatmul.mubr.bf16.gmra.mrb[0].mxu0 %v5439
        %v5555 = vpop.f32.mrb[0].mxu0
        %v5556 = vadd.f32 0.0, %v5555
        %v5557 = vpop.f32.mrb[0].mxu0
        %v5558 = vpop.f32.mrb[0].mxu0
        %v5559 = vadd.f32 0.0, %v5558
        %v5560 = vpop.f32.mrb[0].mxu0
        %5561 = vmatprep.mubr.bf16.mxu0 0
        %5562 = vmatmul.mubr.bf16.gmra.mrb[0].mxu0 %v5442
        %v5563 = vpop.f32.mrb[0].mxu0
        %v5564 = vadd.f32 0.0, %v5563
        %v5565 = vpop.f32.mrb[0].mxu0
        %v5566 = vpop.f32.mrb[0].mxu0
        %v5567 = vadd.f32 0.0, %v5566
        %v5568 = vpop.f32.mrb[0].mxu0
        %5569 = vmatprep.mubr.bf16.mxu0 0
        %5570 = vmatmul.mubr.bf16.gmra.mrb[0].mxu0 %v5445
        %v5571 = vpop.f32.mrb[0].mxu0
        %v5572 = vadd.f32 0.0, %v5571
        %v5573 = vpop.f32.mrb[0].mxu0
        %v5574 = vpop.f32.mrb[0].mxu0
        %v5575 = vadd.f32 0.0, %v5574
        %v5576 = vpop.f32.mrb[0].mxu0
        %5577 = vmatprep.mubr.bf16.mxu0 0
        %5578 = vmatmul.mubr.bf16.gmra.mrb[0].mxu0 %v5448
        %v5579 = vpop.f32.mrb[0].mxu0
        %v5580 = vadd.f32 0.0, %v5579
        %v5581 = vpop.f32.mrb[0].mxu0
        %v5582 = vpop.f32.mrb[0].mxu0
        %v5583 = vadd.f32 0.0, %v5582
        %v5584 = vpop.f32.mrb[0].mxu0
        %5585 = vmatprep.mubr.bf16.mxu0 0
        %5586 = vmatmul.mubr.bf16.gmra.mrb[0].mxu0 %v5451
        %v5587 = vpop.f32.mrb[0].mxu0
        %v5588 = vadd.f32 0.0, %v5587
        %v5589 = vpop.f32.mrb[0].mxu0
        %v5590 = vpop.f32.mrb[0].mxu0
        %v5591 = vadd.f32 0.0, %v5590
        %v5592 = vpop.f32.mrb[0].mxu0
        %5593 = vmatprep.mubr.bf16.mxu0 0
        %5594 = vmatmul.mubr.bf16.gmra.mrb[0].mxu0 %v5454
        %v5595 = vpop.f32.mrb[0].mxu0
        %v5596 = vadd.f32 0.0, %v5595
        %v5597 = vpop.f32.mrb[0].mxu0
        %v5598 = vpop.f32.mrb[0].mxu0
        %v5599 = vadd.f32 0.0, %v5598
        %v5600 = vpop.f32.mrb[0].mxu0
        %5601 = vmatprep.mubr.bf16.mxu0 0
        %5602 = vmatmul.mubr.bf16.gmra.mrb[0].mxu0 %v5457
        %v5603 = vpop.f32.mrb[0].mxu0
        %v5604 = vadd.f32 0.0, %v5603
        %v5605 = vpop.f32.mrb[0].mxu0
        %v5606 = vpop.f32.mrb[0].mxu0
        %v5607 = vadd.f32 0.0, %v5606
        %v5608 = vpop.f32.mrb[0].mxu0
        %5609 = vmatprep.mubr.bf16.mxu0 0
        %5610 = vmatmul.mubr.bf16.gmra.mrb[0].mxu0 %v5460
        %v5611 = vpop.f32.mrb[0].mxu0
        %v5612 = vadd.f32 0.0, %v5611
        %v5613 = vpop.f32.mrb[0].mxu0
        %v5614 = vpop.f32.mrb[0].mxu0
        %v5615 = vadd.f32 0.0, %v5614
        %v5616 = vpop.f32.mrb[0].mxu0
        %5617 = vmatprep.mubr.bf16.mxu0 0
        %5618 = vmatmul.mubr.bf16.gmra.mrb[0].mxu0 %v5463
        %v5619 = vpop.f32.mrb[0].mxu0
        %v5620 = vadd.f32 0.0, %v5619
        %v5621 = vpop.f32.mrb[0].mxu0
        %v5622 = vpop.f32.mrb[0].mxu0
        %v5623 = vadd.f32 0.0, %v5622
        %v5624 = vpop.f32.mrb[0].mxu0
        %5625 = vdwg.mxu0
        %v5626 = vadd.f32 %v5128, %v5500
        %v5627 = vadd.f32 %v5129, %v5503
        %v5628 = vadd.f32 %v5130, %v5508
        %v5629 = vadd.f32 %v5131, %v5511
        %v5630 = vadd.f32 %v5132, %v5516
        %v5631 = vadd.f32 %v5133, %v5519
        %v5632 = vadd.f32 %v5134, %v5524
        %v5633 = vadd.f32 %v5135, %v5527
        %v5634 = vadd.f32 %v5136, %v5532
        %v5635 = vadd.f32 %v5137, %v5535
        %v5636 = vadd.f32 %v5138, %v5540
        %v5637 = vadd.f32 %v5139, %v5543
        %v5638 = vadd.f32 %v5140, %v5548
        %v5639 = vadd.f32 %v5141, %v5551
        %v5640 = vadd.f32 %v5142, %v5556
        %v5641 = vadd.f32 %v5143, %v5559
        %v5642 = vadd.f32 %v5144, %v5564
        %v5643 = vadd.f32 %v5145, %v5567
        %v5644 = vadd.f32 %v5146, %v5572
        %v5645 = vadd.f32 %v5147, %v5575
        %v5646 = vadd.f32 %v5148, %v5580
        %v5647 = vadd.f32 %v5149, %v5583
        %v5648 = vadd.f32 %v5150, %v5588
        %v5649 = vadd.f32 %v5151, %v5591
        %v5650 = vadd.f32 %v5152, %v5596
        %v5651 = vadd.f32 %v5153, %v5599
        %v5652 = vadd.f32 %v5154, %v5604
        %v5653 = vadd.f32 %v5155, %v5607
        %v5654 = vadd.f32 %v5156, %v5612
        %v5655 = vadd.f32 %v5157, %v5615
        %v5656 = vadd.f32 %v5158, %v5620
        %v5657 = vadd.f32 %v5159, %v5623
        %v5658 = vld [vmem:[%s2] sm:$0x1]
        %v5660 = vlaneseq
        %v5661 = vshrl.u32 %v5660, 7
        %v5662 = vsub.s32 0, %v5661
        %v5663 = vrot.slane %v5658, %v5662
        %v5665 = vadd.f32 %v5626, %v5663
        %v5666 = vadd.f32 %v5627, %v5663
        %v5667 = vadd.f32 %v5628, %v5663
        %v5668 = vadd.f32 %v5629, %v5663
        %v5669 = vadd.f32 %v5630, %v5663
        %v5670 = vadd.f32 %v5631, %v5663
        %v5671 = vadd.f32 %v5632, %v5663
        %v5672 = vadd.f32 %v5633, %v5663
        %v5673 = vadd.f32 %v5634, %v5663
        %v5674 = vadd.f32 %v5635, %v5663
        %v5675 = vadd.f32 %v5636, %v5663
        %v5676 = vadd.f32 %v5637, %v5663
        %v5677 = vadd.f32 %v5638, %v5663
        %v5678 = vadd.f32 %v5639, %v5663
        %v5679 = vadd.f32 %v5640, %v5663
        %v5680 = vadd.f32 %v5641, %v5663
        %v5681 = vadd.f32 %v5642, %v5663
        %v5682 = vadd.f32 %v5643, %v5663
        %v5683 = vadd.f32 %v5644, %v5663
        %v5684 = vadd.f32 %v5645, %v5663
        %v5685 = vadd.f32 %v5646, %v5663
        %v5686 = vadd.f32 %v5647, %v5663
        %v5687 = vadd.f32 %v5648, %v5663
        %v5688 = vadd.f32 %v5649, %v5663
        %v5689 = vadd.f32 %v5650, %v5663
        %v5690 = vadd.f32 %v5651, %v5663
        %v5691 = vadd.f32 %v5652, %v5663
        %v5692 = vadd.f32 %v5653, %v5663
        %v5693 = vadd.f32 %v5654, %v5663
        %v5694 = vadd.f32 %v5655, %v5663
        %v5695 = vadd.f32 %v5656, %v5663
        %v5696 = vadd.f32 %v5657, %v5663
        %vm5697 = vcmp.ge.f32.partialorder %v5665, 0.0
        %vm5698 = vcmp.ge.f32.partialorder %v5666, 0.0
        %vm5699 = vcmp.ge.f32.partialorder %v5667, 0.0
        %vm5700 = vcmp.ge.f32.partialorder %v5668, 0.0
        %vm5701 = vcmp.ge.f32.partialorder %v5669, 0.0
        %vm5702 = vcmp.ge.f32.partialorder %v5670, 0.0
        %vm5703 = vcmp.ge.f32.partialorder %v5671, 0.0
        %vm5704 = vcmp.ge.f32.partialorder %v5672, 0.0
        %vm5705 = vcmp.ge.f32.partialorder %v5673, 0.0
        %vm5706 = vcmp.ge.f32.partialorder %v5674, 0.0
        %vm5707 = vcmp.ge.f32.partialorder %v5675, 0.0
        %vm5708 = vcmp.ge.f32.partialorder %v5676, 0.0
        %vm5709 = vcmp.ge.f32.partialorder %v5677, 0.0
        %vm5710 = vcmp.ge.f32.partialorder %v5678, 0.0
        %vm5711 = vcmp.ge.f32.partialorder %v5679, 0.0
        %vm5712 = vcmp.ge.f32.partialorder %v5680, 0.0
        %vm5713 = vcmp.ge.f32.partialorder %v5681, 0.0
        %vm5714 = vcmp.ge.f32.partialorder %v5682, 0.0
        %vm5715 = vcmp.ge.f32.partialorder %v5683, 0.0
        %vm5716 = vcmp.ge.f32.partialorder %v5684, 0.0
        %vm5717 = vcmp.ge.f32.partialorder %v5685, 0.0
        %vm5718 = vcmp.ge.f32.partialorder %v5686, 0.0
        %vm5719 = vcmp.ge.f32.partialorder %v5687, 0.0
        %vm5720 = vcmp.ge.f32.partialorder %v5688, 0.0
        %vm5721 = vcmp.ge.f32.partialorder %v5689, 0.0
        %vm5722 = vcmp.ge.f32.partialorder %v5690, 0.0
        %vm5723 = vcmp.ge.f32.partialorder %v5691, 0.0
        %vm5724 = vcmp.ge.f32.partialorder %v5692, 0.0
        %vm5725 = vcmp.ge.f32.partialorder %v5693, 0.0
        %vm5726 = vcmp.ge.f32.partialorder %v5694, 0.0
        %vm5727 = vcmp.ge.f32.partialorder %v5695, 0.0
        %vm5728 = vcmp.ge.f32.partialorder %v5696, 0.0
        %v5729 = vmul.f32 %v5665, 0.01
        %v5730 = vmul.f32 %v5666, 0.01
        %v5731 = vmul.f32 %v5667, 0.01
        %v5732 = vmul.f32 %v5668, 0.01
        %v5733 = vmul.f32 %v5669, 0.01
        %v5734 = vmul.f32 %v5670, 0.01
        %v5735 = vmul.f32 %v5671, 0.01
        %v5736 = vmul.f32 %v5672, 0.01
        %v5737 = vmul.f32 %v5673, 0.01
        %v5738 = vmul.f32 %v5674, 0.01
        %v5739 = vmul.f32 %v5675, 0.01
        %v5740 = vmul.f32 %v5676, 0.01
        %v5741 = vmul.f32 %v5677, 0.01
        %v5742 = vmul.f32 %v5678, 0.01
        %v5743 = vmul.f32 %v5679, 0.01
        %v5744 = vmul.f32 %v5680, 0.01
        %v5745 = vmul.f32 %v5681, 0.01
        %v5746 = vmul.f32 %v5682, 0.01
        %v5747 = vmul.f32 %v5683, 0.01
        %v5748 = vmul.f32 %v5684, 0.01
        %v5749 = vmul.f32 %v5685, 0.01
        %v5750 = vmul.f32 %v5686, 0.01
        %v5751 = vmul.f32 %v5687, 0.01
        %v5752 = vmul.f32 %v5688, 0.01
        %v5753 = vmul.f32 %v5689, 0.01
        %v5754 = vmul.f32 %v5690, 0.01
        %v5755 = vmul.f32 %v5691, 0.01
        %v5756 = vmul.f32 %v5692, 0.01
        %v5757 = vmul.f32 %v5693, 0.01
        %v5758 = vmul.f32 %v5694, 0.01
        %v5759 = vmul.f32 %v5695, 0.01
        %v5760 = vmul.f32 %v5696, 0.01
        %v5761 = vsel %vm5697, %v5665, %v5729
        %v5762 = vsel %vm5698, %v5666, %v5730
        %v5763 = vsel %vm5699, %v5667, %v5731
        %v5764 = vsel %vm5700, %v5668, %v5732
        %v5765 = vsel %vm5701, %v5669, %v5733
        %v5766 = vsel %vm5702, %v5670, %v5734
        %v5767 = vsel %vm5703, %v5671, %v5735
        %v5768 = vsel %vm5704, %v5672, %v5736
        %v5769 = vsel %vm5705, %v5673, %v5737
        %v5770 = vsel %vm5706, %v5674, %v5738
        %v5771 = vsel %vm5707, %v5675, %v5739
        %v5772 = vsel %vm5708, %v5676, %v5740
        %v5773 = vsel %vm5709, %v5677, %v5741
        %v5774 = vsel %vm5710, %v5678, %v5742
        %v5775 = vsel %vm5711, %v5679, %v5743
        %v5776 = vsel %vm5712, %v5680, %v5744
        %v5777 = vsel %vm5713, %v5681, %v5745
        %v5778 = vsel %vm5714, %v5682, %v5746
        %v5779 = vsel %vm5715, %v5683, %v5747
        %v5780 = vsel %vm5716, %v5684, %v5748
        %v5781 = vsel %vm5717, %v5685, %v5749
        %v5782 = vsel %vm5718, %v5686, %v5750
        %v5783 = vsel %vm5719, %v5687, %v5751
        %v5784 = vsel %vm5720, %v5688, %v5752
        %v5785 = vsel %vm5721, %v5689, %v5753
        %v5786 = vsel %vm5722, %v5690, %v5754
        %v5787 = vsel %vm5723, %v5691, %v5755
        %v5788 = vsel %vm5724, %v5692, %v5756
        %v5789 = vsel %vm5725, %v5693, %v5757
        %v5790 = vsel %vm5726, %v5694, %v5758
        %v5791 = vsel %vm5727, %v5695, %v5759
        %v5792 = vsel %vm5728, %v5696, %v5760
        %5793 = vst.msk [vmem:[#allocation3] sm:$0xf] %vm224, 0
        %5794 = vst.msk [vmem:[#allocation3 + $0x4] sm:$0xf] %vm224, 0
        %5795 = vst.msk [vmem:[#allocation3 + $0x8] sm:$0x1] %vm227, 0
        %5796 = vst.msk [vmem:[#allocation3 + $0xc] sm:$0xf] %vm224, 0
        %5797 = vst.msk [vmem:[#allocation3 + $0x10] sm:$0xf] %vm224, 0
        %5798 = vst.msk [vmem:[#allocation3 + $0x14] sm:$0x1] %vm227, 0
        %5799 = vst.msk [vmem:[#allocation3 + $0x18] sm:$0xf] %vm224, 0
        %5800 = vst.msk [vmem:[#allocation3 + $0x1c] sm:$0xf] %vm224, 0
        %5801 = vst.msk [vmem:[#allocation3 + $0x20] sm:$0x1] %vm227, 0
        %5802 = vst.msk [vmem:[#allocation3 + $0x24] sm:$0xf] %vm224, 0
        %5803 = vst.msk [vmem:[#allocation3 + $0x28] sm:$0xf] %vm224, 0
        %5804 = vst.msk [vmem:[#allocation3 + $0x2c] sm:$0x1] %vm227, 0
        %5805 = vst.msk [vmem:[#allocation3 + $0x30] sm:$0xf] %vm224, 0
        %5806 = vst.msk [vmem:[#allocation3 + $0x34] sm:$0xf] %vm224, 0
        %5807 = vst.msk [vmem:[#allocation3 + $0x38] sm:$0x1] %vm227, 0
        %5808 = vst.msk [vmem:[#allocation3 + $0x3c] sm:$0xf] %vm224, 0
        %5809 = vst.msk [vmem:[#allocation3 + $0x40] sm:$0xf] %vm224, 0
        %5810 = vst.msk [vmem:[#allocation3 + $0x44] sm:$0x1] %vm227, 0
        %5811 = vst.msk [vmem:[#allocation3 + $0x48] sm:$0xf] %vm224, 0
        %5812 = vst.msk [vmem:[#allocation3 + $0x4c] sm:$0xf] %vm224, 0
        %5813 = vst.msk [vmem:[#allocation3 + $0x50] sm:$0x1] %vm227, 0
        %5814 = vst.msk [vmem:[#allocation3 + $0x54] sm:$0xf] %vm224, 0
        %5815 = vst.msk [vmem:[#allocation3 + $0x58] sm:$0xf] %vm224, 0
        %5816 = vst.msk [vmem:[#allocation3 + $0x5c] sm:$0x1] %vm227, 0
        %5817 = vst.msk [vmem:[#allocation3 + $0x60] sm:$0xf] %vm224, 0
        %5818 = vst.msk [vmem:[#allocation3 + $0x64] sm:$0xf] %vm224, 0
        %5819 = vst.msk [vmem:[#allocation3 + $0x68] sm:$0x1] %vm227, 0
        %5820 = vst.msk [vmem:[#allocation3 + $0x6c] sm:$0xf] %vm224, 0
        %5821 = vst.msk [vmem:[#allocation3 + $0x70] sm:$0xf] %vm224, 0
        %5822 = vst.msk [vmem:[#allocation3 + $0x74] sm:$0x1] %vm227, 0
        %5823 = vst.msk [vmem:[#allocation3 + $0x78] sm:$0xf] %vm224, 0
        %5824 = vst.msk [vmem:[#allocation3 + $0x7c] sm:$0xf] %vm224, 0
        %5825 = vst.msk [vmem:[#allocation3 + $0x80] sm:$0x1] %vm227, 0
        %5826 = vst.msk [vmem:[#allocation3 + $0x84] sm:$0xf] %vm224, 0
        %5827 = vst.msk [vmem:[#allocation3 + $0x88] sm:$0xf] %vm224, 0
        %5828 = vst.msk [vmem:[#allocation3 + $0x8c] sm:$0x1] %vm227, 0
        %5829 = vst.msk [vmem:[#allocation3 + $0x90] sm:$0xf] %vm224, 0
        %5830 = vst.msk [vmem:[#allocation3 + $0x94] sm:$0xf] %vm224, 0
        %5831 = vst.msk [vmem:[#allocation3 + $0x98] sm:$0x1] %vm227, 0
        %5832 = vst.msk [vmem:[#allocation3 + $0x9c] sm:$0xf] %vm224, 0
        %5833 = vst.msk [vmem:[#allocation3 + $0xa0] sm:$0xf] %vm224, 0
        %5834 = vst.msk [vmem:[#allocation3 + $0xa4] sm:$0x1] %vm227, 0
        %5835 = vst.msk [vmem:[#allocation3 + $0xa8] sm:$0xf] %vm224, 0
        %5836 = vst.msk [vmem:[#allocation3 + $0xac] sm:$0xf] %vm224, 0
        %5837 = vst.msk [vmem:[#allocation3 + $0xb0] sm:$0x1] %vm227, 0
        %5838 = vst.msk [vmem:[#allocation3 + $0xb4] sm:$0xf] %vm224, 0
        %5839 = vst.msk [vmem:[#allocation3 + $0xb8] sm:$0xf] %vm224, 0
        %5840 = vst.msk [vmem:[#allocation3 + $0xbc] sm:$0x1] %vm227, 0
        %5841 = vst.msk [vmem:[#allocation3 + $0xc0] sm:$0xf] %vm224, 0
        %5842 = vst.msk [vmem:[#allocation3 + $0xc4] sm:$0xf] %vm224, 0
        %5843 = vst.msk [vmem:[#allocation3 + $0xc8] sm:$0x1] %vm227, 0
        %5844 = vst.msk [vmem:[#allocation3 + $0xcc] sm:$0xf] %vm224, 0
        %5845 = vst.msk [vmem:[#allocation3 + $0xd0] sm:$0xf] %vm224, 0
        %5846 = vst.msk [vmem:[#allocation3 + $0xd4] sm:$0x1] %vm227, 0
        %v5847 = vpack.c.bf16 %v5762, %v5761
        %v5848 = vpack.c.bf16 %v5764, %v5763
        %v5849 = vpack.c.bf16 %v5766, %v5765
        %v5850 = vpack.c.bf16 %v5768, %v5767
        %v5851 = vpack.c.bf16 %v5770, %v5769
        %v5852 = vpack.c.bf16 %v5772, %v5771
        %v5853 = vpack.c.bf16 %v5774, %v5773
        %v5854 = vpack.c.bf16 %v5776, %v5775
        %v5855 = vpack.c.bf16 %v5778, %v5777
        %v5856 = vpack.c.bf16 %v5780, %v5779
        %v5857 = vpack.c.bf16 %v5782, %v5781
        %v5858 = vpack.c.bf16 %v5784, %v5783
        %v5859 = vpack.c.bf16 %v5786, %v5785
        %v5860 = vpack.c.bf16 %v5788, %v5787
        %v5861 = vpack.c.bf16 %v5790, %v5789
        %v5862 = vpack.c.bf16 %v5792, %v5791
        %v5879 = vunpack.c.l.b16 %v5847
        %v5880 = vunpack.c.h.b16 %v5847
        %v5881 = vunpack.c.l.b16 %v5848
        %v5882 = vunpack.c.h.b16 %v5848
        %v5883 = vunpack.c.l.b16 %v5849
        %v5884 = vunpack.c.h.b16 %v5849
        %v5885 = vunpack.c.l.b16 %v5850
        %v5886 = vunpack.c.h.b16 %v5850
        %v5887 = vunpack.c.l.b16 %v5851
        %v5888 = vunpack.c.h.b16 %v5851
        %v5889 = vunpack.c.l.b16 %v5852
        %v5890 = vunpack.c.h.b16 %v5852
        %v5891 = vunpack.c.l.b16 %v5853
        %v5892 = vunpack.c.h.b16 %v5853
        %v5893 = vunpack.c.l.b16 %v5854
        %v5894 = vunpack.c.h.b16 %v5854
        %v5895 = vunpack.c.l.b16 %v5855
        %v5896 = vunpack.c.h.b16 %v5855
        %v5897 = vunpack.c.l.b16 %v5856
        %v5898 = vunpack.c.h.b16 %v5856
        %v5899 = vunpack.c.l.b16 %v5857
        %v5900 = vunpack.c.h.b16 %v5857
        %v5901 = vunpack.c.l.b16 %v5858
        %v5902 = vunpack.c.h.b16 %v5858
        %v5903 = vunpack.c.l.b16 %v5859
        %v5904 = vunpack.c.h.b16 %v5859
        %v5905 = vunpack.c.l.b16 %v5860
        %v5906 = vunpack.c.h.b16 %v5860
        %v5907 = vunpack.c.l.b16 %v5861
        %v5908 = vunpack.c.h.b16 %v5861
        %v5909 = vunpack.c.l.b16 %v5862
        %v5910 = vunpack.c.h.b16 %v5862
        %v5911 = vpack.c.b16 %v5879, %v5879
        %v5912 = vpack.c.b16 %v5880, %v5880
        %v5913 = vpack.c.b16 %v5881, %v5881
        %v5914 = vpack.c.b16 %v5882, %v5882
        %v5915 = vpack.c.b16 %v5883, %v5883
        %v5916 = vpack.c.b16 %v5884, %v5884
        %v5917 = vpack.c.b16 %v5885, %v5885
        %v5918 = vpack.c.b16 %v5886, %v5886
        %v5919 = vpack.c.b16 %v5887, %v5887
        %v5920 = vpack.c.b16 %v5888, %v5888
        %v5921 = vpack.c.b16 %v5889, %v5889
        %v5922 = vpack.c.b16 %v5890, %v5890
        %v5923 = vpack.c.b16 %v5891, %v5891
        %v5924 = vpack.c.b16 %v5892, %v5892
        %v5925 = vpack.c.b16 %v5893, %v5893
        %v5926 = vpack.c.b16 %v5894, %v5894
        %v5927 = vpack.c.b16 %v5895, %v5895
        %v5928 = vpack.c.b16 %v5896, %v5896
        %v5929 = vpack.c.b16 %v5897, %v5897
        %v5930 = vpack.c.b16 %v5898, %v5898
        %v5931 = vpack.c.b16 %v5899, %v5899
        %v5932 = vpack.c.b16 %v5900, %v5900
        %v5933 = vpack.c.b16 %v5901, %v5901
        %v5934 = vpack.c.b16 %v5902, %v5902
        %v5935 = vpack.c.b16 %v5903, %v5903
        %v5936 = vpack.c.b16 %v5904, %v5904
        %v5937 = vpack.c.b16 %v5905, %v5905
        %v5938 = vpack.c.b16 %v5906, %v5906
        %v5939 = vpack.c.b16 %v5907, %v5907
        %v5940 = vpack.c.b16 %v5908, %v5908
        %v5941 = vpack.c.b16 %v5909, %v5909
        %v5942 = vpack.c.b16 %v5910, %v5910
        %v5944 = vshrl.u32 %v5911, 16
        %v5946 = vrot.slane %v5944, 7
        %v5947 = vshll.u32 %v5911, 16
        %v5949 = vor.u32 %v5946, %v5947
        %v5950 = vrot.slane %v5946, 4
        %v5952 = vshrl.u32 %v5912, 16
        %v5954 = vrot.slane %v5952, 7
        %v5955 = vshll.u32 %v5912, 16
        %v5957 = vor.u32 %v5954, %v5955
        %v5958 = vsel %vm410, %v5950, %v5957
        %v5959 = vrot.slane %v5954, 4
        %v5961 = vshrl.u32 %v5913, 16
        %v5963 = vrot.slane %v5961, 7
        %v5964 = vshll.u32 %v5913, 16
        %v5966 = vor.u32 %v5963, %v5964
        %v5967 = vrot.slane %v5963, 4
        %v5969 = vshrl.u32 %v5914, 16
        %v5971 = vrot.slane %v5969, 7
        %v5972 = vshll.u32 %v5914, 16
        %v5974 = vor.u32 %v5971, %v5972
        %v5975 = vsel %vm410, %v5967, %v5974
        %v5976 = vrot.slane %v5971, 4
        %v5978 = vshrl.u32 %v5915, 16
        %v5980 = vrot.slane %v5978, 7
        %v5981 = vshll.u32 %v5915, 16
        %v5983 = vor.u32 %v5980, %v5981
        %v5984 = vrot.slane %v5980, 4
        %v5986 = vshrl.u32 %v5916, 16
        %v5988 = vrot.slane %v5986, 7
        %v5989 = vshll.u32 %v5916, 16
        %v5991 = vor.u32 %v5988, %v5989
        %v5992 = vsel %vm410, %v5984, %v5991
        %v5993 = vrot.slane %v5988, 4
        %v5995 = vshrl.u32 %v5917, 16
        %v5997 = vrot.slane %v5995, 7
        %v5998 = vshll.u32 %v5917, 16
        %v6000 = vor.u32 %v5997, %v5998
        %v6001 = vrot.slane %v5997, 4
        %v6003 = vshrl.u32 %v5918, 16
        %v6005 = vrot.slane %v6003, 7
        %v6006 = vshll.u32 %v5918, 16
        %v6008 = vor.u32 %v6005, %v6006
        %v6009 = vsel %vm410, %v6001, %v6008
        %v6010 = vrot.slane %v6005, 4
        %v6012 = vshrl.u32 %v5919, 16
        %v6014 = vrot.slane %v6012, 7
        %v6015 = vshll.u32 %v5919, 16
        %v6017 = vor.u32 %v6014, %v6015
        %v6018 = vrot.slane %v6014, 4
        %v6020 = vshrl.u32 %v5920, 16
        %v6022 = vrot.slane %v6020, 7
        %v6023 = vshll.u32 %v5920, 16
        %v6025 = vor.u32 %v6022, %v6023
        %v6026 = vsel %vm410, %v6018, %v6025
        %v6027 = vrot.slane %v6022, 4
        %v6029 = vshrl.u32 %v5921, 16
        %v6031 = vrot.slane %v6029, 7
        %v6032 = vshll.u32 %v5921, 16
        %v6034 = vor.u32 %v6031, %v6032
        %v6035 = vrot.slane %v6031, 4
        %v6037 = vshrl.u32 %v5922, 16
        %v6039 = vrot.slane %v6037, 7
        %v6040 = vshll.u32 %v5922, 16
        %v6042 = vor.u32 %v6039, %v6040
        %v6043 = vsel %vm410, %v6035, %v6042
        %v6044 = vrot.slane %v6039, 4
        %v6046 = vshrl.u32 %v5923, 16
        %v6048 = vrot.slane %v6046, 7
        %v6049 = vshll.u32 %v5923, 16
        %v6051 = vor.u32 %v6048, %v6049
        %v6052 = vrot.slane %v6048, 4
        %v6054 = vshrl.u32 %v5924, 16
        %v6056 = vrot.slane %v6054, 7
        %v6057 = vshll.u32 %v5924, 16
        %v6059 = vor.u32 %v6056, %v6057
        %v6060 = vsel %vm410, %v6052, %v6059
        %v6061 = vrot.slane %v6056, 4
        %v6063 = vshrl.u32 %v5925, 16
        %v6065 = vrot.slane %v6063, 7
        %v6066 = vshll.u32 %v5925, 16
        %v6068 = vor.u32 %v6065, %v6066
        %v6069 = vrot.slane %v6065, 4
        %v6071 = vshrl.u32 %v5926, 16
        %v6073 = vrot.slane %v6071, 7
        %v6074 = vshll.u32 %v5926, 16
        %v6076 = vor.u32 %v6073, %v6074
        %v6077 = vsel %vm410, %v6069, %v6076
        %v6078 = vrot.slane %v6073, 4
        %v6080 = vshrl.u32 %v5927, 16
        %v6082 = vrot.slane %v6080, 7
        %v6083 = vshll.u32 %v5927, 16
        %v6085 = vor.u32 %v6082, %v6083
        %v6086 = vrot.slane %v6082, 4
        %v6088 = vshrl.u32 %v5928, 16
        %v6090 = vrot.slane %v6088, 7
        %v6091 = vshll.u32 %v5928, 16
        %v6093 = vor.u32 %v6090, %v6091
        %v6094 = vsel %vm410, %v6086, %v6093
        %v6095 = vrot.slane %v6090, 4
        %v6097 = vshrl.u32 %v5929, 16
        %v6099 = vrot.slane %v6097, 7
        %v6100 = vshll.u32 %v5929, 16
        %v6102 = vor.u32 %v6099, %v6100
        %v6103 = vrot.slane %v6099, 4
        %v6105 = vshrl.u32 %v5930, 16
        %v6107 = vrot.slane %v6105, 7
        %v6108 = vshll.u32 %v5930, 16
        %v6110 = vor.u32 %v6107, %v6108
        %v6111 = vsel %vm410, %v6103, %v6110
        %v6112 = vrot.slane %v6107, 4
        %v6114 = vshrl.u32 %v5931, 16
        %v6116 = vrot.slane %v6114, 7
        %v6117 = vshll.u32 %v5931, 16
        %v6119 = vor.u32 %v6116, %v6117
        %v6120 = vrot.slane %v6116, 4
        %v6122 = vshrl.u32 %v5932, 16
        %v6124 = vrot.slane %v6122, 7
        %v6125 = vshll.u32 %v5932, 16
        %v6127 = vor.u32 %v6124, %v6125
        %v6128 = vsel %vm410, %v6120, %v6127
        %v6129 = vrot.slane %v6124, 4
        %v6131 = vshrl.u32 %v5933, 16
        %v6133 = vrot.slane %v6131, 7
        %v6134 = vshll.u32 %v5933, 16
        %v6136 = vor.u32 %v6133, %v6134
        %v6137 = vrot.slane %v6133, 4
        %v6139 = vshrl.u32 %v5934, 16
        %v6141 = vrot.slane %v6139, 7
        %v6142 = vshll.u32 %v5934, 16
        %v6144 = vor.u32 %v6141, %v6142
        %v6145 = vsel %vm410, %v6137, %v6144
        %v6146 = vrot.slane %v6141, 4
        %v6148 = vshrl.u32 %v5935, 16
        %v6150 = vrot.slane %v6148, 7
        %v6151 = vshll.u32 %v5935, 16
        %v6153 = vor.u32 %v6150, %v6151
        %v6154 = vrot.slane %v6150, 4
        %v6156 = vshrl.u32 %v5936, 16
        %v6158 = vrot.slane %v6156, 7
        %v6159 = vshll.u32 %v5936, 16
        %v6161 = vor.u32 %v6158, %v6159
        %v6162 = vsel %vm410, %v6154, %v6161
        %v6163 = vrot.slane %v6158, 4
        %v6165 = vshrl.u32 %v5937, 16
        %v6167 = vrot.slane %v6165, 7
        %v6168 = vshll.u32 %v5937, 16
        %v6170 = vor.u32 %v6167, %v6168
        %v6171 = vrot.slane %v6167, 4
        %v6173 = vshrl.u32 %v5938, 16
        %v6175 = vrot.slane %v6173, 7
        %v6176 = vshll.u32 %v5938, 16
        %v6178 = vor.u32 %v6175, %v6176
        %v6179 = vsel %vm410, %v6171, %v6178
        %v6180 = vrot.slane %v6175, 4
        %v6182 = vshrl.u32 %v5939, 16
        %v6184 = vrot.slane %v6182, 7
        %v6185 = vshll.u32 %v5939, 16
        %v6187 = vor.u32 %v6184, %v6185
        %v6188 = vrot.slane %v6184, 4
        %v6190 = vshrl.u32 %v5940, 16
        %v6192 = vrot.slane %v6190, 7
        %v6193 = vshll.u32 %v5940, 16
        %v6195 = vor.u32 %v6192, %v6193
        %v6196 = vsel %vm410, %v6188, %v6195
        %v6197 = vrot.slane %v6192, 4
        %v6199 = vshrl.u32 %v5941, 16
        %v6201 = vrot.slane %v6199, 7
        %v6202 = vshll.u32 %v5941, 16
        %v6204 = vor.u32 %v6201, %v6202
        %v6205 = vrot.slane %v6201, 4
        %v6207 = vshrl.u32 %v5942, 16
        %v6209 = vrot.slane %v6207, 7
        %v6210 = vshll.u32 %v5942, 16
        %v6212 = vor.u32 %v6209, %v6210
        %v6213 = vsel %vm410, %v6205, %v6212
        %v6214 = vrot.slane %v6209, 4
        %s6263 = scalar_lea.vmem [#allocation3], 12
        %v6264 = vld [vmem:[%s6263] sm:$0xf]
        %v6265 = vsel %vm734, %v5949, %v6264
        %6266 = vst [vmem:[%s6263] sm:$0xf] %v6265
        %6267 = vst.msk [vmem:[%s6263 + $0x4] sm:$0xf] %vm224, %v5958
        %v6268 = vld [vmem:[%s6263 + $0x8] sm:$0x1]
        %v6269 = vsel %vm740, %v5959, %v6268
        %6270 = vst [vmem:[%s6263 + $0x8] sm:$0x1] %v6269
        %v6271 = vld [vmem:[%s6263 + $0xc] sm:$0xf]
        %v6272 = vsel %vm734, %v5966, %v6271
        %6273 = vst [vmem:[%s6263 + $0xc] sm:$0xf] %v6272
        %6274 = vst.msk [vmem:[%s6263 + $0x10] sm:$0xf] %vm224, %v5975
        %v6275 = vld [vmem:[%s6263 + $0x14] sm:$0x1]
        %v6276 = vsel %vm740, %v5976, %v6275
        %6277 = vst [vmem:[%s6263 + $0x14] sm:$0x1] %v6276
        %v6278 = vld [vmem:[%s6263 + $0x18] sm:$0xf]
        %v6279 = vsel %vm734, %v5983, %v6278
        %6280 = vst [vmem:[%s6263 + $0x18] sm:$0xf] %v6279
        %6281 = vst.msk [vmem:[%s6263 + $0x1c] sm:$0xf] %vm224, %v5992
        %v6282 = vld [vmem:[%s6263 + $0x20] sm:$0x1]
        %v6283 = vsel %vm740, %v5993, %v6282
        %6284 = vst [vmem:[%s6263 + $0x20] sm:$0x1] %v6283
        %v6285 = vld [vmem:[%s6263 + $0x24] sm:$0xf]
        %v6286 = vsel %vm734, %v6000, %v6285
        %6287 = vst [vmem:[%s6263 + $0x24] sm:$0xf] %v6286
        %6288 = vst.msk [vmem:[%s6263 + $0x28] sm:$0xf] %vm224, %v6009
        %v6289 = vld [vmem:[%s6263 + $0x2c] sm:$0x1]
        %v6290 = vsel %vm740, %v6010, %v6289
        %6291 = vst [vmem:[%s6263 + $0x2c] sm:$0x1] %v6290
        %v6292 = vld [vmem:[%s6263 + $0x30] sm:$0xf]
        %v6293 = vsel %vm734, %v6017, %v6292
        %6294 = vst [vmem:[%s6263 + $0x30] sm:$0xf] %v6293
        %6295 = vst.msk [vmem:[%s6263 + $0x34] sm:$0xf] %vm224, %v6026
        %v6296 = vld [vmem:[%s6263 + $0x38] sm:$0x1]
        %v6297 = vsel %vm740, %v6027, %v6296
        %6298 = vst [vmem:[%s6263 + $0x38] sm:$0x1] %v6297
        %v6299 = vld [vmem:[%s6263 + $0x3c] sm:$0xf]
        %v6300 = vsel %vm734, %v6034, %v6299
        %6301 = vst [vmem:[%s6263 + $0x3c] sm:$0xf] %v6300
        %6302 = vst.msk [vmem:[%s6263 + $0x40] sm:$0xf] %vm224, %v6043
        %v6303 = vld [vmem:[%s6263 + $0x44] sm:$0x1]
        %v6304 = vsel %vm740, %v6044, %v6303
        %6305 = vst [vmem:[%s6263 + $0x44] sm:$0x1] %v6304
        %v6306 = vld [vmem:[%s6263 + $0x48] sm:$0xf]
        %v6307 = vsel %vm734, %v6051, %v6306
        %6308 = vst [vmem:[%s6263 + $0x48] sm:$0xf] %v6307
        %6309 = vst.msk [vmem:[%s6263 + $0x4c] sm:$0xf] %vm224, %v6060
        %v6310 = vld [vmem:[%s6263 + $0x50] sm:$0x1]
        %v6311 = vsel %vm740, %v6061, %v6310
        %6312 = vst [vmem:[%s6263 + $0x50] sm:$0x1] %v6311
        %v6313 = vld [vmem:[%s6263 + $0x54] sm:$0xf]
        %v6314 = vsel %vm734, %v6068, %v6313
        %6315 = vst [vmem:[%s6263 + $0x54] sm:$0xf] %v6314
        %6316 = vst.msk [vmem:[%s6263 + $0x58] sm:$0xf] %vm224, %v6077
        %v6317 = vld [vmem:[%s6263 + $0x5c] sm:$0x1]
        %v6318 = vsel %vm740, %v6078, %v6317
        %6319 = vst [vmem:[%s6263 + $0x5c] sm:$0x1] %v6318
        %v6320 = vld [vmem:[%s6263 + $0x60] sm:$0xf]
        %v6321 = vsel %vm734, %v6085, %v6320
        %6322 = vst [vmem:[%s6263 + $0x60] sm:$0xf] %v6321
        %6323 = vst.msk [vmem:[%s6263 + $0x64] sm:$0xf] %vm224, %v6094
        %v6324 = vld [vmem:[%s6263 + $0x68] sm:$0x1]
        %v6325 = vsel %vm740, %v6095, %v6324
        %6326 = vst [vmem:[%s6263 + $0x68] sm:$0x1] %v6325
        %v6327 = vld [vmem:[%s6263 + $0x6c] sm:$0xf]
        %v6328 = vsel %vm734, %v6102, %v6327
        %6329 = vst [vmem:[%s6263 + $0x6c] sm:$0xf] %v6328
        %6330 = vst.msk [vmem:[%s6263 + $0x70] sm:$0xf] %vm224, %v6111
        %v6331 = vld [vmem:[%s6263 + $0x74] sm:$0x1]
        %v6332 = vsel %vm740, %v6112, %v6331
        %6333 = vst [vmem:[%s6263 + $0x74] sm:$0x1] %v6332
        %v6334 = vld [vmem:[%s6263 + $0x78] sm:$0xf]
        %v6335 = vsel %vm734, %v6119, %v6334
        %6336 = vst [vmem:[%s6263 + $0x78] sm:$0xf] %v6335
        %6337 = vst.msk [vmem:[%s6263 + $0x7c] sm:$0xf] %vm224, %v6128
        %v6338 = vld [vmem:[%s6263 + $0x80] sm:$0x1]
        %v6339 = vsel %vm740, %v6129, %v6338
        %6340 = vst [vmem:[%s6263 + $0x80] sm:$0x1] %v6339
        %v6341 = vld [vmem:[%s6263 + $0x84] sm:$0xf]
        %v6342 = vsel %vm734, %v6136, %v6341
        %6343 = vst [vmem:[%s6263 + $0x84] sm:$0xf] %v6342
        %6344 = vst.msk [vmem:[%s6263 + $0x88] sm:$0xf] %vm224, %v6145
        %v6345 = vld [vmem:[%s6263 + $0x8c] sm:$0x1]
        %v6346 = vsel %vm740, %v6146, %v6345
        %6347 = vst [vmem:[%s6263 + $0x8c] sm:$0x1] %v6346
        %v6348 = vld [vmem:[%s6263 + $0x90] sm:$0xf]
        %v6349 = vsel %vm734, %v6153, %v6348
        %6350 = vst [vmem:[%s6263 + $0x90] sm:$0xf] %v6349
        %6351 = vst.msk [vmem:[%s6263 + $0x94] sm:$0xf] %vm224, %v6162
        %v6352 = vld [vmem:[%s6263 + $0x98] sm:$0x1]
        %v6353 = vsel %vm740, %v6163, %v6352
        %6354 = vst [vmem:[%s6263 + $0x98] sm:$0x1] %v6353
        %v6355 = vld [vmem:[%s6263 + $0x9c] sm:$0xf]
        %v6356 = vsel %vm734, %v6170, %v6355
        %6357 = vst [vmem:[%s6263 + $0x9c] sm:$0xf] %v6356
        %6358 = vst.msk [vmem:[%s6263 + $0xa0] sm:$0xf] %vm224, %v6179
        %v6359 = vld [vmem:[%s6263 + $0xa4] sm:$0x1]
        %v6360 = vsel %vm740, %v6180, %v6359
        %6361 = vst [vmem:[%s6263 + $0xa4] sm:$0x1] %v6360
        %v6362 = vld [vmem:[%s6263 + $0xa8] sm:$0xf]
        %v6363 = vsel %vm734, %v6187, %v6362
        %6364 = vst [vmem:[%s6263 + $0xa8] sm:$0xf] %v6363
        %6365 = vst.msk [vmem:[%s6263 + $0xac] sm:$0xf] %vm224, %v6196
        %v6366 = vld [vmem:[%s6263 + $0xb0] sm:$0x1]
        %v6367 = vsel %vm740, %v6197, %v6366
        %6368 = vst [vmem:[%s6263 + $0xb0] sm:$0x1] %v6367
        %v6369 = vld [vmem:[%s6263 + $0xb4] sm:$0xf]
        %v6370 = vsel %vm734, %v6204, %v6369
        %6371 = vst [vmem:[%s6263 + $0xb4] sm:$0xf] %v6370
        %6372 = vst.msk [vmem:[%s6263 + $0xb8] sm:$0xf] %vm224, %v6213
        %v6373 = vld [vmem:[%s6263 + $0xbc] sm:$0x1]
        %v6374 = vsel %vm740, %v6214, %v6373
        %6375 = vst [vmem:[%s6263 + $0xbc] sm:$0x1] %v6374
        %v6376 = vld [vmem:[#allocation3] sm:$0xf]
        %v6377 = vld [vmem:[#allocation3 + $0x4] sm:$0xf]
        %v6378 = vld [vmem:[#allocation3 + $0xc] sm:$0xf]
        %v6379 = vld [vmem:[#allocation3 + $0x10] sm:$0xf]
        %v6380 = vld [vmem:[#allocation3 + $0x18] sm:$0xf]
        %v6381 = vld [vmem:[#allocation3 + $0x1c] sm:$0xf]
        %v6382 = vld [vmem:[#allocation3 + $0x24] sm:$0xf]
        %v6383 = vld [vmem:[#allocation3 + $0x28] sm:$0xf]
        %v6384 = vld [vmem:[#allocation3 + $0x30] sm:$0xf]
        %v6385 = vld [vmem:[#allocation3 + $0x34] sm:$0xf]
        %v6386 = vld [vmem:[#allocation3 + $0x3c] sm:$0xf]
        %v6387 = vld [vmem:[#allocation3 + $0x40] sm:$0xf]
        %v6388 = vld [vmem:[#allocation3 + $0x48] sm:$0xf]
        %v6389 = vld [vmem:[#allocation3 + $0x4c] sm:$0xf]
        %v6390 = vld [vmem:[#allocation3 + $0x54] sm:$0xf]
        %v6391 = vld [vmem:[#allocation3 + $0x58] sm:$0xf]
        %v6392 = vld [vmem:[#allocation3 + $0x60] sm:$0xf]
        %v6393 = vld [vmem:[#allocation3 + $0x64] sm:$0xf]
        %v6394 = vld [vmem:[#allocation3 + $0x6c] sm:$0xf]
        %v6395 = vld [vmem:[#allocation3 + $0x70] sm:$0xf]
        %v6396 = vld [vmem:[#allocation3 + $0x78] sm:$0xf]
        %v6397 = vld [vmem:[#allocation3 + $0x7c] sm:$0xf]
        %v6398 = vld [vmem:[#allocation3 + $0x84] sm:$0xf]
        %v6399 = vld [vmem:[#allocation3 + $0x88] sm:$0xf]
        %v6400 = vld [vmem:[#allocation3 + $0x90] sm:$0xf]
        %v6401 = vld [vmem:[#allocation3 + $0x94] sm:$0xf]
        %v6402 = vld [vmem:[#allocation3 + $0x9c] sm:$0xf]
        %v6403 = vld [vmem:[#allocation3 + $0xa0] sm:$0xf]
        %v6404 = vld [vmem:[#allocation3 + $0xa8] sm:$0xf]
        %v6405 = vld [vmem:[#allocation3 + $0xac] sm:$0xf]
        %v6406 = vld [vmem:[#allocation3 + $0xb4] sm:$0xf]
        %v6407 = vld [vmem:[#allocation3 + $0xb8] sm:$0xf]
        %v6408 = vld [vmem:[%s3] sm:$0xf]
        %v6409 = vld [vmem:[%s3 + $0x4] sm:$0xf]
        %v6410 = vld [vmem:[%s3 + $0x8] sm:$0xf]
        %v6411 = vld [vmem:[%s3 + $0xc] sm:$0xf]
        %v6412 = vld [vmem:[%s3 + $0x10] sm:$0xf]
        %v6413 = vld [vmem:[%s3 + $0x14] sm:$0xf]
        %v6414 = vld [vmem:[%s3 + $0x18] sm:$0xf]
        %v6415 = vld [vmem:[%s3 + $0x1c] sm:$0xf]
        %v6416 = vld [vmem:[#allocation3 + $0x8] sm:$0x1]
        %v6417 = vld [vmem:[#allocation3 + $0x14] sm:$0x1]
        %v6418 = vld [vmem:[#allocation3 + $0x20] sm:$0x1]
        %v6419 = vld [vmem:[#allocation3 + $0x2c] sm:$0x1]
        %v6420 = vld [vmem:[#allocation3 + $0x38] sm:$0x1]
        %v6421 = vld [vmem:[#allocation3 + $0x44] sm:$0x1]
        %v6422 = vld [vmem:[#allocation3 + $0x50] sm:$0x1]
        %v6423 = vld [vmem:[#allocation3 + $0x5c] sm:$0x1]
        %v6424 = vld [vmem:[#allocation3 + $0x68] sm:$0x1]
        %v6425 = vld [vmem:[#allocation3 + $0x74] sm:$0x1]
        %v6426 = vld [vmem:[#allocation3 + $0x80] sm:$0x1]
        %v6427 = vld [vmem:[#allocation3 + $0x8c] sm:$0x1]
        %v6428 = vld [vmem:[#allocation3 + $0x98] sm:$0x1]
        %v6429 = vld [vmem:[#allocation3 + $0xa4] sm:$0x1]
        %v6430 = vld [vmem:[#allocation3 + $0xb0] sm:$0x1]
        %v6431 = vld [vmem:[#allocation3 + $0xbc] sm:$0x1]
        %v6433 = vshrl.u32 %v6376, 16
        %v6435 = vrot.slane %v6433, 4
        %v6436 = vshll.u32 %v6376, 16
        %v6438 = vrot.slane %v6436, 5
        %v6439 = vor.u32 %v6435, %v6438
        %v6440 = vrot.slane %v6439, 4
        %v6442 = vshll.u32 %v6377, 16
        %v6444 = vrot.slane %v6442, 5
        %v6445 = vsel %vm907, %v6440, %v6444
        %v6446 = vshrl.u32 %v6377, 16
        %v6448 = vrot.slane %v6446, 4
        %v6449 = vor.u32 %v6448, %v6444
        %v6450 = vrot.slane %v6449, 4
        %v6452 = vshll.u32 %v6416, 16
        %v6454 = vrot.slane %v6452, 5
        %v6455 = vsel %vm907, %v6450, %v6454
        %v6457 = vshrl.u32 %v6378, 16
        %v6459 = vrot.slane %v6457, 4
        %v6460 = vshll.u32 %v6378, 16
        %v6462 = vrot.slane %v6460, 5
        %v6463 = vor.u32 %v6459, %v6462
        %v6464 = vrot.slane %v6463, 4
        %v6466 = vshll.u32 %v6379, 16
        %v6468 = vrot.slane %v6466, 5
        %v6469 = vsel %vm907, %v6464, %v6468
        %v6470 = vshrl.u32 %v6379, 16
        %v6472 = vrot.slane %v6470, 4
        %v6473 = vor.u32 %v6472, %v6468
        %v6474 = vrot.slane %v6473, 4
        %v6476 = vshll.u32 %v6417, 16
        %v6478 = vrot.slane %v6476, 5
        %v6479 = vsel %vm907, %v6474, %v6478
        %v6481 = vshrl.u32 %v6380, 16
        %v6483 = vrot.slane %v6481, 4
        %v6484 = vshll.u32 %v6380, 16
        %v6486 = vrot.slane %v6484, 5
        %v6487 = vor.u32 %v6483, %v6486
        %v6488 = vrot.slane %v6487, 4
        %v6490 = vshll.u32 %v6381, 16
        %v6492 = vrot.slane %v6490, 5
        %v6493 = vsel %vm907, %v6488, %v6492
        %v6494 = vshrl.u32 %v6381, 16
        %v6496 = vrot.slane %v6494, 4
        %v6497 = vor.u32 %v6496, %v6492
        %v6498 = vrot.slane %v6497, 4
        %v6500 = vshll.u32 %v6418, 16
        %v6502 = vrot.slane %v6500, 5
        %v6503 = vsel %vm907, %v6498, %v6502
        %v6505 = vshrl.u32 %v6382, 16
        %v6507 = vrot.slane %v6505, 4
        %v6508 = vshll.u32 %v6382, 16
        %v6510 = vrot.slane %v6508, 5
        %v6511 = vor.u32 %v6507, %v6510
        %v6512 = vrot.slane %v6511, 4
        %v6514 = vshll.u32 %v6383, 16
        %v6516 = vrot.slane %v6514, 5
        %v6517 = vsel %vm907, %v6512, %v6516
        %v6518 = vshrl.u32 %v6383, 16
        %v6520 = vrot.slane %v6518, 4
        %v6521 = vor.u32 %v6520, %v6516
        %v6522 = vrot.slane %v6521, 4
        %v6524 = vshll.u32 %v6419, 16
        %v6526 = vrot.slane %v6524, 5
        %v6527 = vsel %vm907, %v6522, %v6526
        %v6529 = vshrl.u32 %v6384, 16
        %v6531 = vrot.slane %v6529, 4
        %v6532 = vshll.u32 %v6384, 16
        %v6534 = vrot.slane %v6532, 5
        %v6535 = vor.u32 %v6531, %v6534
        %v6536 = vrot.slane %v6535, 4
        %v6538 = vshll.u32 %v6385, 16
        %v6540 = vrot.slane %v6538, 5
        %v6541 = vsel %vm907, %v6536, %v6540
        %v6542 = vshrl.u32 %v6385, 16
        %v6544 = vrot.slane %v6542, 4
        %v6545 = vor.u32 %v6544, %v6540
        %v6546 = vrot.slane %v6545, 4
        %v6548 = vshll.u32 %v6420, 16
        %v6550 = vrot.slane %v6548, 5
        %v6551 = vsel %vm907, %v6546, %v6550
        %v6553 = vshrl.u32 %v6386, 16
        %v6555 = vrot.slane %v6553, 4
        %v6556 = vshll.u32 %v6386, 16
        %v6558 = vrot.slane %v6556, 5
        %v6559 = vor.u32 %v6555, %v6558
        %v6560 = vrot.slane %v6559, 4
        %v6562 = vshll.u32 %v6387, 16
        %v6564 = vrot.slane %v6562, 5
        %v6565 = vsel %vm907, %v6560, %v6564
        %v6566 = vshrl.u32 %v6387, 16
        %v6568 = vrot.slane %v6566, 4
        %v6569 = vor.u32 %v6568, %v6564
        %v6570 = vrot.slane %v6569, 4
        %v6572 = vshll.u32 %v6421, 16
        %v6574 = vrot.slane %v6572, 5
        %v6575 = vsel %vm907, %v6570, %v6574
        %v6577 = vshrl.u32 %v6388, 16
        %v6579 = vrot.slane %v6577, 4
        %v6580 = vshll.u32 %v6388, 16
        %v6582 = vrot.slane %v6580, 5
        %v6583 = vor.u32 %v6579, %v6582
        %v6584 = vrot.slane %v6583, 4
        %v6586 = vshll.u32 %v6389, 16
        %v6588 = vrot.slane %v6586, 5
        %v6589 = vsel %vm907, %v6584, %v6588
        %v6590 = vshrl.u32 %v6389, 16
        %v6592 = vrot.slane %v6590, 4
        %v6593 = vor.u32 %v6592, %v6588
        %v6594 = vrot.slane %v6593, 4
        %v6596 = vshll.u32 %v6422, 16
        %v6598 = vrot.slane %v6596, 5
        %v6599 = vsel %vm907, %v6594, %v6598
        %v6601 = vshrl.u32 %v6390, 16
        %v6603 = vrot.slane %v6601, 4
        %v6604 = vshll.u32 %v6390, 16
        %v6606 = vrot.slane %v6604, 5
        %v6607 = vor.u32 %v6603, %v6606
        %v6608 = vrot.slane %v6607, 4
        %v6610 = vshll.u32 %v6391, 16
        %v6612 = vrot.slane %v6610, 5
        %v6613 = vsel %vm907, %v6608, %v6612
        %v6614 = vshrl.u32 %v6391, 16
        %v6616 = vrot.slane %v6614, 4
        %v6617 = vor.u32 %v6616, %v6612
        %v6618 = vrot.slane %v6617, 4
        %v6620 = vshll.u32 %v6423, 16
        %v6622 = vrot.slane %v6620, 5
        %v6623 = vsel %vm907, %v6618, %v6622
        %v6625 = vshrl.u32 %v6392, 16
        %v6627 = vrot.slane %v6625, 4
        %v6628 = vshll.u32 %v6392, 16
        %v6630 = vrot.slane %v6628, 5
        %v6631 = vor.u32 %v6627, %v6630
        %v6632 = vrot.slane %v6631, 4
        %v6634 = vshll.u32 %v6393, 16
        %v6636 = vrot.slane %v6634, 5
        %v6637 = vsel %vm907, %v6632, %v6636
        %v6638 = vshrl.u32 %v6393, 16
        %v6640 = vrot.slane %v6638, 4
        %v6641 = vor.u32 %v6640, %v6636
        %v6642 = vrot.slane %v6641, 4
        %v6644 = vshll.u32 %v6424, 16
        %v6646 = vrot.slane %v6644, 5
        %v6647 = vsel %vm907, %v6642, %v6646
        %v6649 = vshrl.u32 %v6394, 16
        %v6651 = vrot.slane %v6649, 4
        %v6652 = vshll.u32 %v6394, 16
        %v6654 = vrot.slane %v6652, 5
        %v6655 = vor.u32 %v6651, %v6654
        %v6656 = vrot.slane %v6655, 4
        %v6658 = vshll.u32 %v6395, 16
        %v6660 = vrot.slane %v6658, 5
        %v6661 = vsel %vm907, %v6656, %v6660
        %v6662 = vshrl.u32 %v6395, 16
        %v6664 = vrot.slane %v6662, 4
        %v6665 = vor.u32 %v6664, %v6660
        %v6666 = vrot.slane %v6665, 4
        %v6668 = vshll.u32 %v6425, 16
        %v6670 = vrot.slane %v6668, 5
        %v6671 = vsel %vm907, %v6666, %v6670
        %v6673 = vshrl.u32 %v6396, 16
        %v6675 = vrot.slane %v6673, 4
        %v6676 = vshll.u32 %v6396, 16
        %v6678 = vrot.slane %v6676, 5
        %v6679 = vor.u32 %v6675, %v6678
        %v6680 = vrot.slane %v6679, 4
        %v6682 = vshll.u32 %v6397, 16
        %v6684 = vrot.slane %v6682, 5
        %v6685 = vsel %vm907, %v6680, %v6684
        %v6686 = vshrl.u32 %v6397, 16
        %v6688 = vrot.slane %v6686, 4
        %v6689 = vor.u32 %v6688, %v6684
        %v6690 = vrot.slane %v6689, 4
        %v6692 = vshll.u32 %v6426, 16
        %v6694 = vrot.slane %v6692, 5
        %v6695 = vsel %vm907, %v6690, %v6694
        %v6697 = vshrl.u32 %v6398, 16
        %v6699 = vrot.slane %v6697, 4
        %v6700 = vshll.u32 %v6398, 16
        %v6702 = vrot.slane %v6700, 5
        %v6703 = vor.u32 %v6699, %v6702
        %v6704 = vrot.slane %v6703, 4
        %v6706 = vshll.u32 %v6399, 16
        %v6708 = vrot.slane %v6706, 5
        %v6709 = vsel %vm907, %v6704, %v6708
        %v6710 = vshrl.u32 %v6399, 16
        %v6712 = vrot.slane %v6710, 4
        %v6713 = vor.u32 %v6712, %v6708
        %v6714 = vrot.slane %v6713, 4
        %v6716 = vshll.u32 %v6427, 16
        %v6718 = vrot.slane %v6716, 5
        %v6719 = vsel %vm907, %v6714, %v6718
        %v6721 = vshrl.u32 %v6400, 16
        %v6723 = vrot.slane %v6721, 4
        %v6724 = vshll.u32 %v6400, 16
        %v6726 = vrot.slane %v6724, 5
        %v6727 = vor.u32 %v6723, %v6726
        %v6728 = vrot.slane %v6727, 4
        %v6730 = vshll.u32 %v6401, 16
        %v6732 = vrot.slane %v6730, 5
        %v6733 = vsel %vm907, %v6728, %v6732
        %v6734 = vshrl.u32 %v6401, 16
        %v6736 = vrot.slane %v6734, 4
        %v6737 = vor.u32 %v6736, %v6732
        %v6738 = vrot.slane %v6737, 4
        %v6740 = vshll.u32 %v6428, 16
        %v6742 = vrot.slane %v6740, 5
        %v6743 = vsel %vm907, %v6738, %v6742
        %v6745 = vshrl.u32 %v6402, 16
        %v6747 = vrot.slane %v6745, 4
        %v6748 = vshll.u32 %v6402, 16
        %v6750 = vrot.slane %v6748, 5
        %v6751 = vor.u32 %v6747, %v6750
        %v6752 = vrot.slane %v6751, 4
        %v6754 = vshll.u32 %v6403, 16
        %v6756 = vrot.slane %v6754, 5
        %v6757 = vsel %vm907, %v6752, %v6756
        %v6758 = vshrl.u32 %v6403, 16
        %v6760 = vrot.slane %v6758, 4
        %v6761 = vor.u32 %v6760, %v6756
        %v6762 = vrot.slane %v6761, 4
        %v6764 = vshll.u32 %v6429, 16
        %v6766 = vrot.slane %v6764, 5
        %v6767 = vsel %vm907, %v6762, %v6766
        %v6769 = vshrl.u32 %v6404, 16
        %v6771 = vrot.slane %v6769, 4
        %v6772 = vshll.u32 %v6404, 16
        %v6774 = vrot.slane %v6772, 5
        %v6775 = vor.u32 %v6771, %v6774
        %v6776 = vrot.slane %v6775, 4
        %v6778 = vshll.u32 %v6405, 16
        %v6780 = vrot.slane %v6778, 5
        %v6781 = vsel %vm907, %v6776, %v6780
        %v6782 = vshrl.u32 %v6405, 16
        %v6784 = vrot.slane %v6782, 4
        %v6785 = vor.u32 %v6784, %v6780
        %v6786 = vrot.slane %v6785, 4
        %v6788 = vshll.u32 %v6430, 16
        %v6790 = vrot.slane %v6788, 5
        %v6791 = vsel %vm907, %v6786, %v6790
        %v6793 = vshrl.u32 %v6406, 16
        %v6795 = vrot.slane %v6793, 4
        %v6796 = vshll.u32 %v6406, 16
        %v6798 = vrot.slane %v6796, 5
        %v6799 = vor.u32 %v6795, %v6798
        %v6800 = vrot.slane %v6799, 4
        %v6802 = vshll.u32 %v6407, 16
        %v6804 = vrot.slane %v6802, 5
        %v6805 = vsel %vm907, %v6800, %v6804
        %v6806 = vshrl.u32 %v6407, 16
        %v6808 = vrot.slane %v6806, 4
        %v6809 = vor.u32 %v6808, %v6804
        %v6810 = vrot.slane %v6809, 4
        %v6812 = vshll.u32 %v6431, 16
        %v6814 = vrot.slane %v6812, 5
        %v6815 = vsel %vm907, %v6810, %v6814
        %s6816 = scalar_lea.vmem %s3, 32
        %v6817 = vld [vmem:[%s6816] sm:$0xf]
        %v6818 = vld [vmem:[%s6816 + $0x4] sm:$0xf]
        %v6819 = vld [vmem:[%s6816 + $0x8] sm:$0xf]
        %v6820 = vld [vmem:[%s6816 + $0xc] sm:$0xf]
        %v6821 = vld [vmem:[%s6816 + $0x10] sm:$0xf]
        %v6822 = vld [vmem:[%s6816 + $0x14] sm:$0xf]
        %v6823 = vld [vmem:[%s6816 + $0x18] sm:$0xf]
        %v6824 = vld [vmem:[%s6816 + $0x1c] sm:$0xf]
        %v6825 = vunpack.c.l.b16 %v6445
        %v6826 = vunpack.c.l.b16 %v6455
        %v6827 = vunpack.c.l.b16 %v6469
        %v6828 = vunpack.c.l.b16 %v6479
        %v6829 = vunpack.c.l.b16 %v6493
        %v6830 = vunpack.c.l.b16 %v6503
        %v6831 = vunpack.c.l.b16 %v6517
        %v6832 = vunpack.c.l.b16 %v6527
        %v6833 = vunpack.c.l.b16 %v6541
        %v6834 = vunpack.c.l.b16 %v6551
        %v6835 = vunpack.c.l.b16 %v6565
        %v6836 = vunpack.c.l.b16 %v6575
        %v6837 = vunpack.c.l.b16 %v6589
        %v6838 = vunpack.c.l.b16 %v6599
        %v6839 = vunpack.c.l.b16 %v6613
        %v6840 = vunpack.c.l.b16 %v6623
        %v6841 = vunpack.c.l.b16 %v6637
        %v6842 = vunpack.c.l.b16 %v6647
        %v6843 = vunpack.c.l.b16 %v6661
        %v6844 = vunpack.c.l.b16 %v6671
        %v6845 = vunpack.c.l.b16 %v6685
        %v6846 = vunpack.c.l.b16 %v6695
        %v6847 = vunpack.c.l.b16 %v6709
        %v6848 = vunpack.c.l.b16 %v6719
        %v6849 = vunpack.c.l.b16 %v6733
        %v6850 = vunpack.c.l.b16 %v6743
        %v6851 = vunpack.c.l.b16 %v6757
        %v6852 = vunpack.c.l.b16 %v6767
        %v6853 = vunpack.c.l.b16 %v6781
        %v6854 = vunpack.c.l.b16 %v6791
        %v6855 = vunpack.c.l.b16 %v6805
        %v6856 = vunpack.c.l.b16 %v6815
        %v6857 = vpack.c.b16 %v6826, %v6825
        %v6858 = vpack.c.b16 %v6828, %v6827
        %v6859 = vpack.c.b16 %v6830, %v6829
        %v6860 = vpack.c.b16 %v6832, %v6831
        %v6861 = vpack.c.b16 %v6834, %v6833
        %v6862 = vpack.c.b16 %v6836, %v6835
        %v6863 = vpack.c.b16 %v6838, %v6837
        %v6864 = vpack.c.b16 %v6840, %v6839
        %v6865 = vpack.c.b16 %v6842, %v6841
        %v6866 = vpack.c.b16 %v6844, %v6843
        %v6867 = vpack.c.b16 %v6846, %v6845
        %v6868 = vpack.c.b16 %v6848, %v6847
        %v6869 = vpack.c.b16 %v6850, %v6849
        %v6870 = vpack.c.b16 %v6852, %v6851
        %v6871 = vpack.c.b16 %v6854, %v6853
        %v6872 = vpack.c.b16 %v6856, %v6855
        %v6881 = vunpack.c.l.b16 %v6817
        %v6882 = vunpack.c.l.b16 %v6818
        %v6883 = vunpack.c.l.b16 %v6819
        %v6884 = vunpack.c.l.b16 %v6820
        %v6885 = vunpack.c.l.b16 %v6821
        %v6886 = vunpack.c.l.b16 %v6822
        %v6887 = vunpack.c.l.b16 %v6823
        %v6888 = vunpack.c.l.b16 %v6824
        %v6889 = vpack.c.b16 %v6882, %v6881
        %v6890 = vpack.c.b16 %v6884, %v6883
        %v6891 = vpack.c.b16 %v6886, %v6885
        %v6892 = vpack.c.b16 %v6888, %v6887
        %v6898 = vsel %vm1373, %v6857, 0
        %v6901 = vsel %vm1373, %v6858, 0
        %v6904 = vsel %vm1373, %v6859, 0
        %v6907 = vsel %vm1373, %v6860, 0
        %v6910 = vsel %vm1373, %v6861, 0
        %v6913 = vsel %vm1373, %v6862, 0
        %v6916 = vsel %vm1373, %v6863, 0
        %v6919 = vsel %vm1373, %v6864, 0
        %v6922 = vsel %vm1373, %v6865, 0
        %v6925 = vsel %vm1373, %v6866, 0
        %v6928 = vsel %vm1373, %v6867, 0
        %v6931 = vsel %vm1373, %v6868, 0
        %v6934 = vsel %vm1373, %v6869, 0
        %v6937 = vsel %vm1373, %v6870, 0
        %v6940 = vsel %vm1373, %v6871, 0
        %v6943 = vsel %vm1373, %v6872, 0
        %6945 = vmatprep.subr.bf16.mxu0 0
        %6946 = vmatpush1.bf16.msra.mxu0 %v6889
        %6947 = vmatprep.subr.bf16.mxu0 0
        %6948 = vmatpush1.bf16.msra.mxu0 %v6890
        %6949 = vmatprep.subr.bf16.mxu0 0
        %6950 = vmatpush1.bf16.msra.mxu0 %v6891
        %6951 = vmatprep.subr.bf16.mxu0 0
        %6952 = vmatpush1.bf16.msra.mxu0 %v6892
        %6953 = vmatprep.subr.bf16.mxu0 0
        %6954 = vmatpush1.bf16.msra.mxu0 0
        %6955 = vmatprep.subr.bf16.mxu0 0
        %6956 = vmatpush1.bf16.msra.mxu0 0
        %6957 = vmatprep.subr.bf16.mxu0 0
        %6958 = vmatpush1.bf16.msra.mxu0 0
        %6959 = vmatprep.subr.bf16.mxu0 0
        %6960 = vmatpush1.bf16.msra.mxu0 0
        %6961 = vmatprep.subr.bf16.mxu0 0
        %6962 = vmatpush1.bf16.msra.mxu0 0
        %6963 = vmatprep.subr.bf16.mxu0 0
        %6964 = vmatpush1.bf16.msra.mxu0 0
        %6965 = vmatprep.subr.bf16.mxu0 0
        %6966 = vmatpush1.bf16.msra.mxu0 0
        %6967 = vmatprep.subr.bf16.mxu0 0
        %6968 = vmatpush1.bf16.msra.mxu0 0
        %6969 = vmatprep.subr.bf16.mxu0 0
        %6970 = vmatpush1.bf16.msra.mxu0 0
        %6971 = vmatprep.subr.bf16.mxu0 0
        %6972 = vmatpush1.bf16.msra.mxu0 0
        %6973 = vmatprep.subr.bf16.mxu0 0
        %6974 = vmatpush1.bf16.msra.mxu0 0
        %6975 = vmatprep.subr.bf16.mxu0 0
        %6976 = vmatpush1.bf16.msra.mxu0 0
        %6977 = vmatprep.mubr.bf16.mxu0 0
        %6978 = vmatmul.mubr.bf16.gmra.mrb[0].mxu0 %v6898
        %v6979 = vpop.f32.mrb[0].mxu0
        %v6980 = vadd.f32 0.0, %v6979
        %v6981 = vpop.f32.mrb[0].mxu0
        %v6982 = vpop.f32.mrb[0].mxu0
        %v6983 = vadd.f32 0.0, %v6982
        %v6984 = vpop.f32.mrb[0].mxu0
        %6985 = vmatprep.mubr.bf16.mxu0 0
        %6986 = vmatmul.mubr.bf16.gmra.mrb[0].mxu0 %v6901
        %v6987 = vpop.f32.mrb[0].mxu0
        %v6988 = vadd.f32 0.0, %v6987
        %v6989 = vpop.f32.mrb[0].mxu0
        %v6990 = vpop.f32.mrb[0].mxu0
        %v6991 = vadd.f32 0.0, %v6990
        %v6992 = vpop.f32.mrb[0].mxu0
        %6993 = vmatprep.mubr.bf16.mxu0 0
        %6994 = vmatmul.mubr.bf16.gmra.mrb[0].mxu0 %v6904
        %v6995 = vpop.f32.mrb[0].mxu0
        %v6996 = vadd.f32 0.0, %v6995
        %v6997 = vpop.f32.mrb[0].mxu0
        %v6998 = vpop.f32.mrb[0].mxu0
        %v6999 = vadd.f32 0.0, %v6998
        %v7000 = vpop.f32.mrb[0].mxu0
        %7001 = vmatprep.mubr.bf16.mxu0 0
        %7002 = vmatmul.mubr.bf16.gmra.mrb[0].mxu0 %v6907
        %v7003 = vpop.f32.mrb[0].mxu0
        %v7004 = vadd.f32 0.0, %v7003
        %v7005 = vpop.f32.mrb[0].mxu0
        %v7006 = vpop.f32.mrb[0].mxu0
        %v7007 = vadd.f32 0.0, %v7006
        %v7008 = vpop.f32.mrb[0].mxu0
        %7009 = vmatprep.mubr.bf16.mxu0 0
        %7010 = vmatmul.mubr.bf16.gmra.mrb[0].mxu0 %v6910
        %v7011 = vpop.f32.mrb[0].mxu0
        %v7012 = vadd.f32 0.0, %v7011
        %v7013 = vpop.f32.mrb[0].mxu0
        %v7014 = vpop.f32.mrb[0].mxu0
        %v7015 = vadd.f32 0.0, %v7014
        %v7016 = vpop.f32.mrb[0].mxu0
        %7017 = vmatprep.mubr.bf16.mxu0 0
        %7018 = vmatmul.mubr.bf16.gmra.mrb[0].mxu0 %v6913
        %v7019 = vpop.f32.mrb[0].mxu0
        %v7020 = vadd.f32 0.0, %v7019
        %v7021 = vpop.f32.mrb[0].mxu0
        %v7022 = vpop.f32.mrb[0].mxu0
        %v7023 = vadd.f32 0.0, %v7022
        %v7024 = vpop.f32.mrb[0].mxu0
        %7025 = vmatprep.mubr.bf16.mxu0 0
        %7026 = vmatmul.mubr.bf16.gmra.mrb[0].mxu0 %v6916
        %v7027 = vpop.f32.mrb[0].mxu0
        %v7028 = vadd.f32 0.0, %v7027
        %v7029 = vpop.f32.mrb[0].mxu0
        %v7030 = vpop.f32.mrb[0].mxu0
        %v7031 = vadd.f32 0.0, %v7030
        %v7032 = vpop.f32.mrb[0].mxu0
        %7033 = vmatprep.mubr.bf16.mxu0 0
        %7034 = vmatmul.mubr.bf16.gmra.mrb[0].mxu0 %v6919
        %v7035 = vpop.f32.mrb[0].mxu0
        %v7036 = vadd.f32 0.0, %v7035
        %v7037 = vpop.f32.mrb[0].mxu0
        %v7038 = vpop.f32.mrb[0].mxu0
        %v7039 = vadd.f32 0.0, %v7038
        %v7040 = vpop.f32.mrb[0].mxu0
        %7041 = vmatprep.mubr.bf16.mxu0 0
        %7042 = vmatmul.mubr.bf16.gmra.mrb[0].mxu0 %v6922
        %v7043 = vpop.f32.mrb[0].mxu0
        %v7044 = vadd.f32 0.0, %v7043
        %v7045 = vpop.f32.mrb[0].mxu0
        %v7046 = vpop.f32.mrb[0].mxu0
        %v7047 = vadd.f32 0.0, %v7046
        %v7048 = vpop.f32.mrb[0].mxu0
        %7049 = vmatprep.mubr.bf16.mxu0 0
        %7050 = vmatmul.mubr.bf16.gmra.mrb[0].mxu0 %v6925
        %v7051 = vpop.f32.mrb[0].mxu0
        %v7052 = vadd.f32 0.0, %v7051
        %v7053 = vpop.f32.mrb[0].mxu0
        %v7054 = vpop.f32.mrb[0].mxu0
        %v7055 = vadd.f32 0.0, %v7054
        %v7056 = vpop.f32.mrb[0].mxu0
        %7057 = vmatprep.mubr.bf16.mxu0 0
        %7058 = vmatmul.mubr.bf16.gmra.mrb[0].mxu0 %v6928
        %v7059 = vpop.f32.mrb[0].mxu0
        %v7060 = vadd.f32 0.0, %v7059
        %v7061 = vpop.f32.mrb[0].mxu0
        %v7062 = vpop.f32.mrb[0].mxu0
        %v7063 = vadd.f32 0.0, %v7062
        %v7064 = vpop.f32.mrb[0].mxu0
        %7065 = vmatprep.mubr.bf16.mxu0 0
        %7066 = vmatmul.mubr.bf16.gmra.mrb[0].mxu0 %v6931
        %v7067 = vpop.f32.mrb[0].mxu0
        %v7068 = vadd.f32 0.0, %v7067
        %v7069 = vpop.f32.mrb[0].mxu0
        %v7070 = vpop.f32.mrb[0].mxu0
        %v7071 = vadd.f32 0.0, %v7070
        %v7072 = vpop.f32.mrb[0].mxu0
        %7073 = vmatprep.mubr.bf16.mxu0 0
        %7074 = vmatmul.mubr.bf16.gmra.mrb[0].mxu0 %v6934
        %v7075 = vpop.f32.mrb[0].mxu0
        %v7076 = vadd.f32 0.0, %v7075
        %v7077 = vpop.f32.mrb[0].mxu0
        %v7078 = vpop.f32.mrb[0].mxu0
        %v7079 = vadd.f32 0.0, %v7078
        %v7080 = vpop.f32.mrb[0].mxu0
        %7081 = vmatprep.mubr.bf16.mxu0 0
        %7082 = vmatmul.mubr.bf16.gmra.mrb[0].mxu0 %v6937
        %v7083 = vpop.f32.mrb[0].mxu0
        %v7084 = vadd.f32 0.0, %v7083
        %v7085 = vpop.f32.mrb[0].mxu0
        %v7086 = vpop.f32.mrb[0].mxu0
        %v7087 = vadd.f32 0.0, %v7086
        %v7088 = vpop.f32.mrb[0].mxu0
        %7089 = vmatprep.mubr.bf16.mxu0 0
        %7090 = vmatmul.mubr.bf16.gmra.mrb[0].mxu0 %v6940
        %v7091 = vpop.f32.mrb[0].mxu0
        %v7092 = vadd.f32 0.0, %v7091
        %v7093 = vpop.f32.mrb[0].mxu0
        %v7094 = vpop.f32.mrb[0].mxu0
        %v7095 = vadd.f32 0.0, %v7094
        %v7096 = vpop.f32.mrb[0].mxu0
        %7097 = vmatprep.mubr.bf16.mxu0 0
        %7098 = vmatmul.mubr.bf16.gmra.mrb[0].mxu0 %v6943
        %v7099 = vpop.f32.mrb[0].mxu0
        %v7100 = vadd.f32 0.0, %v7099
        %v7101 = vpop.f32.mrb[0].mxu0
        %v7102 = vpop.f32.mrb[0].mxu0
        %v7103 = vadd.f32 0.0, %v7102
        %v7104 = vpop.f32.mrb[0].mxu0
        %7105 = vdwg.mxu0
        %v7138 = vunpack.c.l.b16 %v6376
        %v7139 = vunpack.c.l.b16 %v6377
        %v7140 = vunpack.c.l.b16 %v6378
        %v7141 = vunpack.c.l.b16 %v6379
        %v7142 = vunpack.c.l.b16 %v6380
        %v7143 = vunpack.c.l.b16 %v6381
        %v7144 = vunpack.c.l.b16 %v6382
        %v7145 = vunpack.c.l.b16 %v6383
        %v7146 = vunpack.c.l.b16 %v6384
        %v7147 = vunpack.c.l.b16 %v6385
        %v7148 = vunpack.c.l.b16 %v6386
        %v7149 = vunpack.c.l.b16 %v6387
        %v7150 = vunpack.c.l.b16 %v6388
        %v7151 = vunpack.c.l.b16 %v6389
        %v7152 = vunpack.c.l.b16 %v6390
        %v7153 = vunpack.c.l.b16 %v6391
        %v7154 = vunpack.c.l.b16 %v6392
        %v7155 = vunpack.c.l.b16 %v6393
        %v7156 = vunpack.c.l.b16 %v6394
        %v7157 = vunpack.c.l.b16 %v6395
        %v7158 = vunpack.c.l.b16 %v6396
        %v7159 = vunpack.c.l.b16 %v6397
        %v7160 = vunpack.c.l.b16 %v6398
        %v7161 = vunpack.c.l.b16 %v6399
        %v7162 = vunpack.c.l.b16 %v6400
        %v7163 = vunpack.c.l.b16 %v6401
        %v7164 = vunpack.c.l.b16 %v6402
        %v7165 = vunpack.c.l.b16 %v6403
        %v7166 = vunpack.c.l.b16 %v6404
        %v7167 = vunpack.c.l.b16 %v6405
        %v7168 = vunpack.c.l.b16 %v6406
        %v7169 = vunpack.c.l.b16 %v6407
        %v7170 = vpack.c.b16 %v7139, %v7138
        %v7171 = vpack.c.b16 %v7141, %v7140
        %v7172 = vpack.c.b16 %v7143, %v7142
        %v7173 = vpack.c.b16 %v7145, %v7144
        %v7174 = vpack.c.b16 %v7147, %v7146
        %v7175 = vpack.c.b16 %v7149, %v7148
        %v7176 = vpack.c.b16 %v7151, %v7150
        %v7177 = vpack.c.b16 %v7153, %v7152
        %v7178 = vpack.c.b16 %v7155, %v7154
        %v7179 = vpack.c.b16 %v7157, %v7156
        %v7180 = vpack.c.b16 %v7159, %v7158
        %v7181 = vpack.c.b16 %v7161, %v7160
        %v7182 = vpack.c.b16 %v7163, %v7162
        %v7183 = vpack.c.b16 %v7165, %v7164
        %v7184 = vpack.c.b16 %v7167, %v7166
        %v7185 = vpack.c.b16 %v7169, %v7168
        %v7194 = vunpack.c.l.b16 %v6408
        %v7195 = vunpack.c.l.b16 %v6409
        %v7196 = vunpack.c.l.b16 %v6410
        %v7197 = vunpack.c.l.b16 %v6411
        %v7198 = vunpack.c.l.b16 %v6412
        %v7199 = vunpack.c.l.b16 %v6413
        %v7200 = vunpack.c.l.b16 %v6414
        %v7201 = vunpack.c.l.b16 %v6415
        %v7202 = vpack.c.b16 %v7195, %v7194
        %v7203 = vpack.c.b16 %v7197, %v7196
        %v7204 = vpack.c.b16 %v7199, %v7198
        %v7205 = vpack.c.b16 %v7201, %v7200
        %v7211 = vsel %vm1373, %v7170, 0
        %v7214 = vsel %vm1373, %v7171, 0
        %v7217 = vsel %vm1373, %v7172, 0
        %v7220 = vsel %vm1373, %v7173, 0
        %v7223 = vsel %vm1373, %v7174, 0
        %v7226 = vsel %vm1373, %v7175, 0
        %v7229 = vsel %vm1373, %v7176, 0
        %v7232 = vsel %vm1373, %v7177, 0
        %v7235 = vsel %vm1373, %v7178, 0
        %v7238 = vsel %vm1373, %v7179, 0
        %v7241 = vsel %vm1373, %v7180, 0
        %v7244 = vsel %vm1373, %v7181, 0
        %v7247 = vsel %vm1373, %v7182, 0
        %v7250 = vsel %vm1373, %v7183, 0
        %v7253 = vsel %vm1373, %v7184, 0
        %v7256 = vsel %vm1373, %v7185, 0
        %7258 = vmatprep.subr.bf16.mxu0 0
        %7259 = vmatpush1.bf16.msra.mxu0 %v7202
        %7260 = vmatprep.subr.bf16.mxu0 0
        %7261 = vmatpush1.bf16.msra.mxu0 %v7203
        %7262 = vmatprep.subr.bf16.mxu0 0
        %7263 = vmatpush1.bf16.msra.mxu0 %v7204
        %7264 = vmatprep.subr.bf16.mxu0 0
        %7265 = vmatpush1.bf16.msra.mxu0 %v7205
        %7266 = vmatprep.subr.bf16.mxu0 0
        %7267 = vmatpush1.bf16.msra.mxu0 0
        %7268 = vmatprep.subr.bf16.mxu0 0
        %7269 = vmatpush1.bf16.msra.mxu0 0
        %7270 = vmatprep.subr.bf16.mxu0 0
        %7271 = vmatpush1.bf16.msra.mxu0 0
        %7272 = vmatprep.subr.bf16.mxu0 0
        %7273 = vmatpush1.bf16.msra.mxu0 0
        %7274 = vmatprep.subr.bf16.mxu0 0
        %7275 = vmatpush1.bf16.msra.mxu0 0
        %7276 = vmatprep.subr.bf16.mxu0 0
        %7277 = vmatpush1.bf16.msra.mxu0 0
        %7278 = vmatprep.subr.bf16.mxu0 0
        %7279 = vmatpush1.bf16.msra.mxu0 0
        %7280 = vmatprep.subr.bf16.mxu0 0
        %7281 = vmatpush1.bf16.msra.mxu0 0
        %7282 = vmatprep.subr.bf16.mxu0 0
        %7283 = vmatpush1.bf16.msra.mxu0 0
        %7284 = vmatprep.subr.bf16.mxu0 0
        %7285 = vmatpush1.bf16.msra.mxu0 0
        %7286 = vmatprep.subr.bf16.mxu0 0
        %7287 = vmatpush1.bf16.msra.mxu0 0
        %7288 = vmatprep.subr.bf16.mxu0 0
        %7289 = vmatpush1.bf16.msra.mxu0 0
        %7290 = vmatprep.mubr.bf16.mxu0 0
        %7291 = vmatmul.mubr.bf16.gmra.mrb[0].mxu0 %v7211
        %v7292 = vpop.f32.mrb[0].mxu0
        %v7293 = vadd.f32 %v6980, %v7292
        %v7294 = vpop.f32.mrb[0].mxu0
        %v7295 = vpop.f32.mrb[0].mxu0
        %v7296 = vadd.f32 %v6983, %v7295
        %v7297 = vpop.f32.mrb[0].mxu0
        %7298 = vmatprep.mubr.bf16.mxu0 0
        %7299 = vmatmul.mubr.bf16.gmra.mrb[0].mxu0 %v7214
        %v7300 = vpop.f32.mrb[0].mxu0
        %v7301 = vadd.f32 %v6988, %v7300
        %v7302 = vpop.f32.mrb[0].mxu0
        %v7303 = vpop.f32.mrb[0].mxu0
        %v7304 = vadd.f32 %v6991, %v7303
        %v7305 = vpop.f32.mrb[0].mxu0
        %7306 = vmatprep.mubr.bf16.mxu0 0
        %7307 = vmatmul.mubr.bf16.gmra.mrb[0].mxu0 %v7217
        %v7308 = vpop.f32.mrb[0].mxu0
        %v7309 = vadd.f32 %v6996, %v7308
        %v7310 = vpop.f32.mrb[0].mxu0
        %v7311 = vpop.f32.mrb[0].mxu0
        %v7312 = vadd.f32 %v6999, %v7311
        %v7313 = vpop.f32.mrb[0].mxu0
        %7314 = vmatprep.mubr.bf16.mxu0 0
        %7315 = vmatmul.mubr.bf16.gmra.mrb[0].mxu0 %v7220
        %v7316 = vpop.f32.mrb[0].mxu0
        %v7317 = vadd.f32 %v7004, %v7316
        %v7318 = vpop.f32.mrb[0].mxu0
        %v7319 = vpop.f32.mrb[0].mxu0
        %v7320 = vadd.f32 %v7007, %v7319
        %v7321 = vpop.f32.mrb[0].mxu0
        %7322 = vmatprep.mubr.bf16.mxu0 0
        %7323 = vmatmul.mubr.bf16.gmra.mrb[0].mxu0 %v7223
        %v7324 = vpop.f32.mrb[0].mxu0
        %v7325 = vadd.f32 %v7012, %v7324
        %v7326 = vpop.f32.mrb[0].mxu0
        %v7327 = vpop.f32.mrb[0].mxu0
        %v7328 = vadd.f32 %v7015, %v7327
        %v7329 = vpop.f32.mrb[0].mxu0
        %7330 = vmatprep.mubr.bf16.mxu0 0
        %7331 = vmatmul.mubr.bf16.gmra.mrb[0].mxu0 %v7226
        %v7332 = vpop.f32.mrb[0].mxu0
        %v7333 = vadd.f32 %v7020, %v7332
        %v7334 = vpop.f32.mrb[0].mxu0
        %v7335 = vpop.f32.mrb[0].mxu0
        %v7336 = vadd.f32 %v7023, %v7335
        %v7337 = vpop.f32.mrb[0].mxu0
        %7338 = vmatprep.mubr.bf16.mxu0 0
        %7339 = vmatmul.mubr.bf16.gmra.mrb[0].mxu0 %v7229
        %v7340 = vpop.f32.mrb[0].mxu0
        %v7341 = vadd.f32 %v7028, %v7340
        %v7342 = vpop.f32.mrb[0].mxu0
        %v7343 = vpop.f32.mrb[0].mxu0
        %v7344 = vadd.f32 %v7031, %v7343
        %v7345 = vpop.f32.mrb[0].mxu0
        %7346 = vmatprep.mubr.bf16.mxu0 0
        %7347 = vmatmul.mubr.bf16.gmra.mrb[0].mxu0 %v7232
        %v7348 = vpop.f32.mrb[0].mxu0
        %v7349 = vadd.f32 %v7036, %v7348
        %v7350 = vpop.f32.mrb[0].mxu0
        %v7351 = vpop.f32.mrb[0].mxu0
        %v7352 = vadd.f32 %v7039, %v7351
        %v7353 = vpop.f32.mrb[0].mxu0
        %7354 = vmatprep.mubr.bf16.mxu0 0
        %7355 = vmatmul.mubr.bf16.gmra.mrb[0].mxu0 %v7235
        %v7356 = vpop.f32.mrb[0].mxu0
        %v7357 = vadd.f32 %v7044, %v7356
        %v7358 = vpop.f32.mrb[0].mxu0
        %v7359 = vpop.f32.mrb[0].mxu0
        %v7360 = vadd.f32 %v7047, %v7359
        %v7361 = vpop.f32.mrb[0].mxu0
        %7362 = vmatprep.mubr.bf16.mxu0 0
        %7363 = vmatmul.mubr.bf16.gmra.mrb[0].mxu0 %v7238
        %v7364 = vpop.f32.mrb[0].mxu0
        %v7365 = vadd.f32 %v7052, %v7364
        %v7366 = vpop.f32.mrb[0].mxu0
        %v7367 = vpop.f32.mrb[0].mxu0
        %v7368 = vadd.f32 %v7055, %v7367
        %v7369 = vpop.f32.mrb[0].mxu0
        %7370 = vmatprep.mubr.bf16.mxu0 0
        %7371 = vmatmul.mubr.bf16.gmra.mrb[0].mxu0 %v7241
        %v7372 = vpop.f32.mrb[0].mxu0
        %v7373 = vadd.f32 %v7060, %v7372
        %v7374 = vpop.f32.mrb[0].mxu0
        %v7375 = vpop.f32.mrb[0].mxu0
        %v7376 = vadd.f32 %v7063, %v7375
        %v7377 = vpop.f32.mrb[0].mxu0
        %7378 = vmatprep.mubr.bf16.mxu0 0
        %7379 = vmatmul.mubr.bf16.gmra.mrb[0].mxu0 %v7244
        %v7380 = vpop.f32.mrb[0].mxu0
        %v7381 = vadd.f32 %v7068, %v7380
        %v7382 = vpop.f32.mrb[0].mxu0
        %v7383 = vpop.f32.mrb[0].mxu0
        %v7384 = vadd.f32 %v7071, %v7383
        %v7385 = vpop.f32.mrb[0].mxu0
        %7386 = vmatprep.mubr.bf16.mxu0 0
        %7387 = vmatmul.mubr.bf16.gmra.mrb[0].mxu0 %v7247
        %v7388 = vpop.f32.mrb[0].mxu0
        %v7389 = vadd.f32 %v7076, %v7388
        %v7390 = vpop.f32.mrb[0].mxu0
        %v7391 = vpop.f32.mrb[0].mxu0
        %v7392 = vadd.f32 %v7079, %v7391
        %v7393 = vpop.f32.mrb[0].mxu0
        %7394 = vmatprep.mubr.bf16.mxu0 0
        %7395 = vmatmul.mubr.bf16.gmra.mrb[0].mxu0 %v7250
        %v7396 = vpop.f32.mrb[0].mxu0
        %v7397 = vadd.f32 %v7084, %v7396
        %v7398 = vpop.f32.mrb[0].mxu0
        %v7399 = vpop.f32.mrb[0].mxu0
        %v7400 = vadd.f32 %v7087, %v7399
        %v7401 = vpop.f32.mrb[0].mxu0
        %7402 = vmatprep.mubr.bf16.mxu0 0
        %7403 = vmatmul.mubr.bf16.gmra.mrb[0].mxu0 %v7253
        %v7404 = vpop.f32.mrb[0].mxu0
        %v7405 = vadd.f32 %v7092, %v7404
        %v7406 = vpop.f32.mrb[0].mxu0
        %v7407 = vpop.f32.mrb[0].mxu0
        %v7408 = vadd.f32 %v7095, %v7407
        %v7409 = vpop.f32.mrb[0].mxu0
        %7410 = vmatprep.mubr.bf16.mxu0 0
        %7411 = vmatmul.mubr.bf16.gmra.mrb[0].mxu0 %v7256
        %v7412 = vpop.f32.mrb[0].mxu0
        %v7413 = vadd.f32 %v7100, %v7412
        %v7414 = vpop.f32.mrb[0].mxu0
        %v7415 = vpop.f32.mrb[0].mxu0
        %v7416 = vadd.f32 %v7103, %v7415
        %v7417 = vpop.f32.mrb[0].mxu0
        %7418 = vdwg.mxu0
        %v7419 = vld [vmem:[#allocation3] sm:$0xe]
        %v7420 = vld [vmem:[#allocation3 + $0xc] sm:$0xe]
        %v7421 = vld [vmem:[#allocation3 + $0x18] sm:$0xe]
        %v7422 = vld [vmem:[#allocation3 + $0x24] sm:$0xe]
        %v7423 = vld [vmem:[#allocation3 + $0x30] sm:$0xe]
        %v7424 = vld [vmem:[#allocation3 + $0x3c] sm:$0xe]
        %v7425 = vld [vmem:[#allocation3 + $0x48] sm:$0xe]
        %v7426 = vld [vmem:[#allocation3 + $0x54] sm:$0xe]
        %v7427 = vld [vmem:[#allocation3 + $0x60] sm:$0xe]
        %v7428 = vld [vmem:[#allocation3 + $0x6c] sm:$0xe]
        %v7429 = vld [vmem:[#allocation3 + $0x78] sm:$0xe]
        %v7430 = vld [vmem:[#allocation3 + $0x84] sm:$0xe]
        %v7431 = vld [vmem:[#allocation3 + $0x90] sm:$0xe]
        %v7432 = vld [vmem:[#allocation3 + $0x9c] sm:$0xe]
        %v7433 = vld [vmem:[#allocation3 + $0xa8] sm:$0xe]
        %v7434 = vld [vmem:[#allocation3 + $0xb4] sm:$0xe]
        %v7467 = vrot.slane %v7419, 5
        %v7468 = vrot.slane %v7467, 4
        %v7469 = vrot.slane %v6377, 5
        %v7470 = vsel %vm1946, %v7468, %v7469
        %v7471 = vrot.slane %v7469, 4
        %v7472 = vrot.slane %v6416, 5
        %v7473 = vsel %vm1946, %v7471, %v7472
        %v7474 = vrot.slane %v7420, 5
        %v7475 = vrot.slane %v7474, 4
        %v7476 = vrot.slane %v6379, 5
        %v7477 = vsel %vm1946, %v7475, %v7476
        %v7478 = vrot.slane %v7476, 4
        %v7479 = vrot.slane %v6417, 5
        %v7480 = vsel %vm1946, %v7478, %v7479
        %v7481 = vrot.slane %v7421, 5
        %v7482 = vrot.slane %v7481, 4
        %v7483 = vrot.slane %v6381, 5
        %v7484 = vsel %vm1946, %v7482, %v7483
        %v7485 = vrot.slane %v7483, 4
        %v7486 = vrot.slane %v6418, 5
        %v7487 = vsel %vm1946, %v7485, %v7486
        %v7488 = vrot.slane %v7422, 5
        %v7489 = vrot.slane %v7488, 4
        %v7490 = vrot.slane %v6383, 5
        %v7491 = vsel %vm1946, %v7489, %v7490
        %v7492 = vrot.slane %v7490, 4
        %v7493 = vrot.slane %v6419, 5
        %v7494 = vsel %vm1946, %v7492, %v7493
        %v7495 = vrot.slane %v7423, 5
        %v7496 = vrot.slane %v7495, 4
        %v7497 = vrot.slane %v6385, 5
        %v7498 = vsel %vm1946, %v7496, %v7497
        %v7499 = vrot.slane %v7497, 4
        %v7500 = vrot.slane %v6420, 5
        %v7501 = vsel %vm1946, %v7499, %v7500
        %v7502 = vrot.slane %v7424, 5
        %v7503 = vrot.slane %v7502, 4
        %v7504 = vrot.slane %v6387, 5
        %v7505 = vsel %vm1946, %v7503, %v7504
        %v7506 = vrot.slane %v7504, 4
        %v7507 = vrot.slane %v6421, 5
        %v7508 = vsel %vm1946, %v7506, %v7507
        %v7509 = vrot.slane %v7425, 5
        %v7510 = vrot.slane %v7509, 4
        %v7511 = vrot.slane %v6389, 5
        %v7512 = vsel %vm1946, %v7510, %v7511
        %v7513 = vrot.slane %v7511, 4
        %v7514 = vrot.slane %v6422, 5
        %v7515 = vsel %vm1946, %v7513, %v7514
        %v7516 = vrot.slane %v7426, 5
        %v7517 = vrot.slane %v7516, 4
        %v7518 = vrot.slane %v6391, 5
        %v7519 = vsel %vm1946, %v7517, %v7518
        %v7520 = vrot.slane %v7518, 4
        %v7521 = vrot.slane %v6423, 5
        %v7522 = vsel %vm1946, %v7520, %v7521
        %v7523 = vrot.slane %v7427, 5
        %v7524 = vrot.slane %v7523, 4
        %v7525 = vrot.slane %v6393, 5
        %v7526 = vsel %vm1946, %v7524, %v7525
        %v7527 = vrot.slane %v7525, 4
        %v7528 = vrot.slane %v6424, 5
        %v7529 = vsel %vm1946, %v7527, %v7528
        %v7530 = vrot.slane %v7428, 5
        %v7531 = vrot.slane %v7530, 4
        %v7532 = vrot.slane %v6395, 5
        %v7533 = vsel %vm1946, %v7531, %v7532
        %v7534 = vrot.slane %v7532, 4
        %v7535 = vrot.slane %v6425, 5
        %v7536 = vsel %vm1946, %v7534, %v7535
        %v7537 = vrot.slane %v7429, 5
        %v7538 = vrot.slane %v7537, 4
        %v7539 = vrot.slane %v6397, 5
        %v7540 = vsel %vm1946, %v7538, %v7539
        %v7541 = vrot.slane %v7539, 4
        %v7542 = vrot.slane %v6426, 5
        %v7543 = vsel %vm1946, %v7541, %v7542
        %v7544 = vrot.slane %v7430, 5
        %v7545 = vrot.slane %v7544, 4
        %v7546 = vrot.slane %v6399, 5
        %v7547 = vsel %vm1946, %v7545, %v7546
        %v7548 = vrot.slane %v7546, 4
        %v7549 = vrot.slane %v6427, 5
        %v7550 = vsel %vm1946, %v7548, %v7549
        %v7551 = vrot.slane %v7431, 5
        %v7552 = vrot.slane %v7551, 4
        %v7553 = vrot.slane %v6401, 5
        %v7554 = vsel %vm1946, %v7552, %v7553
        %v7555 = vrot.slane %v7553, 4
        %v7556 = vrot.slane %v6428, 5
        %v7557 = vsel %vm1946, %v7555, %v7556
        %v7558 = vrot.slane %v7432, 5
        %v7559 = vrot.slane %v7558, 4
        %v7560 = vrot.slane %v6403, 5
        %v7561 = vsel %vm1946, %v7559, %v7560
        %v7562 = vrot.slane %v7560, 4
        %v7563 = vrot.slane %v6429, 5
        %v7564 = vsel %vm1946, %v7562, %v7563
        %v7565 = vrot.slane %v7433, 5
        %v7566 = vrot.slane %v7565, 4
        %v7567 = vrot.slane %v6405, 5
        %v7568 = vsel %vm1946, %v7566, %v7567
        %v7569 = vrot.slane %v7567, 4
        %v7570 = vrot.slane %v6430, 5
        %v7571 = vsel %vm1946, %v7569, %v7570
        %v7572 = vrot.slane %v7434, 5
        %v7573 = vrot.slane %v7572, 4
        %v7574 = vrot.slane %v6407, 5
        %v7575 = vsel %vm1946, %v7573, %v7574
        %v7576 = vrot.slane %v7574, 4
        %v7577 = vrot.slane %v6431, 5
        %v7578 = vsel %vm1946, %v7576, %v7577
        %s7579 = scalar_lea.vmem %s3, 64
        %v7580 = vld [vmem:[%s7579] sm:$0xf]
        %v7581 = vld [vmem:[%s7579 + $0x4] sm:$0xf]
        %v7582 = vld [vmem:[%s7579 + $0x8] sm:$0xf]
        %v7583 = vld [vmem:[%s7579 + $0xc] sm:$0xf]
        %v7584 = vld [vmem:[%s7579 + $0x10] sm:$0xf]
        %v7585 = vld [vmem:[%s7579 + $0x14] sm:$0xf]
        %v7586 = vld [vmem:[%s7579 + $0x18] sm:$0xf]
        %v7587 = vld [vmem:[%s7579 + $0x1c] sm:$0xf]
        %v7588 = vunpack.c.l.b16 %v7470
        %v7589 = vunpack.c.l.b16 %v7473
        %v7590 = vunpack.c.l.b16 %v7477
        %v7591 = vunpack.c.l.b16 %v7480
        %v7592 = vunpack.c.l.b16 %v7484
        %v7593 = vunpack.c.l.b16 %v7487
        %v7594 = vunpack.c.l.b16 %v7491
        %v7595 = vunpack.c.l.b16 %v7494
        %v7596 = vunpack.c.l.b16 %v7498
        %v7597 = vunpack.c.l.b16 %v7501
        %v7598 = vunpack.c.l.b16 %v7505
        %v7599 = vunpack.c.l.b16 %v7508
        %v7600 = vunpack.c.l.b16 %v7512
        %v7601 = vunpack.c.l.b16 %v7515
        %v7602 = vunpack.c.l.b16 %v7519
        %v7603 = vunpack.c.l.b16 %v7522
        %v7604 = vunpack.c.l.b16 %v7526
        %v7605 = vunpack.c.l.b16 %v7529
        %v7606 = vunpack.c.l.b16 %v7533
        %v7607 = vunpack.c.l.b16 %v7536
        %v7608 = vunpack.c.l.b16 %v7540
        %v7609 = vunpack.c.l.b16 %v7543
        %v7610 = vunpack.c.l.b16 %v7547
        %v7611 = vunpack.c.l.b16 %v7550
        %v7612 = vunpack.c.l.b16 %v7554
        %v7613 = vunpack.c.l.b16 %v7557
        %v7614 = vunpack.c.l.b16 %v7561
        %v7615 = vunpack.c.l.b16 %v7564
        %v7616 = vunpack.c.l.b16 %v7568
        %v7617 = vunpack.c.l.b16 %v7571
        %v7618 = vunpack.c.l.b16 %v7575
        %v7619 = vunpack.c.l.b16 %v7578
        %v7620 = vpack.c.b16 %v7589, %v7588
        %v7621 = vpack.c.b16 %v7591, %v7590
        %v7622 = vpack.c.b16 %v7593, %v7592
        %v7623 = vpack.c.b16 %v7595, %v7594
        %v7624 = vpack.c.b16 %v7597, %v7596
        %v7625 = vpack.c.b16 %v7599, %v7598
        %v7626 = vpack.c.b16 %v7601, %v7600
        %v7627 = vpack.c.b16 %v7603, %v7602
        %v7628 = vpack.c.b16 %v7605, %v7604
        %v7629 = vpack.c.b16 %v7607, %v7606
        %v7630 = vpack.c.b16 %v7609, %v7608
        %v7631 = vpack.c.b16 %v7611, %v7610
        %v7632 = vpack.c.b16 %v7613, %v7612
        %v7633 = vpack.c.b16 %v7615, %v7614
        %v7634 = vpack.c.b16 %v7617, %v7616
        %v7635 = vpack.c.b16 %v7619, %v7618
        %v7644 = vunpack.c.l.b16 %v7580
        %v7645 = vunpack.c.l.b16 %v7581
        %v7646 = vunpack.c.l.b16 %v7582
        %v7647 = vunpack.c.l.b16 %v7583
        %v7648 = vunpack.c.l.b16 %v7584
        %v7649 = vunpack.c.l.b16 %v7585
        %v7650 = vunpack.c.l.b16 %v7586
        %v7651 = vunpack.c.l.b16 %v7587
        %v7652 = vpack.c.b16 %v7645, %v7644
        %v7653 = vpack.c.b16 %v7647, %v7646
        %v7654 = vpack.c.b16 %v7649, %v7648
        %v7655 = vpack.c.b16 %v7651, %v7650
        %v7661 = vsel %vm1373, %v7620, 0
        %v7664 = vsel %vm1373, %v7621, 0
        %v7667 = vsel %vm1373, %v7622, 0
        %v7670 = vsel %vm1373, %v7623, 0
        %v7673 = vsel %vm1373, %v7624, 0
        %v7676 = vsel %vm1373, %v7625, 0
        %v7679 = vsel %vm1373, %v7626, 0
        %v7682 = vsel %vm1373, %v7627, 0
        %v7685 = vsel %vm1373, %v7628, 0
        %v7688 = vsel %vm1373, %v7629, 0
        %v7691 = vsel %vm1373, %v7630, 0
        %v7694 = vsel %vm1373, %v7631, 0
        %v7697 = vsel %vm1373, %v7632, 0
        %v7700 = vsel %vm1373, %v7633, 0
        %v7703 = vsel %vm1373, %v7634, 0
        %v7706 = vsel %vm1373, %v7635, 0
        %7708 = vmatprep.subr.bf16.mxu0 0
        %7709 = vmatpush1.bf16.msra.mxu0 %v7652
        %7710 = vmatprep.subr.bf16.mxu0 0
        %7711 = vmatpush1.bf16.msra.mxu0 %v7653
        %7712 = vmatprep.subr.bf16.mxu0 0
        %7713 = vmatpush1.bf16.msra.mxu0 %v7654
        %7714 = vmatprep.subr.bf16.mxu0 0
        %7715 = vmatpush1.bf16.msra.mxu0 %v7655
        %7716 = vmatprep.subr.bf16.mxu0 0
        %7717 = vmatpush1.bf16.msra.mxu0 0
        %7718 = vmatprep.subr.bf16.mxu0 0
        %7719 = vmatpush1.bf16.msra.mxu0 0
        %7720 = vmatprep.subr.bf16.mxu0 0
        %7721 = vmatpush1.bf16.msra.mxu0 0
        %7722 = vmatprep.subr.bf16.mxu0 0
        %7723 = vmatpush1.bf16.msra.mxu0 0
        %7724 = vmatprep.subr.bf16.mxu0 0
        %7725 = vmatpush1.bf16.msra.mxu0 0
        %7726 = vmatprep.subr.bf16.mxu0 0
        %7727 = vmatpush1.bf16.msra.mxu0 0
        %7728 = vmatprep.subr.bf16.mxu0 0
        %7729 = vmatpush1.bf16.msra.mxu0 0
        %7730 = vmatprep.subr.bf16.mxu0 0
        %7731 = vmatpush1.bf16.msra.mxu0 0
        %7732 = vmatprep.subr.bf16.mxu0 0
        %7733 = vmatpush1.bf16.msra.mxu0 0
        %7734 = vmatprep.subr.bf16.mxu0 0
        %7735 = vmatpush1.bf16.msra.mxu0 0
        %7736 = vmatprep.subr.bf16.mxu0 0
        %7737 = vmatpush1.bf16.msra.mxu0 0
        %7738 = vmatprep.subr.bf16.mxu0 0
        %7739 = vmatpush1.bf16.msra.mxu0 0
        %7740 = vmatprep.mubr.bf16.mxu0 0
        %7741 = vmatmul.mubr.bf16.gmra.mrb[0].mxu0 %v7661
        %v7742 = vpop.f32.mrb[0].mxu0
        %v7743 = vadd.f32 0.0, %v7742
        %v7744 = vpop.f32.mrb[0].mxu0
        %v7745 = vpop.f32.mrb[0].mxu0
        %v7746 = vadd.f32 0.0, %v7745
        %v7747 = vpop.f32.mrb[0].mxu0
        %7748 = vmatprep.mubr.bf16.mxu0 0
        %7749 = vmatmul.mubr.bf16.gmra.mrb[0].mxu0 %v7664
        %v7750 = vpop.f32.mrb[0].mxu0
        %v7751 = vadd.f32 0.0, %v7750
        %v7752 = vpop.f32.mrb[0].mxu0
        %v7753 = vpop.f32.mrb[0].mxu0
        %v7754 = vadd.f32 0.0, %v7753
        %v7755 = vpop.f32.mrb[0].mxu0
        %7756 = vmatprep.mubr.bf16.mxu0 0
        %7757 = vmatmul.mubr.bf16.gmra.mrb[0].mxu0 %v7667
        %v7758 = vpop.f32.mrb[0].mxu0
        %v7759 = vadd.f32 0.0, %v7758
        %v7760 = vpop.f32.mrb[0].mxu0
        %v7761 = vpop.f32.mrb[0].mxu0
        %v7762 = vadd.f32 0.0, %v7761
        %v7763 = vpop.f32.mrb[0].mxu0
        %7764 = vmatprep.mubr.bf16.mxu0 0
        %7765 = vmatmul.mubr.bf16.gmra.mrb[0].mxu0 %v7670
        %v7766 = vpop.f32.mrb[0].mxu0
        %v7767 = vadd.f32 0.0, %v7766
        %v7768 = vpop.f32.mrb[0].mxu0
        %v7769 = vpop.f32.mrb[0].mxu0
        %v7770 = vadd.f32 0.0, %v7769
        %v7771 = vpop.f32.mrb[0].mxu0
        %7772 = vmatprep.mubr.bf16.mxu0 0
        %7773 = vmatmul.mubr.bf16.gmra.mrb[0].mxu0 %v7673
        %v7774 = vpop.f32.mrb[0].mxu0
        %v7775 = vadd.f32 0.0, %v7774
        %v7776 = vpop.f32.mrb[0].mxu0
        %v7777 = vpop.f32.mrb[0].mxu0
        %v7778 = vadd.f32 0.0, %v7777
        %v7779 = vpop.f32.mrb[0].mxu0
        %7780 = vmatprep.mubr.bf16.mxu0 0
        %7781 = vmatmul.mubr.bf16.gmra.mrb[0].mxu0 %v7676
        %v7782 = vpop.f32.mrb[0].mxu0
        %v7783 = vadd.f32 0.0, %v7782
        %v7784 = vpop.f32.mrb[0].mxu0
        %v7785 = vpop.f32.mrb[0].mxu0
        %v7786 = vadd.f32 0.0, %v7785
        %v7787 = vpop.f32.mrb[0].mxu0
        %7788 = vmatprep.mubr.bf16.mxu0 0
        %7789 = vmatmul.mubr.bf16.gmra.mrb[0].mxu0 %v7679
        %v7790 = vpop.f32.mrb[0].mxu0
        %v7791 = vadd.f32 0.0, %v7790
        %v7792 = vpop.f32.mrb[0].mxu0
        %v7793 = vpop.f32.mrb[0].mxu0
        %v7794 = vadd.f32 0.0, %v7793
        %v7795 = vpop.f32.mrb[0].mxu0
        %7796 = vmatprep.mubr.bf16.mxu0 0
        %7797 = vmatmul.mubr.bf16.gmra.mrb[0].mxu0 %v7682
        %v7798 = vpop.f32.mrb[0].mxu0
        %v7799 = vadd.f32 0.0, %v7798
        %v7800 = vpop.f32.mrb[0].mxu0
        %v7801 = vpop.f32.mrb[0].mxu0
        %v7802 = vadd.f32 0.0, %v7801
        %v7803 = vpop.f32.mrb[0].mxu0
        %7804 = vmatprep.mubr.bf16.mxu0 0
        %7805 = vmatmul.mubr.bf16.gmra.mrb[0].mxu0 %v7685
        %v7806 = vpop.f32.mrb[0].mxu0
        %v7807 = vadd.f32 0.0, %v7806
        %v7808 = vpop.f32.mrb[0].mxu0
        %v7809 = vpop.f32.mrb[0].mxu0
        %v7810 = vadd.f32 0.0, %v7809
        %v7811 = vpop.f32.mrb[0].mxu0
        %7812 = vmatprep.mubr.bf16.mxu0 0
        %7813 = vmatmul.mubr.bf16.gmra.mrb[0].mxu0 %v7688
        %v7814 = vpop.f32.mrb[0].mxu0
        %v7815 = vadd.f32 0.0, %v7814
        %v7816 = vpop.f32.mrb[0].mxu0
        %v7817 = vpop.f32.mrb[0].mxu0
        %v7818 = vadd.f32 0.0, %v7817
        %v7819 = vpop.f32.mrb[0].mxu0
        %7820 = vmatprep.mubr.bf16.mxu0 0
        %7821 = vmatmul.mubr.bf16.gmra.mrb[0].mxu0 %v7691
        %v7822 = vpop.f32.mrb[0].mxu0
        %v7823 = vadd.f32 0.0, %v7822
        %v7824 = vpop.f32.mrb[0].mxu0
        %v7825 = vpop.f32.mrb[0].mxu0
        %v7826 = vadd.f32 0.0, %v7825
        %v7827 = vpop.f32.mrb[0].mxu0
        %7828 = vmatprep.mubr.bf16.mxu0 0
        %7829 = vmatmul.mubr.bf16.gmra.mrb[0].mxu0 %v7694
        %v7830 = vpop.f32.mrb[0].mxu0
        %v7831 = vadd.f32 0.0, %v7830
        %v7832 = vpop.f32.mrb[0].mxu0
        %v7833 = vpop.f32.mrb[0].mxu0
        %v7834 = vadd.f32 0.0, %v7833
        %v7835 = vpop.f32.mrb[0].mxu0
        %7836 = vmatprep.mubr.bf16.mxu0 0
        %7837 = vmatmul.mubr.bf16.gmra.mrb[0].mxu0 %v7697
        %v7838 = vpop.f32.mrb[0].mxu0
        %v7839 = vadd.f32 0.0, %v7838
        %v7840 = vpop.f32.mrb[0].mxu0
        %v7841 = vpop.f32.mrb[0].mxu0
        %v7842 = vadd.f32 0.0, %v7841
        %v7843 = vpop.f32.mrb[0].mxu0
        %7844 = vmatprep.mubr.bf16.mxu0 0
        %7845 = vmatmul.mubr.bf16.gmra.mrb[0].mxu0 %v7700
        %v7846 = vpop.f32.mrb[0].mxu0
        %v7847 = vadd.f32 0.0, %v7846
        %v7848 = vpop.f32.mrb[0].mxu0
        %v7849 = vpop.f32.mrb[0].mxu0
        %v7850 = vadd.f32 0.0, %v7849
        %v7851 = vpop.f32.mrb[0].mxu0
        %7852 = vmatprep.mubr.bf16.mxu0 0
        %7853 = vmatmul.mubr.bf16.gmra.mrb[0].mxu0 %v7703
        %v7854 = vpop.f32.mrb[0].mxu0
        %v7855 = vadd.f32 0.0, %v7854
        %v7856 = vpop.f32.mrb[0].mxu0
        %v7857 = vpop.f32.mrb[0].mxu0
        %v7858 = vadd.f32 0.0, %v7857
        %v7859 = vpop.f32.mrb[0].mxu0
        %7860 = vmatprep.mubr.bf16.mxu0 0
        %7861 = vmatmul.mubr.bf16.gmra.mrb[0].mxu0 %v7706
        %v7862 = vpop.f32.mrb[0].mxu0
        %v7863 = vadd.f32 0.0, %v7862
        %v7864 = vpop.f32.mrb[0].mxu0
        %v7865 = vpop.f32.mrb[0].mxu0
        %v7866 = vadd.f32 0.0, %v7865
        %v7867 = vpop.f32.mrb[0].mxu0
        %7868 = vdwg.mxu0
        %v7869 = vadd.f32 %v7293, %v7743
        %v7870 = vadd.f32 %v7296, %v7746
        %v7871 = vadd.f32 %v7301, %v7751
        %v7872 = vadd.f32 %v7304, %v7754
        %v7873 = vadd.f32 %v7309, %v7759
        %v7874 = vadd.f32 %v7312, %v7762
        %v7875 = vadd.f32 %v7317, %v7767
        %v7876 = vadd.f32 %v7320, %v7770
        %v7877 = vadd.f32 %v7325, %v7775
        %v7878 = vadd.f32 %v7328, %v7778
        %v7879 = vadd.f32 %v7333, %v7783
        %v7880 = vadd.f32 %v7336, %v7786
        %v7881 = vadd.f32 %v7341, %v7791
        %v7882 = vadd.f32 %v7344, %v7794
        %v7883 = vadd.f32 %v7349, %v7799
        %v7884 = vadd.f32 %v7352, %v7802
        %v7885 = vadd.f32 %v7357, %v7807
        %v7886 = vadd.f32 %v7360, %v7810
        %v7887 = vadd.f32 %v7365, %v7815
        %v7888 = vadd.f32 %v7368, %v7818
        %v7889 = vadd.f32 %v7373, %v7823
        %v7890 = vadd.f32 %v7376, %v7826
        %v7891 = vadd.f32 %v7381, %v7831
        %v7892 = vadd.f32 %v7384, %v7834
        %v7893 = vadd.f32 %v7389, %v7839
        %v7894 = vadd.f32 %v7392, %v7842
        %v7895 = vadd.f32 %v7397, %v7847
        %v7896 = vadd.f32 %v7400, %v7850
        %v7897 = vadd.f32 %v7405, %v7855
        %v7898 = vadd.f32 %v7408, %v7858
        %v7899 = vadd.f32 %v7413, %v7863
        %v7900 = vadd.f32 %v7416, %v7866
        %v7901 = vld [vmem:[%s6263] sm:$0xf]
        %v7902 = vld [vmem:[%s6263 + $0x4] sm:$0xf]
        %v7903 = vld [vmem:[%s6263 + $0xc] sm:$0xf]
        %v7904 = vld [vmem:[%s6263 + $0x10] sm:$0xf]
        %v7905 = vld [vmem:[%s6263 + $0x18] sm:$0xf]
        %v7906 = vld [vmem:[%s6263 + $0x1c] sm:$0xf]
        %v7907 = vld [vmem:[%s6263 + $0x24] sm:$0xf]
        %v7908 = vld [vmem:[%s6263 + $0x28] sm:$0xf]
        %v7909 = vld [vmem:[%s6263 + $0x30] sm:$0xf]
        %v7910 = vld [vmem:[%s6263 + $0x34] sm:$0xf]
        %v7911 = vld [vmem:[%s6263 + $0x3c] sm:$0xf]
        %v7912 = vld [vmem:[%s6263 + $0x40] sm:$0xf]
        %v7913 = vld [vmem:[%s6263 + $0x48] sm:$0xf]
        %v7914 = vld [vmem:[%s6263 + $0x4c] sm:$0xf]
        %v7915 = vld [vmem:[%s6263 + $0x54] sm:$0xf]
        %v7916 = vld [vmem:[%s6263 + $0x58] sm:$0xf]
        %v7917 = vld [vmem:[%s6263 + $0x60] sm:$0xf]
        %v7918 = vld [vmem:[%s6263 + $0x64] sm:$0xf]
        %v7919 = vld [vmem:[%s6263 + $0x6c] sm:$0xf]
        %v7920 = vld [vmem:[%s6263 + $0x70] sm:$0xf]
        %v7921 = vld [vmem:[%s6263 + $0x78] sm:$0xf]
        %v7922 = vld [vmem:[%s6263 + $0x7c] sm:$0xf]
        %v7923 = vld [vmem:[%s6263 + $0x84] sm:$0xf]
        %v7924 = vld [vmem:[%s6263 + $0x88] sm:$0xf]
        %v7925 = vld [vmem:[%s6263 + $0x90] sm:$0xf]
        %v7926 = vld [vmem:[%s6263 + $0x94] sm:$0xf]
        %v7927 = vld [vmem:[%s6263 + $0x9c] sm:$0xf]
        %v7928 = vld [vmem:[%s6263 + $0xa0] sm:$0xf]
        %v7929 = vld [vmem:[%s6263 + $0xa8] sm:$0xf]
        %v7930 = vld [vmem:[%s6263 + $0xac] sm:$0xf]
        %v7931 = vld [vmem:[%s6263 + $0xb4] sm:$0xf]
        %v7932 = vld [vmem:[%s6263 + $0xb8] sm:$0xf]
        %s7933 = scalar_lea.vmem %s3, 96
        %v7934 = vld [vmem:[%s7933] sm:$0xf]
        %v7935 = vld [vmem:[%s7933 + $0x4] sm:$0xf]
        %v7936 = vld [vmem:[%s7933 + $0x8] sm:$0xf]
        %v7937 = vld [vmem:[%s7933 + $0xc] sm:$0xf]
        %v7938 = vld [vmem:[%s7933 + $0x10] sm:$0xf]
        %v7939 = vld [vmem:[%s7933 + $0x14] sm:$0xf]
        %v7940 = vld [vmem:[%s7933 + $0x18] sm:$0xf]
        %v7941 = vld [vmem:[%s7933 + $0x1c] sm:$0xf]
        %v7974 = vunpack.c.l.b16 %v7901
        %v7975 = vunpack.c.l.b16 %v7902
        %v7976 = vunpack.c.l.b16 %v7903
        %v7977 = vunpack.c.l.b16 %v7904
        %v7978 = vunpack.c.l.b16 %v7905
        %v7979 = vunpack.c.l.b16 %v7906
        %v7980 = vunpack.c.l.b16 %v7907
        %v7981 = vunpack.c.l.b16 %v7908
        %v7982 = vunpack.c.l.b16 %v7909
        %v7983 = vunpack.c.l.b16 %v7910
        %v7984 = vunpack.c.l.b16 %v7911
        %v7985 = vunpack.c.l.b16 %v7912
        %v7986 = vunpack.c.l.b16 %v7913
        %v7987 = vunpack.c.l.b16 %v7914
        %v7988 = vunpack.c.l.b16 %v7915
        %v7989 = vunpack.c.l.b16 %v7916
        %v7990 = vunpack.c.l.b16 %v7917
        %v7991 = vunpack.c.l.b16 %v7918
        %v7992 = vunpack.c.l.b16 %v7919
        %v7993 = vunpack.c.l.b16 %v7920
        %v7994 = vunpack.c.l.b16 %v7921
        %v7995 = vunpack.c.l.b16 %v7922
        %v7996 = vunpack.c.l.b16 %v7923
        %v7997 = vunpack.c.l.b16 %v7924
        %v7998 = vunpack.c.l.b16 %v7925
        %v7999 = vunpack.c.l.b16 %v7926
        %v8000 = vunpack.c.l.b16 %v7927
        %v8001 = vunpack.c.l.b16 %v7928
        %v8002 = vunpack.c.l.b16 %v7929
        %v8003 = vunpack.c.l.b16 %v7930
        %v8004 = vunpack.c.l.b16 %v7931
        %v8005 = vunpack.c.l.b16 %v7932
        %v8006 = vpack.c.b16 %v7975, %v7974
        %v8007 = vpack.c.b16 %v7977, %v7976
        %v8008 = vpack.c.b16 %v7979, %v7978
        %v8009 = vpack.c.b16 %v7981, %v7980
        %v8010 = vpack.c.b16 %v7983, %v7982
        %v8011 = vpack.c.b16 %v7985, %v7984
        %v8012 = vpack.c.b16 %v7987, %v7986
        %v8013 = vpack.c.b16 %v7989, %v7988
        %v8014 = vpack.c.b16 %v7991, %v7990
        %v8015 = vpack.c.b16 %v7993, %v7992
        %v8016 = vpack.c.b16 %v7995, %v7994
        %v8017 = vpack.c.b16 %v7997, %v7996
        %v8018 = vpack.c.b16 %v7999, %v7998
        %v8019 = vpack.c.b16 %v8001, %v8000
        %v8020 = vpack.c.b16 %v8003, %v8002
        %v8021 = vpack.c.b16 %v8005, %v8004
        %v8030 = vunpack.c.l.b16 %v7934
        %v8031 = vunpack.c.l.b16 %v7935
        %v8032 = vunpack.c.l.b16 %v7936
        %v8033 = vunpack.c.l.b16 %v7937
        %v8034 = vunpack.c.l.b16 %v7938
        %v8035 = vunpack.c.l.b16 %v7939
        %v8036 = vunpack.c.l.b16 %v7940
        %v8037 = vunpack.c.l.b16 %v7941
        %v8038 = vpack.c.b16 %v8031, %v8030
        %v8039 = vpack.c.b16 %v8033, %v8032
        %v8040 = vpack.c.b16 %v8035, %v8034
        %v8041 = vpack.c.b16 %v8037, %v8036
        %v8047 = vsel %vm1373, %v8006, 0
        %v8050 = vsel %vm1373, %v8007, 0
        %v8053 = vsel %vm1373, %v8008, 0
        %v8056 = vsel %vm1373, %v8009, 0
        %v8059 = vsel %vm1373, %v8010, 0
        %v8062 = vsel %vm1373, %v8011, 0
        %v8065 = vsel %vm1373, %v8012, 0
        %v8068 = vsel %vm1373, %v8013, 0
        %v8071 = vsel %vm1373, %v8014, 0
        %v8074 = vsel %vm1373, %v8015, 0
        %v8077 = vsel %vm1373, %v8016, 0
        %v8080 = vsel %vm1373, %v8017, 0
        %v8083 = vsel %vm1373, %v8018, 0
        %v8086 = vsel %vm1373, %v8019, 0
        %v8089 = vsel %vm1373, %v8020, 0
        %v8092 = vsel %vm1373, %v8021, 0
        %8094 = vmatprep.subr.bf16.mxu0 0
        %8095 = vmatpush1.bf16.msra.mxu0 %v8038
        %8096 = vmatprep.subr.bf16.mxu0 0
        %8097 = vmatpush1.bf16.msra.mxu0 %v8039
        %8098 = vmatprep.subr.bf16.mxu0 0
        %8099 = vmatpush1.bf16.msra.mxu0 %v8040
        %8100 = vmatprep.subr.bf16.mxu0 0
        %8101 = vmatpush1.bf16.msra.mxu0 %v8041
        %8102 = vmatprep.subr.bf16.mxu0 0
        %8103 = vmatpush1.bf16.msra.mxu0 0
        %8104 = vmatprep.subr.bf16.mxu0 0
        %8105 = vmatpush1.bf16.msra.mxu0 0
        %8106 = vmatprep.subr.bf16.mxu0 0
        %8107 = vmatpush1.bf16.msra.mxu0 0
        %8108 = vmatprep.subr.bf16.mxu0 0
        %8109 = vmatpush1.bf16.msra.mxu0 0
        %8110 = vmatprep.subr.bf16.mxu0 0
        %8111 = vmatpush1.bf16.msra.mxu0 0
        %8112 = vmatprep.subr.bf16.mxu0 0
        %8113 = vmatpush1.bf16.msra.mxu0 0
        %8114 = vmatprep.subr.bf16.mxu0 0
        %8115 = vmatpush1.bf16.msra.mxu0 0
        %8116 = vmatprep.subr.bf16.mxu0 0
        %8117 = vmatpush1.bf16.msra.mxu0 0
        %8118 = vmatprep.subr.bf16.mxu0 0
        %8119 = vmatpush1.bf16.msra.mxu0 0
        %8120 = vmatprep.subr.bf16.mxu0 0
        %8121 = vmatpush1.bf16.msra.mxu0 0
        %8122 = vmatprep.subr.bf16.mxu0 0
        %8123 = vmatpush1.bf16.msra.mxu0 0
        %8124 = vmatprep.subr.bf16.mxu0 0
        %8125 = vmatpush1.bf16.msra.mxu0 0
        %8126 = vmatprep.mubr.bf16.mxu0 0
        %8127 = vmatmul.mubr.bf16.gmra.mrb[0].mxu0 %v8047
        %v8128 = vpop.f32.mrb[0].mxu0
        %v8129 = vadd.f32 0.0, %v8128
        %v8130 = vpop.f32.mrb[0].mxu0
        %v8131 = vpop.f32.mrb[0].mxu0
        %v8132 = vadd.f32 0.0, %v8131
        %v8133 = vpop.f32.mrb[0].mxu0
        %8134 = vmatprep.mubr.bf16.mxu0 0
        %8135 = vmatmul.mubr.bf16.gmra.mrb[0].mxu0 %v8050
        %v8136 = vpop.f32.mrb[0].mxu0
        %v8137 = vadd.f32 0.0, %v8136
        %v8138 = vpop.f32.mrb[0].mxu0
        %v8139 = vpop.f32.mrb[0].mxu0
        %v8140 = vadd.f32 0.0, %v8139
        %v8141 = vpop.f32.mrb[0].mxu0
        %8142 = vmatprep.mubr.bf16.mxu0 0
        %8143 = vmatmul.mubr.bf16.gmra.mrb[0].mxu0 %v8053
        %v8144 = vpop.f32.mrb[0].mxu0
        %v8145 = vadd.f32 0.0, %v8144
        %v8146 = vpop.f32.mrb[0].mxu0
        %v8147 = vpop.f32.mrb[0].mxu0
        %v8148 = vadd.f32 0.0, %v8147
        %v8149 = vpop.f32.mrb[0].mxu0
        %8150 = vmatprep.mubr.bf16.mxu0 0
        %8151 = vmatmul.mubr.bf16.gmra.mrb[0].mxu0 %v8056
        %v8152 = vpop.f32.mrb[0].mxu0
        %v8153 = vadd.f32 0.0, %v8152
        %v8154 = vpop.f32.mrb[0].mxu0
        %v8155 = vpop.f32.mrb[0].mxu0
        %v8156 = vadd.f32 0.0, %v8155
        %v8157 = vpop.f32.mrb[0].mxu0
        %8158 = vmatprep.mubr.bf16.mxu0 0
        %8159 = vmatmul.mubr.bf16.gmra.mrb[0].mxu0 %v8059
        %v8160 = vpop.f32.mrb[0].mxu0
        %v8161 = vadd.f32 0.0, %v8160
        %v8162 = vpop.f32.mrb[0].mxu0
        %v8163 = vpop.f32.mrb[0].mxu0
        %v8164 = vadd.f32 0.0, %v8163
        %v8165 = vpop.f32.mrb[0].mxu0
        %8166 = vmatprep.mubr.bf16.mxu0 0
        %8167 = vmatmul.mubr.bf16.gmra.mrb[0].mxu0 %v8062
        %v8168 = vpop.f32.mrb[0].mxu0
        %v8169 = vadd.f32 0.0, %v8168
        %v8170 = vpop.f32.mrb[0].mxu0
        %v8171 = vpop.f32.mrb[0].mxu0
        %v8172 = vadd.f32 0.0, %v8171
        %v8173 = vpop.f32.mrb[0].mxu0
        %8174 = vmatprep.mubr.bf16.mxu0 0
        %8175 = vmatmul.mubr.bf16.gmra.mrb[0].mxu0 %v8065
        %v8176 = vpop.f32.mrb[0].mxu0
        %v8177 = vadd.f32 0.0, %v8176
        %v8178 = vpop.f32.mrb[0].mxu0
        %v8179 = vpop.f32.mrb[0].mxu0
        %v8180 = vadd.f32 0.0, %v8179
        %v8181 = vpop.f32.mrb[0].mxu0
        %8182 = vmatprep.mubr.bf16.mxu0 0
        %8183 = vmatmul.mubr.bf16.gmra.mrb[0].mxu0 %v8068
        %v8184 = vpop.f32.mrb[0].mxu0
        %v8185 = vadd.f32 0.0, %v8184
        %v8186 = vpop.f32.mrb[0].mxu0
        %v8187 = vpop.f32.mrb[0].mxu0
        %v8188 = vadd.f32 0.0, %v8187
        %v8189 = vpop.f32.mrb[0].mxu0
        %8190 = vmatprep.mubr.bf16.mxu0 0
        %8191 = vmatmul.mubr.bf16.gmra.mrb[0].mxu0 %v8071
        %v8192 = vpop.f32.mrb[0].mxu0
        %v8193 = vadd.f32 0.0, %v8192
        %v8194 = vpop.f32.mrb[0].mxu0
        %v8195 = vpop.f32.mrb[0].mxu0
        %v8196 = vadd.f32 0.0, %v8195
        %v8197 = vpop.f32.mrb[0].mxu0
        %8198 = vmatprep.mubr.bf16.mxu0 0
        %8199 = vmatmul.mubr.bf16.gmra.mrb[0].mxu0 %v8074
        %v8200 = vpop.f32.mrb[0].mxu0
        %v8201 = vadd.f32 0.0, %v8200
        %v8202 = vpop.f32.mrb[0].mxu0
        %v8203 = vpop.f32.mrb[0].mxu0
        %v8204 = vadd.f32 0.0, %v8203
        %v8205 = vpop.f32.mrb[0].mxu0
        %8206 = vmatprep.mubr.bf16.mxu0 0
        %8207 = vmatmul.mubr.bf16.gmra.mrb[0].mxu0 %v8077
        %v8208 = vpop.f32.mrb[0].mxu0
        %v8209 = vadd.f32 0.0, %v8208
        %v8210 = vpop.f32.mrb[0].mxu0
        %v8211 = vpop.f32.mrb[0].mxu0
        %v8212 = vadd.f32 0.0, %v8211
        %v8213 = vpop.f32.mrb[0].mxu0
        %8214 = vmatprep.mubr.bf16.mxu0 0
        %8215 = vmatmul.mubr.bf16.gmra.mrb[0].mxu0 %v8080
        %v8216 = vpop.f32.mrb[0].mxu0
        %v8217 = vadd.f32 0.0, %v8216
        %v8218 = vpop.f32.mrb[0].mxu0
        %v8219 = vpop.f32.mrb[0].mxu0
        %v8220 = vadd.f32 0.0, %v8219
        %v8221 = vpop.f32.mrb[0].mxu0
        %8222 = vmatprep.mubr.bf16.mxu0 0
        %8223 = vmatmul.mubr.bf16.gmra.mrb[0].mxu0 %v8083
        %v8224 = vpop.f32.mrb[0].mxu0
        %v8225 = vadd.f32 0.0, %v8224
        %v8226 = vpop.f32.mrb[0].mxu0
        %v8227 = vpop.f32.mrb[0].mxu0
        %v8228 = vadd.f32 0.0, %v8227
        %v8229 = vpop.f32.mrb[0].mxu0
        %8230 = vmatprep.mubr.bf16.mxu0 0
        %8231 = vmatmul.mubr.bf16.gmra.mrb[0].mxu0 %v8086
        %v8232 = vpop.f32.mrb[0].mxu0
        %v8233 = vadd.f32 0.0, %v8232
        %v8234 = vpop.f32.mrb[0].mxu0
        %v8235 = vpop.f32.mrb[0].mxu0
        %v8236 = vadd.f32 0.0, %v8235
        %v8237 = vpop.f32.mrb[0].mxu0
        %8238 = vmatprep.mubr.bf16.mxu0 0
        %8239 = vmatmul.mubr.bf16.gmra.mrb[0].mxu0 %v8089
        %v8240 = vpop.f32.mrb[0].mxu0
        %v8241 = vadd.f32 0.0, %v8240
        %v8242 = vpop.f32.mrb[0].mxu0
        %v8243 = vpop.f32.mrb[0].mxu0
        %v8244 = vadd.f32 0.0, %v8243
        %v8245 = vpop.f32.mrb[0].mxu0
        %8246 = vmatprep.mubr.bf16.mxu0 0
        %8247 = vmatmul.mubr.bf16.gmra.mrb[0].mxu0 %v8092
        %v8248 = vpop.f32.mrb[0].mxu0
        %v8249 = vadd.f32 0.0, %v8248
        %v8250 = vpop.f32.mrb[0].mxu0
        %v8251 = vpop.f32.mrb[0].mxu0
        %v8252 = vadd.f32 0.0, %v8251
        %v8253 = vpop.f32.mrb[0].mxu0
        %8254 = vdwg.mxu0
        %v8255 = vadd.f32 %v7869, %v8129
        %v8256 = vadd.f32 %v7870, %v8132
        %v8257 = vadd.f32 %v7871, %v8137
        %v8258 = vadd.f32 %v7872, %v8140
        %v8259 = vadd.f32 %v7873, %v8145
        %v8260 = vadd.f32 %v7874, %v8148
        %v8261 = vadd.f32 %v7875, %v8153
        %v8262 = vadd.f32 %v7876, %v8156
        %v8263 = vadd.f32 %v7877, %v8161
        %v8264 = vadd.f32 %v7878, %v8164
        %v8265 = vadd.f32 %v7879, %v8169
        %v8266 = vadd.f32 %v7880, %v8172
        %v8267 = vadd.f32 %v7881, %v8177
        %v8268 = vadd.f32 %v7882, %v8180
        %v8269 = vadd.f32 %v7883, %v8185
        %v8270 = vadd.f32 %v7884, %v8188
        %v8271 = vadd.f32 %v7885, %v8193
        %v8272 = vadd.f32 %v7886, %v8196
        %v8273 = vadd.f32 %v7887, %v8201
        %v8274 = vadd.f32 %v7888, %v8204
        %v8275 = vadd.f32 %v7889, %v8209
        %v8276 = vadd.f32 %v7890, %v8212
        %v8277 = vadd.f32 %v7891, %v8217
        %v8278 = vadd.f32 %v7892, %v8220
        %v8279 = vadd.f32 %v7893, %v8225
        %v8280 = vadd.f32 %v7894, %v8228
        %v8281 = vadd.f32 %v7895, %v8233
        %v8282 = vadd.f32 %v7896, %v8236
        %v8283 = vadd.f32 %v7897, %v8241
        %v8284 = vadd.f32 %v7898, %v8244
        %v8285 = vadd.f32 %v7899, %v8249
        %v8286 = vadd.f32 %v7900, %v8252
        %v8287 = vld [vmem:[%s6263] sm:$0xf]
        %v8288 = vld [vmem:[%s6263 + $0x4] sm:$0xf]
        %v8289 = vld [vmem:[%s6263 + $0x8] sm:$0x1]
        %v8290 = vld [vmem:[%s6263 + $0xc] sm:$0xf]
        %v8291 = vld [vmem:[%s6263 + $0x10] sm:$0xf]
        %v8292 = vld [vmem:[%s6263 + $0x14] sm:$0x1]
        %v8293 = vld [vmem:[%s6263 + $0x18] sm:$0xf]
        %v8294 = vld [vmem:[%s6263 + $0x1c] sm:$0xf]
        %v8295 = vld [vmem:[%s6263 + $0x20] sm:$0x1]
        %v8296 = vld [vmem:[%s6263 + $0x24] sm:$0xf]
        %v8297 = vld [vmem:[%s6263 + $0x28] sm:$0xf]
        %v8298 = vld [vmem:[%s6263 + $0x2c] sm:$0x1]
        %v8299 = vld [vmem:[%s6263 + $0x30] sm:$0xf]
        %v8300 = vld [vmem:[%s6263 + $0x34] sm:$0xf]
        %v8301 = vld [vmem:[%s6263 + $0x38] sm:$0x1]
        %v8302 = vld [vmem:[%s6263 + $0x3c] sm:$0xf]
        %v8303 = vld [vmem:[%s6263 + $0x40] sm:$0xf]
        %v8304 = vld [vmem:[%s6263 + $0x44] sm:$0x1]
        %v8305 = vld [vmem:[%s6263 + $0x48] sm:$0xf]
        %v8306 = vld [vmem:[%s6263 + $0x4c] sm:$0xf]
        %v8307 = vld [vmem:[%s6263 + $0x50] sm:$0x1]
        %v8308 = vld [vmem:[%s6263 + $0x54] sm:$0xf]
        %v8309 = vld [vmem:[%s6263 + $0x58] sm:$0xf]
        %v8310 = vld [vmem:[%s6263 + $0x5c] sm:$0x1]
        %v8311 = vld [vmem:[%s6263 + $0x60] sm:$0xf]
        %v8312 = vld [vmem:[%s6263 + $0x64] sm:$0xf]
        %v8313 = vld [vmem:[%s6263 + $0x68] sm:$0x1]
        %v8314 = vld [vmem:[%s6263 + $0x6c] sm:$0xf]
        %v8315 = vld [vmem:[%s6263 + $0x70] sm:$0xf]
        %v8316 = vld [vmem:[%s6263 + $0x74] sm:$0x1]
        %v8317 = vld [vmem:[%s6263 + $0x78] sm:$0xf]
        %v8318 = vld [vmem:[%s6263 + $0x7c] sm:$0xf]
        %v8319 = vld [vmem:[%s6263 + $0x80] sm:$0x1]
        %v8320 = vld [vmem:[%s6263 + $0x84] sm:$0xf]
        %v8321 = vld [vmem:[%s6263 + $0x88] sm:$0xf]
        %v8322 = vld [vmem:[%s6263 + $0x8c] sm:$0x1]
        %v8323 = vld [vmem:[%s6263 + $0x90] sm:$0xf]
        %v8324 = vld [vmem:[%s6263 + $0x94] sm:$0xf]
        %v8325 = vld [vmem:[%s6263 + $0x98] sm:$0x1]
        %v8326 = vld [vmem:[%s6263 + $0x9c] sm:$0xf]
        %v8327 = vld [vmem:[%s6263 + $0xa0] sm:$0xf]
        %v8328 = vld [vmem:[%s6263 + $0xa4] sm:$0x1]
        %v8329 = vld [vmem:[%s6263 + $0xa8] sm:$0xf]
        %v8330 = vld [vmem:[%s6263 + $0xac] sm:$0xf]
        %v8331 = vld [vmem:[%s6263 + $0xb0] sm:$0x1]
        %v8332 = vld [vmem:[%s6263 + $0xb4] sm:$0xf]
        %v8333 = vld [vmem:[%s6263 + $0xb8] sm:$0xf]
        %v8334 = vld [vmem:[%s6263 + $0xbc] sm:$0x1]
        %v8336 = vshrl.u32 %v8287, 16
        %v8338 = vrot.slane %v8336, 4
        %v8339 = vshll.u32 %v8287, 16
        %v8341 = vrot.slane %v8339, 5
        %v8342 = vor.u32 %v8338, %v8341
        %v8343 = vrot.slane %v8342, 4
        %v8345 = vshll.u32 %v8288, 16
        %v8347 = vrot.slane %v8345, 5
        %v8348 = vsel %vm907, %v8343, %v8347
        %v8349 = vshrl.u32 %v8288, 16
        %v8351 = vrot.slane %v8349, 4
        %v8352 = vor.u32 %v8351, %v8347
        %v8353 = vrot.slane %v8352, 4
        %v8355 = vshll.u32 %v8289, 16
        %v8357 = vrot.slane %v8355, 5
        %v8358 = vsel %vm907, %v8353, %v8357
        %v8360 = vshrl.u32 %v8290, 16
        %v8362 = vrot.slane %v8360, 4
        %v8363 = vshll.u32 %v8290, 16
        %v8365 = vrot.slane %v8363, 5
        %v8366 = vor.u32 %v8362, %v8365
        %v8367 = vrot.slane %v8366, 4
        %v8369 = vshll.u32 %v8291, 16
        %v8371 = vrot.slane %v8369, 5
        %v8372 = vsel %vm907, %v8367, %v8371
        %v8373 = vshrl.u32 %v8291, 16
        %v8375 = vrot.slane %v8373, 4
        %v8376 = vor.u32 %v8375, %v8371
        %v8377 = vrot.slane %v8376, 4
        %v8379 = vshll.u32 %v8292, 16
        %v8381 = vrot.slane %v8379, 5
        %v8382 = vsel %vm907, %v8377, %v8381
        %v8384 = vshrl.u32 %v8293, 16
        %v8386 = vrot.slane %v8384, 4
        %v8387 = vshll.u32 %v8293, 16
        %v8389 = vrot.slane %v8387, 5
        %v8390 = vor.u32 %v8386, %v8389
        %v8391 = vrot.slane %v8390, 4
        %v8393 = vshll.u32 %v8294, 16
        %v8395 = vrot.slane %v8393, 5
        %v8396 = vsel %vm907, %v8391, %v8395
        %v8397 = vshrl.u32 %v8294, 16
        %v8399 = vrot.slane %v8397, 4
        %v8400 = vor.u32 %v8399, %v8395
        %v8401 = vrot.slane %v8400, 4
        %v8403 = vshll.u32 %v8295, 16
        %v8405 = vrot.slane %v8403, 5
        %v8406 = vsel %vm907, %v8401, %v8405
        %v8408 = vshrl.u32 %v8296, 16
        %v8410 = vrot.slane %v8408, 4
        %v8411 = vshll.u32 %v8296, 16
        %v8413 = vrot.slane %v8411, 5
        %v8414 = vor.u32 %v8410, %v8413
        %v8415 = vrot.slane %v8414, 4
        %v8417 = vshll.u32 %v8297, 16
        %v8419 = vrot.slane %v8417, 5
        %v8420 = vsel %vm907, %v8415, %v8419
        %v8421 = vshrl.u32 %v8297, 16
        %v8423 = vrot.slane %v8421, 4
        %v8424 = vor.u32 %v8423, %v8419
        %v8425 = vrot.slane %v8424, 4
        %v8427 = vshll.u32 %v8298, 16
        %v8429 = vrot.slane %v8427, 5
        %v8430 = vsel %vm907, %v8425, %v8429
        %v8432 = vshrl.u32 %v8299, 16
        %v8434 = vrot.slane %v8432, 4
        %v8435 = vshll.u32 %v8299, 16
        %v8437 = vrot.slane %v8435, 5
        %v8438 = vor.u32 %v8434, %v8437
        %v8439 = vrot.slane %v8438, 4
        %v8441 = vshll.u32 %v8300, 16
        %v8443 = vrot.slane %v8441, 5
        %v8444 = vsel %vm907, %v8439, %v8443
        %v8445 = vshrl.u32 %v8300, 16
        %v8447 = vrot.slane %v8445, 4
        %v8448 = vor.u32 %v8447, %v8443
        %v8449 = vrot.slane %v8448, 4
        %v8451 = vshll.u32 %v8301, 16
        %v8453 = vrot.slane %v8451, 5
        %v8454 = vsel %vm907, %v8449, %v8453
        %v8456 = vshrl.u32 %v8302, 16
        %v8458 = vrot.slane %v8456, 4
        %v8459 = vshll.u32 %v8302, 16
        %v8461 = vrot.slane %v8459, 5
        %v8462 = vor.u32 %v8458, %v8461
        %v8463 = vrot.slane %v8462, 4
        %v8465 = vshll.u32 %v8303, 16
        %v8467 = vrot.slane %v8465, 5
        %v8468 = vsel %vm907, %v8463, %v8467
        %v8469 = vshrl.u32 %v8303, 16
        %v8471 = vrot.slane %v8469, 4
        %v8472 = vor.u32 %v8471, %v8467
        %v8473 = vrot.slane %v8472, 4
        %v8475 = vshll.u32 %v8304, 16
        %v8477 = vrot.slane %v8475, 5
        %v8478 = vsel %vm907, %v8473, %v8477
        %v8480 = vshrl.u32 %v8305, 16
        %v8482 = vrot.slane %v8480, 4
        %v8483 = vshll.u32 %v8305, 16
        %v8485 = vrot.slane %v8483, 5
        %v8486 = vor.u32 %v8482, %v8485
        %v8487 = vrot.slane %v8486, 4
        %v8489 = vshll.u32 %v8306, 16
        %v8491 = vrot.slane %v8489, 5
        %v8492 = vsel %vm907, %v8487, %v8491
        %v8493 = vshrl.u32 %v8306, 16
        %v8495 = vrot.slane %v8493, 4
        %v8496 = vor.u32 %v8495, %v8491
        %v8497 = vrot.slane %v8496, 4
        %v8499 = vshll.u32 %v8307, 16
        %v8501 = vrot.slane %v8499, 5
        %v8502 = vsel %vm907, %v8497, %v8501
        %v8504 = vshrl.u32 %v8308, 16
        %v8506 = vrot.slane %v8504, 4
        %v8507 = vshll.u32 %v8308, 16
        %v8509 = vrot.slane %v8507, 5
        %v8510 = vor.u32 %v8506, %v8509
        %v8511 = vrot.slane %v8510, 4
        %v8513 = vshll.u32 %v8309, 16
        %v8515 = vrot.slane %v8513, 5
        %v8516 = vsel %vm907, %v8511, %v8515
        %v8517 = vshrl.u32 %v8309, 16
        %v8519 = vrot.slane %v8517, 4
        %v8520 = vor.u32 %v8519, %v8515
        %v8521 = vrot.slane %v8520, 4
        %v8523 = vshll.u32 %v8310, 16
        %v8525 = vrot.slane %v8523, 5
        %v8526 = vsel %vm907, %v8521, %v8525
        %v8528 = vshrl.u32 %v8311, 16
        %v8530 = vrot.slane %v8528, 4
        %v8531 = vshll.u32 %v8311, 16
        %v8533 = vrot.slane %v8531, 5
        %v8534 = vor.u32 %v8530, %v8533
        %v8535 = vrot.slane %v8534, 4
        %v8537 = vshll.u32 %v8312, 16
        %v8539 = vrot.slane %v8537, 5
        %v8540 = vsel %vm907, %v8535, %v8539
        %v8541 = vshrl.u32 %v8312, 16
        %v8543 = vrot.slane %v8541, 4
        %v8544 = vor.u32 %v8543, %v8539
        %v8545 = vrot.slane %v8544, 4
        %v8547 = vshll.u32 %v8313, 16
        %v8549 = vrot.slane %v8547, 5
        %v8550 = vsel %vm907, %v8545, %v8549
        %v8552 = vshrl.u32 %v8314, 16
        %v8554 = vrot.slane %v8552, 4
        %v8555 = vshll.u32 %v8314, 16
        %v8557 = vrot.slane %v8555, 5
        %v8558 = vor.u32 %v8554, %v8557
        %v8559 = vrot.slane %v8558, 4
        %v8561 = vshll.u32 %v8315, 16
        %v8563 = vrot.slane %v8561, 5
        %v8564 = vsel %vm907, %v8559, %v8563
        %v8565 = vshrl.u32 %v8315, 16
        %v8567 = vrot.slane %v8565, 4
        %v8568 = vor.u32 %v8567, %v8563
        %v8569 = vrot.slane %v8568, 4
        %v8571 = vshll.u32 %v8316, 16
        %v8573 = vrot.slane %v8571, 5
        %v8574 = vsel %vm907, %v8569, %v8573
        %v8576 = vshrl.u32 %v8317, 16
        %v8578 = vrot.slane %v8576, 4
        %v8579 = vshll.u32 %v8317, 16
        %v8581 = vrot.slane %v8579, 5
        %v8582 = vor.u32 %v8578, %v8581
        %v8583 = vrot.slane %v8582, 4
        %v8585 = vshll.u32 %v8318, 16
        %v8587 = vrot.slane %v8585, 5
        %v8588 = vsel %vm907, %v8583, %v8587
        %v8589 = vshrl.u32 %v8318, 16
        %v8591 = vrot.slane %v8589, 4
        %v8592 = vor.u32 %v8591, %v8587
        %v8593 = vrot.slane %v8592, 4
        %v8595 = vshll.u32 %v8319, 16
        %v8597 = vrot.slane %v8595, 5
        %v8598 = vsel %vm907, %v8593, %v8597
        %v8600 = vshrl.u32 %v8320, 16
        %v8602 = vrot.slane %v8600, 4
        %v8603 = vshll.u32 %v8320, 16
        %v8605 = vrot.slane %v8603, 5
        %v8606 = vor.u32 %v8602, %v8605
        %v8607 = vrot.slane %v8606, 4
        %v8609 = vshll.u32 %v8321, 16
        %v8611 = vrot.slane %v8609, 5
        %v8612 = vsel %vm907, %v8607, %v8611
        %v8613 = vshrl.u32 %v8321, 16
        %v8615 = vrot.slane %v8613, 4
        %v8616 = vor.u32 %v8615, %v8611
        %v8617 = vrot.slane %v8616, 4
        %v8619 = vshll.u32 %v8322, 16
        %v8621 = vrot.slane %v8619, 5
        %v8622 = vsel %vm907, %v8617, %v8621
        %v8624 = vshrl.u32 %v8323, 16
        %v8626 = vrot.slane %v8624, 4
        %v8627 = vshll.u32 %v8323, 16
        %v8629 = vrot.slane %v8627, 5
        %v8630 = vor.u32 %v8626, %v8629
        %v8631 = vrot.slane %v8630, 4
        %v8633 = vshll.u32 %v8324, 16
        %v8635 = vrot.slane %v8633, 5
        %v8636 = vsel %vm907, %v8631, %v8635
        %v8637 = vshrl.u32 %v8324, 16
        %v8639 = vrot.slane %v8637, 4
        %v8640 = vor.u32 %v8639, %v8635
        %v8641 = vrot.slane %v8640, 4
        %v8643 = vshll.u32 %v8325, 16
        %v8645 = vrot.slane %v8643, 5
        %v8646 = vsel %vm907, %v8641, %v8645
        %v8648 = vshrl.u32 %v8326, 16
        %v8650 = vrot.slane %v8648, 4
        %v8651 = vshll.u32 %v8326, 16
        %v8653 = vrot.slane %v8651, 5
        %v8654 = vor.u32 %v8650, %v8653
        %v8655 = vrot.slane %v8654, 4
        %v8657 = vshll.u32 %v8327, 16
        %v8659 = vrot.slane %v8657, 5
        %v8660 = vsel %vm907, %v8655, %v8659
        %v8661 = vshrl.u32 %v8327, 16
        %v8663 = vrot.slane %v8661, 4
        %v8664 = vor.u32 %v8663, %v8659
        %v8665 = vrot.slane %v8664, 4
        %v8667 = vshll.u32 %v8328, 16
        %v8669 = vrot.slane %v8667, 5
        %v8670 = vsel %vm907, %v8665, %v8669
        %v8672 = vshrl.u32 %v8329, 16
        %v8674 = vrot.slane %v8672, 4
        %v8675 = vshll.u32 %v8329, 16
        %v8677 = vrot.slane %v8675, 5
        %v8678 = vor.u32 %v8674, %v8677
        %v8679 = vrot.slane %v8678, 4
        %v8681 = vshll.u32 %v8330, 16
        %v8683 = vrot.slane %v8681, 5
        %v8684 = vsel %vm907, %v8679, %v8683
        %v8685 = vshrl.u32 %v8330, 16
        %v8687 = vrot.slane %v8685, 4
        %v8688 = vor.u32 %v8687, %v8683
        %v8689 = vrot.slane %v8688, 4
        %v8691 = vshll.u32 %v8331, 16
        %v8693 = vrot.slane %v8691, 5
        %v8694 = vsel %vm907, %v8689, %v8693
        %v8696 = vshrl.u32 %v8332, 16
        %v8698 = vrot.slane %v8696, 4
        %v8699 = vshll.u32 %v8332, 16
        %v8701 = vrot.slane %v8699, 5
        %v8702 = vor.u32 %v8698, %v8701
        %v8703 = vrot.slane %v8702, 4
        %v8705 = vshll.u32 %v8333, 16
        %v8707 = vrot.slane %v8705, 5
        %v8708 = vsel %vm907, %v8703, %v8707
        %v8709 = vshrl.u32 %v8333, 16
        %v8711 = vrot.slane %v8709, 4
        %v8712 = vor.u32 %v8711, %v8707
        %v8713 = vrot.slane %v8712, 4
        %v8715 = vshll.u32 %v8334, 16
        %v8717 = vrot.slane %v8715, 5
        %v8718 = vsel %vm907, %v8713, %v8717
        %s8719 = scalar_lea.vmem %s3, 128
        %v8720 = vld [vmem:[%s8719] sm:$0xf]
        %v8721 = vld [vmem:[%s8719 + $0x4] sm:$0xf]
        %v8722 = vld [vmem:[%s8719 + $0x8] sm:$0xf]
        %v8723 = vld [vmem:[%s8719 + $0xc] sm:$0xf]
        %v8724 = vld [vmem:[%s8719 + $0x10] sm:$0xf]
        %v8725 = vld [vmem:[%s8719 + $0x14] sm:$0xf]
        %v8726 = vld [vmem:[%s8719 + $0x18] sm:$0xf]
        %v8727 = vld [vmem:[%s8719 + $0x1c] sm:$0xf]
        %v8728 = vunpack.c.l.b16 %v8348
        %v8729 = vunpack.c.l.b16 %v8358
        %v8730 = vunpack.c.l.b16 %v8372
        %v8731 = vunpack.c.l.b16 %v8382
        %v8732 = vunpack.c.l.b16 %v8396
        %v8733 = vunpack.c.l.b16 %v8406
        %v8734 = vunpack.c.l.b16 %v8420
        %v8735 = vunpack.c.l.b16 %v8430
        %v8736 = vunpack.c.l.b16 %v8444
        %v8737 = vunpack.c.l.b16 %v8454
        %v8738 = vunpack.c.l.b16 %v8468
        %v8739 = vunpack.c.l.b16 %v8478
        %v8740 = vunpack.c.l.b16 %v8492
        %v8741 = vunpack.c.l.b16 %v8502
        %v8742 = vunpack.c.l.b16 %v8516
        %v8743 = vunpack.c.l.b16 %v8526
        %v8744 = vunpack.c.l.b16 %v8540
        %v8745 = vunpack.c.l.b16 %v8550
        %v8746 = vunpack.c.l.b16 %v8564
        %v8747 = vunpack.c.l.b16 %v8574
        %v8748 = vunpack.c.l.b16 %v8588
        %v8749 = vunpack.c.l.b16 %v8598
        %v8750 = vunpack.c.l.b16 %v8612
        %v8751 = vunpack.c.l.b16 %v8622
        %v8752 = vunpack.c.l.b16 %v8636
        %v8753 = vunpack.c.l.b16 %v8646
        %v8754 = vunpack.c.l.b16 %v8660
        %v8755 = vunpack.c.l.b16 %v8670
        %v8756 = vunpack.c.l.b16 %v8684
        %v8757 = vunpack.c.l.b16 %v8694
        %v8758 = vunpack.c.l.b16 %v8708
        %v8759 = vunpack.c.l.b16 %v8718
        %v8760 = vpack.c.b16 %v8729, %v8728
        %v8761 = vpack.c.b16 %v8731, %v8730
        %v8762 = vpack.c.b16 %v8733, %v8732
        %v8763 = vpack.c.b16 %v8735, %v8734
        %v8764 = vpack.c.b16 %v8737, %v8736
        %v8765 = vpack.c.b16 %v8739, %v8738
        %v8766 = vpack.c.b16 %v8741, %v8740
        %v8767 = vpack.c.b16 %v8743, %v8742
        %v8768 = vpack.c.b16 %v8745, %v8744
        %v8769 = vpack.c.b16 %v8747, %v8746
        %v8770 = vpack.c.b16 %v8749, %v8748
        %v8771 = vpack.c.b16 %v8751, %v8750
        %v8772 = vpack.c.b16 %v8753, %v8752
        %v8773 = vpack.c.b16 %v8755, %v8754
        %v8774 = vpack.c.b16 %v8757, %v8756
        %v8775 = vpack.c.b16 %v8759, %v8758
        %v8784 = vunpack.c.l.b16 %v8720
        %v8785 = vunpack.c.l.b16 %v8721
        %v8786 = vunpack.c.l.b16 %v8722
        %v8787 = vunpack.c.l.b16 %v8723
        %v8788 = vunpack.c.l.b16 %v8724
        %v8789 = vunpack.c.l.b16 %v8725
        %v8790 = vunpack.c.l.b16 %v8726
        %v8791 = vunpack.c.l.b16 %v8727
        %v8792 = vpack.c.b16 %v8785, %v8784
        %v8793 = vpack.c.b16 %v8787, %v8786
        %v8794 = vpack.c.b16 %v8789, %v8788
        %v8795 = vpack.c.b16 %v8791, %v8790
        %v8801 = vsel %vm1373, %v8760, 0
        %v8804 = vsel %vm1373, %v8761, 0
        %v8807 = vsel %vm1373, %v8762, 0
        %v8810 = vsel %vm1373, %v8763, 0
        %v8813 = vsel %vm1373, %v8764, 0
        %v8816 = vsel %vm1373, %v8765, 0
        %v8819 = vsel %vm1373, %v8766, 0
        %v8822 = vsel %vm1373, %v8767, 0
        %v8825 = vsel %vm1373, %v8768, 0
        %v8828 = vsel %vm1373, %v8769, 0
        %v8831 = vsel %vm1373, %v8770, 0
        %v8834 = vsel %vm1373, %v8771, 0
        %v8837 = vsel %vm1373, %v8772, 0
        %v8840 = vsel %vm1373, %v8773, 0
        %v8843 = vsel %vm1373, %v8774, 0
        %v8846 = vsel %vm1373, %v8775, 0
        %8848 = vmatprep.subr.bf16.mxu0 0
        %8849 = vmatpush1.bf16.msra.mxu0 %v8792
        %8850 = vmatprep.subr.bf16.mxu0 0
        %8851 = vmatpush1.bf16.msra.mxu0 %v8793
        %8852 = vmatprep.subr.bf16.mxu0 0
        %8853 = vmatpush1.bf16.msra.mxu0 %v8794
        %8854 = vmatprep.subr.bf16.mxu0 0
        %8855 = vmatpush1.bf16.msra.mxu0 %v8795
        %8856 = vmatprep.subr.bf16.mxu0 0
        %8857 = vmatpush1.bf16.msra.mxu0 0
        %8858 = vmatprep.subr.bf16.mxu0 0
        %8859 = vmatpush1.bf16.msra.mxu0 0
        %8860 = vmatprep.subr.bf16.mxu0 0
        %8861 = vmatpush1.bf16.msra.mxu0 0
        %8862 = vmatprep.subr.bf16.mxu0 0
        %8863 = vmatpush1.bf16.msra.mxu0 0
        %8864 = vmatprep.subr.bf16.mxu0 0
        %8865 = vmatpush1.bf16.msra.mxu0 0
        %8866 = vmatprep.subr.bf16.mxu0 0
        %8867 = vmatpush1.bf16.msra.mxu0 0
        %8868 = vmatprep.subr.bf16.mxu0 0
        %8869 = vmatpush1.bf16.msra.mxu0 0
        %8870 = vmatprep.subr.bf16.mxu0 0
        %8871 = vmatpush1.bf16.msra.mxu0 0
        %8872 = vmatprep.subr.bf16.mxu0 0
        %8873 = vmatpush1.bf16.msra.mxu0 0
        %8874 = vmatprep.subr.bf16.mxu0 0
        %8875 = vmatpush1.bf16.msra.mxu0 0
        %8876 = vmatprep.subr.bf16.mxu0 0
        %8877 = vmatpush1.bf16.msra.mxu0 0
        %8878 = vmatprep.subr.bf16.mxu0 0
        %8879 = vmatpush1.bf16.msra.mxu0 0
        %8880 = vmatprep.mubr.bf16.mxu0 0
        %8881 = vmatmul.mubr.bf16.gmra.mrb[0].mxu0 %v8801
        %v8882 = vpop.f32.mrb[0].mxu0
        %v8883 = vadd.f32 0.0, %v8882
        %v8884 = vpop.f32.mrb[0].mxu0
        %v8885 = vpop.f32.mrb[0].mxu0
        %v8886 = vadd.f32 0.0, %v8885
        %v8887 = vpop.f32.mrb[0].mxu0
        %8888 = vmatprep.mubr.bf16.mxu0 0
        %8889 = vmatmul.mubr.bf16.gmra.mrb[0].mxu0 %v8804
        %v8890 = vpop.f32.mrb[0].mxu0
        %v8891 = vadd.f32 0.0, %v8890
        %v8892 = vpop.f32.mrb[0].mxu0
        %v8893 = vpop.f32.mrb[0].mxu0
        %v8894 = vadd.f32 0.0, %v8893
        %v8895 = vpop.f32.mrb[0].mxu0
        %8896 = vmatprep.mubr.bf16.mxu0 0
        %8897 = vmatmul.mubr.bf16.gmra.mrb[0].mxu0 %v8807
        %v8898 = vpop.f32.mrb[0].mxu0
        %v8899 = vadd.f32 0.0, %v8898
        %v8900 = vpop.f32.mrb[0].mxu0
        %v8901 = vpop.f32.mrb[0].mxu0
        %v8902 = vadd.f32 0.0, %v8901
        %v8903 = vpop.f32.mrb[0].mxu0
        %8904 = vmatprep.mubr.bf16.mxu0 0
        %8905 = vmatmul.mubr.bf16.gmra.mrb[0].mxu0 %v8810
        %v8906 = vpop.f32.mrb[0].mxu0
        %v8907 = vadd.f32 0.0, %v8906
        %v8908 = vpop.f32.mrb[0].mxu0
        %v8909 = vpop.f32.mrb[0].mxu0
        %v8910 = vadd.f32 0.0, %v8909
        %v8911 = vpop.f32.mrb[0].mxu0
        %8912 = vmatprep.mubr.bf16.mxu0 0
        %8913 = vmatmul.mubr.bf16.gmra.mrb[0].mxu0 %v8813
        %v8914 = vpop.f32.mrb[0].mxu0
        %v8915 = vadd.f32 0.0, %v8914
        %v8916 = vpop.f32.mrb[0].mxu0
        %v8917 = vpop.f32.mrb[0].mxu0
        %v8918 = vadd.f32 0.0, %v8917
        %v8919 = vpop.f32.mrb[0].mxu0
        %8920 = vmatprep.mubr.bf16.mxu0 0
        %8921 = vmatmul.mubr.bf16.gmra.mrb[0].mxu0 %v8816
        %v8922 = vpop.f32.mrb[0].mxu0
        %v8923 = vadd.f32 0.0, %v8922
        %v8924 = vpop.f32.mrb[0].mxu0
        %v8925 = vpop.f32.mrb[0].mxu0
        %v8926 = vadd.f32 0.0, %v8925
        %v8927 = vpop.f32.mrb[0].mxu0
        %8928 = vmatprep.mubr.bf16.mxu0 0
        %8929 = vmatmul.mubr.bf16.gmra.mrb[0].mxu0 %v8819
        %v8930 = vpop.f32.mrb[0].mxu0
        %v8931 = vadd.f32 0.0, %v8930
        %v8932 = vpop.f32.mrb[0].mxu0
        %v8933 = vpop.f32.mrb[0].mxu0
        %v8934 = vadd.f32 0.0, %v8933
        %v8935 = vpop.f32.mrb[0].mxu0
        %8936 = vmatprep.mubr.bf16.mxu0 0
        %8937 = vmatmul.mubr.bf16.gmra.mrb[0].mxu0 %v8822
        %v8938 = vpop.f32.mrb[0].mxu0
        %v8939 = vadd.f32 0.0, %v8938
        %v8940 = vpop.f32.mrb[0].mxu0
        %v8941 = vpop.f32.mrb[0].mxu0
        %v8942 = vadd.f32 0.0, %v8941
        %v8943 = vpop.f32.mrb[0].mxu0
        %8944 = vmatprep.mubr.bf16.mxu0 0
        %8945 = vmatmul.mubr.bf16.gmra.mrb[0].mxu0 %v8825
        %v8946 = vpop.f32.mrb[0].mxu0
        %v8947 = vadd.f32 0.0, %v8946
        %v8948 = vpop.f32.mrb[0].mxu0
        %v8949 = vpop.f32.mrb[0].mxu0
        %v8950 = vadd.f32 0.0, %v8949
        %v8951 = vpop.f32.mrb[0].mxu0
        %8952 = vmatprep.mubr.bf16.mxu0 0
        %8953 = vmatmul.mubr.bf16.gmra.mrb[0].mxu0 %v8828
        %v8954 = vpop.f32.mrb[0].mxu0
        %v8955 = vadd.f32 0.0, %v8954
        %v8956 = vpop.f32.mrb[0].mxu0
        %v8957 = vpop.f32.mrb[0].mxu0
        %v8958 = vadd.f32 0.0, %v8957
        %v8959 = vpop.f32.mrb[0].mxu0
        %8960 = vmatprep.mubr.bf16.mxu0 0
        %8961 = vmatmul.mubr.bf16.gmra.mrb[0].mxu0 %v8831
        %v8962 = vpop.f32.mrb[0].mxu0
        %v8963 = vadd.f32 0.0, %v8962
        %v8964 = vpop.f32.mrb[0].mxu0
        %v8965 = vpop.f32.mrb[0].mxu0
        %v8966 = vadd.f32 0.0, %v8965
        %v8967 = vpop.f32.mrb[0].mxu0
        %8968 = vmatprep.mubr.bf16.mxu0 0
        %8969 = vmatmul.mubr.bf16.gmra.mrb[0].mxu0 %v8834
        %v8970 = vpop.f32.mrb[0].mxu0
        %v8971 = vadd.f32 0.0, %v8970
        %v8972 = vpop.f32.mrb[0].mxu0
        %v8973 = vpop.f32.mrb[0].mxu0
        %v8974 = vadd.f32 0.0, %v8973
        %v8975 = vpop.f32.mrb[0].mxu0
        %8976 = vmatprep.mubr.bf16.mxu0 0
        %8977 = vmatmul.mubr.bf16.gmra.mrb[0].mxu0 %v8837
        %v8978 = vpop.f32.mrb[0].mxu0
        %v8979 = vadd.f32 0.0, %v8978
        %v8980 = vpop.f32.mrb[0].mxu0
        %v8981 = vpop.f32.mrb[0].mxu0
        %v8982 = vadd.f32 0.0, %v8981
        %v8983 = vpop.f32.mrb[0].mxu0
        %8984 = vmatprep.mubr.bf16.mxu0 0
        %8985 = vmatmul.mubr.bf16.gmra.mrb[0].mxu0 %v8840
        %v8986 = vpop.f32.mrb[0].mxu0
        %v8987 = vadd.f32 0.0, %v8986
        %v8988 = vpop.f32.mrb[0].mxu0
        %v8989 = vpop.f32.mrb[0].mxu0
        %v8990 = vadd.f32 0.0, %v8989
        %v8991 = vpop.f32.mrb[0].mxu0
        %8992 = vmatprep.mubr.bf16.mxu0 0
        %8993 = vmatmul.mubr.bf16.gmra.mrb[0].mxu0 %v8843
        %v8994 = vpop.f32.mrb[0].mxu0
        %v8995 = vadd.f32 0.0, %v8994
        %v8996 = vpop.f32.mrb[0].mxu0
        %v8997 = vpop.f32.mrb[0].mxu0
        %v8998 = vadd.f32 0.0, %v8997
        %v8999 = vpop.f32.mrb[0].mxu0
        %9000 = vmatprep.mubr.bf16.mxu0 0
        %9001 = vmatmul.mubr.bf16.gmra.mrb[0].mxu0 %v8846
        %v9002 = vpop.f32.mrb[0].mxu0
        %v9003 = vadd.f32 0.0, %v9002
        %v9004 = vpop.f32.mrb[0].mxu0
        %v9005 = vpop.f32.mrb[0].mxu0
        %v9006 = vadd.f32 0.0, %v9005
        %v9007 = vpop.f32.mrb[0].mxu0
        %9008 = vdwg.mxu0
        %v9009 = vadd.f32 %v8255, %v8883
        %v9010 = vadd.f32 %v8256, %v8886
        %v9011 = vadd.f32 %v8257, %v8891
        %v9012 = vadd.f32 %v8258, %v8894
        %v9013 = vadd.f32 %v8259, %v8899
        %v9014 = vadd.f32 %v8260, %v8902
        %v9015 = vadd.f32 %v8261, %v8907
        %v9016 = vadd.f32 %v8262, %v8910
        %v9017 = vadd.f32 %v8263, %v8915
        %v9018 = vadd.f32 %v8264, %v8918
        %v9019 = vadd.f32 %v8265, %v8923
        %v9020 = vadd.f32 %v8266, %v8926
        %v9021 = vadd.f32 %v8267, %v8931
        %v9022 = vadd.f32 %v8268, %v8934
        %v9023 = vadd.f32 %v8269, %v8939
        %v9024 = vadd.f32 %v8270, %v8942
        %v9025 = vadd.f32 %v8271, %v8947
        %v9026 = vadd.f32 %v8272, %v8950
        %v9027 = vadd.f32 %v8273, %v8955
        %v9028 = vadd.f32 %v8274, %v8958
        %v9029 = vadd.f32 %v8275, %v8963
        %v9030 = vadd.f32 %v8276, %v8966
        %v9031 = vadd.f32 %v8277, %v8971
        %v9032 = vadd.f32 %v8278, %v8974
        %v9033 = vadd.f32 %v8279, %v8979
        %v9034 = vadd.f32 %v8280, %v8982
        %v9035 = vadd.f32 %v8281, %v8987
        %v9036 = vadd.f32 %v8282, %v8990
        %v9037 = vadd.f32 %v8283, %v8995
        %v9038 = vadd.f32 %v8284, %v8998
        %v9039 = vadd.f32 %v8285, %v9003
        %v9040 = vadd.f32 %v8286, %v9006
        %v9041 = vld [vmem:[%s6263] sm:$0xe]
        %v9042 = vld [vmem:[%s6263 + $0xc] sm:$0xe]
        %v9043 = vld [vmem:[%s6263 + $0x18] sm:$0xe]
        %v9044 = vld [vmem:[%s6263 + $0x24] sm:$0xe]
        %v9045 = vld [vmem:[%s6263 + $0x30] sm:$0xe]
        %v9046 = vld [vmem:[%s6263 + $0x3c] sm:$0xe]
        %v9047 = vld [vmem:[%s6263 + $0x48] sm:$0xe]
        %v9048 = vld [vmem:[%s6263 + $0x54] sm:$0xe]
        %v9049 = vld [vmem:[%s6263 + $0x60] sm:$0xe]
        %v9050 = vld [vmem:[%s6263 + $0x6c] sm:$0xe]
        %v9051 = vld [vmem:[%s6263 + $0x78] sm:$0xe]
        %v9052 = vld [vmem:[%s6263 + $0x84] sm:$0xe]
        %v9053 = vld [vmem:[%s6263 + $0x90] sm:$0xe]
        %v9054 = vld [vmem:[%s6263 + $0x9c] sm:$0xe]
        %v9055 = vld [vmem:[%s6263 + $0xa8] sm:$0xe]
        %v9056 = vld [vmem:[%s6263 + $0xb4] sm:$0xe]
        %v9105 = vrot.slane %v9041, 5
        %v9106 = vrot.slane %v9105, 4
        %v9107 = vrot.slane %v8288, 5
        %v9108 = vsel %vm1946, %v9106, %v9107
        %v9109 = vrot.slane %v9107, 4
        %v9110 = vrot.slane %v8289, 5
        %v9111 = vsel %vm1946, %v9109, %v9110
        %v9112 = vrot.slane %v9042, 5
        %v9113 = vrot.slane %v9112, 4
        %v9114 = vrot.slane %v8291, 5
        %v9115 = vsel %vm1946, %v9113, %v9114
        %v9116 = vrot.slane %v9114, 4
        %v9117 = vrot.slane %v8292, 5
        %v9118 = vsel %vm1946, %v9116, %v9117
        %v9119 = vrot.slane %v9043, 5
        %v9120 = vrot.slane %v9119, 4
        %v9121 = vrot.slane %v8294, 5
        %v9122 = vsel %vm1946, %v9120, %v9121
        %v9123 = vrot.slane %v9121, 4
        %v9124 = vrot.slane %v8295, 5
        %v9125 = vsel %vm1946, %v9123, %v9124
        %v9126 = vrot.slane %v9044, 5
        %v9127 = vrot.slane %v9126, 4
        %v9128 = vrot.slane %v8297, 5
        %v9129 = vsel %vm1946, %v9127, %v9128
        %v9130 = vrot.slane %v9128, 4
        %v9131 = vrot.slane %v8298, 5
        %v9132 = vsel %vm1946, %v9130, %v9131
        %v9133 = vrot.slane %v9045, 5
        %v9134 = vrot.slane %v9133, 4
        %v9135 = vrot.slane %v8300, 5
        %v9136 = vsel %vm1946, %v9134, %v9135
        %v9137 = vrot.slane %v9135, 4
        %v9138 = vrot.slane %v8301, 5
        %v9139 = vsel %vm1946, %v9137, %v9138
        %v9140 = vrot.slane %v9046, 5
        %v9141 = vrot.slane %v9140, 4
        %v9142 = vrot.slane %v8303, 5
        %v9143 = vsel %vm1946, %v9141, %v9142
        %v9144 = vrot.slane %v9142, 4
        %v9145 = vrot.slane %v8304, 5
        %v9146 = vsel %vm1946, %v9144, %v9145
        %v9147 = vrot.slane %v9047, 5
        %v9148 = vrot.slane %v9147, 4
        %v9149 = vrot.slane %v8306, 5
        %v9150 = vsel %vm1946, %v9148, %v9149
        %v9151 = vrot.slane %v9149, 4
        %v9152 = vrot.slane %v8307, 5
        %v9153 = vsel %vm1946, %v9151, %v9152
        %v9154 = vrot.slane %v9048, 5
        %v9155 = vrot.slane %v9154, 4
        %v9156 = vrot.slane %v8309, 5
        %v9157 = vsel %vm1946, %v9155, %v9156
        %v9158 = vrot.slane %v9156, 4
        %v9159 = vrot.slane %v8310, 5
        %v9160 = vsel %vm1946, %v9158, %v9159
        %v9161 = vrot.slane %v9049, 5
        %v9162 = vrot.slane %v9161, 4
        %v9163 = vrot.slane %v8312, 5
        %v9164 = vsel %vm1946, %v9162, %v9163
        %v9165 = vrot.slane %v9163, 4
        %v9166 = vrot.slane %v8313, 5
        %v9167 = vsel %vm1946, %v9165, %v9166
        %v9168 = vrot.slane %v9050, 5
        %v9169 = vrot.slane %v9168, 4
        %v9170 = vrot.slane %v8315, 5
        %v9171 = vsel %vm1946, %v9169, %v9170
        %v9172 = vrot.slane %v9170, 4
        %v9173 = vrot.slane %v8316, 5
        %v9174 = vsel %vm1946, %v9172, %v9173
        %v9175 = vrot.slane %v9051, 5
        %v9176 = vrot.slane %v9175, 4
        %v9177 = vrot.slane %v8318, 5
        %v9178 = vsel %vm1946, %v9176, %v9177
        %v9179 = vrot.slane %v9177, 4
        %v9180 = vrot.slane %v8319, 5
        %v9181 = vsel %vm1946, %v9179, %v9180
        %v9182 = vrot.slane %v9052, 5
        %v9183 = vrot.slane %v9182, 4
        %v9184 = vrot.slane %v8321, 5
        %v9185 = vsel %vm1946, %v9183, %v9184
        %v9186 = vrot.slane %v9184, 4
        %v9187 = vrot.slane %v8322, 5
        %v9188 = vsel %vm1946, %v9186, %v9187
        %v9189 = vrot.slane %v9053, 5
        %v9190 = vrot.slane %v9189, 4
        %v9191 = vrot.slane %v8324, 5
        %v9192 = vsel %vm1946, %v9190, %v9191
        %v9193 = vrot.slane %v9191, 4
        %v9194 = vrot.slane %v8325, 5
        %v9195 = vsel %vm1946, %v9193, %v9194
        %v9196 = vrot.slane %v9054, 5
        %v9197 = vrot.slane %v9196, 4
        %v9198 = vrot.slane %v8327, 5
        %v9199 = vsel %vm1946, %v9197, %v9198
        %v9200 = vrot.slane %v9198, 4
        %v9201 = vrot.slane %v8328, 5
        %v9202 = vsel %vm1946, %v9200, %v9201
        %v9203 = vrot.slane %v9055, 5
        %v9204 = vrot.slane %v9203, 4
        %v9205 = vrot.slane %v8330, 5
        %v9206 = vsel %vm1946, %v9204, %v9205
        %v9207 = vrot.slane %v9205, 4
        %v9208 = vrot.slane %v8331, 5
        %v9209 = vsel %vm1946, %v9207, %v9208
        %v9210 = vrot.slane %v9056, 5
        %v9211 = vrot.slane %v9210, 4
        %v9212 = vrot.slane %v8333, 5
        %v9213 = vsel %vm1946, %v9211, %v9212
        %v9214 = vrot.slane %v9212, 4
        %v9215 = vrot.slane %v8334, 5
        %v9216 = vsel %vm1946, %v9214, %v9215
        %s9217 = scalar_lea.vmem %s3, 160
        %v9218 = vld [vmem:[%s9217] sm:$0xf]
        %v9219 = vld [vmem:[%s9217 + $0x4] sm:$0xf]
        %v9220 = vld [vmem:[%s9217 + $0x8] sm:$0xf]
        %v9221 = vld [vmem:[%s9217 + $0xc] sm:$0xf]
        %v9222 = vld [vmem:[%s9217 + $0x10] sm:$0xf]
        %v9223 = vld [vmem:[%s9217 + $0x14] sm:$0xf]
        %v9224 = vld [vmem:[%s9217 + $0x18] sm:$0xf]
        %v9225 = vld [vmem:[%s9217 + $0x1c] sm:$0xf]
        %v9226 = vunpack.c.l.b16 %v9108
        %v9227 = vunpack.c.l.b16 %v9111
        %v9228 = vunpack.c.l.b16 %v9115
        %v9229 = vunpack.c.l.b16 %v9118
        %v9230 = vunpack.c.l.b16 %v9122
        %v9231 = vunpack.c.l.b16 %v9125
        %v9232 = vunpack.c.l.b16 %v9129
        %v9233 = vunpack.c.l.b16 %v9132
        %v9234 = vunpack.c.l.b16 %v9136
        %v9235 = vunpack.c.l.b16 %v9139
        %v9236 = vunpack.c.l.b16 %v9143
        %v9237 = vunpack.c.l.b16 %v9146
        %v9238 = vunpack.c.l.b16 %v9150
        %v9239 = vunpack.c.l.b16 %v9153
        %v9240 = vunpack.c.l.b16 %v9157
        %v9241 = vunpack.c.l.b16 %v9160
        %v9242 = vunpack.c.l.b16 %v9164
        %v9243 = vunpack.c.l.b16 %v9167
        %v9244 = vunpack.c.l.b16 %v9171
        %v9245 = vunpack.c.l.b16 %v9174
        %v9246 = vunpack.c.l.b16 %v9178
        %v9247 = vunpack.c.l.b16 %v9181
        %v9248 = vunpack.c.l.b16 %v9185
        %v9249 = vunpack.c.l.b16 %v9188
        %v9250 = vunpack.c.l.b16 %v9192
        %v9251 = vunpack.c.l.b16 %v9195
        %v9252 = vunpack.c.l.b16 %v9199
        %v9253 = vunpack.c.l.b16 %v9202
        %v9254 = vunpack.c.l.b16 %v9206
        %v9255 = vunpack.c.l.b16 %v9209
        %v9256 = vunpack.c.l.b16 %v9213
        %v9257 = vunpack.c.l.b16 %v9216
        %v9258 = vpack.c.b16 %v9227, %v9226
        %v9259 = vpack.c.b16 %v9229, %v9228
        %v9260 = vpack.c.b16 %v9231, %v9230
        %v9261 = vpack.c.b16 %v9233, %v9232
        %v9262 = vpack.c.b16 %v9235, %v9234
        %v9263 = vpack.c.b16 %v9237, %v9236
        %v9264 = vpack.c.b16 %v9239, %v9238
        %v9265 = vpack.c.b16 %v9241, %v9240
        %v9266 = vpack.c.b16 %v9243, %v9242
        %v9267 = vpack.c.b16 %v9245, %v9244
        %v9268 = vpack.c.b16 %v9247, %v9246
        %v9269 = vpack.c.b16 %v9249, %v9248
        %v9270 = vpack.c.b16 %v9251, %v9250
        %v9271 = vpack.c.b16 %v9253, %v9252
        %v9272 = vpack.c.b16 %v9255, %v9254
        %v9273 = vpack.c.b16 %v9257, %v9256
        %v9282 = vunpack.c.l.b16 %v9218
        %v9283 = vunpack.c.l.b16 %v9219
        %v9284 = vunpack.c.l.b16 %v9220
        %v9285 = vunpack.c.l.b16 %v9221
        %v9286 = vunpack.c.l.b16 %v9222
        %v9287 = vunpack.c.l.b16 %v9223
        %v9288 = vunpack.c.l.b16 %v9224
        %v9289 = vunpack.c.l.b16 %v9225
        %v9290 = vpack.c.b16 %v9283, %v9282
        %v9291 = vpack.c.b16 %v9285, %v9284
        %v9292 = vpack.c.b16 %v9287, %v9286
        %v9293 = vpack.c.b16 %v9289, %v9288
        %v9299 = vsel %vm1373, %v9258, 0
        %v9302 = vsel %vm1373, %v9259, 0
        %v9305 = vsel %vm1373, %v9260, 0
        %v9308 = vsel %vm1373, %v9261, 0
        %v9311 = vsel %vm1373, %v9262, 0
        %v9314 = vsel %vm1373, %v9263, 0
        %v9317 = vsel %vm1373, %v9264, 0
        %v9320 = vsel %vm1373, %v9265, 0
        %v9323 = vsel %vm1373, %v9266, 0
        %v9326 = vsel %vm1373, %v9267, 0
        %v9329 = vsel %vm1373, %v9268, 0
        %v9332 = vsel %vm1373, %v9269, 0
        %v9335 = vsel %vm1373, %v9270, 0
        %v9338 = vsel %vm1373, %v9271, 0
        %v9341 = vsel %vm1373, %v9272, 0
        %v9344 = vsel %vm1373, %v9273, 0
        %9346 = vmatprep.subr.bf16.mxu0 0
        %9347 = vmatpush1.bf16.msra.mxu0 %v9290
        %9348 = vmatprep.subr.bf16.mxu0 0
        %9349 = vmatpush1.bf16.msra.mxu0 %v9291
        %9350 = vmatprep.subr.bf16.mxu0 0
        %9351 = vmatpush1.bf16.msra.mxu0 %v9292
        %9352 = vmatprep.subr.bf16.mxu0 0
        %9353 = vmatpush1.bf16.msra.mxu0 %v9293
        %9354 = vmatprep.subr.bf16.mxu0 0
        %9355 = vmatpush1.bf16.msra.mxu0 0
        %9356 = vmatprep.subr.bf16.mxu0 0
        %9357 = vmatpush1.bf16.msra.mxu0 0
        %9358 = vmatprep.subr.bf16.mxu0 0
        %9359 = vmatpush1.bf16.msra.mxu0 0
        %9360 = vmatprep.subr.bf16.mxu0 0
        %9361 = vmatpush1.bf16.msra.mxu0 0
        %9362 = vmatprep.subr.bf16.mxu0 0
        %9363 = vmatpush1.bf16.msra.mxu0 0
        %9364 = vmatprep.subr.bf16.mxu0 0
        %9365 = vmatpush1.bf16.msra.mxu0 0
        %9366 = vmatprep.subr.bf16.mxu0 0
        %9367 = vmatpush1.bf16.msra.mxu0 0
        %9368 = vmatprep.subr.bf16.mxu0 0
        %9369 = vmatpush1.bf16.msra.mxu0 0
        %9370 = vmatprep.subr.bf16.mxu0 0
        %9371 = vmatpush1.bf16.msra.mxu0 0
        %9372 = vmatprep.subr.bf16.mxu0 0
        %9373 = vmatpush1.bf16.msra.mxu0 0
        %9374 = vmatprep.subr.bf16.mxu0 0
        %9375 = vmatpush1.bf16.msra.mxu0 0
        %9376 = vmatprep.subr.bf16.mxu0 0
        %9377 = vmatpush1.bf16.msra.mxu0 0
        %9378 = vmatprep.mubr.bf16.mxu0 0
        %9379 = vmatmul.mubr.bf16.gmra.mrb[0].mxu0 %v9299
        %v9380 = vpop.f32.mrb[0].mxu0
        %v9381 = vadd.f32 0.0, %v9380
        %v9382 = vpop.f32.mrb[0].mxu0
        %v9383 = vpop.f32.mrb[0].mxu0
        %v9384 = vadd.f32 0.0, %v9383
        %v9385 = vpop.f32.mrb[0].mxu0
        %9386 = vmatprep.mubr.bf16.mxu0 0
        %9387 = vmatmul.mubr.bf16.gmra.mrb[0].mxu0 %v9302
        %v9388 = vpop.f32.mrb[0].mxu0
        %v9389 = vadd.f32 0.0, %v9388
        %v9390 = vpop.f32.mrb[0].mxu0
        %v9391 = vpop.f32.mrb[0].mxu0
        %v9392 = vadd.f32 0.0, %v9391
        %v9393 = vpop.f32.mrb[0].mxu0
        %9394 = vmatprep.mubr.bf16.mxu0 0
        %9395 = vmatmul.mubr.bf16.gmra.mrb[0].mxu0 %v9305
        %v9396 = vpop.f32.mrb[0].mxu0
        %v9397 = vadd.f32 0.0, %v9396
        %v9398 = vpop.f32.mrb[0].mxu0
        %v9399 = vpop.f32.mrb[0].mxu0
        %v9400 = vadd.f32 0.0, %v9399
        %v9401 = vpop.f32.mrb[0].mxu0
        %9402 = vmatprep.mubr.bf16.mxu0 0
        %9403 = vmatmul.mubr.bf16.gmra.mrb[0].mxu0 %v9308
        %v9404 = vpop.f32.mrb[0].mxu0
        %v9405 = vadd.f32 0.0, %v9404
        %v9406 = vpop.f32.mrb[0].mxu0
        %v9407 = vpop.f32.mrb[0].mxu0
        %v9408 = vadd.f32 0.0, %v9407
        %v9409 = vpop.f32.mrb[0].mxu0
        %9410 = vmatprep.mubr.bf16.mxu0 0
        %9411 = vmatmul.mubr.bf16.gmra.mrb[0].mxu0 %v9311
        %v9412 = vpop.f32.mrb[0].mxu0
        %v9413 = vadd.f32 0.0, %v9412
        %v9414 = vpop.f32.mrb[0].mxu0
        %v9415 = vpop.f32.mrb[0].mxu0
        %v9416 = vadd.f32 0.0, %v9415
        %v9417 = vpop.f32.mrb[0].mxu0
        %9418 = vmatprep.mubr.bf16.mxu0 0
        %9419 = vmatmul.mubr.bf16.gmra.mrb[0].mxu0 %v9314
        %v9420 = vpop.f32.mrb[0].mxu0
        %v9421 = vadd.f32 0.0, %v9420
        %v9422 = vpop.f32.mrb[0].mxu0
        %v9423 = vpop.f32.mrb[0].mxu0
        %v9424 = vadd.f32 0.0, %v9423
        %v9425 = vpop.f32.mrb[0].mxu0
        %9426 = vmatprep.mubr.bf16.mxu0 0
        %9427 = vmatmul.mubr.bf16.gmra.mrb[0].mxu0 %v9317
        %v9428 = vpop.f32.mrb[0].mxu0
        %v9429 = vadd.f32 0.0, %v9428
        %v9430 = vpop.f32.mrb[0].mxu0
        %v9431 = vpop.f32.mrb[0].mxu0
        %v9432 = vadd.f32 0.0, %v9431
        %v9433 = vpop.f32.mrb[0].mxu0
        %9434 = vmatprep.mubr.bf16.mxu0 0
        %9435 = vmatmul.mubr.bf16.gmra.mrb[0].mxu0 %v9320
        %v9436 = vpop.f32.mrb[0].mxu0
        %v9437 = vadd.f32 0.0, %v9436
        %v9438 = vpop.f32.mrb[0].mxu0
        %v9439 = vpop.f32.mrb[0].mxu0
        %v9440 = vadd.f32 0.0, %v9439
        %v9441 = vpop.f32.mrb[0].mxu0
        %9442 = vmatprep.mubr.bf16.mxu0 0
        %9443 = vmatmul.mubr.bf16.gmra.mrb[0].mxu0 %v9323
        %v9444 = vpop.f32.mrb[0].mxu0
        %v9445 = vadd.f32 0.0, %v9444
        %v9446 = vpop.f32.mrb[0].mxu0
        %v9447 = vpop.f32.mrb[0].mxu0
        %v9448 = vadd.f32 0.0, %v9447
        %v9449 = vpop.f32.mrb[0].mxu0
        %9450 = vmatprep.mubr.bf16.mxu0 0
        %9451 = vmatmul.mubr.bf16.gmra.mrb[0].mxu0 %v9326
        %v9452 = vpop.f32.mrb[0].mxu0
        %v9453 = vadd.f32 0.0, %v9452
        %v9454 = vpop.f32.mrb[0].mxu0
        %v9455 = vpop.f32.mrb[0].mxu0
        %v9456 = vadd.f32 0.0, %v9455
        %v9457 = vpop.f32.mrb[0].mxu0
        %9458 = vmatprep.mubr.bf16.mxu0 0
        %9459 = vmatmul.mubr.bf16.gmra.mrb[0].mxu0 %v9329
        %v9460 = vpop.f32.mrb[0].mxu0
        %v9461 = vadd.f32 0.0, %v9460
        %v9462 = vpop.f32.mrb[0].mxu0
        %v9463 = vpop.f32.mrb[0].mxu0
        %v9464 = vadd.f32 0.0, %v9463
        %v9465 = vpop.f32.mrb[0].mxu0
        %9466 = vmatprep.mubr.bf16.mxu0 0
        %9467 = vmatmul.mubr.bf16.gmra.mrb[0].mxu0 %v9332
        %v9468 = vpop.f32.mrb[0].mxu0
        %v9469 = vadd.f32 0.0, %v9468
        %v9470 = vpop.f32.mrb[0].mxu0
        %v9471 = vpop.f32.mrb[0].mxu0
        %v9472 = vadd.f32 0.0, %v9471
        %v9473 = vpop.f32.mrb[0].mxu0
        %9474 = vmatprep.mubr.bf16.mxu0 0
        %9475 = vmatmul.mubr.bf16.gmra.mrb[0].mxu0 %v9335
        %v9476 = vpop.f32.mrb[0].mxu0
        %v9477 = vadd.f32 0.0, %v9476
        %v9478 = vpop.f32.mrb[0].mxu0
        %v9479 = vpop.f32.mrb[0].mxu0
        %v9480 = vadd.f32 0.0, %v9479
        %v9481 = vpop.f32.mrb[0].mxu0
        %9482 = vmatprep.mubr.bf16.mxu0 0
        %9483 = vmatmul.mubr.bf16.gmra.mrb[0].mxu0 %v9338
        %v9484 = vpop.f32.mrb[0].mxu0
        %v9485 = vadd.f32 0.0, %v9484
        %v9486 = vpop.f32.mrb[0].mxu0
        %v9487 = vpop.f32.mrb[0].mxu0
        %v9488 = vadd.f32 0.0, %v9487
        %v9489 = vpop.f32.mrb[0].mxu0
        %9490 = vmatprep.mubr.bf16.mxu0 0
        %9491 = vmatmul.mubr.bf16.gmra.mrb[0].mxu0 %v9341
        %v9492 = vpop.f32.mrb[0].mxu0
        %v9493 = vadd.f32 0.0, %v9492
        %v9494 = vpop.f32.mrb[0].mxu0
        %v9495 = vpop.f32.mrb[0].mxu0
        %v9496 = vadd.f32 0.0, %v9495
        %v9497 = vpop.f32.mrb[0].mxu0
        %9498 = vmatprep.mubr.bf16.mxu0 0
        %9499 = vmatmul.mubr.bf16.gmra.mrb[0].mxu0 %v9344
        %v9500 = vpop.f32.mrb[0].mxu0
        %v9501 = vadd.f32 0.0, %v9500
        %v9502 = vpop.f32.mrb[0].mxu0
        %v9503 = vpop.f32.mrb[0].mxu0
        %v9504 = vadd.f32 0.0, %v9503
        %v9505 = vpop.f32.mrb[0].mxu0
        %9506 = vdwg.mxu0
        %v9507 = vadd.f32 %v9009, %v9381
        %v9508 = vadd.f32 %v9010, %v9384
        %v9509 = vadd.f32 %v9011, %v9389
        %v9510 = vadd.f32 %v9012, %v9392
        %v9511 = vadd.f32 %v9013, %v9397
        %v9512 = vadd.f32 %v9014, %v9400
        %v9513 = vadd.f32 %v9015, %v9405
        %v9514 = vadd.f32 %v9016, %v9408
        %v9515 = vadd.f32 %v9017, %v9413
        %v9516 = vadd.f32 %v9018, %v9416
        %v9517 = vadd.f32 %v9019, %v9421
        %v9518 = vadd.f32 %v9020, %v9424
        %v9519 = vadd.f32 %v9021, %v9429
        %v9520 = vadd.f32 %v9022, %v9432
        %v9521 = vadd.f32 %v9023, %v9437
        %v9522 = vadd.f32 %v9024, %v9440
        %v9523 = vadd.f32 %v9025, %v9445
        %v9524 = vadd.f32 %v9026, %v9448
        %v9525 = vadd.f32 %v9027, %v9453
        %v9526 = vadd.f32 %v9028, %v9456
        %v9527 = vadd.f32 %v9029, %v9461
        %v9528 = vadd.f32 %v9030, %v9464
        %v9529 = vadd.f32 %v9031, %v9469
        %v9530 = vadd.f32 %v9032, %v9472
        %v9531 = vadd.f32 %v9033, %v9477
        %v9532 = vadd.f32 %v9034, %v9480
        %v9533 = vadd.f32 %v9035, %v9485
        %v9534 = vadd.f32 %v9036, %v9488
        %v9535 = vadd.f32 %v9037, %v9493
        %v9536 = vadd.f32 %v9038, %v9496
        %v9537 = vadd.f32 %v9039, %v9501
        %v9538 = vadd.f32 %v9040, %v9504
        %s9539 = scalar_lea.vmem [#allocation3], 24
        %v9540 = vld [vmem:[%s9539] sm:$0xf]
        %v9541 = vld [vmem:[%s9539 + $0x4] sm:$0xf]
        %v9542 = vld [vmem:[%s9539 + $0xc] sm:$0xf]
        %v9543 = vld [vmem:[%s9539 + $0x10] sm:$0xf]
        %v9544 = vld [vmem:[%s9539 + $0x18] sm:$0xf]
        %v9545 = vld [vmem:[%s9539 + $0x1c] sm:$0xf]
        %v9546 = vld [vmem:[%s9539 + $0x24] sm:$0xf]
        %v9547 = vld [vmem:[%s9539 + $0x28] sm:$0xf]
        %v9548 = vld [vmem:[%s9539 + $0x30] sm:$0xf]
        %v9549 = vld [vmem:[%s9539 + $0x34] sm:$0xf]
        %v9550 = vld [vmem:[%s9539 + $0x3c] sm:$0xf]
        %v9551 = vld [vmem:[%s9539 + $0x40] sm:$0xf]
        %v9552 = vld [vmem:[%s9539 + $0x48] sm:$0xf]
        %v9553 = vld [vmem:[%s9539 + $0x4c] sm:$0xf]
        %v9554 = vld [vmem:[%s9539 + $0x54] sm:$0xf]
        %v9555 = vld [vmem:[%s9539 + $0x58] sm:$0xf]
        %v9556 = vld [vmem:[%s9539 + $0x60] sm:$0xf]
        %v9557 = vld [vmem:[%s9539 + $0x64] sm:$0xf]
        %v9558 = vld [vmem:[%s9539 + $0x6c] sm:$0xf]
        %v9559 = vld [vmem:[%s9539 + $0x70] sm:$0xf]
        %v9560 = vld [vmem:[%s9539 + $0x78] sm:$0xf]
        %v9561 = vld [vmem:[%s9539 + $0x7c] sm:$0xf]
        %v9562 = vld [vmem:[%s9539 + $0x84] sm:$0xf]
        %v9563 = vld [vmem:[%s9539 + $0x88] sm:$0xf]
        %v9564 = vld [vmem:[%s9539 + $0x90] sm:$0xf]
        %v9565 = vld [vmem:[%s9539 + $0x94] sm:$0xf]
        %v9566 = vld [vmem:[%s9539 + $0x9c] sm:$0xf]
        %v9567 = vld [vmem:[%s9539 + $0xa0] sm:$0xf]
        %v9568 = vld [vmem:[%s9539 + $0xa8] sm:$0xf]
        %v9569 = vld [vmem:[%s9539 + $0xac] sm:$0xf]
        %v9570 = vld [vmem:[%s9539 + $0xb4] sm:$0xf]
        %v9571 = vld [vmem:[%s9539 + $0xb8] sm:$0xf]
        %s9572 = scalar_lea.vmem %s3, 192
        %v9573 = vld [vmem:[%s9572] sm:$0xf]
        %v9574 = vld [vmem:[%s9572 + $0x4] sm:$0xf]
        %v9575 = vld [vmem:[%s9572 + $0x8] sm:$0xf]
        %v9576 = vld [vmem:[%s9572 + $0xc] sm:$0xf]
        %v9577 = vld [vmem:[%s9572 + $0x10] sm:$0xf]
        %v9578 = vld [vmem:[%s9572 + $0x14] sm:$0xf]
        %v9579 = vld [vmem:[%s9572 + $0x18] sm:$0xf]
        %v9580 = vld [vmem:[%s9572 + $0x1c] sm:$0xf]
        %v9613 = vunpack.c.l.b16 %v9540
        %v9614 = vunpack.c.l.b16 %v9541
        %v9615 = vunpack.c.l.b16 %v9542
        %v9616 = vunpack.c.l.b16 %v9543
        %v9617 = vunpack.c.l.b16 %v9544
        %v9618 = vunpack.c.l.b16 %v9545
        %v9619 = vunpack.c.l.b16 %v9546
        %v9620 = vunpack.c.l.b16 %v9547
        %v9621 = vunpack.c.l.b16 %v9548
        %v9622 = vunpack.c.l.b16 %v9549
        %v9623 = vunpack.c.l.b16 %v9550
        %v9624 = vunpack.c.l.b16 %v9551
        %v9625 = vunpack.c.l.b16 %v9552
        %v9626 = vunpack.c.l.b16 %v9553
        %v9627 = vunpack.c.l.b16 %v9554
        %v9628 = vunpack.c.l.b16 %v9555
        %v9629 = vunpack.c.l.b16 %v9556
        %v9630 = vunpack.c.l.b16 %v9557
        %v9631 = vunpack.c.l.b16 %v9558
        %v9632 = vunpack.c.l.b16 %v9559
        %v9633 = vunpack.c.l.b16 %v9560
        %v9634 = vunpack.c.l.b16 %v9561
        %v9635 = vunpack.c.l.b16 %v9562
        %v9636 = vunpack.c.l.b16 %v9563
        %v9637 = vunpack.c.l.b16 %v9564
        %v9638 = vunpack.c.l.b16 %v9565
        %v9639 = vunpack.c.l.b16 %v9566
        %v9640 = vunpack.c.l.b16 %v9567
        %v9641 = vunpack.c.l.b16 %v9568
        %v9642 = vunpack.c.l.b16 %v9569
        %v9643 = vunpack.c.l.b16 %v9570
        %v9644 = vunpack.c.l.b16 %v9571
        %v9645 = vpack.c.b16 %v9614, %v9613
        %v9646 = vpack.c.b16 %v9616, %v9615
        %v9647 = vpack.c.b16 %v9618, %v9617
        %v9648 = vpack.c.b16 %v9620, %v9619
        %v9649 = vpack.c.b16 %v9622, %v9621
        %v9650 = vpack.c.b16 %v9624, %v9623
        %v9651 = vpack.c.b16 %v9626, %v9625
        %v9652 = vpack.c.b16 %v9628, %v9627
        %v9653 = vpack.c.b16 %v9630, %v9629
        %v9654 = vpack.c.b16 %v9632, %v9631
        %v9655 = vpack.c.b16 %v9634, %v9633
        %v9656 = vpack.c.b16 %v9636, %v9635
        %v9657 = vpack.c.b16 %v9638, %v9637
        %v9658 = vpack.c.b16 %v9640, %v9639
        %v9659 = vpack.c.b16 %v9642, %v9641
        %v9660 = vpack.c.b16 %v9644, %v9643
        %v9669 = vunpack.c.l.b16 %v9573
        %v9670 = vunpack.c.l.b16 %v9574
        %v9671 = vunpack.c.l.b16 %v9575
        %v9672 = vunpack.c.l.b16 %v9576
        %v9673 = vunpack.c.l.b16 %v9577
        %v9674 = vunpack.c.l.b16 %v9578
        %v9675 = vunpack.c.l.b16 %v9579
        %v9676 = vunpack.c.l.b16 %v9580
        %v9677 = vpack.c.b16 %v9670, %v9669
        %v9678 = vpack.c.b16 %v9672, %v9671
        %v9679 = vpack.c.b16 %v9674, %v9673
        %v9680 = vpack.c.b16 %v9676, %v9675
        %v9686 = vsel %vm1373, %v9645, 0
        %v9689 = vsel %vm1373, %v9646, 0
        %v9692 = vsel %vm1373, %v9647, 0
        %v9695 = vsel %vm1373, %v9648, 0
        %v9698 = vsel %vm1373, %v9649, 0
        %v9701 = vsel %vm1373, %v9650, 0
        %v9704 = vsel %vm1373, %v9651, 0
        %v9707 = vsel %vm1373, %v9652, 0
        %v9710 = vsel %vm1373, %v9653, 0
        %v9713 = vsel %vm1373, %v9654, 0
        %v9716 = vsel %vm1373, %v9655, 0
        %v9719 = vsel %vm1373, %v9656, 0
        %v9722 = vsel %vm1373, %v9657, 0
        %v9725 = vsel %vm1373, %v9658, 0
        %v9728 = vsel %vm1373, %v9659, 0
        %v9731 = vsel %vm1373, %v9660, 0
        %9733 = vmatprep.subr.bf16.mxu0 0
        %9734 = vmatpush1.bf16.msra.mxu0 %v9677
        %9735 = vmatprep.subr.bf16.mxu0 0
        %9736 = vmatpush1.bf16.msra.mxu0 %v9678
        %9737 = vmatprep.subr.bf16.mxu0 0
        %9738 = vmatpush1.bf16.msra.mxu0 %v9679
        %9739 = vmatprep.subr.bf16.mxu0 0
        %9740 = vmatpush1.bf16.msra.mxu0 %v9680
        %9741 = vmatprep.subr.bf16.mxu0 0
        %9742 = vmatpush1.bf16.msra.mxu0 0
        %9743 = vmatprep.subr.bf16.mxu0 0
        %9744 = vmatpush1.bf16.msra.mxu0 0
        %9745 = vmatprep.subr.bf16.mxu0 0
        %9746 = vmatpush1.bf16.msra.mxu0 0
        %9747 = vmatprep.subr.bf16.mxu0 0
        %9748 = vmatpush1.bf16.msra.mxu0 0
        %9749 = vmatprep.subr.bf16.mxu0 0
        %9750 = vmatpush1.bf16.msra.mxu0 0
        %9751 = vmatprep.subr.bf16.mxu0 0
        %9752 = vmatpush1.bf16.msra.mxu0 0
        %9753 = vmatprep.subr.bf16.mxu0 0
        %9754 = vmatpush1.bf16.msra.mxu0 0
        %9755 = vmatprep.subr.bf16.mxu0 0
        %9756 = vmatpush1.bf16.msra.mxu0 0
        %9757 = vmatprep.subr.bf16.mxu0 0
        %9758 = vmatpush1.bf16.msra.mxu0 0
        %9759 = vmatprep.subr.bf16.mxu0 0
        %9760 = vmatpush1.bf16.msra.mxu0 0
        %9761 = vmatprep.subr.bf16.mxu0 0
        %9762 = vmatpush1.bf16.msra.mxu0 0
        %9763 = vmatprep.subr.bf16.mxu0 0
        %9764 = vmatpush1.bf16.msra.mxu0 0
        %9765 = vmatprep.mubr.bf16.mxu0 0
        %9766 = vmatmul.mubr.bf16.gmra.mrb[0].mxu0 %v9686
        %v9767 = vpop.f32.mrb[0].mxu0
        %v9768 = vadd.f32 0.0, %v9767
        %v9769 = vpop.f32.mrb[0].mxu0
        %v9770 = vpop.f32.mrb[0].mxu0
        %v9771 = vadd.f32 0.0, %v9770
        %v9772 = vpop.f32.mrb[0].mxu0
        %9773 = vmatprep.mubr.bf16.mxu0 0
        %9774 = vmatmul.mubr.bf16.gmra.mrb[0].mxu0 %v9689
        %v9775 = vpop.f32.mrb[0].mxu0
        %v9776 = vadd.f32 0.0, %v9775
        %v9777 = vpop.f32.mrb[0].mxu0
        %v9778 = vpop.f32.mrb[0].mxu0
        %v9779 = vadd.f32 0.0, %v9778
        %v9780 = vpop.f32.mrb[0].mxu0
        %9781 = vmatprep.mubr.bf16.mxu0 0
        %9782 = vmatmul.mubr.bf16.gmra.mrb[0].mxu0 %v9692
        %v9783 = vpop.f32.mrb[0].mxu0
        %v9784 = vadd.f32 0.0, %v9783
        %v9785 = vpop.f32.mrb[0].mxu0
        %v9786 = vpop.f32.mrb[0].mxu0
        %v9787 = vadd.f32 0.0, %v9786
        %v9788 = vpop.f32.mrb[0].mxu0
        %9789 = vmatprep.mubr.bf16.mxu0 0
        %9790 = vmatmul.mubr.bf16.gmra.mrb[0].mxu0 %v9695
        %v9791 = vpop.f32.mrb[0].mxu0
        %v9792 = vadd.f32 0.0, %v9791
        %v9793 = vpop.f32.mrb[0].mxu0
        %v9794 = vpop.f32.mrb[0].mxu0
        %v9795 = vadd.f32 0.0, %v9794
        %v9796 = vpop.f32.mrb[0].mxu0
        %9797 = vmatprep.mubr.bf16.mxu0 0
        %9798 = vmatmul.mubr.bf16.gmra.mrb[0].mxu0 %v9698
        %v9799 = vpop.f32.mrb[0].mxu0
        %v9800 = vadd.f32 0.0, %v9799
        %v9801 = vpop.f32.mrb[0].mxu0
        %v9802 = vpop.f32.mrb[0].mxu0
        %v9803 = vadd.f32 0.0, %v9802
        %v9804 = vpop.f32.mrb[0].mxu0
        %9805 = vmatprep.mubr.bf16.mxu0 0
        %9806 = vmatmul.mubr.bf16.gmra.mrb[0].mxu0 %v9701
        %v9807 = vpop.f32.mrb[0].mxu0
        %v9808 = vadd.f32 0.0, %v9807
        %v9809 = vpop.f32.mrb[0].mxu0
        %v9810 = vpop.f32.mrb[0].mxu0
        %v9811 = vadd.f32 0.0, %v9810
        %v9812 = vpop.f32.mrb[0].mxu0
        %9813 = vmatprep.mubr.bf16.mxu0 0
        %9814 = vmatmul.mubr.bf16.gmra.mrb[0].mxu0 %v9704
        %v9815 = vpop.f32.mrb[0].mxu0
        %v9816 = vadd.f32 0.0, %v9815
        %v9817 = vpop.f32.mrb[0].mxu0
        %v9818 = vpop.f32.mrb[0].mxu0
        %v9819 = vadd.f32 0.0, %v9818
        %v9820 = vpop.f32.mrb[0].mxu0
        %9821 = vmatprep.mubr.bf16.mxu0 0
        %9822 = vmatmul.mubr.bf16.gmra.mrb[0].mxu0 %v9707
        %v9823 = vpop.f32.mrb[0].mxu0
        %v9824 = vadd.f32 0.0, %v9823
        %v9825 = vpop.f32.mrb[0].mxu0
        %v9826 = vpop.f32.mrb[0].mxu0
        %v9827 = vadd.f32 0.0, %v9826
        %v9828 = vpop.f32.mrb[0].mxu0
        %9829 = vmatprep.mubr.bf16.mxu0 0
        %9830 = vmatmul.mubr.bf16.gmra.mrb[0].mxu0 %v9710
        %v9831 = vpop.f32.mrb[0].mxu0
        %v9832 = vadd.f32 0.0, %v9831
        %v9833 = vpop.f32.mrb[0].mxu0
        %v9834 = vpop.f32.mrb[0].mxu0
        %v9835 = vadd.f32 0.0, %v9834
        %v9836 = vpop.f32.mrb[0].mxu0
        %9837 = vmatprep.mubr.bf16.mxu0 0
        %9838 = vmatmul.mubr.bf16.gmra.mrb[0].mxu0 %v9713
        %v9839 = vpop.f32.mrb[0].mxu0
        %v9840 = vadd.f32 0.0, %v9839
        %v9841 = vpop.f32.mrb[0].mxu0
        %v9842 = vpop.f32.mrb[0].mxu0
        %v9843 = vadd.f32 0.0, %v9842
        %v9844 = vpop.f32.mrb[0].mxu0
        %9845 = vmatprep.mubr.bf16.mxu0 0
        %9846 = vmatmul.mubr.bf16.gmra.mrb[0].mxu0 %v9716
        %v9847 = vpop.f32.mrb[0].mxu0
        %v9848 = vadd.f32 0.0, %v9847
        %v9849 = vpop.f32.mrb[0].mxu0
        %v9850 = vpop.f32.mrb[0].mxu0
        %v9851 = vadd.f32 0.0, %v9850
        %v9852 = vpop.f32.mrb[0].mxu0
        %9853 = vmatprep.mubr.bf16.mxu0 0
        %9854 = vmatmul.mubr.bf16.gmra.mrb[0].mxu0 %v9719
        %v9855 = vpop.f32.mrb[0].mxu0
        %v9856 = vadd.f32 0.0, %v9855
        %v9857 = vpop.f32.mrb[0].mxu0
        %v9858 = vpop.f32.mrb[0].mxu0
        %v9859 = vadd.f32 0.0, %v9858
        %v9860 = vpop.f32.mrb[0].mxu0
        %9861 = vmatprep.mubr.bf16.mxu0 0
        %9862 = vmatmul.mubr.bf16.gmra.mrb[0].mxu0 %v9722
        %v9863 = vpop.f32.mrb[0].mxu0
        %v9864 = vadd.f32 0.0, %v9863
        %v9865 = vpop.f32.mrb[0].mxu0
        %v9866 = vpop.f32.mrb[0].mxu0
        %v9867 = vadd.f32 0.0, %v9866
        %v9868 = vpop.f32.mrb[0].mxu0
        %9869 = vmatprep.mubr.bf16.mxu0 0
        %9870 = vmatmul.mubr.bf16.gmra.mrb[0].mxu0 %v9725
        %v9871 = vpop.f32.mrb[0].mxu0
        %v9872 = vadd.f32 0.0, %v9871
        %v9873 = vpop.f32.mrb[0].mxu0
        %v9874 = vpop.f32.mrb[0].mxu0
        %v9875 = vadd.f32 0.0, %v9874
        %v9876 = vpop.f32.mrb[0].mxu0
        %9877 = vmatprep.mubr.bf16.mxu0 0
        %9878 = vmatmul.mubr.bf16.gmra.mrb[0].mxu0 %v9728
        %v9879 = vpop.f32.mrb[0].mxu0
        %v9880 = vadd.f32 0.0, %v9879
        %v9881 = vpop.f32.mrb[0].mxu0
        %v9882 = vpop.f32.mrb[0].mxu0
        %v9883 = vadd.f32 0.0, %v9882
        %v9884 = vpop.f32.mrb[0].mxu0
        %9885 = vmatprep.mubr.bf16.mxu0 0
        %9886 = vmatmul.mubr.bf16.gmra.mrb[0].mxu0 %v9731
        %v9887 = vpop.f32.mrb[0].mxu0
        %v9888 = vadd.f32 0.0, %v9887
        %v9889 = vpop.f32.mrb[0].mxu0
        %v9890 = vpop.f32.mrb[0].mxu0
        %v9891 = vadd.f32 0.0, %v9890
        %v9892 = vpop.f32.mrb[0].mxu0
        %9893 = vdwg.mxu0
        %v9894 = vadd.f32 %v9507, %v9768
        %v9895 = vadd.f32 %v9508, %v9771
        %v9896 = vadd.f32 %v9509, %v9776
        %v9897 = vadd.f32 %v9510, %v9779
        %v9898 = vadd.f32 %v9511, %v9784
        %v9899 = vadd.f32 %v9512, %v9787
        %v9900 = vadd.f32 %v9513, %v9792
        %v9901 = vadd.f32 %v9514, %v9795
        %v9902 = vadd.f32 %v9515, %v9800
        %v9903 = vadd.f32 %v9516, %v9803
        %v9904 = vadd.f32 %v9517, %v9808
        %v9905 = vadd.f32 %v9518, %v9811
        %v9906 = vadd.f32 %v9519, %v9816
        %v9907 = vadd.f32 %v9520, %v9819
        %v9908 = vadd.f32 %v9521, %v9824
        %v9909 = vadd.f32 %v9522, %v9827
        %v9910 = vadd.f32 %v9523, %v9832
        %v9911 = vadd.f32 %v9524, %v9835
        %v9912 = vadd.f32 %v9525, %v9840
        %v9913 = vadd.f32 %v9526, %v9843
        %v9914 = vadd.f32 %v9527, %v9848
        %v9915 = vadd.f32 %v9528, %v9851
        %v9916 = vadd.f32 %v9529, %v9856
        %v9917 = vadd.f32 %v9530, %v9859
        %v9918 = vadd.f32 %v9531, %v9864
        %v9919 = vadd.f32 %v9532, %v9867
        %v9920 = vadd.f32 %v9533, %v9872
        %v9921 = vadd.f32 %v9534, %v9875
        %v9922 = vadd.f32 %v9535, %v9880
        %v9923 = vadd.f32 %v9536, %v9883
        %v9924 = vadd.f32 %v9537, %v9888
        %v9925 = vadd.f32 %v9538, %v9891
        %v9926 = vld [vmem:[%s9539] sm:$0xf]
        %v9927 = vld [vmem:[%s9539 + $0x4] sm:$0xf]
        %v9928 = vld [vmem:[%s9539 + $0x8] sm:$0x1]
        %v9929 = vld [vmem:[%s9539 + $0xc] sm:$0xf]
        %v9930 = vld [vmem:[%s9539 + $0x10] sm:$0xf]
        %v9931 = vld [vmem:[%s9539 + $0x14] sm:$0x1]
        %v9932 = vld [vmem:[%s9539 + $0x18] sm:$0xf]
        %v9933 = vld [vmem:[%s9539 + $0x1c] sm:$0xf]
        %v9934 = vld [vmem:[%s9539 + $0x20] sm:$0x1]
        %v9935 = vld [vmem:[%s9539 + $0x24] sm:$0xf]
        %v9936 = vld [vmem:[%s9539 + $0x28] sm:$0xf]
        %v9937 = vld [vmem:[%s9539 + $0x2c] sm:$0x1]
        %v9938 = vld [vmem:[%s9539 + $0x30] sm:$0xf]
        %v9939 = vld [vmem:[%s9539 + $0x34] sm:$0xf]
        %v9940 = vld [vmem:[%s9539 + $0x38] sm:$0x1]
        %v9941 = vld [vmem:[%s9539 + $0x3c] sm:$0xf]
        %v9942 = vld [vmem:[%s9539 + $0x40] sm:$0xf]
        %v9943 = vld [vmem:[%s9539 + $0x44] sm:$0x1]
        %v9944 = vld [vmem:[%s9539 + $0x48] sm:$0xf]
        %v9945 = vld [vmem:[%s9539 + $0x4c] sm:$0xf]
        %v9946 = vld [vmem:[%s9539 + $0x50] sm:$0x1]
        %v9947 = vld [vmem:[%s9539 + $0x54] sm:$0xf]
        %v9948 = vld [vmem:[%s9539 + $0x58] sm:$0xf]
        %v9949 = vld [vmem:[%s9539 + $0x5c] sm:$0x1]
        %v9950 = vld [vmem:[%s9539 + $0x60] sm:$0xf]
        %v9951 = vld [vmem:[%s9539 + $0x64] sm:$0xf]
        %v9952 = vld [vmem:[%s9539 + $0x68] sm:$0x1]
        %v9953 = vld [vmem:[%s9539 + $0x6c] sm:$0xf]
        %v9954 = vld [vmem:[%s9539 + $0x70] sm:$0xf]
        %v9955 = vld [vmem:[%s9539 + $0x74] sm:$0x1]
        %v9956 = vld [vmem:[%s9539 + $0x78] sm:$0xf]
        %v9957 = vld [vmem:[%s9539 + $0x7c] sm:$0xf]
        %v9958 = vld [vmem:[%s9539 + $0x80] sm:$0x1]
        %v9959 = vld [vmem:[%s9539 + $0x84] sm:$0xf]
        %v9960 = vld [vmem:[%s9539 + $0x88] sm:$0xf]
        %v9961 = vld [vmem:[%s9539 + $0x8c] sm:$0x1]
        %v9962 = vld [vmem:[%s9539 + $0x90] sm:$0xf]
        %v9963 = vld [vmem:[%s9539 + $0x94] sm:$0xf]
        %v9964 = vld [vmem:[%s9539 + $0x98] sm:$0x1]
        %v9965 = vld [vmem:[%s9539 + $0x9c] sm:$0xf]
        %v9966 = vld [vmem:[%s9539 + $0xa0] sm:$0xf]
        %v9967 = vld [vmem:[%s9539 + $0xa4] sm:$0x1]
        %v9968 = vld [vmem:[%s9539 + $0xa8] sm:$0xf]
        %v9969 = vld [vmem:[%s9539 + $0xac] sm:$0xf]
        %v9970 = vld [vmem:[%s9539 + $0xb0] sm:$0x1]
        %v9971 = vld [vmem:[%s9539 + $0xb4] sm:$0xf]
        %v9972 = vld [vmem:[%s9539 + $0xb8] sm:$0xf]
        %v9973 = vld [vmem:[%s9539 + $0xbc] sm:$0x1]
        %v9975 = vshrl.u32 %v9926, 16
        %v9977 = vrot.slane %v9975, 4
        %v9978 = vshll.u32 %v9926, 16
        %v9980 = vrot.slane %v9978, 5
        %v9981 = vor.u32 %v9977, %v9980
        %v9982 = vrot.slane %v9981, 4
        %v9984 = vshll.u32 %v9927, 16
        %v9986 = vrot.slane %v9984, 5
        %v9987 = vsel %vm907, %v9982, %v9986
        %v9988 = vshrl.u32 %v9927, 16
        %v9990 = vrot.slane %v9988, 4
        %v9991 = vor.u32 %v9990, %v9986
        %v9992 = vrot.slane %v9991, 4
        %v9994 = vshll.u32 %v9928, 16
        %v9996 = vrot.slane %v9994, 5
        %v9997 = vsel %vm907, %v9992, %v9996
        %v9999 = vshrl.u32 %v9929, 16
        %v10001 = vrot.slane %v9999, 4
        %v10002 = vshll.u32 %v9929, 16
        %v10004 = vrot.slane %v10002, 5
        %v10005 = vor.u32 %v10001, %v10004
        %v10006 = vrot.slane %v10005, 4
        %v10008 = vshll.u32 %v9930, 16
        %v10010 = vrot.slane %v10008, 5
        %v10011 = vsel %vm907, %v10006, %v10010
        %v10012 = vshrl.u32 %v9930, 16
        %v10014 = vrot.slane %v10012, 4
        %v10015 = vor.u32 %v10014, %v10010
        %v10016 = vrot.slane %v10015, 4
        %v10018 = vshll.u32 %v9931, 16
        %v10020 = vrot.slane %v10018, 5
        %v10021 = vsel %vm907, %v10016, %v10020
        %v10023 = vshrl.u32 %v9932, 16
        %v10025 = vrot.slane %v10023, 4
        %v10026 = vshll.u32 %v9932, 16
        %v10028 = vrot.slane %v10026, 5
        %v10029 = vor.u32 %v10025, %v10028
        %v10030 = vrot.slane %v10029, 4
        %v10032 = vshll.u32 %v9933, 16
        %v10034 = vrot.slane %v10032, 5
        %v10035 = vsel %vm907, %v10030, %v10034
        %v10036 = vshrl.u32 %v9933, 16
        %v10038 = vrot.slane %v10036, 4
        %v10039 = vor.u32 %v10038, %v10034
        %v10040 = vrot.slane %v10039, 4
        %v10042 = vshll.u32 %v9934, 16
        %v10044 = vrot.slane %v10042, 5
        %v10045 = vsel %vm907, %v10040, %v10044
        %v10047 = vshrl.u32 %v9935, 16
        %v10049 = vrot.slane %v10047, 4
        %v10050 = vshll.u32 %v9935, 16
        %v10052 = vrot.slane %v10050, 5
        %v10053 = vor.u32 %v10049, %v10052
        %v10054 = vrot.slane %v10053, 4
        %v10056 = vshll.u32 %v9936, 16
        %v10058 = vrot.slane %v10056, 5
        %v10059 = vsel %vm907, %v10054, %v10058
        %v10060 = vshrl.u32 %v9936, 16
        %v10062 = vrot.slane %v10060, 4
        %v10063 = vor.u32 %v10062, %v10058
        %v10064 = vrot.slane %v10063, 4
        %v10066 = vshll.u32 %v9937, 16
        %v10068 = vrot.slane %v10066, 5
        %v10069 = vsel %vm907, %v10064, %v10068
        %v10071 = vshrl.u32 %v9938, 16
        %v10073 = vrot.slane %v10071, 4
        %v10074 = vshll.u32 %v9938, 16
        %v10076 = vrot.slane %v10074, 5
        %v10077 = vor.u32 %v10073, %v10076
        %v10078 = vrot.slane %v10077, 4
        %v10080 = vshll.u32 %v9939, 16
        %v10082 = vrot.slane %v10080, 5
        %v10083 = vsel %vm907, %v10078, %v10082
        %v10084 = vshrl.u32 %v9939, 16
        %v10086 = vrot.slane %v10084, 4
        %v10087 = vor.u32 %v10086, %v10082
        %v10088 = vrot.slane %v10087, 4
        %v10090 = vshll.u32 %v9940, 16
        %v10092 = vrot.slane %v10090, 5
        %v10093 = vsel %vm907, %v10088, %v10092
        %v10095 = vshrl.u32 %v9941, 16
        %v10097 = vrot.slane %v10095, 4
        %v10098 = vshll.u32 %v9941, 16
        %v10100 = vrot.slane %v10098, 5
        %v10101 = vor.u32 %v10097, %v10100
        %v10102 = vrot.slane %v10101, 4
        %v10104 = vshll.u32 %v9942, 16
        %v10106 = vrot.slane %v10104, 5
        %v10107 = vsel %vm907, %v10102, %v10106
        %v10108 = vshrl.u32 %v9942, 16
        %v10110 = vrot.slane %v10108, 4
        %v10111 = vor.u32 %v10110, %v10106
        %v10112 = vrot.slane %v10111, 4
        %v10114 = vshll.u32 %v9943, 16
        %v10116 = vrot.slane %v10114, 5
        %v10117 = vsel %vm907, %v10112, %v10116
        %v10119 = vshrl.u32 %v9944, 16
        %v10121 = vrot.slane %v10119, 4
        %v10122 = vshll.u32 %v9944, 16
        %v10124 = vrot.slane %v10122, 5
        %v10125 = vor.u32 %v10121, %v10124
        %v10126 = vrot.slane %v10125, 4
        %v10128 = vshll.u32 %v9945, 16
        %v10130 = vrot.slane %v10128, 5
        %v10131 = vsel %vm907, %v10126, %v10130
        %v10132 = vshrl.u32 %v9945, 16
        %v10134 = vrot.slane %v10132, 4
        %v10135 = vor.u32 %v10134, %v10130
        %v10136 = vrot.slane %v10135, 4
        %v10138 = vshll.u32 %v9946, 16
        %v10140 = vrot.slane %v10138, 5
        %v10141 = vsel %vm907, %v10136, %v10140
        %v10143 = vshrl.u32 %v9947, 16
        %v10145 = vrot.slane %v10143, 4
        %v10146 = vshll.u32 %v9947, 16
        %v10148 = vrot.slane %v10146, 5
        %v10149 = vor.u32 %v10145, %v10148
        %v10150 = vrot.slane %v10149, 4
        %v10152 = vshll.u32 %v9948, 16
        %v10154 = vrot.slane %v10152, 5
        %v10155 = vsel %vm907, %v10150, %v10154
        %v10156 = vshrl.u32 %v9948, 16
        %v10158 = vrot.slane %v10156, 4
        %v10159 = vor.u32 %v10158, %v10154
        %v10160 = vrot.slane %v10159, 4
        %v10162 = vshll.u32 %v9949, 16
        %v10164 = vrot.slane %v10162, 5
        %v10165 = vsel %vm907, %v10160, %v10164
        %v10167 = vshrl.u32 %v9950, 16
        %v10169 = vrot.slane %v10167, 4
        %v10170 = vshll.u32 %v9950, 16
        %v10172 = vrot.slane %v10170, 5
        %v10173 = vor.u32 %v10169, %v10172
        %v10174 = vrot.slane %v10173, 4
        %v10176 = vshll.u32 %v9951, 16
        %v10178 = vrot.slane %v10176, 5
        %v10179 = vsel %vm907, %v10174, %v10178
        %v10180 = vshrl.u32 %v9951, 16
        %v10182 = vrot.slane %v10180, 4
        %v10183 = vor.u32 %v10182, %v10178
        %v10184 = vrot.slane %v10183, 4
        %v10186 = vshll.u32 %v9952, 16
        %v10188 = vrot.slane %v10186, 5
        %v10189 = vsel %vm907, %v10184, %v10188
        %v10191 = vshrl.u32 %v9953, 16
        %v10193 = vrot.slane %v10191, 4
        %v10194 = vshll.u32 %v9953, 16
        %v10196 = vrot.slane %v10194, 5
        %v10197 = vor.u32 %v10193, %v10196
        %v10198 = vrot.slane %v10197, 4
        %v10200 = vshll.u32 %v9954, 16
        %v10202 = vrot.slane %v10200, 5
        %v10203 = vsel %vm907, %v10198, %v10202
        %v10204 = vshrl.u32 %v9954, 16
        %v10206 = vrot.slane %v10204, 4
        %v10207 = vor.u32 %v10206, %v10202
        %v10208 = vrot.slane %v10207, 4
        %v10210 = vshll.u32 %v9955, 16
        %v10212 = vrot.slane %v10210, 5
        %v10213 = vsel %vm907, %v10208, %v10212
        %v10215 = vshrl.u32 %v9956, 16
        %v10217 = vrot.slane %v10215, 4
        %v10218 = vshll.u32 %v9956, 16
        %v10220 = vrot.slane %v10218, 5
        %v10221 = vor.u32 %v10217, %v10220
        %v10222 = vrot.slane %v10221, 4
        %v10224 = vshll.u32 %v9957, 16
        %v10226 = vrot.slane %v10224, 5
        %v10227 = vsel %vm907, %v10222, %v10226
        %v10228 = vshrl.u32 %v9957, 16
        %v10230 = vrot.slane %v10228, 4
        %v10231 = vor.u32 %v10230, %v10226
        %v10232 = vrot.slane %v10231, 4
        %v10234 = vshll.u32 %v9958, 16
        %v10236 = vrot.slane %v10234, 5
        %v10237 = vsel %vm907, %v10232, %v10236
        %v10239 = vshrl.u32 %v9959, 16
        %v10241 = vrot.slane %v10239, 4
        %v10242 = vshll.u32 %v9959, 16
        %v10244 = vrot.slane %v10242, 5
        %v10245 = vor.u32 %v10241, %v10244
        %v10246 = vrot.slane %v10245, 4
        %v10248 = vshll.u32 %v9960, 16
        %v10250 = vrot.slane %v10248, 5
        %v10251 = vsel %vm907, %v10246, %v10250
        %v10252 = vshrl.u32 %v9960, 16
        %v10254 = vrot.slane %v10252, 4
        %v10255 = vor.u32 %v10254, %v10250
        %v10256 = vrot.slane %v10255, 4
        %v10258 = vshll.u32 %v9961, 16
        %v10260 = vrot.slane %v10258, 5
        %v10261 = vsel %vm907, %v10256, %v10260
        %v10263 = vshrl.u32 %v9962, 16
        %v10265 = vrot.slane %v10263, 4
        %v10266 = vshll.u32 %v9962, 16
        %v10268 = vrot.slane %v10266, 5
        %v10269 = vor.u32 %v10265, %v10268
        %v10270 = vrot.slane %v10269, 4
        %v10272 = vshll.u32 %v9963, 16
        %v10274 = vrot.slane %v10272, 5
        %v10275 = vsel %vm907, %v10270, %v10274
        %v10276 = vshrl.u32 %v9963, 16
        %v10278 = vrot.slane %v10276, 4
        %v10279 = vor.u32 %v10278, %v10274
        %v10280 = vrot.slane %v10279, 4
        %v10282 = vshll.u32 %v9964, 16
        %v10284 = vrot.slane %v10282, 5
        %v10285 = vsel %vm907, %v10280, %v10284
        %v10287 = vshrl.u32 %v9965, 16
        %v10289 = vrot.slane %v10287, 4
        %v10290 = vshll.u32 %v9965, 16
        %v10292 = vrot.slane %v10290, 5
        %v10293 = vor.u32 %v10289, %v10292
        %v10294 = vrot.slane %v10293, 4
        %v10296 = vshll.u32 %v9966, 16
        %v10298 = vrot.slane %v10296, 5
        %v10299 = vsel %vm907, %v10294, %v10298
        %v10300 = vshrl.u32 %v9966, 16
        %v10302 = vrot.slane %v10300, 4
        %v10303 = vor.u32 %v10302, %v10298
        %v10304 = vrot.slane %v10303, 4
        %v10306 = vshll.u32 %v9967, 16
        %v10308 = vrot.slane %v10306, 5
        %v10309 = vsel %vm907, %v10304, %v10308
        %v10311 = vshrl.u32 %v9968, 16
        %v10313 = vrot.slane %v10311, 4
        %v10314 = vshll.u32 %v9968, 16
        %v10316 = vrot.slane %v10314, 5
        %v10317 = vor.u32 %v10313, %v10316
        %v10318 = vrot.slane %v10317, 4
        %v10320 = vshll.u32 %v9969, 16
        %v10322 = vrot.slane %v10320, 5
        %v10323 = vsel %vm907, %v10318, %v10322
        %v10324 = vshrl.u32 %v9969, 16
        %v10326 = vrot.slane %v10324, 4
        %v10327 = vor.u32 %v10326, %v10322
        %v10328 = vrot.slane %v10327, 4
        %v10330 = vshll.u32 %v9970, 16
        %v10332 = vrot.slane %v10330, 5
        %v10333 = vsel %vm907, %v10328, %v10332
        %v10335 = vshrl.u32 %v9971, 16
        %v10337 = vrot.slane %v10335, 4
        %v10338 = vshll.u32 %v9971, 16
        %v10340 = vrot.slane %v10338, 5
        %v10341 = vor.u32 %v10337, %v10340
        %v10342 = vrot.slane %v10341, 4
        %v10344 = vshll.u32 %v9972, 16
        %v10346 = vrot.slane %v10344, 5
        %v10347 = vsel %vm907, %v10342, %v10346
        %v10348 = vshrl.u32 %v9972, 16
        %v10350 = vrot.slane %v10348, 4
        %v10351 = vor.u32 %v10350, %v10346
        %v10352 = vrot.slane %v10351, 4
        %v10354 = vshll.u32 %v9973, 16
        %v10356 = vrot.slane %v10354, 5
        %v10357 = vsel %vm907, %v10352, %v10356
        %s10358 = scalar_lea.vmem %s3, 224
        %v10359 = vld [vmem:[%s10358] sm:$0xf]
        %v10360 = vld [vmem:[%s10358 + $0x4] sm:$0xf]
        %v10361 = vld [vmem:[%s10358 + $0x8] sm:$0xf]
        %v10362 = vld [vmem:[%s10358 + $0xc] sm:$0xf]
        %v10363 = vld [vmem:[%s10358 + $0x10] sm:$0xf]
        %v10364 = vld [vmem:[%s10358 + $0x14] sm:$0xf]
        %v10365 = vld [vmem:[%s10358 + $0x18] sm:$0xf]
        %v10366 = vld [vmem:[%s10358 + $0x1c] sm:$0xf]
        %v10367 = vunpack.c.l.b16 %v9987
        %v10368 = vunpack.c.l.b16 %v9997
        %v10369 = vunpack.c.l.b16 %v10011
        %v10370 = vunpack.c.l.b16 %v10021
        %v10371 = vunpack.c.l.b16 %v10035
        %v10372 = vunpack.c.l.b16 %v10045
        %v10373 = vunpack.c.l.b16 %v10059
        %v10374 = vunpack.c.l.b16 %v10069
        %v10375 = vunpack.c.l.b16 %v10083
        %v10376 = vunpack.c.l.b16 %v10093
        %v10377 = vunpack.c.l.b16 %v10107
        %v10378 = vunpack.c.l.b16 %v10117
        %v10379 = vunpack.c.l.b16 %v10131
        %v10380 = vunpack.c.l.b16 %v10141
        %v10381 = vunpack.c.l.b16 %v10155
        %v10382 = vunpack.c.l.b16 %v10165
        %v10383 = vunpack.c.l.b16 %v10179
        %v10384 = vunpack.c.l.b16 %v10189
        %v10385 = vunpack.c.l.b16 %v10203
        %v10386 = vunpack.c.l.b16 %v10213
        %v10387 = vunpack.c.l.b16 %v10227
        %v10388 = vunpack.c.l.b16 %v10237
        %v10389 = vunpack.c.l.b16 %v10251
        %v10390 = vunpack.c.l.b16 %v10261
        %v10391 = vunpack.c.l.b16 %v10275
        %v10392 = vunpack.c.l.b16 %v10285
        %v10393 = vunpack.c.l.b16 %v10299
        %v10394 = vunpack.c.l.b16 %v10309
        %v10395 = vunpack.c.l.b16 %v10323
        %v10396 = vunpack.c.l.b16 %v10333
        %v10397 = vunpack.c.l.b16 %v10347
        %v10398 = vunpack.c.l.b16 %v10357
        %v10399 = vpack.c.b16 %v10368, %v10367
        %v10400 = vpack.c.b16 %v10370, %v10369
        %v10401 = vpack.c.b16 %v10372, %v10371
        %v10402 = vpack.c.b16 %v10374, %v10373
        %v10403 = vpack.c.b16 %v10376, %v10375
        %v10404 = vpack.c.b16 %v10378, %v10377
        %v10405 = vpack.c.b16 %v10380, %v10379
        %v10406 = vpack.c.b16 %v10382, %v10381
        %v10407 = vpack.c.b16 %v10384, %v10383
        %v10408 = vpack.c.b16 %v10386, %v10385
        %v10409 = vpack.c.b16 %v10388, %v10387
        %v10410 = vpack.c.b16 %v10390, %v10389
        %v10411 = vpack.c.b16 %v10392, %v10391
        %v10412 = vpack.c.b16 %v10394, %v10393
        %v10413 = vpack.c.b16 %v10396, %v10395
        %v10414 = vpack.c.b16 %v10398, %v10397
        %v10423 = vunpack.c.l.b16 %v10359
        %v10424 = vunpack.c.l.b16 %v10360
        %v10425 = vunpack.c.l.b16 %v10361
        %v10426 = vunpack.c.l.b16 %v10362
        %v10427 = vunpack.c.l.b16 %v10363
        %v10428 = vunpack.c.l.b16 %v10364
        %v10429 = vunpack.c.l.b16 %v10365
        %v10430 = vunpack.c.l.b16 %v10366
        %v10431 = vpack.c.b16 %v10424, %v10423
        %v10432 = vpack.c.b16 %v10426, %v10425
        %v10433 = vpack.c.b16 %v10428, %v10427
        %v10434 = vpack.c.b16 %v10430, %v10429
        %v10440 = vsel %vm1373, %v10399, 0
        %v10443 = vsel %vm1373, %v10400, 0
        %v10446 = vsel %vm1373, %v10401, 0
        %v10449 = vsel %vm1373, %v10402, 0
        %v10452 = vsel %vm1373, %v10403, 0
        %v10455 = vsel %vm1373, %v10404, 0
        %v10458 = vsel %vm1373, %v10405, 0
        %v10461 = vsel %vm1373, %v10406, 0
        %v10464 = vsel %vm1373, %v10407, 0
        %v10467 = vsel %vm1373, %v10408, 0
        %v10470 = vsel %vm1373, %v10409, 0
        %v10473 = vsel %vm1373, %v10410, 0
        %v10476 = vsel %vm1373, %v10411, 0
        %v10479 = vsel %vm1373, %v10412, 0
        %v10482 = vsel %vm1373, %v10413, 0
        %v10485 = vsel %vm1373, %v10414, 0
        %10487 = vmatprep.subr.bf16.mxu0 0
        %10488 = vmatpush1.bf16.msra.mxu0 %v10431
        %10489 = vmatprep.subr.bf16.mxu0 0
        %10490 = vmatpush1.bf16.msra.mxu0 %v10432
        %10491 = vmatprep.subr.bf16.mxu0 0
        %10492 = vmatpush1.bf16.msra.mxu0 %v10433
        %10493 = vmatprep.subr.bf16.mxu0 0
        %10494 = vmatpush1.bf16.msra.mxu0 %v10434
        %10495 = vmatprep.subr.bf16.mxu0 0
        %10496 = vmatpush1.bf16.msra.mxu0 0
        %10497 = vmatprep.subr.bf16.mxu0 0
        %10498 = vmatpush1.bf16.msra.mxu0 0
        %10499 = vmatprep.subr.bf16.mxu0 0
        %10500 = vmatpush1.bf16.msra.mxu0 0
        %10501 = vmatprep.subr.bf16.mxu0 0
        %10502 = vmatpush1.bf16.msra.mxu0 0
        %10503 = vmatprep.subr.bf16.mxu0 0
        %10504 = vmatpush1.bf16.msra.mxu0 0
        %10505 = vmatprep.subr.bf16.mxu0 0
        %10506 = vmatpush1.bf16.msra.mxu0 0
        %10507 = vmatprep.subr.bf16.mxu0 0
        %10508 = vmatpush1.bf16.msra.mxu0 0
        %10509 = vmatprep.subr.bf16.mxu0 0
        %10510 = vmatpush1.bf16.msra.mxu0 0
        %10511 = vmatprep.subr.bf16.mxu0 0
        %10512 = vmatpush1.bf16.msra.mxu0 0
        %10513 = vmatprep.subr.bf16.mxu0 0
        %10514 = vmatpush1.bf16.msra.mxu0 0
        %10515 = vmatprep.subr.bf16.mxu0 0
        %10516 = vmatpush1.bf16.msra.mxu0 0
        %10517 = vmatprep.subr.bf16.mxu0 0
        %10518 = vmatpush1.bf16.msra.mxu0 0
        %10519 = vmatprep.mubr.bf16.mxu0 0
        %10520 = vmatmul.mubr.bf16.gmra.mrb[0].mxu0 %v10440
        %v10521 = vpop.f32.mrb[0].mxu0
        %v10522 = vadd.f32 0.0, %v10521
        %v10523 = vpop.f32.mrb[0].mxu0
        %v10524 = vpop.f32.mrb[0].mxu0
        %v10525 = vadd.f32 0.0, %v10524
        %v10526 = vpop.f32.mrb[0].mxu0
        %10527 = vmatprep.mubr.bf16.mxu0 0
        %10528 = vmatmul.mubr.bf16.gmra.mrb[0].mxu0 %v10443
        %v10529 = vpop.f32.mrb[0].mxu0
        %v10530 = vadd.f32 0.0, %v10529
        %v10531 = vpop.f32.mrb[0].mxu0
        %v10532 = vpop.f32.mrb[0].mxu0
        %v10533 = vadd.f32 0.0, %v10532
        %v10534 = vpop.f32.mrb[0].mxu0
        %10535 = vmatprep.mubr.bf16.mxu0 0
        %10536 = vmatmul.mubr.bf16.gmra.mrb[0].mxu0 %v10446
        %v10537 = vpop.f32.mrb[0].mxu0
        %v10538 = vadd.f32 0.0, %v10537
        %v10539 = vpop.f32.mrb[0].mxu0
        %v10540 = vpop.f32.mrb[0].mxu0
        %v10541 = vadd.f32 0.0, %v10540
        %v10542 = vpop.f32.mrb[0].mxu0
        %10543 = vmatprep.mubr.bf16.mxu0 0
        %10544 = vmatmul.mubr.bf16.gmra.mrb[0].mxu0 %v10449
        %v10545 = vpop.f32.mrb[0].mxu0
        %v10546 = vadd.f32 0.0, %v10545
        %v10547 = vpop.f32.mrb[0].mxu0
        %v10548 = vpop.f32.mrb[0].mxu0
        %v10549 = vadd.f32 0.0, %v10548
        %v10550 = vpop.f32.mrb[0].mxu0
        %10551 = vmatprep.mubr.bf16.mxu0 0
        %10552 = vmatmul.mubr.bf16.gmra.mrb[0].mxu0 %v10452
        %v10553 = vpop.f32.mrb[0].mxu0
        %v10554 = vadd.f32 0.0, %v10553
        %v10555 = vpop.f32.mrb[0].mxu0
        %v10556 = vpop.f32.mrb[0].mxu0
        %v10557 = vadd.f32 0.0, %v10556
        %v10558 = vpop.f32.mrb[0].mxu0
        %10559 = vmatprep.mubr.bf16.mxu0 0
        %10560 = vmatmul.mubr.bf16.gmra.mrb[0].mxu0 %v10455
        %v10561 = vpop.f32.mrb[0].mxu0
        %v10562 = vadd.f32 0.0, %v10561
        %v10563 = vpop.f32.mrb[0].mxu0
        %v10564 = vpop.f32.mrb[0].mxu0
        %v10565 = vadd.f32 0.0, %v10564
        %v10566 = vpop.f32.mrb[0].mxu0
        %10567 = vmatprep.mubr.bf16.mxu0 0
        %10568 = vmatmul.mubr.bf16.gmra.mrb[0].mxu0 %v10458
        %v10569 = vpop.f32.mrb[0].mxu0
        %v10570 = vadd.f32 0.0, %v10569
        %v10571 = vpop.f32.mrb[0].mxu0
        %v10572 = vpop.f32.mrb[0].mxu0
        %v10573 = vadd.f32 0.0, %v10572
        %v10574 = vpop.f32.mrb[0].mxu0
        %10575 = vmatprep.mubr.bf16.mxu0 0
        %10576 = vmatmul.mubr.bf16.gmra.mrb[0].mxu0 %v10461
        %v10577 = vpop.f32.mrb[0].mxu0
        %v10578 = vadd.f32 0.0, %v10577
        %v10579 = vpop.f32.mrb[0].mxu0
        %v10580 = vpop.f32.mrb[0].mxu0
        %v10581 = vadd.f32 0.0, %v10580
        %v10582 = vpop.f32.mrb[0].mxu0
        %10583 = vmatprep.mubr.bf16.mxu0 0
        %10584 = vmatmul.mubr.bf16.gmra.mrb[0].mxu0 %v10464
        %v10585 = vpop.f32.mrb[0].mxu0
        %v10586 = vadd.f32 0.0, %v10585
        %v10587 = vpop.f32.mrb[0].mxu0
        %v10588 = vpop.f32.mrb[0].mxu0
        %v10589 = vadd.f32 0.0, %v10588
        %v10590 = vpop.f32.mrb[0].mxu0
        %10591 = vmatprep.mubr.bf16.mxu0 0
        %10592 = vmatmul.mubr.bf16.gmra.mrb[0].mxu0 %v10467
        %v10593 = vpop.f32.mrb[0].mxu0
        %v10594 = vadd.f32 0.0, %v10593
        %v10595 = vpop.f32.mrb[0].mxu0
        %v10596 = vpop.f32.mrb[0].mxu0
        %v10597 = vadd.f32 0.0, %v10596
        %v10598 = vpop.f32.mrb[0].mxu0
        %10599 = vmatprep.mubr.bf16.mxu0 0
        %10600 = vmatmul.mubr.bf16.gmra.mrb[0].mxu0 %v10470
        %v10601 = vpop.f32.mrb[0].mxu0
        %v10602 = vadd.f32 0.0, %v10601
        %v10603 = vpop.f32.mrb[0].mxu0
        %v10604 = vpop.f32.mrb[0].mxu0
        %v10605 = vadd.f32 0.0, %v10604
        %v10606 = vpop.f32.mrb[0].mxu0
        %10607 = vmatprep.mubr.bf16.mxu0 0
        %10608 = vmatmul.mubr.bf16.gmra.mrb[0].mxu0 %v10473
        %v10609 = vpop.f32.mrb[0].mxu0
        %v10610 = vadd.f32 0.0, %v10609
        %v10611 = vpop.f32.mrb[0].mxu0
        %v10612 = vpop.f32.mrb[0].mxu0
        %v10613 = vadd.f32 0.0, %v10612
        %v10614 = vpop.f32.mrb[0].mxu0
        %10615 = vmatprep.mubr.bf16.mxu0 0
        %10616 = vmatmul.mubr.bf16.gmra.mrb[0].mxu0 %v10476
        %v10617 = vpop.f32.mrb[0].mxu0
        %v10618 = vadd.f32 0.0, %v10617
        %v10619 = vpop.f32.mrb[0].mxu0
        %v10620 = vpop.f32.mrb[0].mxu0
        %v10621 = vadd.f32 0.0, %v10620
        %v10622 = vpop.f32.mrb[0].mxu0
        %10623 = vmatprep.mubr.bf16.mxu0 0
        %10624 = vmatmul.mubr.bf16.gmra.mrb[0].mxu0 %v10479
        %v10625 = vpop.f32.mrb[0].mxu0
        %v10626 = vadd.f32 0.0, %v10625
        %v10627 = vpop.f32.mrb[0].mxu0
        %v10628 = vpop.f32.mrb[0].mxu0
        %v10629 = vadd.f32 0.0, %v10628
        %v10630 = vpop.f32.mrb[0].mxu0
        %10631 = vmatprep.mubr.bf16.mxu0 0
        %10632 = vmatmul.mubr.bf16.gmra.mrb[0].mxu0 %v10482
        %v10633 = vpop.f32.mrb[0].mxu0
        %v10634 = vadd.f32 0.0, %v10633
        %v10635 = vpop.f32.mrb[0].mxu0
        %v10636 = vpop.f32.mrb[0].mxu0
        %v10637 = vadd.f32 0.0, %v10636
        %v10638 = vpop.f32.mrb[0].mxu0
        %10639 = vmatprep.mubr.bf16.mxu0 0
        %10640 = vmatmul.mubr.bf16.gmra.mrb[0].mxu0 %v10485
        %v10641 = vpop.f32.mrb[0].mxu0
        %v10642 = vadd.f32 0.0, %v10641
        %v10643 = vpop.f32.mrb[0].mxu0
        %v10644 = vpop.f32.mrb[0].mxu0
        %v10645 = vadd.f32 0.0, %v10644
        %v10646 = vpop.f32.mrb[0].mxu0
        %10647 = vdwg.mxu0
        %v10648 = vadd.f32 %v9894, %v10522
        %v10649 = vadd.f32 %v9895, %v10525
        %v10650 = vadd.f32 %v9896, %v10530
        %v10651 = vadd.f32 %v9897, %v10533
        %v10652 = vadd.f32 %v9898, %v10538
        %v10653 = vadd.f32 %v9899, %v10541
        %v10654 = vadd.f32 %v9900, %v10546
        %v10655 = vadd.f32 %v9901, %v10549
        %v10656 = vadd.f32 %v9902, %v10554
        %v10657 = vadd.f32 %v9903, %v10557
        %v10658 = vadd.f32 %v9904, %v10562
        %v10659 = vadd.f32 %v9905, %v10565
        %v10660 = vadd.f32 %v9906, %v10570
        %v10661 = vadd.f32 %v9907, %v10573
        %v10662 = vadd.f32 %v9908, %v10578
        %v10663 = vadd.f32 %v9909, %v10581
        %v10664 = vadd.f32 %v9910, %v10586
        %v10665 = vadd.f32 %v9911, %v10589
        %v10666 = vadd.f32 %v9912, %v10594
        %v10667 = vadd.f32 %v9913, %v10597
        %v10668 = vadd.f32 %v9914, %v10602
        %v10669 = vadd.f32 %v9915, %v10605
        %v10670 = vadd.f32 %v9916, %v10610
        %v10671 = vadd.f32 %v9917, %v10613
        %v10672 = vadd.f32 %v9918, %v10618
        %v10673 = vadd.f32 %v9919, %v10621
        %v10674 = vadd.f32 %v9920, %v10626
        %v10675 = vadd.f32 %v9921, %v10629
        %v10676 = vadd.f32 %v9922, %v10634
        %v10677 = vadd.f32 %v9923, %v10637
        %v10678 = vadd.f32 %v9924, %v10642
        %v10679 = vadd.f32 %v9925, %v10645
        %v10680 = vld [vmem:[%s9539] sm:$0xe]
        %v10681 = vld [vmem:[%s9539 + $0xc] sm:$0xe]
        %v10682 = vld [vmem:[%s9539 + $0x18] sm:$0xe]
        %v10683 = vld [vmem:[%s9539 + $0x24] sm:$0xe]
        %v10684 = vld [vmem:[%s9539 + $0x30] sm:$0xe]
        %v10685 = vld [vmem:[%s9539 + $0x3c] sm:$0xe]
        %v10686 = vld [vmem:[%s9539 + $0x48] sm:$0xe]
        %v10687 = vld [vmem:[%s9539 + $0x54] sm:$0xe]
        %v10688 = vld [vmem:[%s9539 + $0x60] sm:$0xe]
        %v10689 = vld [vmem:[%s9539 + $0x6c] sm:$0xe]
        %v10690 = vld [vmem:[%s9539 + $0x78] sm:$0xe]
        %v10691 = vld [vmem:[%s9539 + $0x84] sm:$0xe]
        %v10692 = vld [vmem:[%s9539 + $0x90] sm:$0xe]
        %v10693 = vld [vmem:[%s9539 + $0x9c] sm:$0xe]
        %v10694 = vld [vmem:[%s9539 + $0xa8] sm:$0xe]
        %v10695 = vld [vmem:[%s9539 + $0xb4] sm:$0xe]
        %v10744 = vrot.slane %v10680, 5
        %v10745 = vrot.slane %v10744, 4
        %v10746 = vrot.slane %v9927, 5
        %v10747 = vsel %vm1946, %v10745, %v10746
        %v10748 = vrot.slane %v10746, 4
        %v10749 = vrot.slane %v9928, 5
        %v10750 = vsel %vm1946, %v10748, %v10749
        %v10751 = vrot.slane %v10681, 5
        %v10752 = vrot.slane %v10751, 4
        %v10753 = vrot.slane %v9930, 5
        %v10754 = vsel %vm1946, %v10752, %v10753
        %v10755 = vrot.slane %v10753, 4
        %v10756 = vrot.slane %v9931, 5
        %v10757 = vsel %vm1946, %v10755, %v10756
        %v10758 = vrot.slane %v10682, 5
        %v10759 = vrot.slane %v10758, 4
        %v10760 = vrot.slane %v9933, 5
        %v10761 = vsel %vm1946, %v10759, %v10760
        %v10762 = vrot.slane %v10760, 4
        %v10763 = vrot.slane %v9934, 5
        %v10764 = vsel %vm1946, %v10762, %v10763
        %v10765 = vrot.slane %v10683, 5
        %v10766 = vrot.slane %v10765, 4
        %v10767 = vrot.slane %v9936, 5
        %v10768 = vsel %vm1946, %v10766, %v10767
        %v10769 = vrot.slane %v10767, 4
        %v10770 = vrot.slane %v9937, 5
        %v10771 = vsel %vm1946, %v10769, %v10770
        %v10772 = vrot.slane %v10684, 5
        %v10773 = vrot.slane %v10772, 4
        %v10774 = vrot.slane %v9939, 5
        %v10775 = vsel %vm1946, %v10773, %v10774
        %v10776 = vrot.slane %v10774, 4
        %v10777 = vrot.slane %v9940, 5
        %v10778 = vsel %vm1946, %v10776, %v10777
        %v10779 = vrot.slane %v10685, 5
        %v10780 = vrot.slane %v10779, 4
        %v10781 = vrot.slane %v9942, 5
        %v10782 = vsel %vm1946, %v10780, %v10781
        %v10783 = vrot.slane %v10781, 4
        %v10784 = vrot.slane %v9943, 5
        %v10785 = vsel %vm1946, %v10783, %v10784
        %v10786 = vrot.slane %v10686, 5
        %v10787 = vrot.slane %v10786, 4
        %v10788 = vrot.slane %v9945, 5
        %v10789 = vsel %vm1946, %v10787, %v10788
        %v10790 = vrot.slane %v10788, 4
        %v10791 = vrot.slane %v9946, 5
        %v10792 = vsel %vm1946, %v10790, %v10791
        %v10793 = vrot.slane %v10687, 5
        %v10794 = vrot.slane %v10793, 4
        %v10795 = vrot.slane %v9948, 5
        %v10796 = vsel %vm1946, %v10794, %v10795
        %v10797 = vrot.slane %v10795, 4
        %v10798 = vrot.slane %v9949, 5
        %v10799 = vsel %vm1946, %v10797, %v10798
        %v10800 = vrot.slane %v10688, 5
        %v10801 = vrot.slane %v10800, 4
        %v10802 = vrot.slane %v9951, 5
        %v10803 = vsel %vm1946, %v10801, %v10802
        %v10804 = vrot.slane %v10802, 4
        %v10805 = vrot.slane %v9952, 5
        %v10806 = vsel %vm1946, %v10804, %v10805
        %v10807 = vrot.slane %v10689, 5
        %v10808 = vrot.slane %v10807, 4
        %v10809 = vrot.slane %v9954, 5
        %v10810 = vsel %vm1946, %v10808, %v10809
        %v10811 = vrot.slane %v10809, 4
        %v10812 = vrot.slane %v9955, 5
        %v10813 = vsel %vm1946, %v10811, %v10812
        %v10814 = vrot.slane %v10690, 5
        %v10815 = vrot.slane %v10814, 4
        %v10816 = vrot.slane %v9957, 5
        %v10817 = vsel %vm1946, %v10815, %v10816
        %v10818 = vrot.slane %v10816, 4
        %v10819 = vrot.slane %v9958, 5
        %v10820 = vsel %vm1946, %v10818, %v10819
        %v10821 = vrot.slane %v10691, 5
        %v10822 = vrot.slane %v10821, 4
        %v10823 = vrot.slane %v9960, 5
        %v10824 = vsel %vm1946, %v10822, %v10823
        %v10825 = vrot.slane %v10823, 4
        %v10826 = vrot.slane %v9961, 5
        %v10827 = vsel %vm1946, %v10825, %v10826
        %v10828 = vrot.slane %v10692, 5
        %v10829 = vrot.slane %v10828, 4
        %v10830 = vrot.slane %v9963, 5
        %v10831 = vsel %vm1946, %v10829, %v10830
        %v10832 = vrot.slane %v10830, 4
        %v10833 = vrot.slane %v9964, 5
        %v10834 = vsel %vm1946, %v10832, %v10833
        %v10835 = vrot.slane %v10693, 5
        %v10836 = vrot.slane %v10835, 4
        %v10837 = vrot.slane %v9966, 5
        %v10838 = vsel %vm1946, %v10836, %v10837
        %v10839 = vrot.slane %v10837, 4
        %v10840 = vrot.slane %v9967, 5
        %v10841 = vsel %vm1946, %v10839, %v10840
        %v10842 = vrot.slane %v10694, 5
        %v10843 = vrot.slane %v10842, 4
        %v10844 = vrot.slane %v9969, 5
        %v10845 = vsel %vm1946, %v10843, %v10844
        %v10846 = vrot.slane %v10844, 4
        %v10847 = vrot.slane %v9970, 5
        %v10848 = vsel %vm1946, %v10846, %v10847
        %v10849 = vrot.slane %v10695, 5
        %v10850 = vrot.slane %v10849, 4
        %v10851 = vrot.slane %v9972, 5
        %v10852 = vsel %vm1946, %v10850, %v10851
        %v10853 = vrot.slane %v10851, 4
        %v10854 = vrot.slane %v9973, 5
        %v10855 = vsel %vm1946, %v10853, %v10854
        %s10856 = scalar_lea.vmem %s3, 256
        %v10857 = vld [vmem:[%s10856] sm:$0xf]
        %v10858 = vld [vmem:[%s10856 + $0x4] sm:$0xf]
        %v10859 = vld [vmem:[%s10856 + $0x8] sm:$0xf]
        %v10860 = vld [vmem:[%s10856 + $0xc] sm:$0xf]
        %v10861 = vld [vmem:[%s10856 + $0x10] sm:$0xf]
        %v10862 = vld [vmem:[%s10856 + $0x14] sm:$0xf]
        %v10863 = vld [vmem:[%s10856 + $0x18] sm:$0xf]
        %v10864 = vld [vmem:[%s10856 + $0x1c] sm:$0xf]
        %v10865 = vunpack.c.l.b16 %v10747
        %v10866 = vunpack.c.l.b16 %v10750
        %v10867 = vunpack.c.l.b16 %v10754
        %v10868 = vunpack.c.l.b16 %v10757
        %v10869 = vunpack.c.l.b16 %v10761
        %v10870 = vunpack.c.l.b16 %v10764
        %v10871 = vunpack.c.l.b16 %v10768
        %v10872 = vunpack.c.l.b16 %v10771
        %v10873 = vunpack.c.l.b16 %v10775
        %v10874 = vunpack.c.l.b16 %v10778
        %v10875 = vunpack.c.l.b16 %v10782
        %v10876 = vunpack.c.l.b16 %v10785
        %v10877 = vunpack.c.l.b16 %v10789
        %v10878 = vunpack.c.l.b16 %v10792
        %v10879 = vunpack.c.l.b16 %v10796
        %v10880 = vunpack.c.l.b16 %v10799
        %v10881 = vunpack.c.l.b16 %v10803
        %v10882 = vunpack.c.l.b16 %v10806
        %v10883 = vunpack.c.l.b16 %v10810
        %v10884 = vunpack.c.l.b16 %v10813
        %v10885 = vunpack.c.l.b16 %v10817
        %v10886 = vunpack.c.l.b16 %v10820
        %v10887 = vunpack.c.l.b16 %v10824
        %v10888 = vunpack.c.l.b16 %v10827
        %v10889 = vunpack.c.l.b16 %v10831
        %v10890 = vunpack.c.l.b16 %v10834
        %v10891 = vunpack.c.l.b16 %v10838
        %v10892 = vunpack.c.l.b16 %v10841
        %v10893 = vunpack.c.l.b16 %v10845
        %v10894 = vunpack.c.l.b16 %v10848
        %v10895 = vunpack.c.l.b16 %v10852
        %v10896 = vunpack.c.l.b16 %v10855
        %v10897 = vpack.c.b16 %v10866, %v10865
        %v10898 = vpack.c.b16 %v10868, %v10867
        %v10899 = vpack.c.b16 %v10870, %v10869
        %v10900 = vpack.c.b16 %v10872, %v10871
        %v10901 = vpack.c.b16 %v10874, %v10873
        %v10902 = vpack.c.b16 %v10876, %v10875
        %v10903 = vpack.c.b16 %v10878, %v10877
        %v10904 = vpack.c.b16 %v10880, %v10879
        %v10905 = vpack.c.b16 %v10882, %v10881
        %v10906 = vpack.c.b16 %v10884, %v10883
        %v10907 = vpack.c.b16 %v10886, %v10885
        %v10908 = vpack.c.b16 %v10888, %v10887
        %v10909 = vpack.c.b16 %v10890, %v10889
        %v10910 = vpack.c.b16 %v10892, %v10891
        %v10911 = vpack.c.b16 %v10894, %v10893
        %v10912 = vpack.c.b16 %v10896, %v10895
        %v10921 = vunpack.c.l.b16 %v10857
        %v10922 = vunpack.c.l.b16 %v10858
        %v10923 = vunpack.c.l.b16 %v10859
        %v10924 = vunpack.c.l.b16 %v10860
        %v10925 = vunpack.c.l.b16 %v10861
        %v10926 = vunpack.c.l.b16 %v10862
        %v10927 = vunpack.c.l.b16 %v10863
        %v10928 = vunpack.c.l.b16 %v10864
        %v10929 = vpack.c.b16 %v10922, %v10921
        %v10930 = vpack.c.b16 %v10924, %v10923
        %v10931 = vpack.c.b16 %v10926, %v10925
        %v10932 = vpack.c.b16 %v10928, %v10927
        %v10938 = vsel %vm1373, %v10897, 0
        %v10941 = vsel %vm1373, %v10898, 0
        %v10944 = vsel %vm1373, %v10899, 0
        %v10947 = vsel %vm1373, %v10900, 0
        %v10950 = vsel %vm1373, %v10901, 0
        %v10953 = vsel %vm1373, %v10902, 0
        %v10956 = vsel %vm1373, %v10903, 0
        %v10959 = vsel %vm1373, %v10904, 0
        %v10962 = vsel %vm1373, %v10905, 0
        %v10965 = vsel %vm1373, %v10906, 0
        %v10968 = vsel %vm1373, %v10907, 0
        %v10971 = vsel %vm1373, %v10908, 0
        %v10974 = vsel %vm1373, %v10909, 0
        %v10977 = vsel %vm1373, %v10910, 0
        %v10980 = vsel %vm1373, %v10911, 0
        %v10983 = vsel %vm1373, %v10912, 0
        %10985 = vmatprep.subr.bf16.mxu0 0
        %10986 = vmatpush1.bf16.msra.mxu0 %v10929
        %10987 = vmatprep.subr.bf16.mxu0 0
        %10988 = vmatpush1.bf16.msra.mxu0 %v10930
        %10989 = vmatprep.subr.bf16.mxu0 0
        %10990 = vmatpush1.bf16.msra.mxu0 %v10931
        %10991 = vmatprep.subr.bf16.mxu0 0
        %10992 = vmatpush1.bf16.msra.mxu0 %v10932
        %10993 = vmatprep.subr.bf16.mxu0 0
        %10994 = vmatpush1.bf16.msra.mxu0 0
        %10995 = vmatprep.subr.bf16.mxu0 0
        %10996 = vmatpush1.bf16.msra.mxu0 0
        %10997 = vmatprep.subr.bf16.mxu0 0
        %10998 = vmatpush1.bf16.msra.mxu0 0
        %10999 = vmatprep.subr.bf16.mxu0 0
        %11000 = vmatpush1.bf16.msra.mxu0 0
        %11001 = vmatprep.subr.bf16.mxu0 0
        %11002 = vmatpush1.bf16.msra.mxu0 0
        %11003 = vmatprep.subr.bf16.mxu0 0
        %11004 = vmatpush1.bf16.msra.mxu0 0
        %11005 = vmatprep.subr.bf16.mxu0 0
        %11006 = vmatpush1.bf16.msra.mxu0 0
        %11007 = vmatprep.subr.bf16.mxu0 0
        %11008 = vmatpush1.bf16.msra.mxu0 0
        %11009 = vmatprep.subr.bf16.mxu0 0
        %11010 = vmatpush1.bf16.msra.mxu0 0
        %11011 = vmatprep.subr.bf16.mxu0 0
        %11012 = vmatpush1.bf16.msra.mxu0 0
        %11013 = vmatprep.subr.bf16.mxu0 0
        %11014 = vmatpush1.bf16.msra.mxu0 0
        %11015 = vmatprep.subr.bf16.mxu0 0
        %11016 = vmatpush1.bf16.msra.mxu0 0
        %11017 = vmatprep.mubr.bf16.mxu0 0
        %11018 = vmatmul.mubr.bf16.gmra.mrb[0].mxu0 %v10938
        %v11019 = vpop.f32.mrb[0].mxu0
        %v11020 = vadd.f32 0.0, %v11019
        %v11021 = vpop.f32.mrb[0].mxu0
        %v11022 = vpop.f32.mrb[0].mxu0
        %v11023 = vadd.f32 0.0, %v11022
        %v11024 = vpop.f32.mrb[0].mxu0
        %11025 = vmatprep.mubr.bf16.mxu0 0
        %11026 = vmatmul.mubr.bf16.gmra.mrb[0].mxu0 %v10941
        %v11027 = vpop.f32.mrb[0].mxu0
        %v11028 = vadd.f32 0.0, %v11027
        %v11029 = vpop.f32.mrb[0].mxu0
        %v11030 = vpop.f32.mrb[0].mxu0
        %v11031 = vadd.f32 0.0, %v11030
        %v11032 = vpop.f32.mrb[0].mxu0
        %11033 = vmatprep.mubr.bf16.mxu0 0
        %11034 = vmatmul.mubr.bf16.gmra.mrb[0].mxu0 %v10944
        %v11035 = vpop.f32.mrb[0].mxu0
        %v11036 = vadd.f32 0.0, %v11035
        %v11037 = vpop.f32.mrb[0].mxu0
        %v11038 = vpop.f32.mrb[0].mxu0
        %v11039 = vadd.f32 0.0, %v11038
        %v11040 = vpop.f32.mrb[0].mxu0
        %11041 = vmatprep.mubr.bf16.mxu0 0
        %11042 = vmatmul.mubr.bf16.gmra.mrb[0].mxu0 %v10947
        %v11043 = vpop.f32.mrb[0].mxu0
        %v11044 = vadd.f32 0.0, %v11043
        %v11045 = vpop.f32.mrb[0].mxu0
        %v11046 = vpop.f32.mrb[0].mxu0
        %v11047 = vadd.f32 0.0, %v11046
        %v11048 = vpop.f32.mrb[0].mxu0
        %11049 = vmatprep.mubr.bf16.mxu0 0
        %11050 = vmatmul.mubr.bf16.gmra.mrb[0].mxu0 %v10950
        %v11051 = vpop.f32.mrb[0].mxu0
        %v11052 = vadd.f32 0.0, %v11051
        %v11053 = vpop.f32.mrb[0].mxu0
        %v11054 = vpop.f32.mrb[0].mxu0
        %v11055 = vadd.f32 0.0, %v11054
        %v11056 = vpop.f32.mrb[0].mxu0
        %11057 = vmatprep.mubr.bf16.mxu0 0
        %11058 = vmatmul.mubr.bf16.gmra.mrb[0].mxu0 %v10953
        %v11059 = vpop.f32.mrb[0].mxu0
        %v11060 = vadd.f32 0.0, %v11059
        %v11061 = vpop.f32.mrb[0].mxu0
        %v11062 = vpop.f32.mrb[0].mxu0
        %v11063 = vadd.f32 0.0, %v11062
        %v11064 = vpop.f32.mrb[0].mxu0
        %11065 = vmatprep.mubr.bf16.mxu0 0
        %11066 = vmatmul.mubr.bf16.gmra.mrb[0].mxu0 %v10956
        %v11067 = vpop.f32.mrb[0].mxu0
        %v11068 = vadd.f32 0.0, %v11067
        %v11069 = vpop.f32.mrb[0].mxu0
        %v11070 = vpop.f32.mrb[0].mxu0
        %v11071 = vadd.f32 0.0, %v11070
        %v11072 = vpop.f32.mrb[0].mxu0
        %11073 = vmatprep.mubr.bf16.mxu0 0
        %11074 = vmatmul.mubr.bf16.gmra.mrb[0].mxu0 %v10959
        %v11075 = vpop.f32.mrb[0].mxu0
        %v11076 = vadd.f32 0.0, %v11075
        %v11077 = vpop.f32.mrb[0].mxu0
        %v11078 = vpop.f32.mrb[0].mxu0
        %v11079 = vadd.f32 0.0, %v11078
        %v11080 = vpop.f32.mrb[0].mxu0
        %11081 = vmatprep.mubr.bf16.mxu0 0
        %11082 = vmatmul.mubr.bf16.gmra.mrb[0].mxu0 %v10962
        %v11083 = vpop.f32.mrb[0].mxu0
        %v11084 = vadd.f32 0.0, %v11083
        %v11085 = vpop.f32.mrb[0].mxu0
        %v11086 = vpop.f32.mrb[0].mxu0
        %v11087 = vadd.f32 0.0, %v11086
        %v11088 = vpop.f32.mrb[0].mxu0
        %11089 = vmatprep.mubr.bf16.mxu0 0
        %11090 = vmatmul.mubr.bf16.gmra.mrb[0].mxu0 %v10965
        %v11091 = vpop.f32.mrb[0].mxu0
        %v11092 = vadd.f32 0.0, %v11091
        %v11093 = vpop.f32.mrb[0].mxu0
        %v11094 = vpop.f32.mrb[0].mxu0
        %v11095 = vadd.f32 0.0, %v11094
        %v11096 = vpop.f32.mrb[0].mxu0
        %11097 = vmatprep.mubr.bf16.mxu0 0
        %11098 = vmatmul.mubr.bf16.gmra.mrb[0].mxu0 %v10968
        %v11099 = vpop.f32.mrb[0].mxu0
        %v11100 = vadd.f32 0.0, %v11099
        %v11101 = vpop.f32.mrb[0].mxu0
        %v11102 = vpop.f32.mrb[0].mxu0
        %v11103 = vadd.f32 0.0, %v11102
        %v11104 = vpop.f32.mrb[0].mxu0
        %11105 = vmatprep.mubr.bf16.mxu0 0
        %11106 = vmatmul.mubr.bf16.gmra.mrb[0].mxu0 %v10971
        %v11107 = vpop.f32.mrb[0].mxu0
        %v11108 = vadd.f32 0.0, %v11107
        %v11109 = vpop.f32.mrb[0].mxu0
        %v11110 = vpop.f32.mrb[0].mxu0
        %v11111 = vadd.f32 0.0, %v11110
        %v11112 = vpop.f32.mrb[0].mxu0
        %11113 = vmatprep.mubr.bf16.mxu0 0
        %11114 = vmatmul.mubr.bf16.gmra.mrb[0].mxu0 %v10974
        %v11115 = vpop.f32.mrb[0].mxu0
        %v11116 = vadd.f32 0.0, %v11115
        %v11117 = vpop.f32.mrb[0].mxu0
        %v11118 = vpop.f32.mrb[0].mxu0
        %v11119 = vadd.f32 0.0, %v11118
        %v11120 = vpop.f32.mrb[0].mxu0
        %11121 = vmatprep.mubr.bf16.mxu0 0
        %11122 = vmatmul.mubr.bf16.gmra.mrb[0].mxu0 %v10977
        %v11123 = vpop.f32.mrb[0].mxu0
        %v11124 = vadd.f32 0.0, %v11123
        %v11125 = vpop.f32.mrb[0].mxu0
        %v11126 = vpop.f32.mrb[0].mxu0
        %v11127 = vadd.f32 0.0, %v11126
        %v11128 = vpop.f32.mrb[0].mxu0
        %11129 = vmatprep.mubr.bf16.mxu0 0
        %11130 = vmatmul.mubr.bf16.gmra.mrb[0].mxu0 %v10980
        %v11131 = vpop.f32.mrb[0].mxu0
        %v11132 = vadd.f32 0.0, %v11131
        %v11133 = vpop.f32.mrb[0].mxu0
        %v11134 = vpop.f32.mrb[0].mxu0
        %v11135 = vadd.f32 0.0, %v11134
        %v11136 = vpop.f32.mrb[0].mxu0
        %11137 = vmatprep.mubr.bf16.mxu0 0
        %11138 = vmatmul.mubr.bf16.gmra.mrb[0].mxu0 %v10983
        %v11139 = vpop.f32.mrb[0].mxu0
        %v11140 = vadd.f32 0.0, %v11139
        %v11141 = vpop.f32.mrb[0].mxu0
        %v11142 = vpop.f32.mrb[0].mxu0
        %v11143 = vadd.f32 0.0, %v11142
        %v11144 = vpop.f32.mrb[0].mxu0
        %11145 = vdwg.mxu0
        %v11146 = vadd.f32 %v10648, %v11020
        %v11147 = vadd.f32 %v10649, %v11023
        %v11148 = vadd.f32 %v10650, %v11028
        %v11149 = vadd.f32 %v10651, %v11031
        %v11150 = vadd.f32 %v10652, %v11036
        %v11151 = vadd.f32 %v10653, %v11039
        %v11152 = vadd.f32 %v10654, %v11044
        %v11153 = vadd.f32 %v10655, %v11047
        %v11154 = vadd.f32 %v10656, %v11052
        %v11155 = vadd.f32 %v10657, %v11055
        %v11156 = vadd.f32 %v10658, %v11060
        %v11157 = vadd.f32 %v10659, %v11063
        %v11158 = vadd.f32 %v10660, %v11068
        %v11159 = vadd.f32 %v10661, %v11071
        %v11160 = vadd.f32 %v10662, %v11076
        %v11161 = vadd.f32 %v10663, %v11079
        %v11162 = vadd.f32 %v10664, %v11084
        %v11163 = vadd.f32 %v10665, %v11087
        %v11164 = vadd.f32 %v10666, %v11092
        %v11165 = vadd.f32 %v10667, %v11095
        %v11166 = vadd.f32 %v10668, %v11100
        %v11167 = vadd.f32 %v10669, %v11103
        %v11168 = vadd.f32 %v10670, %v11108
        %v11169 = vadd.f32 %v10671, %v11111
        %v11170 = vadd.f32 %v10672, %v11116
        %v11171 = vadd.f32 %v10673, %v11119
        %v11172 = vadd.f32 %v10674, %v11124
        %v11173 = vadd.f32 %v10675, %v11127
        %v11174 = vadd.f32 %v10676, %v11132
        %v11175 = vadd.f32 %v10677, %v11135
        %v11176 = vadd.f32 %v10678, %v11140
        %v11177 = vadd.f32 %v10679, %v11143
        %v11178 = vld [vmem:[%s222] sm:$0xff]
        %v11179 = vld [vmem:[%s222 + $0x8] sm:$0xff]
        %v11180 = vld [vmem:[%s222 + $0x10] sm:$0xff]
        %v11181 = vld [vmem:[%s222 + $0x18] sm:$0xff]
        %v11182 = vld [vmem:[%s222 + $0x20] sm:$0xff]
        %v11183 = vld [vmem:[%s222 + $0x28] sm:$0xff]
        %v11184 = vld [vmem:[%s222 + $0x30] sm:$0xff]
        %v11185 = vld [vmem:[%s222 + $0x38] sm:$0xff]
        %v11186 = vld [vmem:[%s222 + $0x40] sm:$0xff]
        %v11187 = vld [vmem:[%s222 + $0x48] sm:$0xff]
        %v11188 = vld [vmem:[%s222 + $0x50] sm:$0xff]
        %v11189 = vld [vmem:[%s222 + $0x58] sm:$0xff]
        %v11190 = vld [vmem:[%s222 + $0x60] sm:$0xff]
        %v11191 = vld [vmem:[%s222 + $0x68] sm:$0xff]
        %v11192 = vld [vmem:[%s222 + $0x70] sm:$0xff]
        %v11193 = vld [vmem:[%s222 + $0x78] sm:$0xff]
        %v11194 = vld [vmem:[%s222 + $0x80] sm:$0xff]
        %v11195 = vld [vmem:[%s222 + $0x88] sm:$0xff]
        %v11196 = vld [vmem:[%s222 + $0x90] sm:$0xff]
        %v11197 = vld [vmem:[%s222 + $0x98] sm:$0xff]
        %v11198 = vld [vmem:[%s222 + $0xa0] sm:$0xff]
        %v11199 = vld [vmem:[%s222 + $0xa8] sm:$0xff]
        %v11200 = vld [vmem:[%s222 + $0xb0] sm:$0xff]
        %v11201 = vld [vmem:[%s222 + $0xb8] sm:$0xff]
        %v11202 = vld [vmem:[%s222 + $0xc0] sm:$0xff]
        %v11203 = vld [vmem:[%s222 + $0xc8] sm:$0xff]
        %v11204 = vld [vmem:[%s222 + $0xd0] sm:$0xff]
        %v11205 = vld [vmem:[%s222 + $0xd8] sm:$0xff]
        %v11206 = vld [vmem:[%s222 + $0xe0] sm:$0xff]
        %v11207 = vld [vmem:[%s222 + $0xe8] sm:$0xff]
        %v11208 = vld [vmem:[%s222 + $0xf0] sm:$0xff]
        %v11209 = vld [vmem:[%s222 + $0xf8] sm:$0xff]
        %v11210 = vld [vmem:[%s4] sm:$0x1]
        %v11212 = vlaneseq
        %v11213 = vshrl.u32 %v11212, 7
        %v11214 = vsub.s32 0, %v11213
        %v11215 = vrot.slane %v11210, %v11214
        %v11217 = vadd.f32 %v11146, %v11215
        %v11218 = vadd.f32 %v11147, %v11215
        %v11219 = vadd.f32 %v11148, %v11215
        %v11220 = vadd.f32 %v11149, %v11215
        %v11221 = vadd.f32 %v11150, %v11215
        %v11222 = vadd.f32 %v11151, %v11215
        %v11223 = vadd.f32 %v11152, %v11215
        %v11224 = vadd.f32 %v11153, %v11215
        %v11225 = vadd.f32 %v11154, %v11215
        %v11226 = vadd.f32 %v11155, %v11215
        %v11227 = vadd.f32 %v11156, %v11215
        %v11228 = vadd.f32 %v11157, %v11215
        %v11229 = vadd.f32 %v11158, %v11215
        %v11230 = vadd.f32 %v11159, %v11215
        %v11231 = vadd.f32 %v11160, %v11215
        %v11232 = vadd.f32 %v11161, %v11215
        %v11233 = vadd.f32 %v11162, %v11215
        %v11234 = vadd.f32 %v11163, %v11215
        %v11235 = vadd.f32 %v11164, %v11215
        %v11236 = vadd.f32 %v11165, %v11215
        %v11237 = vadd.f32 %v11166, %v11215
        %v11238 = vadd.f32 %v11167, %v11215
        %v11239 = vadd.f32 %v11168, %v11215
        %v11240 = vadd.f32 %v11169, %v11215
        %v11241 = vadd.f32 %v11170, %v11215
        %v11242 = vadd.f32 %v11171, %v11215
        %v11243 = vadd.f32 %v11172, %v11215
        %v11244 = vadd.f32 %v11173, %v11215
        %v11245 = vadd.f32 %v11174, %v11215
        %v11246 = vadd.f32 %v11175, %v11215
        %v11247 = vadd.f32 %v11176, %v11215
        %v11248 = vadd.f32 %v11177, %v11215
        %v11249 = vadd.f32 %v11217, %v11178
        %v11250 = vadd.f32 %v11218, %v11179
        %v11251 = vadd.f32 %v11219, %v11180
        %v11252 = vadd.f32 %v11220, %v11181
        %v11253 = vadd.f32 %v11221, %v11182
        %v11254 = vadd.f32 %v11222, %v11183
        %v11255 = vadd.f32 %v11223, %v11184
        %v11256 = vadd.f32 %v11224, %v11185
        %v11257 = vadd.f32 %v11225, %v11186
        %v11258 = vadd.f32 %v11226, %v11187
        %v11259 = vadd.f32 %v11227, %v11188
        %v11260 = vadd.f32 %v11228, %v11189
        %v11261 = vadd.f32 %v11229, %v11190
        %v11262 = vadd.f32 %v11230, %v11191
        %v11263 = vadd.f32 %v11231, %v11192
        %v11264 = vadd.f32 %v11232, %v11193
        %v11265 = vadd.f32 %v11233, %v11194
        %v11266 = vadd.f32 %v11234, %v11195
        %v11267 = vadd.f32 %v11235, %v11196
        %v11268 = vadd.f32 %v11236, %v11197
        %v11269 = vadd.f32 %v11237, %v11198
        %v11270 = vadd.f32 %v11238, %v11199
        %v11271 = vadd.f32 %v11239, %v11200
        %v11272 = vadd.f32 %v11240, %v11201
        %v11273 = vadd.f32 %v11241, %v11202
        %v11274 = vadd.f32 %v11242, %v11203
        %v11275 = vadd.f32 %v11243, %v11204
        %v11276 = vadd.f32 %v11244, %v11205
        %v11277 = vadd.f32 %v11245, %v11206
        %v11278 = vadd.f32 %v11246, %v11207
        %v11279 = vadd.f32 %v11247, %v11208
        %v11280 = vadd.f32 %v11248, %v11209
        %vm11281 = vcmp.ge.f32.partialorder %v11249, 0.0
        %vm11282 = vcmp.ge.f32.partialorder %v11250, 0.0
        %vm11283 = vcmp.ge.f32.partialorder %v11251, 0.0
        %vm11284 = vcmp.ge.f32.partialorder %v11252, 0.0
        %vm11285 = vcmp.ge.f32.partialorder %v11253, 0.0
        %vm11286 = vcmp.ge.f32.partialorder %v11254, 0.0
        %vm11287 = vcmp.ge.f32.partialorder %v11255, 0.0
        %vm11288 = vcmp.ge.f32.partialorder %v11256, 0.0
        %vm11289 = vcmp.ge.f32.partialorder %v11257, 0.0
        %vm11290 = vcmp.ge.f32.partialorder %v11258, 0.0
        %vm11291 = vcmp.ge.f32.partialorder %v11259, 0.0
        %vm11292 = vcmp.ge.f32.partialorder %v11260, 0.0
        %vm11293 = vcmp.ge.f32.partialorder %v11261, 0.0
        %vm11294 = vcmp.ge.f32.partialorder %v11262, 0.0
        %vm11295 = vcmp.ge.f32.partialorder %v11263, 0.0
        %vm11296 = vcmp.ge.f32.partialorder %v11264, 0.0
        %vm11297 = vcmp.ge.f32.partialorder %v11265, 0.0
        %vm11298 = vcmp.ge.f32.partialorder %v11266, 0.0
        %vm11299 = vcmp.ge.f32.partialorder %v11267, 0.0
        %vm11300 = vcmp.ge.f32.partialorder %v11268, 0.0
        %vm11301 = vcmp.ge.f32.partialorder %v11269, 0.0
        %vm11302 = vcmp.ge.f32.partialorder %v11270, 0.0
        %vm11303 = vcmp.ge.f32.partialorder %v11271, 0.0
        %vm11304 = vcmp.ge.f32.partialorder %v11272, 0.0
        %vm11305 = vcmp.ge.f32.partialorder %v11273, 0.0
        %vm11306 = vcmp.ge.f32.partialorder %v11274, 0.0
        %vm11307 = vcmp.ge.f32.partialorder %v11275, 0.0
        %vm11308 = vcmp.ge.f32.partialorder %v11276, 0.0
        %vm11309 = vcmp.ge.f32.partialorder %v11277, 0.0
        %vm11310 = vcmp.ge.f32.partialorder %v11278, 0.0
        %vm11311 = vcmp.ge.f32.partialorder %v11279, 0.0
        %vm11312 = vcmp.ge.f32.partialorder %v11280, 0.0
        %v11313 = vmul.f32 %v11249, 0.01
        %v11314 = vmul.f32 %v11250, 0.01
        %v11315 = vmul.f32 %v11251, 0.01
        %v11316 = vmul.f32 %v11252, 0.01
        %v11317 = vmul.f32 %v11253, 0.01
        %v11318 = vmul.f32 %v11254, 0.01
        %v11319 = vmul.f32 %v11255, 0.01
        %v11320 = vmul.f32 %v11256, 0.01
        %v11321 = vmul.f32 %v11257, 0.01
        %v11322 = vmul.f32 %v11258, 0.01
        %v11323 = vmul.f32 %v11259, 0.01
        %v11324 = vmul.f32 %v11260, 0.01
        %v11325 = vmul.f32 %v11261, 0.01
        %v11326 = vmul.f32 %v11262, 0.01
        %v11327 = vmul.f32 %v11263, 0.01
        %v11328 = vmul.f32 %v11264, 0.01
        %v11329 = vmul.f32 %v11265, 0.01
        %v11330 = vmul.f32 %v11266, 0.01
        %v11331 = vmul.f32 %v11267, 0.01
        %v11332 = vmul.f32 %v11268, 0.01
        %v11333 = vmul.f32 %v11269, 0.01
        %v11334 = vmul.f32 %v11270, 0.01
        %v11335 = vmul.f32 %v11271, 0.01
        %v11336 = vmul.f32 %v11272, 0.01
        %v11337 = vmul.f32 %v11273, 0.01
        %v11338 = vmul.f32 %v11274, 0.01
        %v11339 = vmul.f32 %v11275, 0.01
        %v11340 = vmul.f32 %v11276, 0.01
        %v11341 = vmul.f32 %v11277, 0.01
        %v11342 = vmul.f32 %v11278, 0.01
        %v11343 = vmul.f32 %v11279, 0.01
        %v11344 = vmul.f32 %v11280, 0.01
        %v11345 = vsel %vm11281, %v11249, %v11313
        %v11346 = vsel %vm11282, %v11250, %v11314
        %v11347 = vsel %vm11283, %v11251, %v11315
        %v11348 = vsel %vm11284, %v11252, %v11316
        %v11349 = vsel %vm11285, %v11253, %v11317
        %v11350 = vsel %vm11286, %v11254, %v11318
        %v11351 = vsel %vm11287, %v11255, %v11319
        %v11352 = vsel %vm11288, %v11256, %v11320
        %v11353 = vsel %vm11289, %v11257, %v11321
        %v11354 = vsel %vm11290, %v11258, %v11322
        %v11355 = vsel %vm11291, %v11259, %v11323
        %v11356 = vsel %vm11292, %v11260, %v11324
        %v11357 = vsel %vm11293, %v11261, %v11325
        %v11358 = vsel %vm11294, %v11262, %v11326
        %v11359 = vsel %vm11295, %v11263, %v11327
        %v11360 = vsel %vm11296, %v11264, %v11328
        %v11361 = vsel %vm11297, %v11265, %v11329
        %v11362 = vsel %vm11298, %v11266, %v11330
        %v11363 = vsel %vm11299, %v11267, %v11331
        %v11364 = vsel %vm11300, %v11268, %v11332
        %v11365 = vsel %vm11301, %v11269, %v11333
        %v11366 = vsel %vm11302, %v11270, %v11334
        %v11367 = vsel %vm11303, %v11271, %v11335
        %v11368 = vsel %vm11304, %v11272, %v11336
        %v11369 = vsel %vm11305, %v11273, %v11337
        %v11370 = vsel %vm11306, %v11274, %v11338
        %v11371 = vsel %vm11307, %v11275, %v11339
        %v11372 = vsel %vm11308, %v11276, %v11340
        %v11373 = vsel %vm11309, %v11277, %v11341
        %v11374 = vsel %vm11310, %v11278, %v11342
        %v11375 = vsel %vm11311, %v11279, %v11343
        %v11376 = vsel %vm11312, %v11280, %v11344
        %11377 = vst.msk [vmem:[%s217] sm:$0xff] %vm1373, %v11345
        %11378 = vst.msk [vmem:[%s217 + $0x8] sm:$0xff] %vm1373, %v11346
        %11379 = vst.msk [vmem:[%s217 + $0x10] sm:$0xff] %vm1373, %v11347
        %11380 = vst.msk [vmem:[%s217 + $0x18] sm:$0xff] %vm1373, %v11348
        %11381 = vst.msk [vmem:[%s217 + $0x20] sm:$0xff] %vm1373, %v11349
        %11382 = vst.msk [vmem:[%s217 + $0x28] sm:$0xff] %vm1373, %v11350
        %11383 = vst.msk [vmem:[%s217 + $0x30] sm:$0xff] %vm1373, %v11351
        %11384 = vst.msk [vmem:[%s217 + $0x38] sm:$0xff] %vm1373, %v11352
        %11385 = vst.msk [vmem:[%s217 + $0x40] sm:$0xff] %vm1373, %v11353
        %11386 = vst.msk [vmem:[%s217 + $0x48] sm:$0xff] %vm1373, %v11354
        %11387 = vst.msk [vmem:[%s217 + $0x50] sm:$0xff] %vm1373, %v11355
        %11388 = vst.msk [vmem:[%s217 + $0x58] sm:$0xff] %vm1373, %v11356
        %11389 = vst.msk [vmem:[%s217 + $0x60] sm:$0xff] %vm1373, %v11357
        %11390 = vst.msk [vmem:[%s217 + $0x68] sm:$0xff] %vm1373, %v11358
        %11391 = vst.msk [vmem:[%s217 + $0x70] sm:$0xff] %vm1373, %v11359
        %11392 = vst.msk [vmem:[%s217 + $0x78] sm:$0xff] %vm1373, %v11360
        %11393 = vst.msk [vmem:[%s217 + $0x80] sm:$0xff] %vm1373, %v11361
        %11394 = vst.msk [vmem:[%s217 + $0x88] sm:$0xff] %vm1373, %v11362
        %11395 = vst.msk [vmem:[%s217 + $0x90] sm:$0xff] %vm1373, %v11363
        %11396 = vst.msk [vmem:[%s217 + $0x98] sm:$0xff] %vm1373, %v11364
        %11397 = vst.msk [vmem:[%s217 + $0xa0] sm:$0xff] %vm1373, %v11365
        %11398 = vst.msk [vmem:[%s217 + $0xa8] sm:$0xff] %vm1373, %v11366
        %11399 = vst.msk [vmem:[%s217 + $0xb0] sm:$0xff] %vm1373, %v11367
        %11400 = vst.msk [vmem:[%s217 + $0xb8] sm:$0xff] %vm1373, %v11368
        %11401 = vst.msk [vmem:[%s217 + $0xc0] sm:$0xff] %vm1373, %v11369
        %11402 = vst.msk [vmem:[%s217 + $0xc8] sm:$0xff] %vm1373, %v11370
        %11403 = vst.msk [vmem:[%s217 + $0xd0] sm:$0xff] %vm1373, %v11371
        %11404 = vst.msk [vmem:[%s217 + $0xd8] sm:$0xff] %vm1373, %v11372
        %11405 = vst.msk [vmem:[%s217 + $0xe0] sm:$0xff] %vm1373, %v11373
        %11406 = vst.msk [vmem:[%s217 + $0xe8] sm:$0xff] %vm1373, %v11374
        %11407 = vst.msk [vmem:[%s217 + $0xf0] sm:$0xff] %vm1373, %v11375
        %11408 = vst.msk [vmem:[%s217 + $0xf8] sm:$0xff] %vm1373, %v11376
        %s11409 = sand.u32 %s137, 1
        %s11410 = scalar_lea.sflag [#allocation5], %s11409
        %s11411 = sand.u32 %s137, 1
        %s11412 = smul.addr %s11411, 256
        %s11413 = scalar_lea.vmem [#allocation4], %s11412
        // Predicated region
        $region41: #{resblock_forward.1} parent=39 // pred_check
          %p11414 = pneg %p147
        $region42: #{resblock_forward.1} parent=39 // pred_check_branch
          %11416 = sbr.rel (%p11414) target = $region44
        $region43: #{resblock_forward.1} parent=39 // pred_region
          %s11418 = ssub.s32 4096, 4096
          %11419 = vsyncadd %s11410, %s11418
          %s11420 = smul.addr %s19, 32
          %s11421 = smul.addr %s11420, 128
          %s11422 = scalar_lea.hbm %s5, %s11421
          %s11423 = sshll.u32 %s11413, 4
          %s11424 = int_to_ptr.vmem [resolvable:$true] %s11423
          %11429 = dma.vmem_to_hbm [thread:$0]  %s11424, 4096, %s11422, %s11410, 128, 128, 8
        $region44: #{resblock_forward.1} parent=39 // pred_fallthru
          _
      $region40: #{resblock_forward.1} parent=5 // pred_fallthru
        _
      %p11430 = scmp.le.s32.totalorder 2, %s14
      // Predicated region
      $region45: #{resblock_forward.1} parent=5 // pred_check
        %p11431 = pneg %p11430
      $region46: #{resblock_forward.1} parent=5 // pred_check_branch
        %11433 = sbr.rel (%p11431) target = $region48
      $region47: #{resblock_forward.1} parent=5 // pred_region
        %s11434 = ssub.s32 %s14, 2
        // Predicated region
        $region49: #{resblock_forward.1} parent=47 // pred_check
          %p11435 = pneg %p153
        $region50: #{resblock_forward.1} parent=47 // pred_check_branch
          %11437 = sbr.rel (%p11435) target = $region52
        $region51: #{resblock_forward.1} parent=47 // pred_region
          %s11438 = sand.u32 %s138, 1
          %s11439 = scalar_lea.sflag [#allocation5], %s11438
          %s11440 = sand.u32 %s138, 1
          %s11441 = smul.addr %s11440, 256
          %s11442 = scalar_lea.vmem [#allocation4], %s11441
          %11443 = dma.done %s11439, 4096
        $region52: #{resblock_forward.1} parent=47 // pred_fallthru
          _
      $region48: #{resblock_forward.1} parent=5 // pred_fallthru
        _
    $region6: #{resblock_forward.1} parent=1 // loop_footer
      %s18 = sadd.s32 1, %s14
    $region7: #{resblock_forward.1} parent=1 // loop_footer_branch
      %13 = sbr.rel target = $region3
    $region8: #{resblock_forward.1} parent=1 // loop_exit
      _
    %11444 = vsyncpa [#allocation5], 1
    %s11445 = scalar_lea.sflag [#allocation5], 1
    %11446 = vsyncpa %s11445, 1

</llo_original>
